<compile_context>
chip_gen: v6e
topology: v6e:2x2x1
jax: 0.10.0
libtpu: 0.0.40
codegen_flags: <defaults>
</compile_context>

<pallas_src>
import jax
import jax.numpy as jnp
from jax.experimental import pallas as pl
from jax.experimental.pallas import tpu as pltpu


def _leaky_relu(h, slope=0.1):
    return jnp.where(h > 0, h, slope * h)


def vae_forward_kernel(
    x_ref, eps_ref,
    # encoder (784->128->64->12) + fused head (12->4 : [mu | log_var])
    ew1, eb1, ew2, eb2, ew3, eb3, whd, bhd,
    # decoder (2->12->64->128->784)
    dw1, db1, dw2, db2, dw3, db3, dw4, db4,
    # outputs
    stats_out, dec_out,
):
    bf16 = jnp.bfloat16
    f32 = jnp.float32

    x = x_ref[...]                                   # (TB, 784) bf16

    # ---- encoder: 784 -> 128 -> 64 -> 12, LeakyReLU(0.1) in f32 ----
    h = jnp.dot(x, ew1[...], preferred_element_type=f32) + eb1[...]
    h = _leaky_relu(h)
    h = jnp.dot(h.astype(bf16), ew2[...], preferred_element_type=f32) + eb2[...]
    h = _leaky_relu(h)
    h = jnp.dot(h.astype(bf16), ew3[...], preferred_element_type=f32) + eb3[...]
    h = _leaky_relu(h)

    # ---- fused encoder tail + heads: (TB, 4) = [mu | log_var] ----
    stats4 = jnp.dot(h.astype(bf16), whd[...], preferred_element_type=f32) + bhd[...]
    mu = stats4[:, 0:2]
    log_var = stats4[:, 2:4]

    # ---- reparameterize: z = mu + eps * exp(log_var / 2) ----
    z = mu + eps_ref[...] * jnp.exp(log_var * 0.5)

    # ---- decoder layer 1 (2 -> 12) as VPU 2-term FMA (skip an MXU round trip) ----
    w1 = dw1[...].astype(f32)                        # (2, 12)
    d = z[:, 0:1] * w1[0:1, :] + z[:, 1:2] * w1[1:2, :] + db1[...]
    d = _leaky_relu(d)

    # ---- decoder: 12 -> 64 -> 128 -> 784, LeakyReLU then Sigmoid ----
    d = jnp.dot(d.astype(bf16), dw2[...], preferred_element_type=f32) + db2[...]
    d = _leaky_relu(d)
    d = jnp.dot(d.astype(bf16), dw3[...], preferred_element_type=f32) + db3[...]
    d = _leaky_relu(d)
    d = jnp.dot(d.astype(bf16), dw4[...], preferred_element_type=f32) + db4[...]
    d = jax.nn.sigmoid(d)

    # single combined small-output store: [z | mu | log_var | 2 pad cols]
    pad = jnp.zeros((z.shape[0], 2), f32)
    stats_out[...] = jnp.concatenate([z, mu, log_var, pad], axis=1)
    dec_out[...] = d.astype(dec_out.dtype)


def _round_up(v, m):
    return ((v + m - 1) // m) * m


def make_params(key, n_input=28 * 28):
    """Deterministic synthetic parameters (PyTorch Linear shapes, pre-transposed
    to (in, out); biases as (1, out))."""
    dims = [(n_input, 128), (128, 64), (64, 12), (12, 4),   # encoder
            (4, 2), (4, 2),                                 # mu, log_var heads
            (2, 12), (12, 64), (64, 128), (128, n_input)]   # decoder
    params = []
    for (fin, fout) in dims:
        key, kw, kb = jax.random.split(key, 3)
        bound = 1.0 / (fin ** 0.5)
        w = jax.random.uniform(kw, (fin, fout), jnp.float32, -bound, bound)
        b = jax.random.uniform(kb, (1, fout), jnp.float32, -bound, bound)
        params.append((w, b))
    return params


def prepare_params(params):
    """Fuse mu/log_var heads into the last encoder Linear (exact: no activation
    between them) and cast weight matrices to bf16 (biases stay f32)."""
    (ew1, eb1), (ew2, eb2), (ew3, eb3), (ew4, eb4), (wmu, bmu), (wlv, blv), \
        (dw1, db1), (dw2, db2), (dw3, db3), (dw4, db4) = params
    whead = jnp.concatenate([wmu, wlv], axis=1)     # (4, 4)
    bhead = jnp.concatenate([bmu, blv], axis=1)     # (1, 4)
    whd = ew4 @ whead                               # (12, 4)
    bhd = eb4 @ whead + bhead                       # (1, 4)

    bf16 = jnp.bfloat16
    ws = [ew1, ew2, ew3, whd, dw1, dw2, dw3, dw4]
    bs = [eb1, eb2, eb3, bhd, db1, db2, db3, db4]
    flat = []
    for w, b in zip(ws, bs):
        flat.append(w.astype(bf16))
        flat.append(b.astype(jnp.float32))
    return tuple(flat)


def vae_forward(x, eps, kparams, *, tb=256):
    B, n_input = x.shape

    tb = min(tb, _round_up(B, 8))
    tb = max(8, _round_up(tb, 8))
    Bp = _round_up(B, tb)

    x = x.astype(jnp.bfloat16)
    eps = eps.astype(jnp.float32)
    if Bp != B:
        x = jnp.pad(x, ((0, Bp - B), (0, 0)))
        eps = jnp.pad(eps, ((0, Bp - B), (0, 0)))

    grid = (pl.cdiv(Bp, tb),)

    x_spec = pl.BlockSpec((tb, n_input), lambda i: (i, 0))
    eps_spec = pl.BlockSpec((tb, 2), lambda i: (i, 0))
    # Full-shape blocks + constant index_map -> fetched once, resident in VMEM
    # for every batch tile (no per-step weight re-DMA).
    param_specs = [pl.BlockSpec(p.shape, lambda i: (0, 0)) for p in kparams]

    out_shapes = (
        jax.ShapeDtypeStruct((Bp, 8), jnp.float32),        # [z | mu | log_var | pad]
        jax.ShapeDtypeStruct((Bp, n_input), jnp.float32),  # decoded
    )
    out_specs = (
        pl.BlockSpec((tb, 8), lambda i: (i, 0)),
        pl.BlockSpec((tb, n_input), lambda i: (i, 0)),
    )

    stats, dec = pl.pallas_call(
        vae_forward_kernel,
        grid=grid,
        in_specs=[x_spec, eps_spec] + param_specs,
        out_specs=out_specs,
        out_shape=out_shapes,
        compiler_params=pltpu.CompilerParams(
            # batch tiles are independent -> megacore-shard on v7x; no-op on v5e/v6e
            dimension_semantics=("parallel",),
        ),
    )(x, eps, *kparams)

    stats = stats[:B]
    return stats[:, 0:2], stats[:, 2:4], stats[:, 4:6], dec[:B]


def ref_forward(x, eps, kparams):
    """Pure-JAX reference using the same prepared (fused, bf16) parameters."""
    bf16, f32 = jnp.bfloat16, jnp.float32
    (ew1, eb1, ew2, eb2, ew3, eb3, whd, bhd,
     dw1, db1, dw2, db2, dw3, db3, dw4, db4) = kparams
    lrelu = lambda h: jnp.where(h > 0, h, 0.1 * h)
    mm = lambda a, w, b: jnp.dot(a.astype(bf16), w, preferred_element_type=f32) + b

    h = lrelu(mm(x.astype(bf16), ew1, eb1))
    h = lrelu(mm(h, ew2, eb2))
    h = lrelu(mm(h, ew3, eb3))
    stats4 = mm(h, whd, bhd)
    mu, lv = stats4[:, 0:2], stats4[:, 2:4]
    z = mu + eps * jnp.exp(lv * 0.5)

    w1 = dw1.astype(f32)
    d = lrelu(z[:, 0:1] * w1[0:1, :] + z[:, 1:2] * w1[1:2, :] + db1)
    d = lrelu(mm(d, dw2, db2))
    d = lrelu(mm(d, dw3, db3))
    d = jax.nn.sigmoid(mm(d, dw4, db4))
    return z, mu, lv, d


if __name__ == "__main__":
    n_input = 28 * 28
    B = 512  # two batch tiles of 256 -> exercises the grid / resident weights

    key = jax.random.PRNGKey(0)
    kx, keps, kp = jax.random.split(key, 3)

    x = jax.random.uniform(kx, (B, n_input), jnp.float32)
    # eps ~ N(0,1): the torch.randn inside reparameterize, passed in explicitly
    # for determinism (could alternatively use pltpu.prng_* in-kernel).
    eps = jax.random.normal(keps, (B, 2), jnp.float32)

    params = make_params(kp, n_input=n_input)
    kparams = prepare_params(params)

    z, mu, log_var, decoded = vae_forward(x, eps, kparams, tb=256)
    jax.block_until_ready((z, mu, log_var, decoded))

    rz, rmu, rlv, rdec = ref_forward(x, eps, kparams)
    assert jnp.allclose(z, rz, atol=5e-3, rtol=5e-3), "z mismatch"
    assert jnp.allclose(mu, rmu, atol=5e-3, rtol=5e-3), "mu mismatch"
    assert jnp.allclose(log_var, rlv, atol=5e-3, rtol=5e-3), "log_var mismatch"
    assert jnp.allclose(decoded, rdec, atol=5e-3, rtol=5e-3), "decoded mismatch"

    print("KERNEL_OK")
</pallas_src>

<mosaic_0001>
module attributes {stable_mosaic.version = 11 : i64} {
  func.func @vae_forward_kernel(%arg0: i32, %arg1: memref<256x784xbf16, #tpu.memory_space<vmem>>, %arg2: memref<256x2xf32, #tpu.memory_space<vmem>>, %arg3: memref<784x128xbf16, #tpu.memory_space<vmem>>, %arg4: memref<1x128xf32, #tpu.memory_space<vmem>>, %arg5: memref<128x64xbf16, #tpu.memory_space<vmem>>, %arg6: memref<1x64xf32, #tpu.memory_space<vmem>>, %arg7: memref<64x12xbf16, #tpu.memory_space<vmem>>, %arg8: memref<1x12xf32, #tpu.memory_space<vmem>>, %arg9: memref<12x4xbf16, #tpu.memory_space<vmem>>, %arg10: memref<1x4xf32, #tpu.memory_space<vmem>>, %arg11: memref<2x12xbf16, #tpu.memory_space<vmem>>, %arg12: memref<1x12xf32, #tpu.memory_space<vmem>>, %arg13: memref<12x64xbf16, #tpu.memory_space<vmem>>, %arg14: memref<1x64xf32, #tpu.memory_space<vmem>>, %arg15: memref<64x128xbf16, #tpu.memory_space<vmem>>, %arg16: memref<1x128xf32, #tpu.memory_space<vmem>>, %arg17: memref<128x784xbf16, #tpu.memory_space<vmem>>, %arg18: memref<1x784xf32, #tpu.memory_space<vmem>>, %arg19: memref<256x8xf32, #tpu.memory_space<vmem>>, %arg20: memref<256x784xf32, #tpu.memory_space<vmem>>) attributes {dimension_semantics = [#tpu.dimension_semantics<parallel>], iteration_bounds = array<i64: 2>, scalar_prefetch = 0 : i64, scratch_operands = 0 : i64, tpu.core_type = #tpu.core_type<tc>, window_params = [{transform_indices = @transform_0, window_bounds = array<i64: 256, 784>}, {transform_indices = @transform_1, window_bounds = array<i64: 256, 2>}, {pipeline_mode = #tpu.pipeline_mode<synchronous>, transform_indices = @transform_2, window_bounds = array<i64: 784, 128>}, {pipeline_mode = #tpu.pipeline_mode<synchronous>, transform_indices = @transform_3, window_bounds = array<i64: 1, 128>}, {pipeline_mode = #tpu.pipeline_mode<synchronous>, transform_indices = @transform_4, window_bounds = array<i64: 128, 64>}, {pipeline_mode = #tpu.pipeline_mode<synchronous>, transform_indices = @transform_5, window_bounds = array<i64: 1, 64>}, {pipeline_mode = #tpu.pipeline_mode<synchronous>, transform_indices = @transform_6, window_bounds = array<i64: 64, 12>}, {pipeline_mode = #tpu.pipeline_mode<synchronous>, transform_indices = @transform_7, window_bounds = array<i64: 1, 12>}, {pipeline_mode = #tpu.pipeline_mode<synchronous>, transform_indices = @transform_8, window_bounds = array<i64: 12, 4>}, {pipeline_mode = #tpu.pipeline_mode<synchronous>, transform_indices = @transform_9, window_bounds = array<i64: 1, 4>}, {pipeline_mode = #tpu.pipeline_mode<synchronous>, transform_indices = @transform_10, window_bounds = array<i64: 2, 12>}, {pipeline_mode = #tpu.pipeline_mode<synchronous>, transform_indices = @transform_11, window_bounds = array<i64: 1, 12>}, {pipeline_mode = #tpu.pipeline_mode<synchronous>, transform_indices = @transform_12, window_bounds = array<i64: 12, 64>}, {pipeline_mode = #tpu.pipeline_mode<synchronous>, transform_indices = @transform_13, window_bounds = array<i64: 1, 64>}, {pipeline_mode = #tpu.pipeline_mode<synchronous>, transform_indices = @transform_14, window_bounds = array<i64: 64, 128>}, {pipeline_mode = #tpu.pipeline_mode<synchronous>, transform_indices = @transform_15, window_bounds = array<i64: 1, 128>}, {pipeline_mode = #tpu.pipeline_mode<synchronous>, transform_indices = @transform_16, window_bounds = array<i64: 128, 784>}, {pipeline_mode = #tpu.pipeline_mode<synchronous>, transform_indices = @transform_17, window_bounds = array<i64: 1, 784>}, {transform_indices = @transform_18, window_bounds = array<i64: 256, 8>}, {transform_indices = @transform_19, window_bounds = array<i64: 256, 784>}]} {
    %c0 = arith.constant 0 : index
    %c0_0 = arith.constant 0 : index
    %0 = vector.load %arg1[%c0, %c0_0] : memref<256x784xbf16, #tpu.memory_space<vmem>>, vector<256x784xbf16>
    %c0_1 = arith.constant 0 : index
    %c0_2 = arith.constant 0 : index
    %1 = vector.load %arg3[%c0_1, %c0_2] : memref<784x128xbf16, #tpu.memory_space<vmem>>, vector<784x128xbf16>
    %cst = arith.constant dense<0.000000e+00> : vector<256x128xf32>
    %2 = tpu.matmul %0, %1, %cst {dimension_numbers = #tpu.dot_dimension_numbers<[1], [0], [0], [1], [0, 0, 1, 1], [], []>} : vector<256x784xbf16>, vector<784x128xbf16>, vector<256x128xf32> -> vector<256x128xf32>
    %c0_3 = arith.constant 0 : index
    %c0_4 = arith.constant 0 : index
    %3 = vector.load %arg4[%c0_3, %c0_4] : memref<1x128xf32, #tpu.memory_space<vmem>>, vector<1x128xf32>
    %4 = vector.broadcast %3 : vector<1x128xf32> to vector<256x128xf32>
    %5 = arith.addf %2, %4 : vector<256x128xf32>
    %cst_5 = arith.constant 0.000000e+00 : f32
    %6 = vector.broadcast %cst_5 : f32 to vector<256x128xf32>
    %7 = arith.cmpf ogt, %5, %6 : vector<256x128xf32>
    %cst_6 = arith.constant 1.000000e-01 : f32
    %8 = vector.broadcast %cst_6 : f32 to vector<256x128xf32>
    %9 = arith.mulf %8, %5 : vector<256x128xf32>
    %10 = arith.select %7, %5, %9 : vector<256x128xi1>, vector<256x128xf32>
    %11 = arith.truncf %10 : vector<256x128xf32> to vector<256x128xbf16>
    %c0_7 = arith.constant 0 : index
    %c0_8 = arith.constant 0 : index
    %12 = vector.load %arg5[%c0_7, %c0_8] : memref<128x64xbf16, #tpu.memory_space<vmem>>, vector<128x64xbf16>
    %cst_9 = arith.constant dense<0.000000e+00> : vector<256x64xf32>
    %13 = tpu.matmul %11, %12, %cst_9 {dimension_numbers = #tpu.dot_dimension_numbers<[1], [0], [0], [1], [0, 0, 1, 1], [], []>} : vector<256x128xbf16>, vector<128x64xbf16>, vector<256x64xf32> -> vector<256x64xf32>
    %c0_10 = arith.constant 0 : index
    %c0_11 = arith.constant 0 : index
    %14 = vector.load %arg6[%c0_10, %c0_11] : memref<1x64xf32, #tpu.memory_space<vmem>>, vector<1x64xf32>
    %15 = vector.broadcast %14 : vector<1x64xf32> to vector<256x64xf32>
    %16 = arith.addf %13, %15 : vector<256x64xf32>
    %cst_12 = arith.constant 0.000000e+00 : f32
    %17 = vector.broadcast %cst_12 : f32 to vector<256x64xf32>
    %18 = arith.cmpf ogt, %16, %17 : vector<256x64xf32>
    %cst_13 = arith.constant 1.000000e-01 : f32
    %19 = vector.broadcast %cst_13 : f32 to vector<256x64xf32>
    %20 = arith.mulf %19, %16 : vector<256x64xf32>
    %21 = arith.select %18, %16, %20 : vector<256x64xi1>, vector<256x64xf32>
    %22 = arith.truncf %21 : vector<256x64xf32> to vector<256x64xbf16>
    %c0_14 = arith.constant 0 : index
    %c0_15 = arith.constant 0 : index
    %23 = vector.load %arg7[%c0_14, %c0_15] : memref<64x12xbf16, #tpu.memory_space<vmem>>, vector<64x12xbf16>
    %cst_16 = arith.constant dense<0.000000e+00> : vector<256x12xf32>
    %24 = tpu.matmul %22, %23, %cst_16 {dimension_numbers = #tpu.dot_dimension_numbers<[1], [0], [0], [1], [0, 0, 1, 1], [], []>} : vector<256x64xbf16>, vector<64x12xbf16>, vector<256x12xf32> -> vector<256x12xf32>
    %c0_17 = arith.constant 0 : index
    %c0_18 = arith.constant 0 : index
    %25 = vector.load %arg8[%c0_17, %c0_18] : memref<1x12xf32, #tpu.memory_space<vmem>>, vector<1x12xf32>
    %26 = vector.broadcast %25 : vector<1x12xf32> to vector<256x12xf32>
    %27 = arith.addf %24, %26 : vector<256x12xf32>
    %cst_19 = arith.constant 0.000000e+00 : f32
    %28 = vector.broadcast %cst_19 : f32 to vector<256x12xf32>
    %29 = arith.cmpf ogt, %27, %28 : vector<256x12xf32>
    %cst_20 = arith.constant 1.000000e-01 : f32
    %30 = vector.broadcast %cst_20 : f32 to vector<256x12xf32>
    %31 = arith.mulf %30, %27 : vector<256x12xf32>
    %32 = arith.select %29, %27, %31 : vector<256x12xi1>, vector<256x12xf32>
    %33 = arith.truncf %32 : vector<256x12xf32> to vector<256x12xbf16>
    %c0_21 = arith.constant 0 : index
    %c0_22 = arith.constant 0 : index
    %34 = vector.load %arg9[%c0_21, %c0_22] : memref<12x4xbf16, #tpu.memory_space<vmem>>, vector<12x4xbf16>
    %cst_23 = arith.constant dense<0.000000e+00> : vector<256x4xf32>
    %35 = tpu.matmul %33, %34, %cst_23 {dimension_numbers = #tpu.dot_dimension_numbers<[1], [0], [0], [1], [0, 0, 1, 1], [], []>} : vector<256x12xbf16>, vector<12x4xbf16>, vector<256x4xf32> -> vector<256x4xf32>
    %c0_24 = arith.constant 0 : index
    %c0_25 = arith.constant 0 : index
    %36 = vector.load %arg10[%c0_24, %c0_25] : memref<1x4xf32, #tpu.memory_space<vmem>>, vector<1x4xf32>
    %37 = vector.broadcast %36 : vector<1x4xf32> to vector<256x4xf32>
    %38 = arith.addf %35, %37 : vector<256x4xf32>
    %39 = vector.extract_strided_slice %38 {offsets = [0, 0], sizes = [256, 2], strides = [1, 1]} : vector<256x4xf32> to vector<256x2xf32>
    %40 = vector.extract_strided_slice %38 {offsets = [0, 2], sizes = [256, 2], strides = [1, 1]} : vector<256x4xf32> to vector<256x2xf32>
    %c0_26 = arith.constant 0 : index
    %c0_27 = arith.constant 0 : index
    %41 = vector.load %arg2[%c0_26, %c0_27] : memref<256x2xf32, #tpu.memory_space<vmem>>, vector<256x2xf32>
    %cst_28 = arith.constant 5.000000e-01 : f32
    %42 = vector.broadcast %cst_28 : f32 to vector<256x2xf32>
    %43 = arith.mulf %40, %42 : vector<256x2xf32>
    %44 = math.exp %43 : vector<256x2xf32>
    %45 = arith.mulf %41, %44 : vector<256x2xf32>
    %46 = arith.addf %39, %45 : vector<256x2xf32>
    %c0_29 = arith.constant 0 : index
    %c0_30 = arith.constant 0 : index
    %47 = vector.load %arg11[%c0_29, %c0_30] : memref<2x12xbf16, #tpu.memory_space<vmem>>, vector<2x12xbf16>
    %48 = arith.extf %47 : vector<2x12xbf16> to vector<2x12xf32>
    %49 = vector.extract_strided_slice %46 {offsets = [0, 0], sizes = [256, 1], strides = [1, 1]} : vector<256x2xf32> to vector<256x1xf32>
    %50 = vector.extract_strided_slice %48 {offsets = [0, 0], sizes = [1, 12], strides = [1, 1]} : vector<2x12xf32> to vector<1x12xf32>
    %51 = vector.broadcast %49 : vector<256x1xf32> to vector<256x12xf32>
    %52 = vector.broadcast %50 : vector<1x12xf32> to vector<256x12xf32>
    %53 = arith.mulf %51, %52 : vector<256x12xf32>
    %54 = vector.extract_strided_slice %46 {offsets = [0, 1], sizes = [256, 1], strides = [1, 1]} : vector<256x2xf32> to vector<256x1xf32>
    %55 = vector.extract_strided_slice %48 {offsets = [1, 0], sizes = [1, 12], strides = [1, 1]} : vector<2x12xf32> to vector<1x12xf32>
    %56 = vector.broadcast %54 : vector<256x1xf32> to vector<256x12xf32>
    %57 = vector.broadcast %55 : vector<1x12xf32> to vector<256x12xf32>
    %58 = arith.mulf %56, %57 : vector<256x12xf32>
    %59 = arith.addf %53, %58 : vector<256x12xf32>
    %c0_31 = arith.constant 0 : index
    %c0_32 = arith.constant 0 : index
    %60 = vector.load %arg12[%c0_31, %c0_32] : memref<1x12xf32, #tpu.memory_space<vmem>>, vector<1x12xf32>
    %61 = vector.broadcast %60 : vector<1x12xf32> to vector<256x12xf32>
    %62 = arith.addf %59, %61 : vector<256x12xf32>
    %cst_33 = arith.constant 0.000000e+00 : f32
    %63 = vector.broadcast %cst_33 : f32 to vector<256x12xf32>
    %64 = arith.cmpf ogt, %62, %63 : vector<256x12xf32>
    %cst_34 = arith.constant 1.000000e-01 : f32
    %65 = vector.broadcast %cst_34 : f32 to vector<256x12xf32>
    %66 = arith.mulf %65, %62 : vector<256x12xf32>
    %67 = arith.select %64, %62, %66 : vector<256x12xi1>, vector<256x12xf32>
    %68 = arith.truncf %67 : vector<256x12xf32> to vector<256x12xbf16>
    %c0_35 = arith.constant 0 : index
    %c0_36 = arith.constant 0 : index
    %69 = vector.load %arg13[%c0_35, %c0_36] : memref<12x64xbf16, #tpu.memory_space<vmem>>, vector<12x64xbf16>
    %cst_37 = arith.constant dense<0.000000e+00> : vector<256x64xf32>
    %70 = tpu.matmul %68, %69, %cst_37 {dimension_numbers = #tpu.dot_dimension_numbers<[1], [0], [0], [1], [0, 0, 1, 1], [], []>} : vector<256x12xbf16>, vector<12x64xbf16>, vector<256x64xf32> -> vector<256x64xf32>
    %c0_38 = arith.constant 0 : index
    %c0_39 = arith.constant 0 : index
    %71 = vector.load %arg14[%c0_38, %c0_39] : memref<1x64xf32, #tpu.memory_space<vmem>>, vector<1x64xf32>
    %72 = vector.broadcast %71 : vector<1x64xf32> to vector<256x64xf32>
    %73 = arith.addf %70, %72 : vector<256x64xf32>
    %cst_40 = arith.constant 0.000000e+00 : f32
    %74 = vector.broadcast %cst_40 : f32 to vector<256x64xf32>
    %75 = arith.cmpf ogt, %73, %74 : vector<256x64xf32>
    %cst_41 = arith.constant 1.000000e-01 : f32
    %76 = vector.broadcast %cst_41 : f32 to vector<256x64xf32>
    %77 = arith.mulf %76, %73 : vector<256x64xf32>
    %78 = arith.select %75, %73, %77 : vector<256x64xi1>, vector<256x64xf32>
    %79 = arith.truncf %78 : vector<256x64xf32> to vector<256x64xbf16>
    %c0_42 = arith.constant 0 : index
    %c0_43 = arith.constant 0 : index
    %80 = vector.load %arg15[%c0_42, %c0_43] : memref<64x128xbf16, #tpu.memory_space<vmem>>, vector<64x128xbf16>
    %cst_44 = arith.constant dense<0.000000e+00> : vector<256x128xf32>
    %81 = tpu.matmul %79, %80, %cst_44 {dimension_numbers = #tpu.dot_dimension_numbers<[1], [0], [0], [1], [0, 0, 1, 1], [], []>} : vector<256x64xbf16>, vector<64x128xbf16>, vector<256x128xf32> -> vector<256x128xf32>
    %c0_45 = arith.constant 0 : index
    %c0_46 = arith.constant 0 : index
    %82 = vector.load %arg16[%c0_45, %c0_46] : memref<1x128xf32, #tpu.memory_space<vmem>>, vector<1x128xf32>
    %83 = vector.broadcast %82 : vector<1x128xf32> to vector<256x128xf32>
    %84 = arith.addf %81, %83 : vector<256x128xf32>
    %cst_47 = arith.constant 0.000000e+00 : f32
    %85 = vector.broadcast %cst_47 : f32 to vector<256x128xf32>
    %86 = arith.cmpf ogt, %84, %85 : vector<256x128xf32>
    %cst_48 = arith.constant 1.000000e-01 : f32
    %87 = vector.broadcast %cst_48 : f32 to vector<256x128xf32>
    %88 = arith.mulf %87, %84 : vector<256x128xf32>
    %89 = arith.select %86, %84, %88 : vector<256x128xi1>, vector<256x128xf32>
    %90 = arith.truncf %89 : vector<256x128xf32> to vector<256x128xbf16>
    %c0_49 = arith.constant 0 : index
    %c0_50 = arith.constant 0 : index
    %91 = vector.load %arg17[%c0_49, %c0_50] : memref<128x784xbf16, #tpu.memory_space<vmem>>, vector<128x784xbf16>
    %cst_51 = arith.constant dense<0.000000e+00> : vector<256x784xf32>
    %92 = tpu.matmul %90, %91, %cst_51 {dimension_numbers = #tpu.dot_dimension_numbers<[1], [0], [0], [1], [0, 0, 1, 1], [], []>} : vector<256x128xbf16>, vector<128x784xbf16>, vector<256x784xf32> -> vector<256x784xf32>
    %c0_52 = arith.constant 0 : index
    %c0_53 = arith.constant 0 : index
    %93 = vector.load %arg18[%c0_52, %c0_53] : memref<1x784xf32, #tpu.memory_space<vmem>>, vector<1x784xf32>
    %94 = vector.broadcast %93 : vector<1x784xf32> to vector<256x784xf32>
    %95 = arith.addf %92, %94 : vector<256x784xf32>
    %96 = arith.negf %95 : vector<256x784xf32>
    %97 = math.exp %96 : vector<256x784xf32>
    %cst_54 = arith.constant 1.000000e+00 : f32
    %98 = vector.broadcast %cst_54 : f32 to vector<256x784xf32>
    %99 = arith.addf %98, %97 : vector<256x784xf32>
    %100 = arith.divf %98, %99 : vector<256x784xf32>
    %cst_55 = arith.constant 0.000000e+00 : f32
    %101 = vector.broadcast %cst_55 : f32 to vector<256x2xf32>
    %102 = tpu.concatenate %46, %39, %40, %101 in 1 : vector<256x2xf32>, vector<256x2xf32>, vector<256x2xf32>, vector<256x2xf32> -> vector<256x8xf32>
    %c0_56 = arith.constant 0 : index
    %c0_57 = arith.constant 0 : index
    %103 = vector.load %arg19[%c0_56, %c0_57] : memref<256x8xf32, #tpu.memory_space<vmem>>, vector<256x8xf32>
    tpu.vector_store %arg19[%c0_56, %c0_57], %102 {strides = array<i32>} : memref<256x8xf32, #tpu.memory_space<vmem>>, vector<256x8xf32>,
    %c0_58 = arith.constant 0 : index
    %c0_59 = arith.constant 0 : index
    %104 = vector.load %arg20[%c0_58, %c0_59] : memref<256x784xf32, #tpu.memory_space<vmem>>, vector<256x784xf32>
    tpu.vector_store %arg20[%c0_58, %c0_59], %100 {strides = array<i32>} : memref<256x784xf32, #tpu.memory_space<vmem>>, vector<256x784xf32>,
    return
  }
  func.func @transform_0(%arg0: i32) -> (i32, i32) {
    %c0_i32 = arith.constant 0 : i32
    %c0_i32_0 = arith.constant 0 : i32
    return %arg0, %c0_i32 : i32, i32
  }
  func.func @transform_1(%arg0: i32) -> (i32, i32) {
    %c0_i32 = arith.constant 0 : i32
    %c0_i32_0 = arith.constant 0 : i32
    return %arg0, %c0_i32 : i32, i32
  }
  func.func @transform_2(%arg0: i32) -> (i32, i32) {
    %c0_i32 = arith.constant 0 : i32
    %c0_i32_0 = arith.constant 0 : i32
    %c0_i32_1 = arith.constant 0 : i32
    return %c0_i32, %c0_i32_0 : i32, i32
  }
  func.func @transform_3(%arg0: i32) -> (i32, i32) {
    %c0_i32 = arith.constant 0 : i32
    %c0_i32_0 = arith.constant 0 : i32
    %c0_i32_1 = arith.constant 0 : i32
    return %c0_i32, %c0_i32_0 : i32, i32
  }
  func.func @transform_4(%arg0: i32) -> (i32, i32) {
    %c0_i32 = arith.constant 0 : i32
    %c0_i32_0 = arith.constant 0 : i32
    %c0_i32_1 = arith.constant 0 : i32
    return %c0_i32, %c0_i32_0 : i32, i32
  }
  func.func @transform_5(%arg0: i32) -> (i32, i32) {
    %c0_i32 = arith.constant 0 : i32
    %c0_i32_0 = arith.constant 0 : i32
    %c0_i32_1 = arith.constant 0 : i32
    return %c0_i32, %c0_i32_0 : i32, i32
  }
  func.func @transform_6(%arg0: i32) -> (i32, i32) {
    %c0_i32 = arith.constant 0 : i32
    %c0_i32_0 = arith.constant 0 : i32
    %c0_i32_1 = arith.constant 0 : i32
    return %c0_i32, %c0_i32_0 : i32, i32
  }
  func.func @transform_7(%arg0: i32) -> (i32, i32) {
    %c0_i32 = arith.constant 0 : i32
    %c0_i32_0 = arith.constant 0 : i32
    %c0_i32_1 = arith.constant 0 : i32
    return %c0_i32, %c0_i32_0 : i32, i32
  }
  func.func @transform_8(%arg0: i32) -> (i32, i32) {
    %c0_i32 = arith.constant 0 : i32
    %c0_i32_0 = arith.constant 0 : i32
    %c0_i32_1 = arith.constant 0 : i32
    return %c0_i32, %c0_i32_0 : i32, i32
  }
  func.func @transform_9(%arg0: i32) -> (i32, i32) {
    %c0_i32 = arith.constant 0 : i32
    %c0_i32_0 = arith.constant 0 : i32
    %c0_i32_1 = arith.constant 0 : i32
    return %c0_i32, %c0_i32_0 : i32, i32
  }
  func.func @transform_10(%arg0: i32) -> (i32, i32) {
    %c0_i32 = arith.constant 0 : i32
    %c0_i32_0 = arith.constant 0 : i32
    %c0_i32_1 = arith.constant 0 : i32
    return %c0_i32, %c0_i32_0 : i32, i32
  }
  func.func @transform_11(%arg0: i32) -> (i32, i32) {
    %c0_i32 = arith.constant 0 : i32
    %c0_i32_0 = arith.constant 0 : i32
    %c0_i32_1 = arith.constant 0 : i32
    return %c0_i32, %c0_i32_0 : i32, i32
  }
  func.func @transform_12(%arg0: i32) -> (i32, i32) {
    %c0_i32 = arith.constant 0 : i32
    %c0_i32_0 = arith.constant 0 : i32
    %c0_i32_1 = arith.constant 0 : i32
    return %c0_i32, %c0_i32_0 : i32, i32
  }
  func.func @transform_13(%arg0: i32) -> (i32, i32) {
    %c0_i32 = arith.constant 0 : i32
    %c0_i32_0 = arith.constant 0 : i32
    %c0_i32_1 = arith.constant 0 : i32
    return %c0_i32, %c0_i32_0 : i32, i32
  }
  func.func @transform_14(%arg0: i32) -> (i32, i32) {
    %c0_i32 = arith.constant 0 : i32
    %c0_i32_0 = arith.constant 0 : i32
    %c0_i32_1 = arith.constant 0 : i32
    return %c0_i32, %c0_i32_0 : i32, i32
  }
  func.func @transform_15(%arg0: i32) -> (i32, i32) {
    %c0_i32 = arith.constant 0 : i32
    %c0_i32_0 = arith.constant 0 : i32
    %c0_i32_1 = arith.constant 0 : i32
    return %c0_i32, %c0_i32_0 : i32, i32
  }
  func.func @transform_16(%arg0: i32) -> (i32, i32) {
    %c0_i32 = arith.constant 0 : i32
    %c0_i32_0 = arith.constant 0 : i32
    %c0_i32_1 = arith.constant 0 : i32
    return %c0_i32, %c0_i32_0 : i32, i32
  }
  func.func @transform_17(%arg0: i32) -> (i32, i32) {
    %c0_i32 = arith.constant 0 : i32
    %c0_i32_0 = arith.constant 0 : i32
    %c0_i32_1 = arith.constant 0 : i32
    return %c0_i32, %c0_i32_0 : i32, i32
  }
  func.func @transform_18(%arg0: i32) -> (i32, i32) {
    %c0_i32 = arith.constant 0 : i32
    %c0_i32_0 = arith.constant 0 : i32
    return %arg0, %c0_i32 : i32, i32
  }
  func.func @transform_19(%arg0: i32) -> (i32, i32) {
    %c0_i32 = arith.constant 0 : i32
    %c0_i32_0 = arith.constant 0 : i32
    return %arg0, %c0_i32 : i32, i32
  }
}

</mosaic_0001>

<llo_original>
// kernel: tpu_custom_call.1
$region0: #{tpu_custom_call.1}
  #allocation0 [shape = 'u32[]', space=smem, size = 0x4, offset = 0x4, fixed_abs, tag = 'smem constant byte address 0x4 - core index']
  #allocation1 [shape = 'u32[144,128]{1,0:T(1,128)}', space=vmem, size = 0x12000, scoped, tag = 'internal scratch']
  %s0 = inlined_call_operand.vmem [shape: bf16[512,784], index: 0, kind: input, shape index: {}]
  %s1 = inlined_call_operand.vmem [shape: f32[512,2], index: 1, kind: input, shape index: {}]
  %s2 = inlined_call_operand.vmem [shape: bf16[784,128], index: 2, kind: input, shape index: {}]
  %s3 = inlined_call_operand.vmem [shape: f32[1,128], index: 3, kind: input, shape index: {}]
  %s4 = inlined_call_operand.vmem [shape: bf16[128,64], index: 4, kind: input, shape index: {}]
  %s5 = inlined_call_operand.vmem [shape: f32[1,64], index: 5, kind: input, shape index: {}]
  %s6 = inlined_call_operand.vmem [shape: bf16[64,12], index: 6, kind: input, shape index: {}]
  %s7 = inlined_call_operand.vmem [shape: f32[1,12], index: 7, kind: input, shape index: {}]
  %s8 = inlined_call_operand.vmem [shape: bf16[12,4], index: 8, kind: input, shape index: {}]
  %s9 = inlined_call_operand.vmem [shape: f32[1,4], index: 9, kind: input, shape index: {}]
  %s10 = inlined_call_operand.vmem [shape: bf16[2,12], index: 10, kind: input, shape index: {}]
  %s11 = inlined_call_operand.vmem [shape: f32[1,12], index: 11, kind: input, shape index: {}]
  %s12 = inlined_call_operand.vmem [shape: bf16[12,64], index: 12, kind: input, shape index: {}]
  %s13 = inlined_call_operand.vmem [shape: f32[1,64], index: 13, kind: input, shape index: {}]
  %s14 = inlined_call_operand.vmem [shape: bf16[64,128], index: 14, kind: input, shape index: {}]
  %s15 = inlined_call_operand.vmem [shape: f32[1,128], index: 15, kind: input, shape index: {}]
  %s16 = inlined_call_operand.vmem [shape: bf16[128,784], index: 16, kind: input, shape index: {}]
  %s17 = inlined_call_operand.vmem [shape: f32[1,784], index: 17, kind: input, shape index: {}]
  %s18 = inlined_call_operand.vmem [shape: f32[512,8], index: 18, kind: output, shape index: {0}]
  %s19 = inlined_call_operand.vmem [shape: f32[512,784], index: 19, kind: output, shape index: {1}]
  %20 = xla_tuple %s18, %s19
  %s21 = sld [smem:[#allocation0]]
  $region113: #{tpu_custom_call.1} parent=0
    _
  %s23 = ssub.s32 1, %s21
  %s24 = scalar_select 0, %s23, %s21
  loop: start=0, step=1, limit=4
  $region2: #{tpu_custom_call.1} parent=0 // loop_pre_header
    _
  $region3: #{tpu_custom_call.1} parent=0 // loop_header
    %s26 = sphi 0, %s30
    %p27 = scmp.ge.s32.totalorder %s26, 4
    %s36 = sphi 0, %s38
    %s39 = sphi 0, %s36
    %s40 = sphi 0, %s39
    %s56 = sphi 0, %s40
    %s62 = sphi 0, %s64
    %s65 = sphi 0, %s62
    %s66 = sphi 0, %s65
    %s82 = sphi 0, %s66
    %s86 = sphi 0, %s86
    %s88 = sphi 0, %s86
    %s89 = sphi 0, %s88
    %s103 = sphi 0, %s89
    %s107 = sphi 0, %s107
    %s109 = sphi 0, %s107
    %s110 = sphi 0, %s109
    %s124 = sphi 0, %s110
    %s128 = sphi 0, %s128
    %s130 = sphi 0, %s128
    %s131 = sphi 0, %s130
    %s145 = sphi 0, %s131
    %s149 = sphi 0, %s149
    %s151 = sphi 0, %s149
    %s152 = sphi 0, %s151
    %s166 = sphi 0, %s152
    %s170 = sphi 0, %s170
    %s172 = sphi 0, %s170
    %s173 = sphi 0, %s172
    %s187 = sphi 0, %s173
    %s191 = sphi 0, %s191
    %s193 = sphi 0, %s191
    %s194 = sphi 0, %s193
    %s208 = sphi 0, %s194
    %s212 = sphi 0, %s212
    %s214 = sphi 0, %s212
    %s215 = sphi 0, %s214
    %s229 = sphi 0, %s215
    %s233 = sphi 0, %s233
    %s235 = sphi 0, %s233
    %s236 = sphi 0, %s235
    %s250 = sphi 0, %s236
    %s254 = sphi 0, %s254
    %s256 = sphi 0, %s254
    %s257 = sphi 0, %s256
    %s271 = sphi 0, %s257
    %s275 = sphi 0, %s275
    %s277 = sphi 0, %s275
    %s278 = sphi 0, %s277
    %s292 = sphi 0, %s278
    %s296 = sphi 0, %s296
    %s298 = sphi 0, %s296
    %s299 = sphi 0, %s298
    %s313 = sphi 0, %s299
    %s317 = sphi 0, %s317
    %s319 = sphi 0, %s317
    %s320 = sphi 0, %s319
    %s334 = sphi 0, %s320
    %s338 = sphi 0, %s338
    %s340 = sphi 0, %s338
    %s341 = sphi 0, %s340
    %s355 = sphi 0, %s341
    %s359 = sphi 0, %s359
    %s361 = sphi 0, %s359
    %s362 = sphi 0, %s361
    %s376 = sphi 0, %s362
    %s380 = sphi 0, %s380
    %s382 = sphi 0, %s380
    %s383 = sphi 0, %s382
    %s397 = sphi 0, %s383
    %s401 = sphi 0, %s401
    %s403 = sphi 0, %s401
    %s404 = sphi 0, %s403
    %s418 = sphi 0, %s404
    %s424 = sphi 0, %s426
    %s427 = sphi 0, %s424
    %s428 = sphi 0, %s427
    %s444 = sphi 0, %s428
    %s450 = sphi 0, %s452
    %s453 = sphi 0, %s450
    %s454 = sphi 0, %s453
    %s470 = sphi 0, %s454
  $region4: #{tpu_custom_call.1} parent=0 // loop_header_branch
    %29 = sbr.rel (%p27) target = $region8
  $region5: #{tpu_custom_call.1} parent=0 // loop_body
    %s31 = ssub.s32 %s26, 1
    %s32 = ssub.s32 %s26, 2
    %s33 = sadd.s32 %s26, 1
    %s34 = ssub.s32 %s26, %s33
    %p35 = scmp.eq.s32.totalorder %s34, 0
    %s37 = sadd.s32 %s36, 1
    %s38 = scalar_select %p35, %s36, %s37
    %p41 = pneg %p35
    %p42 = scmp.eq.s32.totalorder %s26, 1
    %p43 = por %p41, %p42
    %p44 = scmp.ne.s32.totalorder %s36, %s39
    %p45 = scmp.eq.s32.totalorder %s26, 0
    %p46 = por %p44, %p45
    %p47 = scmp.ne.s32.totalorder %s36, %s39
    %p48 = scmp.eq.s32.totalorder %s31, 1
    %p49 = por %p47, %p48
    %p50 = scmp.ne.s32.totalorder %s39, %s40
    %p51 = scmp.eq.s32.totalorder %s31, 0
    %p52 = por %p50, %p51
    %p53 = scmp.ne.s32.totalorder %s39, %s40
    %p54 = scmp.eq.s32.totalorder %s32, 1
    %p55 = por %p53, %p54
    %p57 = scmp.ne.s32.totalorder %s40, %s56
    %p58 = scmp.eq.s32.totalorder %s32, 0
    %p59 = por %p57, %p58
    %s60 = ssub.s32 %s26, %s33
    %p61 = scmp.eq.s32.totalorder %s60, 0
    %s63 = sadd.s32 %s62, 1
    %s64 = scalar_select %p61, %s62, %s63
    %p67 = pneg %p61
    %p68 = scmp.eq.s32.totalorder %s26, 1
    %p69 = por %p67, %p68
    %p70 = scmp.ne.s32.totalorder %s62, %s65
    %p71 = scmp.eq.s32.totalorder %s26, 0
    %p72 = por %p70, %p71
    %p73 = scmp.ne.s32.totalorder %s62, %s65
    %p74 = scmp.eq.s32.totalorder %s31, 1
    %p75 = por %p73, %p74
    %p76 = scmp.ne.s32.totalorder %s65, %s66
    %p77 = scmp.eq.s32.totalorder %s31, 0
    %p78 = por %p76, %p77
    %p79 = scmp.ne.s32.totalorder %s65, %s66
    %p80 = scmp.eq.s32.totalorder %s32, 1
    %p81 = por %p79, %p80
    %p83 = scmp.ne.s32.totalorder %s66, %s82
    %p84 = scmp.eq.s32.totalorder %s32, 0
    %p85 = por %p83, %p84
    %s87 = sadd.s32 %s86, 1
    %p90 = scmp.eq.s32.totalorder %s26, 1
    %p91 = scmp.ne.s32.totalorder %s86, %s88
    %p92 = scmp.eq.s32.totalorder %s26, 0
    %p93 = por %p91, %p92
    %p94 = scmp.ne.s32.totalorder %s86, %s88
    %p95 = scmp.eq.s32.totalorder %s31, 1
    %p96 = por %p94, %p95
    %p97 = scmp.ne.s32.totalorder %s88, %s89
    %p98 = scmp.eq.s32.totalorder %s31, 0
    %p99 = por %p97, %p98
    %p100 = scmp.ne.s32.totalorder %s88, %s89
    %p101 = scmp.eq.s32.totalorder %s32, 1
    %p102 = por %p100, %p101
    %p104 = scmp.ne.s32.totalorder %s89, %s103
    %p105 = scmp.eq.s32.totalorder %s32, 0
    %p106 = por %p104, %p105
    %s108 = sadd.s32 %s107, 1
    %p111 = scmp.eq.s32.totalorder %s26, 1
    %p112 = scmp.ne.s32.totalorder %s107, %s109
    %p113 = scmp.eq.s32.totalorder %s26, 0
    %p114 = por %p112, %p113
    %p115 = scmp.ne.s32.totalorder %s107, %s109
    %p116 = scmp.eq.s32.totalorder %s31, 1
    %p117 = por %p115, %p116
    %p118 = scmp.ne.s32.totalorder %s109, %s110
    %p119 = scmp.eq.s32.totalorder %s31, 0
    %p120 = por %p118, %p119
    %p121 = scmp.ne.s32.totalorder %s109, %s110
    %p122 = scmp.eq.s32.totalorder %s32, 1
    %p123 = por %p121, %p122
    %p125 = scmp.ne.s32.totalorder %s110, %s124
    %p126 = scmp.eq.s32.totalorder %s32, 0
    %p127 = por %p125, %p126
    %s129 = sadd.s32 %s128, 1
    %p132 = scmp.eq.s32.totalorder %s26, 1
    %p133 = scmp.ne.s32.totalorder %s128, %s130
    %p134 = scmp.eq.s32.totalorder %s26, 0
    %p135 = por %p133, %p134
    %p136 = scmp.ne.s32.totalorder %s128, %s130
    %p137 = scmp.eq.s32.totalorder %s31, 1
    %p138 = por %p136, %p137
    %p139 = scmp.ne.s32.totalorder %s130, %s131
    %p140 = scmp.eq.s32.totalorder %s31, 0
    %p141 = por %p139, %p140
    %p142 = scmp.ne.s32.totalorder %s130, %s131
    %p143 = scmp.eq.s32.totalorder %s32, 1
    %p144 = por %p142, %p143
    %p146 = scmp.ne.s32.totalorder %s131, %s145
    %p147 = scmp.eq.s32.totalorder %s32, 0
    %p148 = por %p146, %p147
    %s150 = sadd.s32 %s149, 1
    %p153 = scmp.eq.s32.totalorder %s26, 1
    %p154 = scmp.ne.s32.totalorder %s149, %s151
    %p155 = scmp.eq.s32.totalorder %s26, 0
    %p156 = por %p154, %p155
    %p157 = scmp.ne.s32.totalorder %s149, %s151
    %p158 = scmp.eq.s32.totalorder %s31, 1
    %p159 = por %p157, %p158
    %p160 = scmp.ne.s32.totalorder %s151, %s152
    %p161 = scmp.eq.s32.totalorder %s31, 0
    %p162 = por %p160, %p161
    %p163 = scmp.ne.s32.totalorder %s151, %s152
    %p164 = scmp.eq.s32.totalorder %s32, 1
    %p165 = por %p163, %p164
    %p167 = scmp.ne.s32.totalorder %s152, %s166
    %p168 = scmp.eq.s32.totalorder %s32, 0
    %p169 = por %p167, %p168
    %s171 = sadd.s32 %s170, 1
    %p174 = scmp.eq.s32.totalorder %s26, 1
    %p175 = scmp.ne.s32.totalorder %s170, %s172
    %p176 = scmp.eq.s32.totalorder %s26, 0
    %p177 = por %p175, %p176
    %p178 = scmp.ne.s32.totalorder %s170, %s172
    %p179 = scmp.eq.s32.totalorder %s31, 1
    %p180 = por %p178, %p179
    %p181 = scmp.ne.s32.totalorder %s172, %s173
    %p182 = scmp.eq.s32.totalorder %s31, 0
    %p183 = por %p181, %p182
    %p184 = scmp.ne.s32.totalorder %s172, %s173
    %p185 = scmp.eq.s32.totalorder %s32, 1
    %p186 = por %p184, %p185
    %p188 = scmp.ne.s32.totalorder %s173, %s187
    %p189 = scmp.eq.s32.totalorder %s32, 0
    %p190 = por %p188, %p189
    %s192 = sadd.s32 %s191, 1
    %p195 = scmp.eq.s32.totalorder %s26, 1
    %p196 = scmp.ne.s32.totalorder %s191, %s193
    %p197 = scmp.eq.s32.totalorder %s26, 0
    %p198 = por %p196, %p197
    %p199 = scmp.ne.s32.totalorder %s191, %s193
    %p200 = scmp.eq.s32.totalorder %s31, 1
    %p201 = por %p199, %p200
    %p202 = scmp.ne.s32.totalorder %s193, %s194
    %p203 = scmp.eq.s32.totalorder %s31, 0
    %p204 = por %p202, %p203
    %p205 = scmp.ne.s32.totalorder %s193, %s194
    %p206 = scmp.eq.s32.totalorder %s32, 1
    %p207 = por %p205, %p206
    %p209 = scmp.ne.s32.totalorder %s194, %s208
    %p210 = scmp.eq.s32.totalorder %s32, 0
    %p211 = por %p209, %p210
    %s213 = sadd.s32 %s212, 1
    %p216 = scmp.eq.s32.totalorder %s26, 1
    %p217 = scmp.ne.s32.totalorder %s212, %s214
    %p218 = scmp.eq.s32.totalorder %s26, 0
    %p219 = por %p217, %p218
    %p220 = scmp.ne.s32.totalorder %s212, %s214
    %p221 = scmp.eq.s32.totalorder %s31, 1
    %p222 = por %p220, %p221
    %p223 = scmp.ne.s32.totalorder %s214, %s215
    %p224 = scmp.eq.s32.totalorder %s31, 0
    %p225 = por %p223, %p224
    %p226 = scmp.ne.s32.totalorder %s214, %s215
    %p227 = scmp.eq.s32.totalorder %s32, 1
    %p228 = por %p226, %p227
    %p230 = scmp.ne.s32.totalorder %s215, %s229
    %p231 = scmp.eq.s32.totalorder %s32, 0
    %p232 = por %p230, %p231
    %s234 = sadd.s32 %s233, 1
    %p237 = scmp.eq.s32.totalorder %s26, 1
    %p238 = scmp.ne.s32.totalorder %s233, %s235
    %p239 = scmp.eq.s32.totalorder %s26, 0
    %p240 = por %p238, %p239
    %p241 = scmp.ne.s32.totalorder %s233, %s235
    %p242 = scmp.eq.s32.totalorder %s31, 1
    %p243 = por %p241, %p242
    %p244 = scmp.ne.s32.totalorder %s235, %s236
    %p245 = scmp.eq.s32.totalorder %s31, 0
    %p246 = por %p244, %p245
    %p247 = scmp.ne.s32.totalorder %s235, %s236
    %p248 = scmp.eq.s32.totalorder %s32, 1
    %p249 = por %p247, %p248
    %p251 = scmp.ne.s32.totalorder %s236, %s250
    %p252 = scmp.eq.s32.totalorder %s32, 0
    %p253 = por %p251, %p252
    %s255 = sadd.s32 %s254, 1
    %p258 = scmp.eq.s32.totalorder %s26, 1
    %p259 = scmp.ne.s32.totalorder %s254, %s256
    %p260 = scmp.eq.s32.totalorder %s26, 0
    %p261 = por %p259, %p260
    %p262 = scmp.ne.s32.totalorder %s254, %s256
    %p263 = scmp.eq.s32.totalorder %s31, 1
    %p264 = por %p262, %p263
    %p265 = scmp.ne.s32.totalorder %s256, %s257
    %p266 = scmp.eq.s32.totalorder %s31, 0
    %p267 = por %p265, %p266
    %p268 = scmp.ne.s32.totalorder %s256, %s257
    %p269 = scmp.eq.s32.totalorder %s32, 1
    %p270 = por %p268, %p269
    %p272 = scmp.ne.s32.totalorder %s257, %s271
    %p273 = scmp.eq.s32.totalorder %s32, 0
    %p274 = por %p272, %p273
    %s276 = sadd.s32 %s275, 1
    %p279 = scmp.eq.s32.totalorder %s26, 1
    %p280 = scmp.ne.s32.totalorder %s275, %s277
    %p281 = scmp.eq.s32.totalorder %s26, 0
    %p282 = por %p280, %p281
    %p283 = scmp.ne.s32.totalorder %s275, %s277
    %p284 = scmp.eq.s32.totalorder %s31, 1
    %p285 = por %p283, %p284
    %p286 = scmp.ne.s32.totalorder %s277, %s278
    %p287 = scmp.eq.s32.totalorder %s31, 0
    %p288 = por %p286, %p287
    %p289 = scmp.ne.s32.totalorder %s277, %s278
    %p290 = scmp.eq.s32.totalorder %s32, 1
    %p291 = por %p289, %p290
    %p293 = scmp.ne.s32.totalorder %s278, %s292
    %p294 = scmp.eq.s32.totalorder %s32, 0
    %p295 = por %p293, %p294
    %s297 = sadd.s32 %s296, 1
    %p300 = scmp.eq.s32.totalorder %s26, 1
    %p301 = scmp.ne.s32.totalorder %s296, %s298
    %p302 = scmp.eq.s32.totalorder %s26, 0
    %p303 = por %p301, %p302
    %p304 = scmp.ne.s32.totalorder %s296, %s298
    %p305 = scmp.eq.s32.totalorder %s31, 1
    %p306 = por %p304, %p305
    %p307 = scmp.ne.s32.totalorder %s298, %s299
    %p308 = scmp.eq.s32.totalorder %s31, 0
    %p309 = por %p307, %p308
    %p310 = scmp.ne.s32.totalorder %s298, %s299
    %p311 = scmp.eq.s32.totalorder %s32, 1
    %p312 = por %p310, %p311
    %p314 = scmp.ne.s32.totalorder %s299, %s313
    %p315 = scmp.eq.s32.totalorder %s32, 0
    %p316 = por %p314, %p315
    %s318 = sadd.s32 %s317, 1
    %p321 = scmp.eq.s32.totalorder %s26, 1
    %p322 = scmp.ne.s32.totalorder %s317, %s319
    %p323 = scmp.eq.s32.totalorder %s26, 0
    %p324 = por %p322, %p323
    %p325 = scmp.ne.s32.totalorder %s317, %s319
    %p326 = scmp.eq.s32.totalorder %s31, 1
    %p327 = por %p325, %p326
    %p328 = scmp.ne.s32.totalorder %s319, %s320
    %p329 = scmp.eq.s32.totalorder %s31, 0
    %p330 = por %p328, %p329
    %p331 = scmp.ne.s32.totalorder %s319, %s320
    %p332 = scmp.eq.s32.totalorder %s32, 1
    %p333 = por %p331, %p332
    %p335 = scmp.ne.s32.totalorder %s320, %s334
    %p336 = scmp.eq.s32.totalorder %s32, 0
    %p337 = por %p335, %p336
    %s339 = sadd.s32 %s338, 1
    %p342 = scmp.eq.s32.totalorder %s26, 1
    %p343 = scmp.ne.s32.totalorder %s338, %s340
    %p344 = scmp.eq.s32.totalorder %s26, 0
    %p345 = por %p343, %p344
    %p346 = scmp.ne.s32.totalorder %s338, %s340
    %p347 = scmp.eq.s32.totalorder %s31, 1
    %p348 = por %p346, %p347
    %p349 = scmp.ne.s32.totalorder %s340, %s341
    %p350 = scmp.eq.s32.totalorder %s31, 0
    %p351 = por %p349, %p350
    %p352 = scmp.ne.s32.totalorder %s340, %s341
    %p353 = scmp.eq.s32.totalorder %s32, 1
    %p354 = por %p352, %p353
    %p356 = scmp.ne.s32.totalorder %s341, %s355
    %p357 = scmp.eq.s32.totalorder %s32, 0
    %p358 = por %p356, %p357
    %s360 = sadd.s32 %s359, 1
    %p363 = scmp.eq.s32.totalorder %s26, 1
    %p364 = scmp.ne.s32.totalorder %s359, %s361
    %p365 = scmp.eq.s32.totalorder %s26, 0
    %p366 = por %p364, %p365
    %p367 = scmp.ne.s32.totalorder %s359, %s361
    %p368 = scmp.eq.s32.totalorder %s31, 1
    %p369 = por %p367, %p368
    %p370 = scmp.ne.s32.totalorder %s361, %s362
    %p371 = scmp.eq.s32.totalorder %s31, 0
    %p372 = por %p370, %p371
    %p373 = scmp.ne.s32.totalorder %s361, %s362
    %p374 = scmp.eq.s32.totalorder %s32, 1
    %p375 = por %p373, %p374
    %p377 = scmp.ne.s32.totalorder %s362, %s376
    %p378 = scmp.eq.s32.totalorder %s32, 0
    %p379 = por %p377, %p378
    %s381 = sadd.s32 %s380, 1
    %p384 = scmp.eq.s32.totalorder %s26, 1
    %p385 = scmp.ne.s32.totalorder %s380, %s382
    %p386 = scmp.eq.s32.totalorder %s26, 0
    %p387 = por %p385, %p386
    %p388 = scmp.ne.s32.totalorder %s380, %s382
    %p389 = scmp.eq.s32.totalorder %s31, 1
    %p390 = por %p388, %p389
    %p391 = scmp.ne.s32.totalorder %s382, %s383
    %p392 = scmp.eq.s32.totalorder %s31, 0
    %p393 = por %p391, %p392
    %p394 = scmp.ne.s32.totalorder %s382, %s383
    %p395 = scmp.eq.s32.totalorder %s32, 1
    %p396 = por %p394, %p395
    %p398 = scmp.ne.s32.totalorder %s383, %s397
    %p399 = scmp.eq.s32.totalorder %s32, 0
    %p400 = por %p398, %p399
    %s402 = sadd.s32 %s401, 1
    %p405 = scmp.eq.s32.totalorder %s26, 1
    %p406 = scmp.ne.s32.totalorder %s401, %s403
    %p407 = scmp.eq.s32.totalorder %s26, 0
    %p408 = por %p406, %p407
    %p409 = scmp.ne.s32.totalorder %s401, %s403
    %p410 = scmp.eq.s32.totalorder %s31, 1
    %p411 = por %p409, %p410
    %p412 = scmp.ne.s32.totalorder %s403, %s404
    %p413 = scmp.eq.s32.totalorder %s31, 0
    %p414 = por %p412, %p413
    %p415 = scmp.ne.s32.totalorder %s403, %s404
    %p416 = scmp.eq.s32.totalorder %s32, 1
    %p417 = por %p415, %p416
    %p419 = scmp.ne.s32.totalorder %s404, %s418
    %p420 = scmp.eq.s32.totalorder %s32, 0
    %p421 = por %p419, %p420
    %s422 = ssub.s32 %s26, %s33
    %p423 = scmp.eq.s32.totalorder %s422, 0
    %s425 = sadd.s32 %s424, 1
    %s426 = scalar_select %p423, %s424, %s425
    %p429 = pneg %p423
    %p430 = scmp.eq.s32.totalorder %s26, 1
    %p431 = por %p429, %p430
    %p432 = scmp.ne.s32.totalorder %s424, %s427
    %p433 = scmp.eq.s32.totalorder %s26, 0
    %p434 = por %p432, %p433
    %p435 = scmp.ne.s32.totalorder %s424, %s427
    %p436 = scmp.eq.s32.totalorder %s31, 1
    %p437 = por %p435, %p436
    %p438 = scmp.ne.s32.totalorder %s427, %s428
    %p439 = scmp.eq.s32.totalorder %s31, 0
    %p440 = por %p438, %p439
    %p441 = scmp.ne.s32.totalorder %s427, %s428
    %p442 = scmp.eq.s32.totalorder %s32, 1
    %p443 = por %p441, %p442
    %p445 = scmp.ne.s32.totalorder %s428, %s444
    %p446 = scmp.eq.s32.totalorder %s32, 0
    %p447 = por %p445, %p446
    %s448 = ssub.s32 %s26, %s33
    %p449 = scmp.eq.s32.totalorder %s448, 0
    %s451 = sadd.s32 %s450, 1
    %s452 = scalar_select %p449, %s450, %s451
    %p455 = pneg %p449
    %p456 = scmp.eq.s32.totalorder %s26, 1
    %p457 = por %p455, %p456
    %p458 = scmp.ne.s32.totalorder %s450, %s453
    %p459 = scmp.eq.s32.totalorder %s26, 0
    %p460 = por %p458, %p459
    %p461 = scmp.ne.s32.totalorder %s450, %s453
    %p462 = scmp.eq.s32.totalorder %s31, 1
    %p463 = por %p461, %p462
    %p464 = scmp.ne.s32.totalorder %s453, %s454
    %p465 = scmp.eq.s32.totalorder %s31, 0
    %p466 = por %p464, %p465
    %p467 = scmp.ne.s32.totalorder %s453, %s454
    %p468 = scmp.eq.s32.totalorder %s32, 1
    %p469 = por %p467, %p468
    %p471 = scmp.ne.s32.totalorder %s454, %s470
    %p472 = scmp.eq.s32.totalorder %s32, 0
    %p473 = por %p471, %p472
    %p474 = scmp.le.s32.totalorder 1, %s26
    %p475 = scmp.lt.s32.totalorder %s26, 3
    %p476 = pnand %p474, %p475
    %p477 = pneg %p476
    // Predicated region
    $region9: #{tpu_custom_call.1} parent=5 // pred_check
      _
    $region10: #{tpu_custom_call.1} parent=5 // pred_check_branch
      %479 = sbr.rel (%p476) target = $region12
    $region11: #{tpu_custom_call.1} parent=5 // pred_region
      %s480 = ssub.s32 %s26, 1
      // Predicated region
      $region13: #{tpu_custom_call.1} parent=11 // pred_check
        %p481 = pneg %p99
      $region14: #{tpu_custom_call.1} parent=11 // pred_check_branch
        %483 = sbr.rel (%p481) target = $region16
      $region15: #{tpu_custom_call.1} parent=11 // pred_region
        _
      $region16: #{tpu_custom_call.1} parent=11 // pred_fallthru
        _
      // Predicated region
      $region17: #{tpu_custom_call.1} parent=11 // pred_check
        %p484 = pneg %p120
      $region18: #{tpu_custom_call.1} parent=11 // pred_check_branch
        %486 = sbr.rel (%p484) target = $region20
      $region19: #{tpu_custom_call.1} parent=11 // pred_region
        _
      $region20: #{tpu_custom_call.1} parent=11 // pred_fallthru
        _
      // Predicated region
      $region21: #{tpu_custom_call.1} parent=11 // pred_check
        %p487 = pneg %p141
      $region22: #{tpu_custom_call.1} parent=11 // pred_check_branch
        %489 = sbr.rel (%p487) target = $region24
      $region23: #{tpu_custom_call.1} parent=11 // pred_region
        _
      $region24: #{tpu_custom_call.1} parent=11 // pred_fallthru
        _
      // Predicated region
      $region25: #{tpu_custom_call.1} parent=11 // pred_check
        %p490 = pneg %p162
      $region26: #{tpu_custom_call.1} parent=11 // pred_check_branch
        %492 = sbr.rel (%p490) target = $region28
      $region27: #{tpu_custom_call.1} parent=11 // pred_region
        _
      $region28: #{tpu_custom_call.1} parent=11 // pred_fallthru
        _
      // Predicated region
      $region29: #{tpu_custom_call.1} parent=11 // pred_check
        %p493 = pneg %p183
      $region30: #{tpu_custom_call.1} parent=11 // pred_check_branch
        %495 = sbr.rel (%p493) target = $region32
      $region31: #{tpu_custom_call.1} parent=11 // pred_region
        _
      $region32: #{tpu_custom_call.1} parent=11 // pred_fallthru
        _
      // Predicated region
      $region33: #{tpu_custom_call.1} parent=11 // pred_check
        %p496 = pneg %p204
      $region34: #{tpu_custom_call.1} parent=11 // pred_check_branch
        %498 = sbr.rel (%p496) target = $region36
      $region35: #{tpu_custom_call.1} parent=11 // pred_region
        _
      $region36: #{tpu_custom_call.1} parent=11 // pred_fallthru
        _
      // Predicated region
      $region37: #{tpu_custom_call.1} parent=11 // pred_check
        %p499 = pneg %p225
      $region38: #{tpu_custom_call.1} parent=11 // pred_check_branch
        %501 = sbr.rel (%p499) target = $region40
      $region39: #{tpu_custom_call.1} parent=11 // pred_region
        _
      $region40: #{tpu_custom_call.1} parent=11 // pred_fallthru
        _
      // Predicated region
      $region41: #{tpu_custom_call.1} parent=11 // pred_check
        %p502 = pneg %p246
      $region42: #{tpu_custom_call.1} parent=11 // pred_check_branch
        %504 = sbr.rel (%p502) target = $region44
      $region43: #{tpu_custom_call.1} parent=11 // pred_region
        _
      $region44: #{tpu_custom_call.1} parent=11 // pred_fallthru
        _
      // Predicated region
      $region45: #{tpu_custom_call.1} parent=11 // pred_check
        %p505 = pneg %p267
      $region46: #{tpu_custom_call.1} parent=11 // pred_check_branch
        %507 = sbr.rel (%p505) target = $region48
      $region47: #{tpu_custom_call.1} parent=11 // pred_region
        _
      $region48: #{tpu_custom_call.1} parent=11 // pred_fallthru
        _
      // Predicated region
      $region49: #{tpu_custom_call.1} parent=11 // pred_check
        %p508 = pneg %p288
      $region50: #{tpu_custom_call.1} parent=11 // pred_check_branch
        %510 = sbr.rel (%p508) target = $region52
      $region51: #{tpu_custom_call.1} parent=11 // pred_region
        _
      $region52: #{tpu_custom_call.1} parent=11 // pred_fallthru
        _
      // Predicated region
      $region53: #{tpu_custom_call.1} parent=11 // pred_check
        %p511 = pneg %p309
      $region54: #{tpu_custom_call.1} parent=11 // pred_check_branch
        %513 = sbr.rel (%p511) target = $region56
      $region55: #{tpu_custom_call.1} parent=11 // pred_region
        _
      $region56: #{tpu_custom_call.1} parent=11 // pred_fallthru
        _
      // Predicated region
      $region57: #{tpu_custom_call.1} parent=11 // pred_check
        %p514 = pneg %p330
      $region58: #{tpu_custom_call.1} parent=11 // pred_check_branch
        %516 = sbr.rel (%p514) target = $region60
      $region59: #{tpu_custom_call.1} parent=11 // pred_region
        _
      $region60: #{tpu_custom_call.1} parent=11 // pred_fallthru
        _
      // Predicated region
      $region61: #{tpu_custom_call.1} parent=11 // pred_check
        %p517 = pneg %p351
      $region62: #{tpu_custom_call.1} parent=11 // pred_check_branch
        %519 = sbr.rel (%p517) target = $region64
      $region63: #{tpu_custom_call.1} parent=11 // pred_region
        _
      $region64: #{tpu_custom_call.1} parent=11 // pred_fallthru
        _
      // Predicated region
      $region65: #{tpu_custom_call.1} parent=11 // pred_check
        %p520 = pneg %p372
      $region66: #{tpu_custom_call.1} parent=11 // pred_check_branch
        %522 = sbr.rel (%p520) target = $region68
      $region67: #{tpu_custom_call.1} parent=11 // pred_region
        _
      $region68: #{tpu_custom_call.1} parent=11 // pred_fallthru
        _
      // Predicated region
      $region69: #{tpu_custom_call.1} parent=11 // pred_check
        %p523 = pneg %p393
      $region70: #{tpu_custom_call.1} parent=11 // pred_check_branch
        %525 = sbr.rel (%p523) target = $region72
      $region71: #{tpu_custom_call.1} parent=11 // pred_region
        _
      $region72: #{tpu_custom_call.1} parent=11 // pred_fallthru
        _
      // Predicated region
      $region73: #{tpu_custom_call.1} parent=11 // pred_check
        %p526 = pneg %p414
      $region74: #{tpu_custom_call.1} parent=11 // pred_check_branch
        %528 = sbr.rel (%p526) target = $region76
      $region75: #{tpu_custom_call.1} parent=11 // pred_region
        _
      $region76: #{tpu_custom_call.1} parent=11 // pred_fallthru
        _
    $region12: #{tpu_custom_call.1} parent=5 // pred_fallthru
      _
    %p529 = scmp.lt.s32.totalorder %s26, 2
    // Predicated region
    $region77: #{tpu_custom_call.1} parent=5 // pred_check
      %p530 = pneg %p529
    $region78: #{tpu_custom_call.1} parent=5 // pred_check_branch
      %532 = sbr.rel (%p530) target = $region80
    $region79: #{tpu_custom_call.1} parent=5 // pred_region
      // Predicated region
      $region81: #{tpu_custom_call.1} parent=79 // pred_check
        %p533 = pneg %p46
      $region82: #{tpu_custom_call.1} parent=79 // pred_check_branch
        %535 = sbr.rel (%p533) target = $region84
      $region83: #{tpu_custom_call.1} parent=79 // pred_region
        %s536 = smul.u32 32, %s26
        %p537 = scmp.lt.s32.totalorder %s536, 63
        %s538 = scalar_select %p537, %s536, 63
        %s539 = smul.addr %s538, 7
        %s540 = smul.addr %s539, 4
        %s541 = scalar_lea.vmem %s0, %s540
        %s542 = smul.u32 32, %s26
      $region84: #{tpu_custom_call.1} parent=79 // pred_fallthru
        _
      // Predicated region
      $region85: #{tpu_custom_call.1} parent=79 // pred_check
        %p543 = pneg %p72
      $region86: #{tpu_custom_call.1} parent=79 // pred_check_branch
        %545 = sbr.rel (%p543) target = $region88
      $region87: #{tpu_custom_call.1} parent=79 // pred_region
        %s546 = smul.u32 32, %s26
        %p547 = scmp.lt.s32.totalorder %s546, 63
        %s548 = scalar_select %p547, %s546, 63
        %s549 = smul.addr %s548, 8
        %s550 = scalar_lea.vmem %s1, %s549
        %s551 = smul.u32 32, %s26
      $region88: #{tpu_custom_call.1} parent=79 // pred_fallthru
        _
    $region80: #{tpu_custom_call.1} parent=5 // pred_fallthru
      _
    %p552 = scmp.le.s32.totalorder 1, %s26
    %p553 = scmp.lt.s32.totalorder %s26, 3
    %p554 = pnand %p552, %p553
    %p555 = pneg %p554
    // Predicated region
    $region89: #{tpu_custom_call.1} parent=5 // pred_check
      _
    $region90: #{tpu_custom_call.1} parent=5 // pred_check_branch
      %557 = sbr.rel (%p554) target = $region92
    $region91: #{tpu_custom_call.1} parent=5 // pred_region
      %s558 = ssub.s32 %s26, 1
      %s559 = smul.u32 32, %s31
      %p560 = scmp.lt.s32.totalorder %s559, 63
      %s561 = scalar_select %p560, %s559, 63
      %s562 = smul.addr %s561, 7
      %s563 = smul.addr %s562, 4
      %s564 = scalar_lea.vmem %s0, %s563
      %p565 = pneg %p52
      %p566 = pneg %p49
      %s567 = smul.u32 32, %s31
      %p568 = scmp.lt.s32.totalorder %s567, 63
      %s569 = scalar_select %p568, %s567, 63
      %s570 = smul.addr %s569, 8
      %s571 = scalar_lea.vmem %s1, %s570
      %p572 = pneg %p78
      %p573 = pneg %p75
      %p574 = pneg %p99
      %p575 = pneg %p96
      %p576 = pneg %p120
      %p577 = pneg %p117
      %p578 = pneg %p141
      %p579 = pneg %p138
      %p580 = pneg %p162
      %p581 = pneg %p159
      %p582 = pneg %p183
      %p583 = pneg %p180
      %p584 = pneg %p204
      %p585 = pneg %p201
      %p586 = pneg %p225
      %p587 = pneg %p222
      %p588 = pneg %p246
      %p589 = pneg %p243
      %p590 = pneg %p267
      %p591 = pneg %p264
      %p592 = pneg %p288
      %p593 = pneg %p285
      %p594 = pneg %p309
      %p595 = pneg %p306
      %p596 = pneg %p330
      %p597 = pneg %p327
      %p598 = pneg %p351
      %p599 = pneg %p348
      %p600 = pneg %p372
      %p601 = pneg %p369
      %p602 = pneg %p393
      %p603 = pneg %p390
      %p604 = pneg %p414
      %p605 = pneg %p411
      %p606 = pneg %p440
      %p607 = pneg %p437
      %s608 = smul.u32 32, %s31
      %p609 = scmp.lt.s32.totalorder %s608, 63
      %s610 = scalar_select %p609, %s608, 63
      %s611 = smul.addr %s610, 8
      %s612 = scalar_lea.vmem %s18, %s611
      %p613 = pneg %p466
      %p614 = pneg %p463
      %s615 = smul.u32 32, %s31
      %p616 = scmp.lt.s32.totalorder %s615, 63
      %s617 = scalar_select %p616, %s615, 63
      %s618 = smul.addr %s617, 7
      %s619 = smul.addr %s618, 8
      %s620 = scalar_lea.vmem %s19, %s619
      %s621 = smul.u32 32, %s31
      %p622 = scmp.lt.s32.totalorder %s621, 63
      %s623 = scalar_select %p622, %s621, 63
      %s624 = smul.addr %s623, 7
      %s625 = smul.addr %s624, 4
      %s626 = scalar_lea.vmem %s0, %s625
      %s627 = smul.u32 32, %s31
      %s628 = smul.u32 32, %s31
      %p629 = scmp.lt.s32.totalorder %s628, 63
      %s630 = scalar_select %p629, %s628, 63
      %s631 = smul.addr %s630, 8
      %s632 = scalar_lea.vmem %s1, %s631
      %s633 = smul.u32 32, %s31
      %s634 = smul.u32 32, %s31
      %p635 = scmp.lt.s32.totalorder %s634, 63
      %s636 = scalar_select %p635, %s634, 63
      %s637 = smul.addr %s636, 8
      %s638 = scalar_lea.vmem %s18, %s637
      %s639 = smul.u32 32, %s31
      %s640 = smul.u32 32, %s31
      %p641 = scmp.lt.s32.totalorder %s640, 63
      %s642 = scalar_select %p641, %s640, 63
      %s643 = smul.addr %s642, 7
      %s644 = smul.addr %s643, 8
      %s645 = scalar_lea.vmem %s19, %s644
      %s646 = smul.u32 32, %s31
      %v648 = vld [vmem:[%s626] sm:$0xff]
      %v649 = vld [vmem:[%s626 + $0x8] sm:$0xff]
      %v650 = vld [vmem:[%s626 + $0x10] sm:$0xff]
      %v651 = vld [vmem:[%s626 + $0x18] sm:$0xf]
      %v652 = vld [vmem:[%s626 + $0x1c] sm:$0xff]
      %v653 = vld [vmem:[%s626 + $0x24] sm:$0xff]
      %v654 = vld [vmem:[%s626 + $0x2c] sm:$0xff]
      %v655 = vld [vmem:[%s626 + $0x34] sm:$0xf]
      %v656 = vld [vmem:[%s626 + $0x38] sm:$0xff]
      %v657 = vld [vmem:[%s626 + $0x40] sm:$0xff]
      %v658 = vld [vmem:[%s626 + $0x48] sm:$0xff]
      %v659 = vld [vmem:[%s626 + $0x50] sm:$0xf]
      %v660 = vld [vmem:[%s626 + $0x54] sm:$0xff]
      %v661 = vld [vmem:[%s626 + $0x5c] sm:$0xff]
      %v662 = vld [vmem:[%s626 + $0x64] sm:$0xff]
      %v663 = vld [vmem:[%s626 + $0x6c] sm:$0xf]
      %v664 = vld [vmem:[%s626 + $0x70] sm:$0xff]
      %v665 = vld [vmem:[%s626 + $0x78] sm:$0xff]
      %v666 = vld [vmem:[%s626 + $0x80] sm:$0xff]
      %v667 = vld [vmem:[%s626 + $0x88] sm:$0xf]
      %v668 = vld [vmem:[%s626 + $0x8c] sm:$0xff]
      %v669 = vld [vmem:[%s626 + $0x94] sm:$0xff]
      %v670 = vld [vmem:[%s626 + $0x9c] sm:$0xff]
      %v671 = vld [vmem:[%s626 + $0xa4] sm:$0xf]
      %v672 = vld [vmem:[%s626 + $0xa8] sm:$0xff]
      %v673 = vld [vmem:[%s626 + $0xb0] sm:$0xff]
      %v674 = vld [vmem:[%s626 + $0xb8] sm:$0xff]
      %v675 = vld [vmem:[%s626 + $0xc0] sm:$0xf]
      %v676 = vld [vmem:[%s626 + $0xc4] sm:$0xff]
      %v677 = vld [vmem:[%s626 + $0xcc] sm:$0xff]
      %v678 = vld [vmem:[%s626 + $0xd4] sm:$0xff]
      %v679 = vld [vmem:[%s626 + $0xdc] sm:$0xf]
      %v680 = vld [vmem:[%s626 + $0xe0] sm:$0xff]
      %v681 = vld [vmem:[%s626 + $0xe8] sm:$0xff]
      %v682 = vld [vmem:[%s626 + $0xf0] sm:$0xff]
      %v683 = vld [vmem:[%s626 + $0xf8] sm:$0xf]
      %v684 = vld [vmem:[%s626 + $0xfc] sm:$0xff]
      %v685 = vld [vmem:[%s626 + $0x104] sm:$0xff]
      %v686 = vld [vmem:[%s626 + $0x10c] sm:$0xff]
      %v687 = vld [vmem:[%s626 + $0x114] sm:$0xf]
      %v688 = vld [vmem:[%s626 + $0x118] sm:$0xff]
      %v689 = vld [vmem:[%s626 + $0x120] sm:$0xff]
      %v690 = vld [vmem:[%s626 + $0x128] sm:$0xff]
      %v691 = vld [vmem:[%s626 + $0x130] sm:$0xf]
      %v692 = vld [vmem:[%s626 + $0x134] sm:$0xff]
      %v693 = vld [vmem:[%s626 + $0x13c] sm:$0xff]
      %v694 = vld [vmem:[%s626 + $0x144] sm:$0xff]
      %v695 = vld [vmem:[%s626 + $0x14c] sm:$0xf]
      %v696 = vld [vmem:[%s626 + $0x150] sm:$0xff]
      %v697 = vld [vmem:[%s626 + $0x158] sm:$0xff]
      %v698 = vld [vmem:[%s626 + $0x160] sm:$0xff]
      %v699 = vld [vmem:[%s626 + $0x168] sm:$0xf]
      %v700 = vld [vmem:[%s626 + $0x16c] sm:$0xff]
      %v701 = vld [vmem:[%s626 + $0x174] sm:$0xff]
      %v702 = vld [vmem:[%s626 + $0x17c] sm:$0xff]
      %v703 = vld [vmem:[%s626 + $0x184] sm:$0xf]
      %v704 = vld [vmem:[%s626 + $0x188] sm:$0xff]
      %v705 = vld [vmem:[%s626 + $0x190] sm:$0xff]
      %v706 = vld [vmem:[%s626 + $0x198] sm:$0xff]
      %v707 = vld [vmem:[%s626 + $0x1a0] sm:$0xf]
      %v708 = vld [vmem:[%s626 + $0x1a4] sm:$0xff]
      %v709 = vld [vmem:[%s626 + $0x1ac] sm:$0xff]
      %v710 = vld [vmem:[%s626 + $0x1b4] sm:$0xff]
      %v711 = vld [vmem:[%s626 + $0x1bc] sm:$0xf]
      %v712 = vld [vmem:[%s626 + $0x1c0] sm:$0xff]
      %v713 = vld [vmem:[%s626 + $0x1c8] sm:$0xff]
      %v714 = vld [vmem:[%s626 + $0x1d0] sm:$0xff]
      %v715 = vld [vmem:[%s626 + $0x1d8] sm:$0xf]
      %v716 = vld [vmem:[%s626 + $0x1dc] sm:$0xff]
      %v717 = vld [vmem:[%s626 + $0x1e4] sm:$0xff]
      %v718 = vld [vmem:[%s626 + $0x1ec] sm:$0xff]
      %v719 = vld [vmem:[%s626 + $0x1f4] sm:$0xf]
      %v720 = vld [vmem:[%s626 + $0x1f8] sm:$0xff]
      %v721 = vld [vmem:[%s626 + $0x200] sm:$0xff]
      %v722 = vld [vmem:[%s626 + $0x208] sm:$0xff]
      %v723 = vld [vmem:[%s626 + $0x210] sm:$0xf]
      %v724 = vld [vmem:[%s626 + $0x214] sm:$0xff]
      %v725 = vld [vmem:[%s626 + $0x21c] sm:$0xff]
      %v726 = vld [vmem:[%s626 + $0x224] sm:$0xff]
      %v727 = vld [vmem:[%s626 + $0x22c] sm:$0xf]
      %v728 = vld [vmem:[%s626 + $0x230] sm:$0xff]
      %v729 = vld [vmem:[%s626 + $0x238] sm:$0xff]
      %v730 = vld [vmem:[%s626 + $0x240] sm:$0xff]
      %v731 = vld [vmem:[%s626 + $0x248] sm:$0xf]
      %v732 = vld [vmem:[%s626 + $0x24c] sm:$0xff]
      %v733 = vld [vmem:[%s626 + $0x254] sm:$0xff]
      %v734 = vld [vmem:[%s626 + $0x25c] sm:$0xff]
      %v735 = vld [vmem:[%s626 + $0x264] sm:$0xf]
      %v736 = vld [vmem:[%s626 + $0x268] sm:$0xff]
      %v737 = vld [vmem:[%s626 + $0x270] sm:$0xff]
      %v738 = vld [vmem:[%s626 + $0x278] sm:$0xff]
      %v739 = vld [vmem:[%s626 + $0x280] sm:$0xf]
      %v740 = vld [vmem:[%s626 + $0x284] sm:$0xff]
      %v741 = vld [vmem:[%s626 + $0x28c] sm:$0xff]
      %v742 = vld [vmem:[%s626 + $0x294] sm:$0xff]
      %v743 = vld [vmem:[%s626 + $0x29c] sm:$0xf]
      %v744 = vld [vmem:[%s626 + $0x2a0] sm:$0xff]
      %v745 = vld [vmem:[%s626 + $0x2a8] sm:$0xff]
      %v746 = vld [vmem:[%s626 + $0x2b0] sm:$0xff]
      %v747 = vld [vmem:[%s626 + $0x2b8] sm:$0xf]
      %v748 = vld [vmem:[%s626 + $0x2bc] sm:$0xff]
      %v749 = vld [vmem:[%s626 + $0x2c4] sm:$0xff]
      %v750 = vld [vmem:[%s626 + $0x2cc] sm:$0xff]
      %v751 = vld [vmem:[%s626 + $0x2d4] sm:$0xf]
      %v752 = vld [vmem:[%s626 + $0x2d8] sm:$0xff]
      %v753 = vld [vmem:[%s626 + $0x2e0] sm:$0xff]
      %v754 = vld [vmem:[%s626 + $0x2e8] sm:$0xff]
      %v755 = vld [vmem:[%s626 + $0x2f0] sm:$0xf]
      %v756 = vld [vmem:[%s626 + $0x2f4] sm:$0xff]
      %v757 = vld [vmem:[%s626 + $0x2fc] sm:$0xff]
      %v758 = vld [vmem:[%s626 + $0x304] sm:$0xff]
      %v759 = vld [vmem:[%s626 + $0x30c] sm:$0xf]
      %v760 = vld [vmem:[%s626 + $0x310] sm:$0xff]
      %v761 = vld [vmem:[%s626 + $0x318] sm:$0xff]
      %v762 = vld [vmem:[%s626 + $0x320] sm:$0xff]
      %v763 = vld [vmem:[%s626 + $0x328] sm:$0xf]
      %v764 = vld [vmem:[%s626 + $0x32c] sm:$0xff]
      %v765 = vld [vmem:[%s626 + $0x334] sm:$0xff]
      %v766 = vld [vmem:[%s626 + $0x33c] sm:$0xff]
      %v767 = vld [vmem:[%s626 + $0x344] sm:$0xf]
      %v768 = vld [vmem:[%s626 + $0x348] sm:$0xff]
      %v769 = vld [vmem:[%s626 + $0x350] sm:$0xff]
      %v770 = vld [vmem:[%s626 + $0x358] sm:$0xff]
      %v771 = vld [vmem:[%s626 + $0x360] sm:$0xf]
      %v772 = vld [vmem:[%s626 + $0x364] sm:$0xff]
      %v773 = vld [vmem:[%s626 + $0x36c] sm:$0xff]
      %v774 = vld [vmem:[%s626 + $0x374] sm:$0xff]
      %v775 = vld [vmem:[%s626 + $0x37c] sm:$0xf]
      %v776 = vld [vmem:[%s2] sm:$0xf]
      %v777 = vld [vmem:[%s2 + $0x4] sm:$0xf]
      %v778 = vld [vmem:[%s2 + $0x8] sm:$0xf]
      %v779 = vld [vmem:[%s2 + $0xc] sm:$0xf]
      %v780 = vld [vmem:[%s2 + $0x10] sm:$0xf]
      %v781 = vld [vmem:[%s2 + $0x14] sm:$0xf]
      %v782 = vld [vmem:[%s2 + $0x18] sm:$0xf]
      %v783 = vld [vmem:[%s2 + $0x1c] sm:$0xf]
      %v784 = vld [vmem:[%s2 + $0x20] sm:$0xf]
      %v785 = vld [vmem:[%s2 + $0x24] sm:$0xf]
      %v786 = vld [vmem:[%s2 + $0x28] sm:$0xf]
      %v787 = vld [vmem:[%s2 + $0x2c] sm:$0xf]
      %v788 = vld [vmem:[%s2 + $0x30] sm:$0xf]
      %v789 = vld [vmem:[%s2 + $0x34] sm:$0xf]
      %v790 = vld [vmem:[%s2 + $0x38] sm:$0xf]
      %v791 = vld [vmem:[%s2 + $0x3c] sm:$0xf]
      %v792 = vld [vmem:[%s2 + $0x40] sm:$0xf]
      %v793 = vld [vmem:[%s2 + $0x44] sm:$0xf]
      %v794 = vld [vmem:[%s2 + $0x48] sm:$0xf]
      %v795 = vld [vmem:[%s2 + $0x4c] sm:$0xf]
      %v796 = vld [vmem:[%s2 + $0x50] sm:$0xf]
      %v797 = vld [vmem:[%s2 + $0x54] sm:$0xf]
      %v798 = vld [vmem:[%s2 + $0x58] sm:$0xf]
      %v799 = vld [vmem:[%s2 + $0x5c] sm:$0xf]
      %v800 = vld [vmem:[%s2 + $0x60] sm:$0xf]
      %v801 = vld [vmem:[%s2 + $0x64] sm:$0xf]
      %v802 = vld [vmem:[%s2 + $0x68] sm:$0xf]
      %v803 = vld [vmem:[%s2 + $0x6c] sm:$0xf]
      %v804 = vld [vmem:[%s2 + $0x70] sm:$0xf]
      %v805 = vld [vmem:[%s2 + $0x74] sm:$0xf]
      %v806 = vld [vmem:[%s2 + $0x78] sm:$0xf]
      %v807 = vld [vmem:[%s2 + $0x7c] sm:$0xf]
      %v808 = vld [vmem:[%s2 + $0x80] sm:$0xf]
      %v809 = vld [vmem:[%s2 + $0x84] sm:$0xf]
      %v810 = vld [vmem:[%s2 + $0x88] sm:$0xf]
      %v811 = vld [vmem:[%s2 + $0x8c] sm:$0xf]
      %v812 = vld [vmem:[%s2 + $0x90] sm:$0xf]
      %v813 = vld [vmem:[%s2 + $0x94] sm:$0xf]
      %v814 = vld [vmem:[%s2 + $0x98] sm:$0xf]
      %v815 = vld [vmem:[%s2 + $0x9c] sm:$0xf]
      %v816 = vld [vmem:[%s2 + $0xa0] sm:$0xf]
      %v817 = vld [vmem:[%s2 + $0xa4] sm:$0xf]
      %v818 = vld [vmem:[%s2 + $0xa8] sm:$0xf]
      %v819 = vld [vmem:[%s2 + $0xac] sm:$0xf]
      %v820 = vld [vmem:[%s2 + $0xb0] sm:$0xf]
      %v821 = vld [vmem:[%s2 + $0xb4] sm:$0xf]
      %v822 = vld [vmem:[%s2 + $0xb8] sm:$0xf]
      %v823 = vld [vmem:[%s2 + $0xbc] sm:$0xf]
      %v824 = vld [vmem:[%s2 + $0xc0] sm:$0xf]
      %v825 = vld [vmem:[%s2 + $0xc4] sm:$0xf]
      %v826 = vld [vmem:[%s2 + $0xc8] sm:$0xf]
      %v827 = vld [vmem:[%s2 + $0xcc] sm:$0xf]
      %v828 = vld [vmem:[%s2 + $0xd0] sm:$0xf]
      %v829 = vld [vmem:[%s2 + $0xd4] sm:$0xf]
      %v830 = vld [vmem:[%s2 + $0xd8] sm:$0xf]
      %v831 = vld [vmem:[%s2 + $0xdc] sm:$0xf]
      %v832 = vld [vmem:[%s2 + $0xe0] sm:$0xf]
      %v833 = vld [vmem:[%s2 + $0xe4] sm:$0xf]
      %v834 = vld [vmem:[%s2 + $0xe8] sm:$0xf]
      %v835 = vld [vmem:[%s2 + $0xec] sm:$0xf]
      %v836 = vld [vmem:[%s2 + $0xf0] sm:$0xf]
      %v837 = vld [vmem:[%s2 + $0xf4] sm:$0xf]
      %v838 = vld [vmem:[%s2 + $0xf8] sm:$0xf]
      %v839 = vld [vmem:[%s2 + $0xfc] sm:$0xf]
      %v840 = vld [vmem:[%s2 + $0x100] sm:$0xf]
      %v841 = vld [vmem:[%s2 + $0x104] sm:$0xf]
      %v842 = vld [vmem:[%s2 + $0x108] sm:$0xf]
      %v843 = vld [vmem:[%s2 + $0x10c] sm:$0xf]
      %v844 = vld [vmem:[%s2 + $0x110] sm:$0xf]
      %v845 = vld [vmem:[%s2 + $0x114] sm:$0xf]
      %v846 = vld [vmem:[%s2 + $0x118] sm:$0xf]
      %v847 = vld [vmem:[%s2 + $0x11c] sm:$0xf]
      %v848 = vld [vmem:[%s2 + $0x120] sm:$0xf]
      %v849 = vld [vmem:[%s2 + $0x124] sm:$0xf]
      %v850 = vld [vmem:[%s2 + $0x128] sm:$0xf]
      %v851 = vld [vmem:[%s2 + $0x12c] sm:$0xf]
      %v852 = vld [vmem:[%s2 + $0x130] sm:$0xf]
      %v853 = vld [vmem:[%s2 + $0x134] sm:$0xf]
      %v854 = vld [vmem:[%s2 + $0x138] sm:$0xf]
      %v855 = vld [vmem:[%s2 + $0x13c] sm:$0xf]
      %v856 = vld [vmem:[%s2 + $0x140] sm:$0xf]
      %v857 = vld [vmem:[%s2 + $0x144] sm:$0xf]
      %v858 = vld [vmem:[%s2 + $0x148] sm:$0xf]
      %v859 = vld [vmem:[%s2 + $0x14c] sm:$0xf]
      %v860 = vld [vmem:[%s2 + $0x150] sm:$0xf]
      %v861 = vld [vmem:[%s2 + $0x154] sm:$0xf]
      %v862 = vld [vmem:[%s2 + $0x158] sm:$0xf]
      %v863 = vld [vmem:[%s2 + $0x15c] sm:$0xf]
      %v864 = vld [vmem:[%s2 + $0x160] sm:$0xf]
      %v865 = vld [vmem:[%s2 + $0x164] sm:$0xf]
      %v866 = vld [vmem:[%s2 + $0x168] sm:$0xf]
      %v867 = vld [vmem:[%s2 + $0x16c] sm:$0xf]
      %v868 = vld [vmem:[%s2 + $0x170] sm:$0xf]
      %v869 = vld [vmem:[%s2 + $0x174] sm:$0xf]
      %v870 = vld [vmem:[%s2 + $0x178] sm:$0xf]
      %v871 = vld [vmem:[%s2 + $0x17c] sm:$0xf]
      %v872 = vld [vmem:[%s2 + $0x180] sm:$0xf]
      %v873 = vld [vmem:[%s2 + $0x184] sm:$0xf]
      %v874 = vld [vmem:[%s3] sm:$0x1]
      %v876 = vlaneseq
      %v877 = vshrl.u32 %v876, 7
      %v878 = vsub.s32 0, %v877
      %v879 = vrot.slane %v874, %v878
      %v1009 = vunpack.c.l.b16 %v648
      %v1010 = vunpack.c.h.b16 %v648
      %v1011 = vunpack.c.l.b16 %v649
      %v1012 = vunpack.c.h.b16 %v649
      %v1013 = vunpack.c.l.b16 %v650
      %v1014 = vunpack.c.h.b16 %v650
      %v1015 = vunpack.c.l.b16 %v651
      %v1016 = vunpack.c.l.b16 %v652
      %v1017 = vunpack.c.h.b16 %v652
      %v1018 = vunpack.c.l.b16 %v653
      %v1019 = vunpack.c.h.b16 %v653
      %v1020 = vunpack.c.l.b16 %v654
      %v1021 = vunpack.c.h.b16 %v654
      %v1022 = vunpack.c.l.b16 %v655
      %v1023 = vunpack.c.l.b16 %v656
      %v1024 = vunpack.c.h.b16 %v656
      %v1025 = vunpack.c.l.b16 %v657
      %v1026 = vunpack.c.h.b16 %v657
      %v1027 = vunpack.c.l.b16 %v658
      %v1028 = vunpack.c.h.b16 %v658
      %v1029 = vunpack.c.l.b16 %v659
      %v1030 = vunpack.c.l.b16 %v660
      %v1031 = vunpack.c.h.b16 %v660
      %v1032 = vunpack.c.l.b16 %v661
      %v1033 = vunpack.c.h.b16 %v661
      %v1034 = vunpack.c.l.b16 %v662
      %v1035 = vunpack.c.h.b16 %v662
      %v1036 = vunpack.c.l.b16 %v663
      %v1037 = vunpack.c.l.b16 %v664
      %v1038 = vunpack.c.h.b16 %v664
      %v1039 = vunpack.c.l.b16 %v665
      %v1040 = vunpack.c.h.b16 %v665
      %v1041 = vunpack.c.l.b16 %v666
      %v1042 = vunpack.c.h.b16 %v666
      %v1043 = vunpack.c.l.b16 %v667
      %v1044 = vunpack.c.l.b16 %v668
      %v1045 = vunpack.c.h.b16 %v668
      %v1046 = vunpack.c.l.b16 %v669
      %v1047 = vunpack.c.h.b16 %v669
      %v1048 = vunpack.c.l.b16 %v670
      %v1049 = vunpack.c.h.b16 %v670
      %v1050 = vunpack.c.l.b16 %v671
      %v1051 = vunpack.c.l.b16 %v672
      %v1052 = vunpack.c.h.b16 %v672
      %v1053 = vunpack.c.l.b16 %v673
      %v1054 = vunpack.c.h.b16 %v673
      %v1055 = vunpack.c.l.b16 %v674
      %v1056 = vunpack.c.h.b16 %v674
      %v1057 = vunpack.c.l.b16 %v675
      %v1058 = vunpack.c.l.b16 %v676
      %v1059 = vunpack.c.h.b16 %v676
      %v1060 = vunpack.c.l.b16 %v677
      %v1061 = vunpack.c.h.b16 %v677
      %v1062 = vunpack.c.l.b16 %v678
      %v1063 = vunpack.c.h.b16 %v678
      %v1064 = vunpack.c.l.b16 %v679
      %v1065 = vunpack.c.l.b16 %v680
      %v1066 = vunpack.c.h.b16 %v680
      %v1067 = vunpack.c.l.b16 %v681
      %v1068 = vunpack.c.h.b16 %v681
      %v1069 = vunpack.c.l.b16 %v682
      %v1070 = vunpack.c.h.b16 %v682
      %v1071 = vunpack.c.l.b16 %v683
      %v1072 = vunpack.c.l.b16 %v684
      %v1073 = vunpack.c.h.b16 %v684
      %v1074 = vunpack.c.l.b16 %v685
      %v1075 = vunpack.c.h.b16 %v685
      %v1076 = vunpack.c.l.b16 %v686
      %v1077 = vunpack.c.h.b16 %v686
      %v1078 = vunpack.c.l.b16 %v687
      %v1079 = vunpack.c.l.b16 %v688
      %v1080 = vunpack.c.h.b16 %v688
      %v1081 = vunpack.c.l.b16 %v689
      %v1082 = vunpack.c.h.b16 %v689
      %v1083 = vunpack.c.l.b16 %v690
      %v1084 = vunpack.c.h.b16 %v690
      %v1085 = vunpack.c.l.b16 %v691
      %v1086 = vunpack.c.l.b16 %v692
      %v1087 = vunpack.c.h.b16 %v692
      %v1088 = vunpack.c.l.b16 %v693
      %v1089 = vunpack.c.h.b16 %v693
      %v1090 = vunpack.c.l.b16 %v694
      %v1091 = vunpack.c.h.b16 %v694
      %v1092 = vunpack.c.l.b16 %v695
      %v1093 = vunpack.c.l.b16 %v696
      %v1094 = vunpack.c.h.b16 %v696
      %v1095 = vunpack.c.l.b16 %v697
      %v1096 = vunpack.c.h.b16 %v697
      %v1097 = vunpack.c.l.b16 %v698
      %v1098 = vunpack.c.h.b16 %v698
      %v1099 = vunpack.c.l.b16 %v699
      %v1100 = vunpack.c.l.b16 %v700
      %v1101 = vunpack.c.h.b16 %v700
      %v1102 = vunpack.c.l.b16 %v701
      %v1103 = vunpack.c.h.b16 %v701
      %v1104 = vunpack.c.l.b16 %v702
      %v1105 = vunpack.c.h.b16 %v702
      %v1106 = vunpack.c.l.b16 %v703
      %v1107 = vunpack.c.l.b16 %v704
      %v1108 = vunpack.c.h.b16 %v704
      %v1109 = vunpack.c.l.b16 %v705
      %v1110 = vunpack.c.h.b16 %v705
      %v1111 = vunpack.c.l.b16 %v706
      %v1112 = vunpack.c.h.b16 %v706
      %v1113 = vunpack.c.l.b16 %v707
      %v1114 = vunpack.c.l.b16 %v708
      %v1115 = vunpack.c.h.b16 %v708
      %v1116 = vunpack.c.l.b16 %v709
      %v1117 = vunpack.c.h.b16 %v709
      %v1118 = vunpack.c.l.b16 %v710
      %v1119 = vunpack.c.h.b16 %v710
      %v1120 = vunpack.c.l.b16 %v711
      %v1121 = vunpack.c.l.b16 %v712
      %v1122 = vunpack.c.h.b16 %v712
      %v1123 = vunpack.c.l.b16 %v713
      %v1124 = vunpack.c.h.b16 %v713
      %v1125 = vunpack.c.l.b16 %v714
      %v1126 = vunpack.c.h.b16 %v714
      %v1127 = vunpack.c.l.b16 %v715
      %v1128 = vunpack.c.l.b16 %v716
      %v1129 = vunpack.c.h.b16 %v716
      %v1130 = vunpack.c.l.b16 %v717
      %v1131 = vunpack.c.h.b16 %v717
      %v1132 = vunpack.c.l.b16 %v718
      %v1133 = vunpack.c.h.b16 %v718
      %v1134 = vunpack.c.l.b16 %v719
      %v1135 = vunpack.c.l.b16 %v720
      %v1136 = vunpack.c.h.b16 %v720
      %v1137 = vunpack.c.l.b16 %v721
      %v1138 = vunpack.c.h.b16 %v721
      %v1139 = vunpack.c.l.b16 %v722
      %v1140 = vunpack.c.h.b16 %v722
      %v1141 = vunpack.c.l.b16 %v723
      %v1142 = vunpack.c.l.b16 %v724
      %v1143 = vunpack.c.h.b16 %v724
      %v1144 = vunpack.c.l.b16 %v725
      %v1145 = vunpack.c.h.b16 %v725
      %v1146 = vunpack.c.l.b16 %v726
      %v1147 = vunpack.c.h.b16 %v726
      %v1148 = vunpack.c.l.b16 %v727
      %v1149 = vunpack.c.l.b16 %v728
      %v1150 = vunpack.c.h.b16 %v728
      %v1151 = vunpack.c.l.b16 %v729
      %v1152 = vunpack.c.h.b16 %v729
      %v1153 = vunpack.c.l.b16 %v730
      %v1154 = vunpack.c.h.b16 %v730
      %v1155 = vunpack.c.l.b16 %v731
      %v1156 = vunpack.c.l.b16 %v732
      %v1157 = vunpack.c.h.b16 %v732
      %v1158 = vunpack.c.l.b16 %v733
      %v1159 = vunpack.c.h.b16 %v733
      %v1160 = vunpack.c.l.b16 %v734
      %v1161 = vunpack.c.h.b16 %v734
      %v1162 = vunpack.c.l.b16 %v735
      %v1163 = vunpack.c.l.b16 %v736
      %v1164 = vunpack.c.h.b16 %v736
      %v1165 = vunpack.c.l.b16 %v737
      %v1166 = vunpack.c.h.b16 %v737
      %v1167 = vunpack.c.l.b16 %v738
      %v1168 = vunpack.c.h.b16 %v738
      %v1169 = vunpack.c.l.b16 %v739
      %v1170 = vunpack.c.l.b16 %v740
      %v1171 = vunpack.c.h.b16 %v740
      %v1172 = vunpack.c.l.b16 %v741
      %v1173 = vunpack.c.h.b16 %v741
      %v1174 = vunpack.c.l.b16 %v742
      %v1175 = vunpack.c.h.b16 %v742
      %v1176 = vunpack.c.l.b16 %v743
      %v1177 = vunpack.c.l.b16 %v744
      %v1178 = vunpack.c.h.b16 %v744
      %v1179 = vunpack.c.l.b16 %v745
      %v1180 = vunpack.c.h.b16 %v745
      %v1181 = vunpack.c.l.b16 %v746
      %v1182 = vunpack.c.h.b16 %v746
      %v1183 = vunpack.c.l.b16 %v747
      %v1184 = vunpack.c.l.b16 %v748
      %v1185 = vunpack.c.h.b16 %v748
      %v1186 = vunpack.c.l.b16 %v749
      %v1187 = vunpack.c.h.b16 %v749
      %v1188 = vunpack.c.l.b16 %v750
      %v1189 = vunpack.c.h.b16 %v750
      %v1190 = vunpack.c.l.b16 %v751
      %v1191 = vunpack.c.l.b16 %v752
      %v1192 = vunpack.c.h.b16 %v752
      %v1193 = vunpack.c.l.b16 %v753
      %v1194 = vunpack.c.h.b16 %v753
      %v1195 = vunpack.c.l.b16 %v754
      %v1196 = vunpack.c.h.b16 %v754
      %v1197 = vunpack.c.l.b16 %v755
      %v1198 = vunpack.c.l.b16 %v756
      %v1199 = vunpack.c.h.b16 %v756
      %v1200 = vunpack.c.l.b16 %v757
      %v1201 = vunpack.c.h.b16 %v757
      %v1202 = vunpack.c.l.b16 %v758
      %v1203 = vunpack.c.h.b16 %v758
      %v1204 = vunpack.c.l.b16 %v759
      %v1205 = vunpack.c.l.b16 %v760
      %v1206 = vunpack.c.h.b16 %v760
      %v1207 = vunpack.c.l.b16 %v761
      %v1208 = vunpack.c.h.b16 %v761
      %v1209 = vunpack.c.l.b16 %v762
      %v1210 = vunpack.c.h.b16 %v762
      %v1211 = vunpack.c.l.b16 %v763
      %v1212 = vunpack.c.l.b16 %v764
      %v1213 = vunpack.c.h.b16 %v764
      %v1214 = vunpack.c.l.b16 %v765
      %v1215 = vunpack.c.h.b16 %v765
      %v1216 = vunpack.c.l.b16 %v766
      %v1217 = vunpack.c.h.b16 %v766
      %v1218 = vunpack.c.l.b16 %v767
      %v1219 = vunpack.c.l.b16 %v768
      %v1220 = vunpack.c.h.b16 %v768
      %v1221 = vunpack.c.l.b16 %v769
      %v1222 = vunpack.c.h.b16 %v769
      %v1223 = vunpack.c.l.b16 %v770
      %v1224 = vunpack.c.h.b16 %v770
      %v1225 = vunpack.c.l.b16 %v771
      %v1226 = vunpack.c.l.b16 %v772
      %v1227 = vunpack.c.h.b16 %v772
      %v1228 = vunpack.c.l.b16 %v773
      %v1229 = vunpack.c.h.b16 %v773
      %v1230 = vunpack.c.l.b16 %v774
      %v1231 = vunpack.c.h.b16 %v774
      %v1232 = vunpack.c.l.b16 %v775
      %v1233 = vpack.c.b16 %v1016, %v1009
      %v1234 = vpack.c.b16 %v1017, %v1010
      %v1235 = vpack.c.b16 %v1018, %v1011
      %v1236 = vpack.c.b16 %v1019, %v1012
      %v1237 = vpack.c.b16 %v1020, %v1013
      %v1238 = vpack.c.b16 %v1021, %v1014
      %v1239 = vpack.c.b16 %v1022, %v1015
      %v1240 = vpack.c.b16 %v1030, %v1023
      %v1241 = vpack.c.b16 %v1031, %v1024
      %v1242 = vpack.c.b16 %v1032, %v1025
      %v1243 = vpack.c.b16 %v1033, %v1026
      %v1244 = vpack.c.b16 %v1034, %v1027
      %v1245 = vpack.c.b16 %v1035, %v1028
      %v1246 = vpack.c.b16 %v1036, %v1029
      %v1247 = vpack.c.b16 %v1044, %v1037
      %v1248 = vpack.c.b16 %v1045, %v1038
      %v1249 = vpack.c.b16 %v1046, %v1039
      %v1250 = vpack.c.b16 %v1047, %v1040
      %v1251 = vpack.c.b16 %v1048, %v1041
      %v1252 = vpack.c.b16 %v1049, %v1042
      %v1253 = vpack.c.b16 %v1050, %v1043
      %v1254 = vpack.c.b16 %v1058, %v1051
      %v1255 = vpack.c.b16 %v1059, %v1052
      %v1256 = vpack.c.b16 %v1060, %v1053
      %v1257 = vpack.c.b16 %v1061, %v1054
      %v1258 = vpack.c.b16 %v1062, %v1055
      %v1259 = vpack.c.b16 %v1063, %v1056
      %v1260 = vpack.c.b16 %v1064, %v1057
      %v1261 = vpack.c.b16 %v1072, %v1065
      %v1262 = vpack.c.b16 %v1073, %v1066
      %v1263 = vpack.c.b16 %v1074, %v1067
      %v1264 = vpack.c.b16 %v1075, %v1068
      %v1265 = vpack.c.b16 %v1076, %v1069
      %v1266 = vpack.c.b16 %v1077, %v1070
      %v1267 = vpack.c.b16 %v1078, %v1071
      %v1268 = vpack.c.b16 %v1086, %v1079
      %v1269 = vpack.c.b16 %v1087, %v1080
      %v1270 = vpack.c.b16 %v1088, %v1081
      %v1271 = vpack.c.b16 %v1089, %v1082
      %v1272 = vpack.c.b16 %v1090, %v1083
      %v1273 = vpack.c.b16 %v1091, %v1084
      %v1274 = vpack.c.b16 %v1092, %v1085
      %v1275 = vpack.c.b16 %v1100, %v1093
      %v1276 = vpack.c.b16 %v1101, %v1094
      %v1277 = vpack.c.b16 %v1102, %v1095
      %v1278 = vpack.c.b16 %v1103, %v1096
      %v1279 = vpack.c.b16 %v1104, %v1097
      %v1280 = vpack.c.b16 %v1105, %v1098
      %v1281 = vpack.c.b16 %v1106, %v1099
      %v1282 = vpack.c.b16 %v1114, %v1107
      %v1283 = vpack.c.b16 %v1115, %v1108
      %v1284 = vpack.c.b16 %v1116, %v1109
      %v1285 = vpack.c.b16 %v1117, %v1110
      %v1286 = vpack.c.b16 %v1118, %v1111
      %v1287 = vpack.c.b16 %v1119, %v1112
      %v1288 = vpack.c.b16 %v1120, %v1113
      %v1289 = vpack.c.b16 %v1128, %v1121
      %v1290 = vpack.c.b16 %v1129, %v1122
      %v1291 = vpack.c.b16 %v1130, %v1123
      %v1292 = vpack.c.b16 %v1131, %v1124
      %v1293 = vpack.c.b16 %v1132, %v1125
      %v1294 = vpack.c.b16 %v1133, %v1126
      %v1295 = vpack.c.b16 %v1134, %v1127
      %v1296 = vpack.c.b16 %v1142, %v1135
      %v1297 = vpack.c.b16 %v1143, %v1136
      %v1298 = vpack.c.b16 %v1144, %v1137
      %v1299 = vpack.c.b16 %v1145, %v1138
      %v1300 = vpack.c.b16 %v1146, %v1139
      %v1301 = vpack.c.b16 %v1147, %v1140
      %v1302 = vpack.c.b16 %v1148, %v1141
      %v1303 = vpack.c.b16 %v1156, %v1149
      %v1304 = vpack.c.b16 %v1157, %v1150
      %v1305 = vpack.c.b16 %v1158, %v1151
      %v1306 = vpack.c.b16 %v1159, %v1152
      %v1307 = vpack.c.b16 %v1160, %v1153
      %v1308 = vpack.c.b16 %v1161, %v1154
      %v1309 = vpack.c.b16 %v1162, %v1155
      %v1310 = vpack.c.b16 %v1170, %v1163
      %v1311 = vpack.c.b16 %v1171, %v1164
      %v1312 = vpack.c.b16 %v1172, %v1165
      %v1313 = vpack.c.b16 %v1173, %v1166
      %v1314 = vpack.c.b16 %v1174, %v1167
      %v1315 = vpack.c.b16 %v1175, %v1168
      %v1316 = vpack.c.b16 %v1176, %v1169
      %v1317 = vpack.c.b16 %v1184, %v1177
      %v1318 = vpack.c.b16 %v1185, %v1178
      %v1319 = vpack.c.b16 %v1186, %v1179
      %v1320 = vpack.c.b16 %v1187, %v1180
      %v1321 = vpack.c.b16 %v1188, %v1181
      %v1322 = vpack.c.b16 %v1189, %v1182
      %v1323 = vpack.c.b16 %v1190, %v1183
      %v1324 = vpack.c.b16 %v1198, %v1191
      %v1325 = vpack.c.b16 %v1199, %v1192
      %v1326 = vpack.c.b16 %v1200, %v1193
      %v1327 = vpack.c.b16 %v1201, %v1194
      %v1328 = vpack.c.b16 %v1202, %v1195
      %v1329 = vpack.c.b16 %v1203, %v1196
      %v1330 = vpack.c.b16 %v1204, %v1197
      %v1331 = vpack.c.b16 %v1212, %v1205
      %v1332 = vpack.c.b16 %v1213, %v1206
      %v1333 = vpack.c.b16 %v1214, %v1207
      %v1334 = vpack.c.b16 %v1215, %v1208
      %v1335 = vpack.c.b16 %v1216, %v1209
      %v1336 = vpack.c.b16 %v1217, %v1210
      %v1337 = vpack.c.b16 %v1218, %v1211
      %v1338 = vpack.c.b16 %v1226, %v1219
      %v1339 = vpack.c.b16 %v1227, %v1220
      %v1340 = vpack.c.b16 %v1228, %v1221
      %v1341 = vpack.c.b16 %v1229, %v1222
      %v1342 = vpack.c.b16 %v1230, %v1223
      %v1343 = vpack.c.b16 %v1231, %v1224
      %v1344 = vpack.c.b16 %v1232, %v1225
      %v1539 = vunpack.c.l.b16 %v776
      %v1540 = vunpack.c.l.b16 %v777
      %v1541 = vunpack.c.l.b16 %v778
      %v1542 = vunpack.c.l.b16 %v779
      %v1543 = vunpack.c.l.b16 %v780
      %v1544 = vunpack.c.l.b16 %v781
      %v1545 = vunpack.c.l.b16 %v782
      %v1546 = vunpack.c.l.b16 %v783
      %v1547 = vunpack.c.l.b16 %v784
      %v1548 = vunpack.c.l.b16 %v785
      %v1549 = vunpack.c.l.b16 %v786
      %v1550 = vunpack.c.l.b16 %v787
      %v1551 = vunpack.c.l.b16 %v788
      %v1552 = vunpack.c.l.b16 %v789
      %v1553 = vunpack.c.l.b16 %v790
      %v1554 = vunpack.c.l.b16 %v791
      %v1555 = vunpack.c.l.b16 %v792
      %v1556 = vunpack.c.l.b16 %v793
      %v1557 = vunpack.c.l.b16 %v794
      %v1558 = vunpack.c.l.b16 %v795
      %v1559 = vunpack.c.l.b16 %v796
      %v1560 = vunpack.c.l.b16 %v797
      %v1561 = vunpack.c.l.b16 %v798
      %v1562 = vunpack.c.l.b16 %v799
      %v1563 = vunpack.c.l.b16 %v800
      %v1564 = vunpack.c.l.b16 %v801
      %v1565 = vunpack.c.l.b16 %v802
      %v1566 = vunpack.c.l.b16 %v803
      %v1567 = vunpack.c.l.b16 %v804
      %v1568 = vunpack.c.l.b16 %v805
      %v1569 = vunpack.c.l.b16 %v806
      %v1570 = vunpack.c.l.b16 %v807
      %v1571 = vunpack.c.l.b16 %v808
      %v1572 = vunpack.c.l.b16 %v809
      %v1573 = vunpack.c.l.b16 %v810
      %v1574 = vunpack.c.l.b16 %v811
      %v1575 = vunpack.c.l.b16 %v812
      %v1576 = vunpack.c.l.b16 %v813
      %v1577 = vunpack.c.l.b16 %v814
      %v1578 = vunpack.c.l.b16 %v815
      %v1579 = vunpack.c.l.b16 %v816
      %v1580 = vunpack.c.l.b16 %v817
      %v1581 = vunpack.c.l.b16 %v818
      %v1582 = vunpack.c.l.b16 %v819
      %v1583 = vunpack.c.l.b16 %v820
      %v1584 = vunpack.c.l.b16 %v821
      %v1585 = vunpack.c.l.b16 %v822
      %v1586 = vunpack.c.l.b16 %v823
      %v1587 = vunpack.c.l.b16 %v824
      %v1588 = vunpack.c.l.b16 %v825
      %v1589 = vunpack.c.l.b16 %v826
      %v1590 = vunpack.c.l.b16 %v827
      %v1591 = vunpack.c.l.b16 %v828
      %v1592 = vunpack.c.l.b16 %v829
      %v1593 = vunpack.c.l.b16 %v830
      %v1594 = vunpack.c.l.b16 %v831
      %v1595 = vunpack.c.l.b16 %v832
      %v1596 = vunpack.c.l.b16 %v833
      %v1597 = vunpack.c.l.b16 %v834
      %v1598 = vunpack.c.l.b16 %v835
      %v1599 = vunpack.c.l.b16 %v836
      %v1600 = vunpack.c.l.b16 %v837
      %v1601 = vunpack.c.l.b16 %v838
      %v1602 = vunpack.c.l.b16 %v839
      %v1603 = vunpack.c.l.b16 %v840
      %v1604 = vunpack.c.l.b16 %v841
      %v1605 = vunpack.c.l.b16 %v842
      %v1606 = vunpack.c.l.b16 %v843
      %v1607 = vunpack.c.l.b16 %v844
      %v1608 = vunpack.c.l.b16 %v845
      %v1609 = vunpack.c.l.b16 %v846
      %v1610 = vunpack.c.l.b16 %v847
      %v1611 = vunpack.c.l.b16 %v848
      %v1612 = vunpack.c.l.b16 %v849
      %v1613 = vunpack.c.l.b16 %v850
      %v1614 = vunpack.c.l.b16 %v851
      %v1615 = vunpack.c.l.b16 %v852
      %v1616 = vunpack.c.l.b16 %v853
      %v1617 = vunpack.c.l.b16 %v854
      %v1618 = vunpack.c.l.b16 %v855
      %v1619 = vunpack.c.l.b16 %v856
      %v1620 = vunpack.c.l.b16 %v857
      %v1621 = vunpack.c.l.b16 %v858
      %v1622 = vunpack.c.l.b16 %v859
      %v1623 = vunpack.c.l.b16 %v860
      %v1624 = vunpack.c.l.b16 %v861
      %v1625 = vunpack.c.l.b16 %v862
      %v1626 = vunpack.c.l.b16 %v863
      %v1627 = vunpack.c.l.b16 %v864
      %v1628 = vunpack.c.l.b16 %v865
      %v1629 = vunpack.c.l.b16 %v866
      %v1630 = vunpack.c.l.b16 %v867
      %v1631 = vunpack.c.l.b16 %v868
      %v1632 = vunpack.c.l.b16 %v869
      %v1633 = vunpack.c.l.b16 %v870
      %v1634 = vunpack.c.l.b16 %v871
      %v1635 = vunpack.c.l.b16 %v872
      %v1636 = vunpack.c.l.b16 %v873
      %v1637 = vpack.c.b16 %v1540, %v1539
      %v1638 = vpack.c.b16 %v1542, %v1541
      %v1639 = vpack.c.b16 %v1544, %v1543
      %v1640 = vpack.c.b16 %v1546, %v1545
      %v1641 = vpack.c.b16 %v1548, %v1547
      %v1642 = vpack.c.b16 %v1550, %v1549
      %v1643 = vpack.c.b16 %v1552, %v1551
      %v1644 = vpack.c.b16 %v1554, %v1553
      %v1645 = vpack.c.b16 %v1556, %v1555
      %v1646 = vpack.c.b16 %v1558, %v1557
      %v1647 = vpack.c.b16 %v1560, %v1559
      %v1648 = vpack.c.b16 %v1562, %v1561
      %v1649 = vpack.c.b16 %v1564, %v1563
      %v1650 = vpack.c.b16 %v1566, %v1565
      %v1651 = vpack.c.b16 %v1568, %v1567
      %v1652 = vpack.c.b16 %v1570, %v1569
      %v1653 = vpack.c.b16 %v1572, %v1571
      %v1654 = vpack.c.b16 %v1574, %v1573
      %v1655 = vpack.c.b16 %v1576, %v1575
      %v1656 = vpack.c.b16 %v1578, %v1577
      %v1657 = vpack.c.b16 %v1580, %v1579
      %v1658 = vpack.c.b16 %v1582, %v1581
      %v1659 = vpack.c.b16 %v1584, %v1583
      %v1660 = vpack.c.b16 %v1586, %v1585
      %v1661 = vpack.c.b16 %v1588, %v1587
      %v1662 = vpack.c.b16 %v1590, %v1589
      %v1663 = vpack.c.b16 %v1592, %v1591
      %v1664 = vpack.c.b16 %v1594, %v1593
      %v1665 = vpack.c.b16 %v1596, %v1595
      %v1666 = vpack.c.b16 %v1598, %v1597
      %v1667 = vpack.c.b16 %v1600, %v1599
      %v1668 = vpack.c.b16 %v1602, %v1601
      %v1669 = vpack.c.b16 %v1604, %v1603
      %v1670 = vpack.c.b16 %v1606, %v1605
      %v1671 = vpack.c.b16 %v1608, %v1607
      %v1672 = vpack.c.b16 %v1610, %v1609
      %v1673 = vpack.c.b16 %v1612, %v1611
      %v1674 = vpack.c.b16 %v1614, %v1613
      %v1675 = vpack.c.b16 %v1616, %v1615
      %v1676 = vpack.c.b16 %v1618, %v1617
      %v1677 = vpack.c.b16 %v1620, %v1619
      %v1678 = vpack.c.b16 %v1622, %v1621
      %v1679 = vpack.c.b16 %v1624, %v1623
      %v1680 = vpack.c.b16 %v1626, %v1625
      %v1681 = vpack.c.b16 %v1628, %v1627
      %v1682 = vpack.c.b16 %v1630, %v1629
      %v1683 = vpack.c.b16 %v1632, %v1631
      %v1684 = vpack.c.b16 %v1634, %v1633
      %v1685 = vpack.c.b16 %v1636, %v1635
      %vm1735 = vcmask 130048
      %v1737 = vsel %vm1735, %v1239, 0
      %v1740 = vsel %vm1735, %v1246, 0
      %v1743 = vsel %vm1735, %v1253, 0
      %v1746 = vsel %vm1735, %v1260, 0
      %v1749 = vsel %vm1735, %v1267, 0
      %v1752 = vsel %vm1735, %v1274, 0
      %v1755 = vsel %vm1735, %v1281, 0
      %v1758 = vsel %vm1735, %v1288, 0
      %v1761 = vsel %vm1735, %v1295, 0
      %v1764 = vsel %vm1735, %v1302, 0
      %v1767 = vsel %vm1735, %v1309, 0
      %v1770 = vsel %vm1735, %v1316, 0
      %v1773 = vsel %vm1735, %v1323, 0
      %v1776 = vsel %vm1735, %v1330, 0
      %v1779 = vsel %vm1735, %v1337, 0
      %v1782 = vsel %vm1735, %v1344, 0
      %1784 = vmatprep.subr.bf16.mxu0 0
      %1785 = vmatpush1.bf16.msra.mxu0 %v1644
      %1786 = vmatprep.subr.bf16.mxu0 0
      %1787 = vmatpush1.bf16.msra.mxu0 %v1643
      %1788 = vmatprep.subr.bf16.mxu0 0
      %1789 = vmatpush1.bf16.msra.mxu0 %v1642
      %1790 = vmatprep.subr.bf16.mxu0 0
      %1791 = vmatpush1.bf16.msra.mxu0 %v1641
      %1792 = vmatprep.subr.bf16.mxu0 0
      %1793 = vmatpush1.bf16.msra.mxu0 %v1640
      %1794 = vmatprep.subr.bf16.mxu0 0
      %1795 = vmatpush1.bf16.msra.mxu0 %v1639
      %1796 = vmatprep.subr.bf16.mxu0 0
      %1797 = vmatpush1.bf16.msra.mxu0 %v1638
      %1798 = vmatprep.subr.bf16.mxu0 0
      %1799 = vmatpush1.bf16.msra.mxu0 %v1637
      %1800 = vmatprep.subr.bf16.mxu0 0
      %1801 = vmatpush2.bf16.msra.mxu0 %v1652
      %1802 = vmatprep.subr.bf16.mxu0 0
      %1803 = vmatpush2.bf16.msra.mxu0 %v1651
      %1804 = vmatprep.subr.bf16.mxu0 0
      %1805 = vmatpush2.bf16.msra.mxu0 %v1650
      %1806 = vmatprep.subr.bf16.mxu0 0
      %1807 = vmatpush2.bf16.msra.mxu0 %v1649
      %1808 = vmatprep.subr.bf16.mxu0 0
      %1809 = vmatpush2.bf16.msra.mxu0 %v1648
      %1810 = vmatprep.subr.bf16.mxu0 0
      %1811 = vmatpush2.bf16.msra.mxu0 %v1647
      %1812 = vmatprep.subr.bf16.mxu0 0
      %1813 = vmatpush2.bf16.msra.mxu0 %v1646
      %1814 = vmatprep.subr.bf16.mxu0 0
      %1815 = vmatpush2.bf16.msra.mxu0 %v1645
      %1816 = vmatprep.mubr.bf16.mxu0 %v1234
      %1817 = vmatmul.mubr.bf16.gmra.mxu0 %v1233
      %v1818 = vpop.f32.mrf.mxu0
      %v1819 = vadd.f32 %v879, %v1818
      %v1820 = vpop.f32.mrf.mxu0
      %v1821 = vpop.f32.mrf.mxu0
      %v1822 = vadd.f32 %v879, %v1821
      %v1823 = vpop.f32.mrf.mxu0
      %1824 = vmatprep.mubr.bf16.mxu0 %v1241
      %1825 = vmatmul.mubr.bf16.gmra.mxu0 %v1240
      %v1826 = vpop.f32.mrf.mxu0
      %v1827 = vadd.f32 %v879, %v1826
      %v1828 = vpop.f32.mrf.mxu0
      %v1829 = vpop.f32.mrf.mxu0
      %v1830 = vadd.f32 %v879, %v1829
      %v1831 = vpop.f32.mrf.mxu0
      %1832 = vmatprep.mubr.bf16.mxu0 %v1248
      %1833 = vmatmul.mubr.bf16.gmra.mxu0 %v1247
      %v1834 = vpop.f32.mrf.mxu0
      %v1835 = vadd.f32 %v879, %v1834
      %v1836 = vpop.f32.mrf.mxu0
      %v1837 = vpop.f32.mrf.mxu0
      %v1838 = vadd.f32 %v879, %v1837
      %v1839 = vpop.f32.mrf.mxu0
      %1840 = vmatprep.mubr.bf16.mxu0 %v1255
      %1841 = vmatmul.mubr.bf16.gmra.mxu0 %v1254
      %v1842 = vpop.f32.mrf.mxu0
      %v1843 = vadd.f32 %v879, %v1842
      %v1844 = vpop.f32.mrf.mxu0
      %v1845 = vpop.f32.mrf.mxu0
      %v1846 = vadd.f32 %v879, %v1845
      %v1847 = vpop.f32.mrf.mxu0
      %1848 = vmatprep.mubr.bf16.mxu0 %v1262
      %1849 = vmatmul.mubr.bf16.gmra.mxu0 %v1261
      %v1850 = vpop.f32.mrf.mxu0
      %v1851 = vadd.f32 %v879, %v1850
      %v1852 = vpop.f32.mrf.mxu0
      %v1853 = vpop.f32.mrf.mxu0
      %v1854 = vadd.f32 %v879, %v1853
      %v1855 = vpop.f32.mrf.mxu0
      %1856 = vmatprep.mubr.bf16.mxu0 %v1269
      %1857 = vmatmul.mubr.bf16.gmra.mxu0 %v1268
      %v1858 = vpop.f32.mrf.mxu0
      %v1859 = vadd.f32 %v879, %v1858
      %v1860 = vpop.f32.mrf.mxu0
      %v1861 = vpop.f32.mrf.mxu0
      %v1862 = vadd.f32 %v879, %v1861
      %v1863 = vpop.f32.mrf.mxu0
      %1864 = vmatprep.mubr.bf16.mxu0 %v1276
      %1865 = vmatmul.mubr.bf16.gmra.mxu0 %v1275
      %v1866 = vpop.f32.mrf.mxu0
      %v1867 = vadd.f32 %v879, %v1866
      %v1868 = vpop.f32.mrf.mxu0
      %v1869 = vpop.f32.mrf.mxu0
      %v1870 = vadd.f32 %v879, %v1869
      %v1871 = vpop.f32.mrf.mxu0
      %1872 = vmatprep.mubr.bf16.mxu0 %v1283
      %1873 = vmatmul.mubr.bf16.gmra.mxu0 %v1282
      %v1874 = vpop.f32.mrf.mxu0
      %v1875 = vadd.f32 %v879, %v1874
      %v1876 = vpop.f32.mrf.mxu0
      %v1877 = vpop.f32.mrf.mxu0
      %v1878 = vadd.f32 %v879, %v1877
      %v1879 = vpop.f32.mrf.mxu0
      %1880 = vmatprep.mubr.bf16.mxu0 %v1290
      %1881 = vmatmul.mubr.bf16.gmra.mxu0 %v1289
      %v1882 = vpop.f32.mrf.mxu0
      %v1883 = vadd.f32 %v879, %v1882
      %v1884 = vpop.f32.mrf.mxu0
      %v1885 = vpop.f32.mrf.mxu0
      %v1886 = vadd.f32 %v879, %v1885
      %v1887 = vpop.f32.mrf.mxu0
      %1888 = vmatprep.mubr.bf16.mxu0 %v1297
      %1889 = vmatmul.mubr.bf16.gmra.mxu0 %v1296
      %v1890 = vpop.f32.mrf.mxu0
      %v1891 = vadd.f32 %v879, %v1890
      %v1892 = vpop.f32.mrf.mxu0
      %v1893 = vpop.f32.mrf.mxu0
      %v1894 = vadd.f32 %v879, %v1893
      %v1895 = vpop.f32.mrf.mxu0
      %1896 = vmatprep.mubr.bf16.mxu0 %v1304
      %1897 = vmatmul.mubr.bf16.gmra.mxu0 %v1303
      %v1898 = vpop.f32.mrf.mxu0
      %v1899 = vadd.f32 %v879, %v1898
      %v1900 = vpop.f32.mrf.mxu0
      %v1901 = vpop.f32.mrf.mxu0
      %v1902 = vadd.f32 %v879, %v1901
      %v1903 = vpop.f32.mrf.mxu0
      %1904 = vmatprep.mubr.bf16.mxu0 %v1311
      %1905 = vmatmul.mubr.bf16.gmra.mxu0 %v1310
      %v1906 = vpop.f32.mrf.mxu0
      %v1907 = vadd.f32 %v879, %v1906
      %v1908 = vpop.f32.mrf.mxu0
      %v1909 = vpop.f32.mrf.mxu0
      %v1910 = vadd.f32 %v879, %v1909
      %v1911 = vpop.f32.mrf.mxu0
      %1912 = vmatprep.mubr.bf16.mxu0 %v1318
      %1913 = vmatmul.mubr.bf16.gmra.mxu0 %v1317
      %v1914 = vpop.f32.mrf.mxu0
      %v1915 = vadd.f32 %v879, %v1914
      %v1916 = vpop.f32.mrf.mxu0
      %v1917 = vpop.f32.mrf.mxu0
      %v1918 = vadd.f32 %v879, %v1917
      %v1919 = vpop.f32.mrf.mxu0
      %1920 = vmatprep.mubr.bf16.mxu0 %v1325
      %1921 = vmatmul.mubr.bf16.gmra.mxu0 %v1324
      %v1922 = vpop.f32.mrf.mxu0
      %v1923 = vadd.f32 %v879, %v1922
      %v1924 = vpop.f32.mrf.mxu0
      %v1925 = vpop.f32.mrf.mxu0
      %v1926 = vadd.f32 %v879, %v1925
      %v1927 = vpop.f32.mrf.mxu0
      %1928 = vmatprep.mubr.bf16.mxu0 %v1332
      %1929 = vmatmul.mubr.bf16.gmra.mxu0 %v1331
      %v1930 = vpop.f32.mrf.mxu0
      %v1931 = vadd.f32 %v879, %v1930
      %v1932 = vpop.f32.mrf.mxu0
      %v1933 = vpop.f32.mrf.mxu0
      %v1934 = vadd.f32 %v879, %v1933
      %v1935 = vpop.f32.mrf.mxu0
      %1936 = vmatprep.mubr.bf16.mxu0 %v1339
      %1937 = vmatmul.mubr.bf16.gmra.mxu0 %v1338
      %v1938 = vpop.f32.mrf.mxu0
      %v1939 = vadd.f32 %v879, %v1938
      %v1940 = vpop.f32.mrf.mxu0
      %v1941 = vpop.f32.mrf.mxu0
      %v1942 = vadd.f32 %v879, %v1941
      %v1943 = vpop.f32.mrf.mxu0
      %1944 = vdwg.mxu0
      %1945 = vmatprep.subr.bf16.mxu0 0
      %1946 = vmatpush1.bf16.msra.mxu0 %v1660
      %1947 = vmatprep.subr.bf16.mxu0 0
      %1948 = vmatpush1.bf16.msra.mxu0 %v1659
      %1949 = vmatprep.subr.bf16.mxu0 0
      %1950 = vmatpush1.bf16.msra.mxu0 %v1658
      %1951 = vmatprep.subr.bf16.mxu0 0
      %1952 = vmatpush1.bf16.msra.mxu0 %v1657
      %1953 = vmatprep.subr.bf16.mxu0 0
      %1954 = vmatpush1.bf16.msra.mxu0 %v1656
      %1955 = vmatprep.subr.bf16.mxu0 0
      %1956 = vmatpush1.bf16.msra.mxu0 %v1655
      %1957 = vmatprep.subr.bf16.mxu0 0
      %1958 = vmatpush1.bf16.msra.mxu0 %v1654
      %1959 = vmatprep.subr.bf16.mxu0 0
      %1960 = vmatpush1.bf16.msra.mxu0 %v1653
      %1961 = vmatprep.subr.bf16.mxu0 0
      %1962 = vmatpush2.bf16.msra.mxu0 %v1668
      %1963 = vmatprep.subr.bf16.mxu0 0
      %1964 = vmatpush2.bf16.msra.mxu0 %v1667
      %1965 = vmatprep.subr.bf16.mxu0 0
      %1966 = vmatpush2.bf16.msra.mxu0 %v1666
      %1967 = vmatprep.subr.bf16.mxu0 0
      %1968 = vmatpush2.bf16.msra.mxu0 %v1665
      %1969 = vmatprep.subr.bf16.mxu0 0
      %1970 = vmatpush2.bf16.msra.mxu0 %v1664
      %1971 = vmatprep.subr.bf16.mxu0 0
      %1972 = vmatpush2.bf16.msra.mxu0 %v1663
      %1973 = vmatprep.subr.bf16.mxu0 0
      %1974 = vmatpush2.bf16.msra.mxu0 %v1662
      %1975 = vmatprep.subr.bf16.mxu0 0
      %1976 = vmatpush2.bf16.msra.mxu0 %v1661
      %1977 = vmatprep.mubr.bf16.mxu0 %v1236
      %1978 = vmatmul.mubr.bf16.gmra.mxu0 %v1235
      %v1979 = vpop.f32.mrf.mxu0
      %v1980 = vadd.f32 %v1819, %v1979
      %v1981 = vpop.f32.mrf.mxu0
      %v1982 = vpop.f32.mrf.mxu0
      %v1983 = vadd.f32 %v1822, %v1982
      %v1984 = vpop.f32.mrf.mxu0
      %1985 = vmatprep.mubr.bf16.mxu0 %v1243
      %1986 = vmatmul.mubr.bf16.gmra.mxu0 %v1242
      %v1987 = vpop.f32.mrf.mxu0
      %v1988 = vadd.f32 %v1827, %v1987
      %v1989 = vpop.f32.mrf.mxu0
      %v1990 = vpop.f32.mrf.mxu0
      %v1991 = vadd.f32 %v1830, %v1990
      %v1992 = vpop.f32.mrf.mxu0
      %1993 = vmatprep.mubr.bf16.mxu0 %v1250
      %1994 = vmatmul.mubr.bf16.gmra.mxu0 %v1249
      %v1995 = vpop.f32.mrf.mxu0
      %v1996 = vadd.f32 %v1835, %v1995
      %v1997 = vpop.f32.mrf.mxu0
      %v1998 = vpop.f32.mrf.mxu0
      %v1999 = vadd.f32 %v1838, %v1998
      %v2000 = vpop.f32.mrf.mxu0
      %2001 = vmatprep.mubr.bf16.mxu0 %v1257
      %2002 = vmatmul.mubr.bf16.gmra.mxu0 %v1256
      %v2003 = vpop.f32.mrf.mxu0
      %v2004 = vadd.f32 %v1843, %v2003
      %v2005 = vpop.f32.mrf.mxu0
      %v2006 = vpop.f32.mrf.mxu0
      %v2007 = vadd.f32 %v1846, %v2006
      %v2008 = vpop.f32.mrf.mxu0
      %2009 = vmatprep.mubr.bf16.mxu0 %v1264
      %2010 = vmatmul.mubr.bf16.gmra.mxu0 %v1263
      %v2011 = vpop.f32.mrf.mxu0
      %v2012 = vadd.f32 %v1851, %v2011
      %v2013 = vpop.f32.mrf.mxu0
      %v2014 = vpop.f32.mrf.mxu0
      %v2015 = vadd.f32 %v1854, %v2014
      %v2016 = vpop.f32.mrf.mxu0
      %2017 = vmatprep.mubr.bf16.mxu0 %v1271
      %2018 = vmatmul.mubr.bf16.gmra.mxu0 %v1270
      %v2019 = vpop.f32.mrf.mxu0
      %v2020 = vadd.f32 %v1859, %v2019
      %v2021 = vpop.f32.mrf.mxu0
      %v2022 = vpop.f32.mrf.mxu0
      %v2023 = vadd.f32 %v1862, %v2022
      %v2024 = vpop.f32.mrf.mxu0
      %2025 = vmatprep.mubr.bf16.mxu0 %v1278
      %2026 = vmatmul.mubr.bf16.gmra.mxu0 %v1277
      %v2027 = vpop.f32.mrf.mxu0
      %v2028 = vadd.f32 %v1867, %v2027
      %v2029 = vpop.f32.mrf.mxu0
      %v2030 = vpop.f32.mrf.mxu0
      %v2031 = vadd.f32 %v1870, %v2030
      %v2032 = vpop.f32.mrf.mxu0
      %2033 = vmatprep.mubr.bf16.mxu0 %v1285
      %2034 = vmatmul.mubr.bf16.gmra.mxu0 %v1284
      %v2035 = vpop.f32.mrf.mxu0
      %v2036 = vadd.f32 %v1875, %v2035
      %v2037 = vpop.f32.mrf.mxu0
      %v2038 = vpop.f32.mrf.mxu0
      %v2039 = vadd.f32 %v1878, %v2038
      %v2040 = vpop.f32.mrf.mxu0
      %2041 = vmatprep.mubr.bf16.mxu0 %v1292
      %2042 = vmatmul.mubr.bf16.gmra.mxu0 %v1291
      %v2043 = vpop.f32.mrf.mxu0
      %v2044 = vadd.f32 %v1883, %v2043
      %v2045 = vpop.f32.mrf.mxu0
      %v2046 = vpop.f32.mrf.mxu0
      %v2047 = vadd.f32 %v1886, %v2046
      %v2048 = vpop.f32.mrf.mxu0
      %2049 = vmatprep.mubr.bf16.mxu0 %v1299
      %2050 = vmatmul.mubr.bf16.gmra.mxu0 %v1298
      %v2051 = vpop.f32.mrf.mxu0
      %v2052 = vadd.f32 %v1891, %v2051
      %v2053 = vpop.f32.mrf.mxu0
      %v2054 = vpop.f32.mrf.mxu0
      %v2055 = vadd.f32 %v1894, %v2054
      %v2056 = vpop.f32.mrf.mxu0
      %2057 = vmatprep.mubr.bf16.mxu0 %v1306
      %2058 = vmatmul.mubr.bf16.gmra.mxu0 %v1305
      %v2059 = vpop.f32.mrf.mxu0
      %v2060 = vadd.f32 %v1899, %v2059
      %v2061 = vpop.f32.mrf.mxu0
      %v2062 = vpop.f32.mrf.mxu0
      %v2063 = vadd.f32 %v1902, %v2062
      %v2064 = vpop.f32.mrf.mxu0
      %2065 = vmatprep.mubr.bf16.mxu0 %v1313
      %2066 = vmatmul.mubr.bf16.gmra.mxu0 %v1312
      %v2067 = vpop.f32.mrf.mxu0
      %v2068 = vadd.f32 %v1907, %v2067
      %v2069 = vpop.f32.mrf.mxu0
      %v2070 = vpop.f32.mrf.mxu0
      %v2071 = vadd.f32 %v1910, %v2070
      %v2072 = vpop.f32.mrf.mxu0
      %2073 = vmatprep.mubr.bf16.mxu0 %v1320
      %2074 = vmatmul.mubr.bf16.gmra.mxu0 %v1319
      %v2075 = vpop.f32.mrf.mxu0
      %v2076 = vadd.f32 %v1915, %v2075
      %v2077 = vpop.f32.mrf.mxu0
      %v2078 = vpop.f32.mrf.mxu0
      %v2079 = vadd.f32 %v1918, %v2078
      %v2080 = vpop.f32.mrf.mxu0
      %2081 = vmatprep.mubr.bf16.mxu0 %v1327
      %2082 = vmatmul.mubr.bf16.gmra.mxu0 %v1326
      %v2083 = vpop.f32.mrf.mxu0
      %v2084 = vadd.f32 %v1923, %v2083
      %v2085 = vpop.f32.mrf.mxu0
      %v2086 = vpop.f32.mrf.mxu0
      %v2087 = vadd.f32 %v1926, %v2086
      %v2088 = vpop.f32.mrf.mxu0
      %2089 = vmatprep.mubr.bf16.mxu0 %v1334
      %2090 = vmatmul.mubr.bf16.gmra.mxu0 %v1333
      %v2091 = vpop.f32.mrf.mxu0
      %v2092 = vadd.f32 %v1931, %v2091
      %v2093 = vpop.f32.mrf.mxu0
      %v2094 = vpop.f32.mrf.mxu0
      %v2095 = vadd.f32 %v1934, %v2094
      %v2096 = vpop.f32.mrf.mxu0
      %2097 = vmatprep.mubr.bf16.mxu0 %v1341
      %2098 = vmatmul.mubr.bf16.gmra.mxu0 %v1340
      %v2099 = vpop.f32.mrf.mxu0
      %v2100 = vadd.f32 %v1939, %v2099
      %v2101 = vpop.f32.mrf.mxu0
      %v2102 = vpop.f32.mrf.mxu0
      %v2103 = vadd.f32 %v1942, %v2102
      %v2104 = vpop.f32.mrf.mxu0
      %2105 = vdwg.mxu0
      %2106 = vmatprep.subr.bf16.mxu0 0
      %2107 = vmatpush1.bf16.msra.mxu0 %v1676
      %2108 = vmatprep.subr.bf16.mxu0 0
      %2109 = vmatpush1.bf16.msra.mxu0 %v1675
      %2110 = vmatprep.subr.bf16.mxu0 0
      %2111 = vmatpush1.bf16.msra.mxu0 %v1674
      %2112 = vmatprep.subr.bf16.mxu0 0
      %2113 = vmatpush1.bf16.msra.mxu0 %v1673
      %2114 = vmatprep.subr.bf16.mxu0 0
      %2115 = vmatpush1.bf16.msra.mxu0 %v1672
      %2116 = vmatprep.subr.bf16.mxu0 0
      %2117 = vmatpush1.bf16.msra.mxu0 %v1671
      %2118 = vmatprep.subr.bf16.mxu0 0
      %2119 = vmatpush1.bf16.msra.mxu0 %v1670
      %2120 = vmatprep.subr.bf16.mxu0 0
      %2121 = vmatpush1.bf16.msra.mxu0 %v1669
      %2122 = vmatprep.subr.bf16.mxu0 0
      %2123 = vmatpush2.bf16.msra.mxu0 %v1684
      %2124 = vmatprep.subr.bf16.mxu0 0
      %2125 = vmatpush2.bf16.msra.mxu0 %v1683
      %2126 = vmatprep.subr.bf16.mxu0 0
      %2127 = vmatpush2.bf16.msra.mxu0 %v1682
      %2128 = vmatprep.subr.bf16.mxu0 0
      %2129 = vmatpush2.bf16.msra.mxu0 %v1681
      %2130 = vmatprep.subr.bf16.mxu0 0
      %2131 = vmatpush2.bf16.msra.mxu0 %v1680
      %2132 = vmatprep.subr.bf16.mxu0 0
      %2133 = vmatpush2.bf16.msra.mxu0 %v1679
      %2134 = vmatprep.subr.bf16.mxu0 0
      %2135 = vmatpush2.bf16.msra.mxu0 %v1678
      %2136 = vmatprep.subr.bf16.mxu0 0
      %2137 = vmatpush2.bf16.msra.mxu0 %v1677
      %2138 = vmatprep.mubr.bf16.mxu0 %v1238
      %2139 = vmatmul.mubr.bf16.gmra.mxu0 %v1237
      %v2140 = vpop.f32.mrf.mxu0
      %v2141 = vadd.f32 %v1980, %v2140
      %v2142 = vpop.f32.mrf.mxu0
      %v2143 = vpop.f32.mrf.mxu0
      %v2144 = vadd.f32 %v1983, %v2143
      %v2145 = vpop.f32.mrf.mxu0
      %2146 = vmatprep.mubr.bf16.mxu0 %v1245
      %2147 = vmatmul.mubr.bf16.gmra.mxu0 %v1244
      %v2148 = vpop.f32.mrf.mxu0
      %v2149 = vadd.f32 %v1988, %v2148
      %v2150 = vpop.f32.mrf.mxu0
      %v2151 = vpop.f32.mrf.mxu0
      %v2152 = vadd.f32 %v1991, %v2151
      %v2153 = vpop.f32.mrf.mxu0
      %2154 = vmatprep.mubr.bf16.mxu0 %v1252
      %2155 = vmatmul.mubr.bf16.gmra.mxu0 %v1251
      %v2156 = vpop.f32.mrf.mxu0
      %v2157 = vadd.f32 %v1996, %v2156
      %v2158 = vpop.f32.mrf.mxu0
      %v2159 = vpop.f32.mrf.mxu0
      %v2160 = vadd.f32 %v1999, %v2159
      %v2161 = vpop.f32.mrf.mxu0
      %2162 = vmatprep.mubr.bf16.mxu0 %v1259
      %2163 = vmatmul.mubr.bf16.gmra.mxu0 %v1258
      %v2164 = vpop.f32.mrf.mxu0
      %v2165 = vadd.f32 %v2004, %v2164
      %v2166 = vpop.f32.mrf.mxu0
      %v2167 = vpop.f32.mrf.mxu0
      %v2168 = vadd.f32 %v2007, %v2167
      %v2169 = vpop.f32.mrf.mxu0
      %2170 = vmatprep.mubr.bf16.mxu0 %v1266
      %2171 = vmatmul.mubr.bf16.gmra.mxu0 %v1265
      %v2172 = vpop.f32.mrf.mxu0
      %v2173 = vadd.f32 %v2012, %v2172
      %v2174 = vpop.f32.mrf.mxu0
      %v2175 = vpop.f32.mrf.mxu0
      %v2176 = vadd.f32 %v2015, %v2175
      %v2177 = vpop.f32.mrf.mxu0
      %2178 = vmatprep.mubr.bf16.mxu0 %v1273
      %2179 = vmatmul.mubr.bf16.gmra.mxu0 %v1272
      %v2180 = vpop.f32.mrf.mxu0
      %v2181 = vadd.f32 %v2020, %v2180
      %v2182 = vpop.f32.mrf.mxu0
      %v2183 = vpop.f32.mrf.mxu0
      %v2184 = vadd.f32 %v2023, %v2183
      %v2185 = vpop.f32.mrf.mxu0
      %2186 = vmatprep.mubr.bf16.mxu0 %v1280
      %2187 = vmatmul.mubr.bf16.gmra.mxu0 %v1279
      %v2188 = vpop.f32.mrf.mxu0
      %v2189 = vadd.f32 %v2028, %v2188
      %v2190 = vpop.f32.mrf.mxu0
      %v2191 = vpop.f32.mrf.mxu0
      %v2192 = vadd.f32 %v2031, %v2191
      %v2193 = vpop.f32.mrf.mxu0
      %2194 = vmatprep.mubr.bf16.mxu0 %v1287
      %2195 = vmatmul.mubr.bf16.gmra.mxu0 %v1286
      %v2196 = vpop.f32.mrf.mxu0
      %v2197 = vadd.f32 %v2036, %v2196
      %v2198 = vpop.f32.mrf.mxu0
      %v2199 = vpop.f32.mrf.mxu0
      %v2200 = vadd.f32 %v2039, %v2199
      %v2201 = vpop.f32.mrf.mxu0
      %2202 = vmatprep.mubr.bf16.mxu0 %v1294
      %2203 = vmatmul.mubr.bf16.gmra.mxu0 %v1293
      %v2204 = vpop.f32.mrf.mxu0
      %v2205 = vadd.f32 %v2044, %v2204
      %v2206 = vpop.f32.mrf.mxu0
      %v2207 = vpop.f32.mrf.mxu0
      %v2208 = vadd.f32 %v2047, %v2207
      %v2209 = vpop.f32.mrf.mxu0
      %2210 = vmatprep.mubr.bf16.mxu0 %v1301
      %2211 = vmatmul.mubr.bf16.gmra.mxu0 %v1300
      %v2212 = vpop.f32.mrf.mxu0
      %v2213 = vadd.f32 %v2052, %v2212
      %v2214 = vpop.f32.mrf.mxu0
      %v2215 = vpop.f32.mrf.mxu0
      %v2216 = vadd.f32 %v2055, %v2215
      %v2217 = vpop.f32.mrf.mxu0
      %2218 = vmatprep.mubr.bf16.mxu0 %v1308
      %2219 = vmatmul.mubr.bf16.gmra.mxu0 %v1307
      %v2220 = vpop.f32.mrf.mxu0
      %v2221 = vadd.f32 %v2060, %v2220
      %v2222 = vpop.f32.mrf.mxu0
      %v2223 = vpop.f32.mrf.mxu0
      %v2224 = vadd.f32 %v2063, %v2223
      %v2225 = vpop.f32.mrf.mxu0
      %2226 = vmatprep.mubr.bf16.mxu0 %v1315
      %2227 = vmatmul.mubr.bf16.gmra.mxu0 %v1314
      %v2228 = vpop.f32.mrf.mxu0
      %v2229 = vadd.f32 %v2068, %v2228
      %v2230 = vpop.f32.mrf.mxu0
      %v2231 = vpop.f32.mrf.mxu0
      %v2232 = vadd.f32 %v2071, %v2231
      %v2233 = vpop.f32.mrf.mxu0
      %2234 = vmatprep.mubr.bf16.mxu0 %v1322
      %2235 = vmatmul.mubr.bf16.gmra.mxu0 %v1321
      %v2236 = vpop.f32.mrf.mxu0
      %v2237 = vadd.f32 %v2076, %v2236
      %v2238 = vpop.f32.mrf.mxu0
      %v2239 = vpop.f32.mrf.mxu0
      %v2240 = vadd.f32 %v2079, %v2239
      %v2241 = vpop.f32.mrf.mxu0
      %2242 = vmatprep.mubr.bf16.mxu0 %v1329
      %2243 = vmatmul.mubr.bf16.gmra.mxu0 %v1328
      %v2244 = vpop.f32.mrf.mxu0
      %v2245 = vadd.f32 %v2084, %v2244
      %v2246 = vpop.f32.mrf.mxu0
      %v2247 = vpop.f32.mrf.mxu0
      %v2248 = vadd.f32 %v2087, %v2247
      %v2249 = vpop.f32.mrf.mxu0
      %2250 = vmatprep.mubr.bf16.mxu0 %v1336
      %2251 = vmatmul.mubr.bf16.gmra.mxu0 %v1335
      %v2252 = vpop.f32.mrf.mxu0
      %v2253 = vadd.f32 %v2092, %v2252
      %v2254 = vpop.f32.mrf.mxu0
      %v2255 = vpop.f32.mrf.mxu0
      %v2256 = vadd.f32 %v2095, %v2255
      %v2257 = vpop.f32.mrf.mxu0
      %2258 = vmatprep.mubr.bf16.mxu0 %v1343
      %2259 = vmatmul.mubr.bf16.gmra.mxu0 %v1342
      %v2260 = vpop.f32.mrf.mxu0
      %v2261 = vadd.f32 %v2100, %v2260
      %v2262 = vpop.f32.mrf.mxu0
      %v2263 = vpop.f32.mrf.mxu0
      %v2264 = vadd.f32 %v2103, %v2263
      %v2265 = vpop.f32.mrf.mxu0
      %2266 = vdwg.mxu0
      %2267 = vmatprep.subr.bf16.mxu0 0
      %2268 = vmatpush1.bf16.msra.mxu0 0
      %2269 = vmatprep.subr.bf16.mxu0 0
      %2270 = vmatpush1.bf16.msra.mxu0 0
      %2271 = vmatprep.subr.bf16.mxu0 0
      %2272 = vmatpush1.bf16.msra.mxu0 0
      %2273 = vmatprep.subr.bf16.mxu0 0
      %2274 = vmatpush1.bf16.msra.mxu0 0
      %2275 = vmatprep.subr.bf16.mxu0 0
      %2276 = vmatpush1.bf16.msra.mxu0 0
      %2277 = vmatprep.subr.bf16.mxu0 0
      %2278 = vmatpush1.bf16.msra.mxu0 0
      %2279 = vmatprep.subr.bf16.mxu0 0
      %2280 = vmatpush1.bf16.msra.mxu0 0
      %2281 = vmatprep.subr.bf16.mxu0 0
      %2282 = vmatpush1.bf16.msra.mxu0 %v1685
      %2283 = vmatprep.subr.bf16.mxu0 0
      %2284 = vmatpush2.bf16.msra.mxu0 0
      %2285 = vmatprep.subr.bf16.mxu0 0
      %2286 = vmatpush2.bf16.msra.mxu0 0
      %2287 = vmatprep.subr.bf16.mxu0 0
      %2288 = vmatpush2.bf16.msra.mxu0 0
      %2289 = vmatprep.subr.bf16.mxu0 0
      %2290 = vmatpush2.bf16.msra.mxu0 0
      %2291 = vmatprep.subr.bf16.mxu0 0
      %2292 = vmatpush2.bf16.msra.mxu0 0
      %2293 = vmatprep.subr.bf16.mxu0 0
      %2294 = vmatpush2.bf16.msra.mxu0 0
      %2295 = vmatprep.subr.bf16.mxu0 0
      %2296 = vmatpush2.bf16.msra.mxu0 0
      %2297 = vmatprep.subr.bf16.mxu0 0
      %2298 = vmatpush2.bf16.msra.mxu0 0
      %2299 = vmatprep.mubr.bf16.mxu0 0
      %2300 = vmatmul.mubr.bf16.gmra.mxu0 %v1737
      %v2301 = vpop.f32.mrf.mxu0
      %v2302 = vadd.f32 %v2141, %v2301
      %v2303 = vpop.f32.mrf.mxu0
      %v2304 = vpop.f32.mrf.mxu0
      %v2305 = vadd.f32 %v2144, %v2304
      %v2306 = vpop.f32.mrf.mxu0
      %2307 = vmatprep.mubr.bf16.mxu0 0
      %2308 = vmatmul.mubr.bf16.gmra.mxu0 %v1740
      %v2309 = vpop.f32.mrf.mxu0
      %v2310 = vadd.f32 %v2149, %v2309
      %v2311 = vpop.f32.mrf.mxu0
      %v2312 = vpop.f32.mrf.mxu0
      %v2313 = vadd.f32 %v2152, %v2312
      %v2314 = vpop.f32.mrf.mxu0
      %2315 = vmatprep.mubr.bf16.mxu0 0
      %2316 = vmatmul.mubr.bf16.gmra.mxu0 %v1743
      %v2317 = vpop.f32.mrf.mxu0
      %v2318 = vadd.f32 %v2157, %v2317
      %v2319 = vpop.f32.mrf.mxu0
      %v2320 = vpop.f32.mrf.mxu0
      %v2321 = vadd.f32 %v2160, %v2320
      %v2322 = vpop.f32.mrf.mxu0
      %2323 = vmatprep.mubr.bf16.mxu0 0
      %2324 = vmatmul.mubr.bf16.gmra.mxu0 %v1746
      %v2325 = vpop.f32.mrf.mxu0
      %v2326 = vadd.f32 %v2165, %v2325
      %v2327 = vpop.f32.mrf.mxu0
      %v2328 = vpop.f32.mrf.mxu0
      %v2329 = vadd.f32 %v2168, %v2328
      %v2330 = vpop.f32.mrf.mxu0
      %2331 = vmatprep.mubr.bf16.mxu0 0
      %2332 = vmatmul.mubr.bf16.gmra.mxu0 %v1749
      %v2333 = vpop.f32.mrf.mxu0
      %v2334 = vadd.f32 %v2173, %v2333
      %v2335 = vpop.f32.mrf.mxu0
      %v2336 = vpop.f32.mrf.mxu0
      %v2337 = vadd.f32 %v2176, %v2336
      %v2338 = vpop.f32.mrf.mxu0
      %2339 = vmatprep.mubr.bf16.mxu0 0
      %2340 = vmatmul.mubr.bf16.gmra.mxu0 %v1752
      %v2341 = vpop.f32.mrf.mxu0
      %v2342 = vadd.f32 %v2181, %v2341
      %v2343 = vpop.f32.mrf.mxu0
      %v2344 = vpop.f32.mrf.mxu0
      %v2345 = vadd.f32 %v2184, %v2344
      %v2346 = vpop.f32.mrf.mxu0
      %2347 = vmatprep.mubr.bf16.mxu0 0
      %2348 = vmatmul.mubr.bf16.gmra.mxu0 %v1755
      %v2349 = vpop.f32.mrf.mxu0
      %v2350 = vadd.f32 %v2189, %v2349
      %v2351 = vpop.f32.mrf.mxu0
      %v2352 = vpop.f32.mrf.mxu0
      %v2353 = vadd.f32 %v2192, %v2352
      %v2354 = vpop.f32.mrf.mxu0
      %2355 = vmatprep.mubr.bf16.mxu0 0
      %2356 = vmatmul.mubr.bf16.gmra.mxu0 %v1758
      %v2357 = vpop.f32.mrf.mxu0
      %v2358 = vadd.f32 %v2197, %v2357
      %v2359 = vpop.f32.mrf.mxu0
      %v2360 = vpop.f32.mrf.mxu0
      %v2361 = vadd.f32 %v2200, %v2360
      %v2362 = vpop.f32.mrf.mxu0
      %2363 = vmatprep.mubr.bf16.mxu0 0
      %2364 = vmatmul.mubr.bf16.gmra.mxu0 %v1761
      %v2365 = vpop.f32.mrf.mxu0
      %v2366 = vadd.f32 %v2205, %v2365
      %v2367 = vpop.f32.mrf.mxu0
      %v2368 = vpop.f32.mrf.mxu0
      %v2369 = vadd.f32 %v2208, %v2368
      %v2370 = vpop.f32.mrf.mxu0
      %2371 = vmatprep.mubr.bf16.mxu0 0
      %2372 = vmatmul.mubr.bf16.gmra.mxu0 %v1764
      %v2373 = vpop.f32.mrf.mxu0
      %v2374 = vadd.f32 %v2213, %v2373
      %v2375 = vpop.f32.mrf.mxu0
      %v2376 = vpop.f32.mrf.mxu0
      %v2377 = vadd.f32 %v2216, %v2376
      %v2378 = vpop.f32.mrf.mxu0
      %2379 = vmatprep.mubr.bf16.mxu0 0
      %2380 = vmatmul.mubr.bf16.gmra.mxu0 %v1767
      %v2381 = vpop.f32.mrf.mxu0
      %v2382 = vadd.f32 %v2221, %v2381
      %v2383 = vpop.f32.mrf.mxu0
      %v2384 = vpop.f32.mrf.mxu0
      %v2385 = vadd.f32 %v2224, %v2384
      %v2386 = vpop.f32.mrf.mxu0
      %2387 = vmatprep.mubr.bf16.mxu0 0
      %2388 = vmatmul.mubr.bf16.gmra.mxu0 %v1770
      %v2389 = vpop.f32.mrf.mxu0
      %v2390 = vadd.f32 %v2229, %v2389
      %v2391 = vpop.f32.mrf.mxu0
      %v2392 = vpop.f32.mrf.mxu0
      %v2393 = vadd.f32 %v2232, %v2392
      %v2394 = vpop.f32.mrf.mxu0
      %2395 = vmatprep.mubr.bf16.mxu0 0
      %2396 = vmatmul.mubr.bf16.gmra.mxu0 %v1773
      %v2397 = vpop.f32.mrf.mxu0
      %v2398 = vadd.f32 %v2237, %v2397
      %v2399 = vpop.f32.mrf.mxu0
      %v2400 = vpop.f32.mrf.mxu0
      %v2401 = vadd.f32 %v2240, %v2400
      %v2402 = vpop.f32.mrf.mxu0
      %2403 = vmatprep.mubr.bf16.mxu0 0
      %2404 = vmatmul.mubr.bf16.gmra.mxu0 %v1776
      %v2405 = vpop.f32.mrf.mxu0
      %v2406 = vadd.f32 %v2245, %v2405
      %v2407 = vpop.f32.mrf.mxu0
      %v2408 = vpop.f32.mrf.mxu0
      %v2409 = vadd.f32 %v2248, %v2408
      %v2410 = vpop.f32.mrf.mxu0
      %2411 = vmatprep.mubr.bf16.mxu0 0
      %2412 = vmatmul.mubr.bf16.gmra.mxu0 %v1779
      %v2413 = vpop.f32.mrf.mxu0
      %v2414 = vadd.f32 %v2253, %v2413
      %v2415 = vpop.f32.mrf.mxu0
      %v2416 = vpop.f32.mrf.mxu0
      %v2417 = vadd.f32 %v2256, %v2416
      %v2418 = vpop.f32.mrf.mxu0
      %2419 = vmatprep.mubr.bf16.mxu0 0
      %2420 = vmatmul.mubr.bf16.gmra.mxu0 %v1782
      %v2421 = vpop.f32.mrf.mxu0
      %v2422 = vadd.f32 %v2261, %v2421
      %v2423 = vpop.f32.mrf.mxu0
      %v2424 = vpop.f32.mrf.mxu0
      %v2425 = vadd.f32 %v2264, %v2424
      %v2426 = vpop.f32.mrf.mxu0
      %2427 = vdwg.mxu0
      %vm2428 = vcmp.gt.f32.partialorder %v2302, 0.0
      %vm2429 = vcmp.gt.f32.partialorder %v2305, 0.0
      %vm2430 = vcmp.gt.f32.partialorder %v2310, 0.0
      %vm2431 = vcmp.gt.f32.partialorder %v2313, 0.0
      %vm2432 = vcmp.gt.f32.partialorder %v2318, 0.0
      %vm2433 = vcmp.gt.f32.partialorder %v2321, 0.0
      %vm2434 = vcmp.gt.f32.partialorder %v2326, 0.0
      %vm2435 = vcmp.gt.f32.partialorder %v2329, 0.0
      %vm2436 = vcmp.gt.f32.partialorder %v2334, 0.0
      %vm2437 = vcmp.gt.f32.partialorder %v2337, 0.0
      %vm2438 = vcmp.gt.f32.partialorder %v2342, 0.0
      %vm2439 = vcmp.gt.f32.partialorder %v2345, 0.0
      %vm2440 = vcmp.gt.f32.partialorder %v2350, 0.0
      %vm2441 = vcmp.gt.f32.partialorder %v2353, 0.0
      %vm2442 = vcmp.gt.f32.partialorder %v2358, 0.0
      %vm2443 = vcmp.gt.f32.partialorder %v2361, 0.0
      %vm2444 = vcmp.gt.f32.partialorder %v2366, 0.0
      %vm2445 = vcmp.gt.f32.partialorder %v2369, 0.0
      %vm2446 = vcmp.gt.f32.partialorder %v2374, 0.0
      %vm2447 = vcmp.gt.f32.partialorder %v2377, 0.0
      %vm2448 = vcmp.gt.f32.partialorder %v2382, 0.0
      %vm2449 = vcmp.gt.f32.partialorder %v2385, 0.0
      %vm2450 = vcmp.gt.f32.partialorder %v2390, 0.0
      %vm2451 = vcmp.gt.f32.partialorder %v2393, 0.0
      %vm2452 = vcmp.gt.f32.partialorder %v2398, 0.0
      %vm2453 = vcmp.gt.f32.partialorder %v2401, 0.0
      %vm2454 = vcmp.gt.f32.partialorder %v2406, 0.0
      %vm2455 = vcmp.gt.f32.partialorder %v2409, 0.0
      %vm2456 = vcmp.gt.f32.partialorder %v2414, 0.0
      %vm2457 = vcmp.gt.f32.partialorder %v2417, 0.0
      %vm2458 = vcmp.gt.f32.partialorder %v2422, 0.0
      %vm2459 = vcmp.gt.f32.partialorder %v2425, 0.0
      %v2460 = vmul.f32 %v2302, 0.1
      %v2461 = vmul.f32 %v2305, 0.1
      %v2462 = vmul.f32 %v2310, 0.1
      %v2463 = vmul.f32 %v2313, 0.1
      %v2464 = vmul.f32 %v2318, 0.1
      %v2465 = vmul.f32 %v2321, 0.1
      %v2466 = vmul.f32 %v2326, 0.1
      %v2467 = vmul.f32 %v2329, 0.1
      %v2468 = vmul.f32 %v2334, 0.1
      %v2469 = vmul.f32 %v2337, 0.1
      %v2470 = vmul.f32 %v2342, 0.1
      %v2471 = vmul.f32 %v2345, 0.1
      %v2472 = vmul.f32 %v2350, 0.1
      %v2473 = vmul.f32 %v2353, 0.1
      %v2474 = vmul.f32 %v2358, 0.1
      %v2475 = vmul.f32 %v2361, 0.1
      %v2476 = vmul.f32 %v2366, 0.1
      %v2477 = vmul.f32 %v2369, 0.1
      %v2478 = vmul.f32 %v2374, 0.1
      %v2479 = vmul.f32 %v2377, 0.1
      %v2480 = vmul.f32 %v2382, 0.1
      %v2481 = vmul.f32 %v2385, 0.1
      %v2482 = vmul.f32 %v2390, 0.1
      %v2483 = vmul.f32 %v2393, 0.1
      %v2484 = vmul.f32 %v2398, 0.1
      %v2485 = vmul.f32 %v2401, 0.1
      %v2486 = vmul.f32 %v2406, 0.1
      %v2487 = vmul.f32 %v2409, 0.1
      %v2488 = vmul.f32 %v2414, 0.1
      %v2489 = vmul.f32 %v2417, 0.1
      %v2490 = vmul.f32 %v2422, 0.1
      %v2491 = vmul.f32 %v2425, 0.1
      %v2492 = vsel %vm2428, %v2302, %v2460
      %v2493 = vsel %vm2429, %v2305, %v2461
      %v2494 = vsel %vm2430, %v2310, %v2462
      %v2495 = vsel %vm2431, %v2313, %v2463
      %v2496 = vsel %vm2432, %v2318, %v2464
      %v2497 = vsel %vm2433, %v2321, %v2465
      %v2498 = vsel %vm2434, %v2326, %v2466
      %v2499 = vsel %vm2435, %v2329, %v2467
      %v2500 = vsel %vm2436, %v2334, %v2468
      %v2501 = vsel %vm2437, %v2337, %v2469
      %v2502 = vsel %vm2438, %v2342, %v2470
      %v2503 = vsel %vm2439, %v2345, %v2471
      %v2504 = vsel %vm2440, %v2350, %v2472
      %v2505 = vsel %vm2441, %v2353, %v2473
      %v2506 = vsel %vm2442, %v2358, %v2474
      %v2507 = vsel %vm2443, %v2361, %v2475
      %v2508 = vsel %vm2444, %v2366, %v2476
      %v2509 = vsel %vm2445, %v2369, %v2477
      %v2510 = vsel %vm2446, %v2374, %v2478
      %v2511 = vsel %vm2447, %v2377, %v2479
      %v2512 = vsel %vm2448, %v2382, %v2480
      %v2513 = vsel %vm2449, %v2385, %v2481
      %v2514 = vsel %vm2450, %v2390, %v2482
      %v2515 = vsel %vm2451, %v2393, %v2483
      %v2516 = vsel %vm2452, %v2398, %v2484
      %v2517 = vsel %vm2453, %v2401, %v2485
      %v2518 = vsel %vm2454, %v2406, %v2486
      %v2519 = vsel %vm2455, %v2409, %v2487
      %v2520 = vsel %vm2456, %v2414, %v2488
      %v2521 = vsel %vm2457, %v2417, %v2489
      %v2522 = vsel %vm2458, %v2422, %v2490
      %v2523 = vsel %vm2459, %v2425, %v2491
      %v2524 = vpack.c.bf16 %v2493, %v2492
      %v2525 = vpack.c.bf16 %v2495, %v2494
      %v2526 = vpack.c.bf16 %v2497, %v2496
      %v2527 = vpack.c.bf16 %v2499, %v2498
      %v2528 = vpack.c.bf16 %v2501, %v2500
      %v2529 = vpack.c.bf16 %v2503, %v2502
      %v2530 = vpack.c.bf16 %v2505, %v2504
      %v2531 = vpack.c.bf16 %v2507, %v2506
      %v2532 = vpack.c.bf16 %v2509, %v2508
      %v2533 = vpack.c.bf16 %v2511, %v2510
      %v2534 = vpack.c.bf16 %v2513, %v2512
      %v2535 = vpack.c.bf16 %v2515, %v2514
      %v2536 = vpack.c.bf16 %v2517, %v2516
      %v2537 = vpack.c.bf16 %v2519, %v2518
      %v2538 = vpack.c.bf16 %v2521, %v2520
      %v2539 = vpack.c.bf16 %v2523, %v2522
      %v2540 = vld [vmem:[%s4] sm:$0xf]
      %v2541 = vld [vmem:[%s4 + $0x4] sm:$0xf]
      %v2542 = vld [vmem:[%s4 + $0x8] sm:$0xf]
      %v2543 = vld [vmem:[%s4 + $0xc] sm:$0xf]
      %v2544 = vld [vmem:[%s4 + $0x10] sm:$0xf]
      %v2545 = vld [vmem:[%s4 + $0x14] sm:$0xf]
      %v2546 = vld [vmem:[%s4 + $0x18] sm:$0xf]
      %v2547 = vld [vmem:[%s4 + $0x1c] sm:$0xf]
      %v2548 = vld [vmem:[%s4 + $0x20] sm:$0xf]
      %v2549 = vld [vmem:[%s4 + $0x24] sm:$0xf]
      %v2550 = vld [vmem:[%s4 + $0x28] sm:$0xf]
      %v2551 = vld [vmem:[%s4 + $0x2c] sm:$0xf]
      %v2552 = vld [vmem:[%s4 + $0x30] sm:$0xf]
      %v2553 = vld [vmem:[%s4 + $0x34] sm:$0xf]
      %v2554 = vld [vmem:[%s4 + $0x38] sm:$0xf]
      %v2555 = vld [vmem:[%s4 + $0x3c] sm:$0xf]
      %v2556 = vld [vmem:[%s5] sm:$0x1]
      %v2558 = vlaneseq
      %v2559 = vshrl.u32 %v2558, 7
      %v2560 = vsub.s32 0, %v2559
      %v2561 = vrot.slane %v2556, %v2560
      %v2579 = vunpack.c.l.b16 %v2540
      %v2580 = vunpack.c.l.b16 %v2541
      %v2581 = vunpack.c.l.b16 %v2542
      %v2582 = vunpack.c.l.b16 %v2543
      %v2583 = vunpack.c.l.b16 %v2544
      %v2584 = vunpack.c.l.b16 %v2545
      %v2585 = vunpack.c.l.b16 %v2546
      %v2586 = vunpack.c.l.b16 %v2547
      %v2587 = vunpack.c.l.b16 %v2548
      %v2588 = vunpack.c.l.b16 %v2549
      %v2589 = vunpack.c.l.b16 %v2550
      %v2590 = vunpack.c.l.b16 %v2551
      %v2591 = vunpack.c.l.b16 %v2552
      %v2592 = vunpack.c.l.b16 %v2553
      %v2593 = vunpack.c.l.b16 %v2554
      %v2594 = vunpack.c.l.b16 %v2555
      %v2595 = vpack.c.b16 %v2580, %v2579
      %v2596 = vpack.c.b16 %v2582, %v2581
      %v2597 = vpack.c.b16 %v2584, %v2583
      %v2598 = vpack.c.b16 %v2586, %v2585
      %v2599 = vpack.c.b16 %v2588, %v2587
      %v2600 = vpack.c.b16 %v2590, %v2589
      %v2601 = vpack.c.b16 %v2592, %v2591
      %v2602 = vpack.c.b16 %v2594, %v2593
      %2611 = vmatprep.subr.bf16.mxu0 0
      %2612 = vmatpush1.bf16.msra.mxu0 %v2602
      %2613 = vmatprep.subr.bf16.mxu0 0
      %2614 = vmatpush1.bf16.msra.mxu0 %v2601
      %2615 = vmatprep.subr.bf16.mxu0 0
      %2616 = vmatpush1.bf16.msra.mxu0 %v2600
      %2617 = vmatprep.subr.bf16.mxu0 0
      %2618 = vmatpush1.bf16.msra.mxu0 %v2599
      %2619 = vmatprep.subr.bf16.mxu0 0
      %2620 = vmatpush1.bf16.msra.mxu0 %v2598
      %2621 = vmatprep.subr.bf16.mxu0 0
      %2622 = vmatpush1.bf16.msra.mxu0 %v2597
      %2623 = vmatprep.subr.bf16.mxu0 0
      %2624 = vmatpush1.bf16.msra.mxu0 %v2596
      %2625 = vmatprep.subr.bf16.mxu0 0
      %2626 = vmatpush1.bf16.msra.mxu0 %v2595
      %2627 = vmatprep.subr.bf16.mxu0 0
      %2628 = vmatpush2.bf16.msra.mxu0 0
      %2629 = vmatprep.subr.bf16.mxu0 0
      %2630 = vmatpush2.bf16.msra.mxu0 0
      %2631 = vmatprep.subr.bf16.mxu0 0
      %2632 = vmatpush2.bf16.msra.mxu0 0
      %2633 = vmatprep.subr.bf16.mxu0 0
      %2634 = vmatpush2.bf16.msra.mxu0 0
      %2635 = vmatprep.subr.bf16.mxu0 0
      %2636 = vmatpush2.bf16.msra.mxu0 0
      %2637 = vmatprep.subr.bf16.mxu0 0
      %2638 = vmatpush2.bf16.msra.mxu0 0
      %2639 = vmatprep.subr.bf16.mxu0 0
      %2640 = vmatpush2.bf16.msra.mxu0 0
      %2641 = vmatprep.subr.bf16.mxu0 0
      %2642 = vmatpush2.bf16.msra.mxu0 0
      %2643 = vmatprep.mubr.bf16.mxu0 0
      %2644 = vmatmul.mubr.bf16.gmra.mxu0 %v2524
      %v2645 = vpop.f32.mrf.mxu0
      %v2646 = vadd.f32 %v2561, %v2645
      %v2647 = vpop.f32.mrf.mxu0
      %v2648 = vpop.f32.mrf.mxu0
      %v2649 = vadd.f32 %v2561, %v2648
      %v2650 = vpop.f32.mrf.mxu0
      %2651 = vmatprep.mubr.bf16.mxu0 0
      %2652 = vmatmul.mubr.bf16.gmra.mxu0 %v2525
      %v2653 = vpop.f32.mrf.mxu0
      %v2654 = vadd.f32 %v2561, %v2653
      %v2655 = vpop.f32.mrf.mxu0
      %v2656 = vpop.f32.mrf.mxu0
      %v2657 = vadd.f32 %v2561, %v2656
      %v2658 = vpop.f32.mrf.mxu0
      %2659 = vmatprep.mubr.bf16.mxu0 0
      %2660 = vmatmul.mubr.bf16.gmra.mxu0 %v2526
      %v2661 = vpop.f32.mrf.mxu0
      %v2662 = vadd.f32 %v2561, %v2661
      %v2663 = vpop.f32.mrf.mxu0
      %v2664 = vpop.f32.mrf.mxu0
      %v2665 = vadd.f32 %v2561, %v2664
      %v2666 = vpop.f32.mrf.mxu0
      %2667 = vmatprep.mubr.bf16.mxu0 0
      %2668 = vmatmul.mubr.bf16.gmra.mxu0 %v2527
      %v2669 = vpop.f32.mrf.mxu0
      %v2670 = vadd.f32 %v2561, %v2669
      %v2671 = vpop.f32.mrf.mxu0
      %v2672 = vpop.f32.mrf.mxu0
      %v2673 = vadd.f32 %v2561, %v2672
      %v2674 = vpop.f32.mrf.mxu0
      %2675 = vmatprep.mubr.bf16.mxu0 0
      %2676 = vmatmul.mubr.bf16.gmra.mxu0 %v2528
      %v2677 = vpop.f32.mrf.mxu0
      %v2678 = vadd.f32 %v2561, %v2677
      %v2679 = vpop.f32.mrf.mxu0
      %v2680 = vpop.f32.mrf.mxu0
      %v2681 = vadd.f32 %v2561, %v2680
      %v2682 = vpop.f32.mrf.mxu0
      %2683 = vmatprep.mubr.bf16.mxu0 0
      %2684 = vmatmul.mubr.bf16.gmra.mxu0 %v2529
      %v2685 = vpop.f32.mrf.mxu0
      %v2686 = vadd.f32 %v2561, %v2685
      %v2687 = vpop.f32.mrf.mxu0
      %v2688 = vpop.f32.mrf.mxu0
      %v2689 = vadd.f32 %v2561, %v2688
      %v2690 = vpop.f32.mrf.mxu0
      %2691 = vmatprep.mubr.bf16.mxu0 0
      %2692 = vmatmul.mubr.bf16.gmra.mxu0 %v2530
      %v2693 = vpop.f32.mrf.mxu0
      %v2694 = vadd.f32 %v2561, %v2693
      %v2695 = vpop.f32.mrf.mxu0
      %v2696 = vpop.f32.mrf.mxu0
      %v2697 = vadd.f32 %v2561, %v2696
      %v2698 = vpop.f32.mrf.mxu0
      %2699 = vmatprep.mubr.bf16.mxu0 0
      %2700 = vmatmul.mubr.bf16.gmra.mxu0 %v2531
      %v2701 = vpop.f32.mrf.mxu0
      %v2702 = vadd.f32 %v2561, %v2701
      %v2703 = vpop.f32.mrf.mxu0
      %v2704 = vpop.f32.mrf.mxu0
      %v2705 = vadd.f32 %v2561, %v2704
      %v2706 = vpop.f32.mrf.mxu0
      %2707 = vmatprep.mubr.bf16.mxu0 0
      %2708 = vmatmul.mubr.bf16.gmra.mxu0 %v2532
      %v2709 = vpop.f32.mrf.mxu0
      %v2710 = vadd.f32 %v2561, %v2709
      %v2711 = vpop.f32.mrf.mxu0
      %v2712 = vpop.f32.mrf.mxu0
      %v2713 = vadd.f32 %v2561, %v2712
      %v2714 = vpop.f32.mrf.mxu0
      %2715 = vmatprep.mubr.bf16.mxu0 0
      %2716 = vmatmul.mubr.bf16.gmra.mxu0 %v2533
      %v2717 = vpop.f32.mrf.mxu0
      %v2718 = vadd.f32 %v2561, %v2717
      %v2719 = vpop.f32.mrf.mxu0
      %v2720 = vpop.f32.mrf.mxu0
      %v2721 = vadd.f32 %v2561, %v2720
      %v2722 = vpop.f32.mrf.mxu0
      %2723 = vmatprep.mubr.bf16.mxu0 0
      %2724 = vmatmul.mubr.bf16.gmra.mxu0 %v2534
      %v2725 = vpop.f32.mrf.mxu0
      %v2726 = vadd.f32 %v2561, %v2725
      %v2727 = vpop.f32.mrf.mxu0
      %v2728 = vpop.f32.mrf.mxu0
      %v2729 = vadd.f32 %v2561, %v2728
      %v2730 = vpop.f32.mrf.mxu0
      %2731 = vmatprep.mubr.bf16.mxu0 0
      %2732 = vmatmul.mubr.bf16.gmra.mxu0 %v2535
      %v2733 = vpop.f32.mrf.mxu0
      %v2734 = vadd.f32 %v2561, %v2733
      %v2735 = vpop.f32.mrf.mxu0
      %v2736 = vpop.f32.mrf.mxu0
      %v2737 = vadd.f32 %v2561, %v2736
      %v2738 = vpop.f32.mrf.mxu0
      %2739 = vmatprep.mubr.bf16.mxu0 0
      %2740 = vmatmul.mubr.bf16.gmra.mxu0 %v2536
      %v2741 = vpop.f32.mrf.mxu0
      %v2742 = vadd.f32 %v2561, %v2741
      %v2743 = vpop.f32.mrf.mxu0
      %v2744 = vpop.f32.mrf.mxu0
      %v2745 = vadd.f32 %v2561, %v2744
      %v2746 = vpop.f32.mrf.mxu0
      %2747 = vmatprep.mubr.bf16.mxu0 0
      %2748 = vmatmul.mubr.bf16.gmra.mxu0 %v2537
      %v2749 = vpop.f32.mrf.mxu0
      %v2750 = vadd.f32 %v2561, %v2749
      %v2751 = vpop.f32.mrf.mxu0
      %v2752 = vpop.f32.mrf.mxu0
      %v2753 = vadd.f32 %v2561, %v2752
      %v2754 = vpop.f32.mrf.mxu0
      %2755 = vmatprep.mubr.bf16.mxu0 0
      %2756 = vmatmul.mubr.bf16.gmra.mxu0 %v2538
      %v2757 = vpop.f32.mrf.mxu0
      %v2758 = vadd.f32 %v2561, %v2757
      %v2759 = vpop.f32.mrf.mxu0
      %v2760 = vpop.f32.mrf.mxu0
      %v2761 = vadd.f32 %v2561, %v2760
      %v2762 = vpop.f32.mrf.mxu0
      %2763 = vmatprep.mubr.bf16.mxu0 0
      %2764 = vmatmul.mubr.bf16.gmra.mxu0 %v2539
      %v2765 = vpop.f32.mrf.mxu0
      %v2766 = vadd.f32 %v2561, %v2765
      %v2767 = vpop.f32.mrf.mxu0
      %v2768 = vpop.f32.mrf.mxu0
      %v2769 = vadd.f32 %v2561, %v2768
      %v2770 = vpop.f32.mrf.mxu0
      %2771 = vdwg.mxu0
      %vm2772 = vcmp.gt.f32.partialorder %v2646, 0.0
      %vm2773 = vcmp.gt.f32.partialorder %v2649, 0.0
      %vm2774 = vcmp.gt.f32.partialorder %v2654, 0.0
      %vm2775 = vcmp.gt.f32.partialorder %v2657, 0.0
      %vm2776 = vcmp.gt.f32.partialorder %v2662, 0.0
      %vm2777 = vcmp.gt.f32.partialorder %v2665, 0.0
      %vm2778 = vcmp.gt.f32.partialorder %v2670, 0.0
      %vm2779 = vcmp.gt.f32.partialorder %v2673, 0.0
      %vm2780 = vcmp.gt.f32.partialorder %v2678, 0.0
      %vm2781 = vcmp.gt.f32.partialorder %v2681, 0.0
      %vm2782 = vcmp.gt.f32.partialorder %v2686, 0.0
      %vm2783 = vcmp.gt.f32.partialorder %v2689, 0.0
      %vm2784 = vcmp.gt.f32.partialorder %v2694, 0.0
      %vm2785 = vcmp.gt.f32.partialorder %v2697, 0.0
      %vm2786 = vcmp.gt.f32.partialorder %v2702, 0.0
      %vm2787 = vcmp.gt.f32.partialorder %v2705, 0.0
      %vm2788 = vcmp.gt.f32.partialorder %v2710, 0.0
      %vm2789 = vcmp.gt.f32.partialorder %v2713, 0.0
      %vm2790 = vcmp.gt.f32.partialorder %v2718, 0.0
      %vm2791 = vcmp.gt.f32.partialorder %v2721, 0.0
      %vm2792 = vcmp.gt.f32.partialorder %v2726, 0.0
      %vm2793 = vcmp.gt.f32.partialorder %v2729, 0.0
      %vm2794 = vcmp.gt.f32.partialorder %v2734, 0.0
      %vm2795 = vcmp.gt.f32.partialorder %v2737, 0.0
      %vm2796 = vcmp.gt.f32.partialorder %v2742, 0.0
      %vm2797 = vcmp.gt.f32.partialorder %v2745, 0.0
      %vm2798 = vcmp.gt.f32.partialorder %v2750, 0.0
      %vm2799 = vcmp.gt.f32.partialorder %v2753, 0.0
      %vm2800 = vcmp.gt.f32.partialorder %v2758, 0.0
      %vm2801 = vcmp.gt.f32.partialorder %v2761, 0.0
      %vm2802 = vcmp.gt.f32.partialorder %v2766, 0.0
      %vm2803 = vcmp.gt.f32.partialorder %v2769, 0.0
      %v2804 = vmul.f32 %v2646, 0.1
      %v2805 = vmul.f32 %v2649, 0.1
      %v2806 = vmul.f32 %v2654, 0.1
      %v2807 = vmul.f32 %v2657, 0.1
      %v2808 = vmul.f32 %v2662, 0.1
      %v2809 = vmul.f32 %v2665, 0.1
      %v2810 = vmul.f32 %v2670, 0.1
      %v2811 = vmul.f32 %v2673, 0.1
      %v2812 = vmul.f32 %v2678, 0.1
      %v2813 = vmul.f32 %v2681, 0.1
      %v2814 = vmul.f32 %v2686, 0.1
      %v2815 = vmul.f32 %v2689, 0.1
      %v2816 = vmul.f32 %v2694, 0.1
      %v2817 = vmul.f32 %v2697, 0.1
      %v2818 = vmul.f32 %v2702, 0.1
      %v2819 = vmul.f32 %v2705, 0.1
      %v2820 = vmul.f32 %v2710, 0.1
      %v2821 = vmul.f32 %v2713, 0.1
      %v2822 = vmul.f32 %v2718, 0.1
      %v2823 = vmul.f32 %v2721, 0.1
      %v2824 = vmul.f32 %v2726, 0.1
      %v2825 = vmul.f32 %v2729, 0.1
      %v2826 = vmul.f32 %v2734, 0.1
      %v2827 = vmul.f32 %v2737, 0.1
      %v2828 = vmul.f32 %v2742, 0.1
      %v2829 = vmul.f32 %v2745, 0.1
      %v2830 = vmul.f32 %v2750, 0.1
      %v2831 = vmul.f32 %v2753, 0.1
      %v2832 = vmul.f32 %v2758, 0.1
      %v2833 = vmul.f32 %v2761, 0.1
      %v2834 = vmul.f32 %v2766, 0.1
      %v2835 = vmul.f32 %v2769, 0.1
      %v2836 = vsel %vm2772, %v2646, %v2804
      %v2837 = vsel %vm2773, %v2649, %v2805
      %v2838 = vsel %vm2774, %v2654, %v2806
      %v2839 = vsel %vm2775, %v2657, %v2807
      %v2840 = vsel %vm2776, %v2662, %v2808
      %v2841 = vsel %vm2777, %v2665, %v2809
      %v2842 = vsel %vm2778, %v2670, %v2810
      %v2843 = vsel %vm2779, %v2673, %v2811
      %v2844 = vsel %vm2780, %v2678, %v2812
      %v2845 = vsel %vm2781, %v2681, %v2813
      %v2846 = vsel %vm2782, %v2686, %v2814
      %v2847 = vsel %vm2783, %v2689, %v2815
      %v2848 = vsel %vm2784, %v2694, %v2816
      %v2849 = vsel %vm2785, %v2697, %v2817
      %v2850 = vsel %vm2786, %v2702, %v2818
      %v2851 = vsel %vm2787, %v2705, %v2819
      %v2852 = vsel %vm2788, %v2710, %v2820
      %v2853 = vsel %vm2789, %v2713, %v2821
      %v2854 = vsel %vm2790, %v2718, %v2822
      %v2855 = vsel %vm2791, %v2721, %v2823
      %v2856 = vsel %vm2792, %v2726, %v2824
      %v2857 = vsel %vm2793, %v2729, %v2825
      %v2858 = vsel %vm2794, %v2734, %v2826
      %v2859 = vsel %vm2795, %v2737, %v2827
      %v2860 = vsel %vm2796, %v2742, %v2828
      %v2861 = vsel %vm2797, %v2745, %v2829
      %v2862 = vsel %vm2798, %v2750, %v2830
      %v2863 = vsel %vm2799, %v2753, %v2831
      %v2864 = vsel %vm2800, %v2758, %v2832
      %v2865 = vsel %vm2801, %v2761, %v2833
      %v2866 = vsel %vm2802, %v2766, %v2834
      %v2867 = vsel %vm2803, %v2769, %v2835
      %v2868 = vpack.c.bf16 %v2837, %v2836
      %v2869 = vpack.c.bf16 %v2839, %v2838
      %v2870 = vpack.c.bf16 %v2841, %v2840
      %v2871 = vpack.c.bf16 %v2843, %v2842
      %v2872 = vpack.c.bf16 %v2845, %v2844
      %v2873 = vpack.c.bf16 %v2847, %v2846
      %v2874 = vpack.c.bf16 %v2849, %v2848
      %v2875 = vpack.c.bf16 %v2851, %v2850
      %v2876 = vpack.c.bf16 %v2853, %v2852
      %v2877 = vpack.c.bf16 %v2855, %v2854
      %v2878 = vpack.c.bf16 %v2857, %v2856
      %v2879 = vpack.c.bf16 %v2859, %v2858
      %v2880 = vpack.c.bf16 %v2861, %v2860
      %v2881 = vpack.c.bf16 %v2863, %v2862
      %v2882 = vpack.c.bf16 %v2865, %v2864
      %v2883 = vpack.c.bf16 %v2867, %v2866
      %v2884 = vld [vmem:[%s6] sm:$0xf]
      %v2885 = vld [vmem:[%s6 + $0x4] sm:$0xf]
      %v2886 = vld [vmem:[%s6 + $0x8] sm:$0xf]
      %v2887 = vld [vmem:[%s6 + $0xc] sm:$0xf]
      %v2888 = vld [vmem:[%s6 + $0x10] sm:$0xf]
      %v2889 = vld [vmem:[%s6 + $0x14] sm:$0xf]
      %v2890 = vld [vmem:[%s6 + $0x18] sm:$0xf]
      %v2891 = vld [vmem:[%s6 + $0x1c] sm:$0xf]
      %v2892 = vld [vmem:[%s7] sm:$0x1]
      %v2894 = vlaneseq
      %v2895 = vshrl.u32 %v2894, 7
      %v2896 = vsub.s32 0, %v2895
      %v2897 = vrot.slane %v2892, %v2896
      %v2907 = vunpack.c.l.b16 %v2884
      %v2908 = vunpack.c.l.b16 %v2885
      %v2909 = vunpack.c.l.b16 %v2886
      %v2910 = vunpack.c.l.b16 %v2887
      %v2911 = vunpack.c.l.b16 %v2888
      %v2912 = vunpack.c.l.b16 %v2889
      %v2913 = vunpack.c.l.b16 %v2890
      %v2914 = vunpack.c.l.b16 %v2891
      %v2915 = vpack.c.b16 %v2908, %v2907
      %v2916 = vpack.c.b16 %v2910, %v2909
      %v2917 = vpack.c.b16 %v2912, %v2911
      %v2918 = vpack.c.b16 %v2914, %v2913
      %vm2923 = vcmask 523264
      %v2925 = vsel %vm2923, %v2868, 0
      %v2928 = vsel %vm2923, %v2869, 0
      %v2931 = vsel %vm2923, %v2870, 0
      %v2934 = vsel %vm2923, %v2871, 0
      %v2937 = vsel %vm2923, %v2872, 0
      %v2940 = vsel %vm2923, %v2873, 0
      %v2943 = vsel %vm2923, %v2874, 0
      %v2946 = vsel %vm2923, %v2875, 0
      %v2949 = vsel %vm2923, %v2876, 0
      %v2952 = vsel %vm2923, %v2877, 0
      %v2955 = vsel %vm2923, %v2878, 0
      %v2958 = vsel %vm2923, %v2879, 0
      %v2961 = vsel %vm2923, %v2880, 0
      %v2964 = vsel %vm2923, %v2881, 0
      %v2967 = vsel %vm2923, %v2882, 0
      %v2970 = vsel %vm2923, %v2883, 0
      %2972 = vmatprep.subr.bf16.mxu0 0
      %2973 = vmatpush1.bf16.msra.mxu0 0
      %2974 = vmatprep.subr.bf16.mxu0 0
      %2975 = vmatpush1.bf16.msra.mxu0 0
      %2976 = vmatprep.subr.bf16.mxu0 0
      %2977 = vmatpush1.bf16.msra.mxu0 0
      %2978 = vmatprep.subr.bf16.mxu0 0
      %2979 = vmatpush1.bf16.msra.mxu0 0
      %2980 = vmatprep.subr.bf16.mxu0 0
      %2981 = vmatpush1.bf16.msra.mxu0 %v2918
      %2982 = vmatprep.subr.bf16.mxu0 0
      %2983 = vmatpush1.bf16.msra.mxu0 %v2917
      %2984 = vmatprep.subr.bf16.mxu0 0
      %2985 = vmatpush1.bf16.msra.mxu0 %v2916
      %2986 = vmatprep.subr.bf16.mxu0 0
      %2987 = vmatpush1.bf16.msra.mxu0 %v2915
      %2988 = vmatprep.subr.bf16.mxu0 0
      %2989 = vmatpush2.bf16.msra.mxu0 0
      %2990 = vmatprep.subr.bf16.mxu0 0
      %2991 = vmatpush2.bf16.msra.mxu0 0
      %2992 = vmatprep.subr.bf16.mxu0 0
      %2993 = vmatpush2.bf16.msra.mxu0 0
      %2994 = vmatprep.subr.bf16.mxu0 0
      %2995 = vmatpush2.bf16.msra.mxu0 0
      %2996 = vmatprep.subr.bf16.mxu0 0
      %2997 = vmatpush2.bf16.msra.mxu0 0
      %2998 = vmatprep.subr.bf16.mxu0 0
      %2999 = vmatpush2.bf16.msra.mxu0 0
      %3000 = vmatprep.subr.bf16.mxu0 0
      %3001 = vmatpush2.bf16.msra.mxu0 0
      %3002 = vmatprep.subr.bf16.mxu0 0
      %3003 = vmatpush2.bf16.msra.mxu0 0
      %3004 = vmatprep.mubr.bf16.mxu0 0
      %3005 = vmatmul.mubr.bf16.gmra.mxu0 %v2925
      %v3006 = vpop.f32.mrf.mxu0
      %v3007 = vadd.f32 %v2897, %v3006
      %v3008 = vpop.f32.mrf.mxu0
      %v3009 = vpop.f32.mrf.mxu0
      %v3010 = vadd.f32 %v2897, %v3009
      %v3011 = vpop.f32.mrf.mxu0
      %3012 = vmatprep.mubr.bf16.mxu0 0
      %3013 = vmatmul.mubr.bf16.gmra.mxu0 %v2928
      %v3014 = vpop.f32.mrf.mxu0
      %v3015 = vadd.f32 %v2897, %v3014
      %v3016 = vpop.f32.mrf.mxu0
      %v3017 = vpop.f32.mrf.mxu0
      %v3018 = vadd.f32 %v2897, %v3017
      %v3019 = vpop.f32.mrf.mxu0
      %3020 = vmatprep.mubr.bf16.mxu0 0
      %3021 = vmatmul.mubr.bf16.gmra.mxu0 %v2931
      %v3022 = vpop.f32.mrf.mxu0
      %v3023 = vadd.f32 %v2897, %v3022
      %v3024 = vpop.f32.mrf.mxu0
      %v3025 = vpop.f32.mrf.mxu0
      %v3026 = vadd.f32 %v2897, %v3025
      %v3027 = vpop.f32.mrf.mxu0
      %3028 = vmatprep.mubr.bf16.mxu0 0
      %3029 = vmatmul.mubr.bf16.gmra.mxu0 %v2934
      %v3030 = vpop.f32.mrf.mxu0
      %v3031 = vadd.f32 %v2897, %v3030
      %v3032 = vpop.f32.mrf.mxu0
      %v3033 = vpop.f32.mrf.mxu0
      %v3034 = vadd.f32 %v2897, %v3033
      %v3035 = vpop.f32.mrf.mxu0
      %3036 = vmatprep.mubr.bf16.mxu0 0
      %3037 = vmatmul.mubr.bf16.gmra.mxu0 %v2937
      %v3038 = vpop.f32.mrf.mxu0
      %v3039 = vadd.f32 %v2897, %v3038
      %v3040 = vpop.f32.mrf.mxu0
      %v3041 = vpop.f32.mrf.mxu0
      %v3042 = vadd.f32 %v2897, %v3041
      %v3043 = vpop.f32.mrf.mxu0
      %3044 = vmatprep.mubr.bf16.mxu0 0
      %3045 = vmatmul.mubr.bf16.gmra.mxu0 %v2940
      %v3046 = vpop.f32.mrf.mxu0
      %v3047 = vadd.f32 %v2897, %v3046
      %v3048 = vpop.f32.mrf.mxu0
      %v3049 = vpop.f32.mrf.mxu0
      %v3050 = vadd.f32 %v2897, %v3049
      %v3051 = vpop.f32.mrf.mxu0
      %3052 = vmatprep.mubr.bf16.mxu0 0
      %3053 = vmatmul.mubr.bf16.gmra.mxu0 %v2943
      %v3054 = vpop.f32.mrf.mxu0
      %v3055 = vadd.f32 %v2897, %v3054
      %v3056 = vpop.f32.mrf.mxu0
      %v3057 = vpop.f32.mrf.mxu0
      %v3058 = vadd.f32 %v2897, %v3057
      %v3059 = vpop.f32.mrf.mxu0
      %3060 = vmatprep.mubr.bf16.mxu0 0
      %3061 = vmatmul.mubr.bf16.gmra.mxu0 %v2946
      %v3062 = vpop.f32.mrf.mxu0
      %v3063 = vadd.f32 %v2897, %v3062
      %v3064 = vpop.f32.mrf.mxu0
      %v3065 = vpop.f32.mrf.mxu0
      %v3066 = vadd.f32 %v2897, %v3065
      %v3067 = vpop.f32.mrf.mxu0
      %3068 = vmatprep.mubr.bf16.mxu0 0
      %3069 = vmatmul.mubr.bf16.gmra.mxu0 %v2949
      %v3070 = vpop.f32.mrf.mxu0
      %v3071 = vadd.f32 %v2897, %v3070
      %v3072 = vpop.f32.mrf.mxu0
      %v3073 = vpop.f32.mrf.mxu0
      %v3074 = vadd.f32 %v2897, %v3073
      %v3075 = vpop.f32.mrf.mxu0
      %3076 = vmatprep.mubr.bf16.mxu0 0
      %3077 = vmatmul.mubr.bf16.gmra.mxu0 %v2952
      %v3078 = vpop.f32.mrf.mxu0
      %v3079 = vadd.f32 %v2897, %v3078
      %v3080 = vpop.f32.mrf.mxu0
      %v3081 = vpop.f32.mrf.mxu0
      %v3082 = vadd.f32 %v2897, %v3081
      %v3083 = vpop.f32.mrf.mxu0
      %3084 = vmatprep.mubr.bf16.mxu0 0
      %3085 = vmatmul.mubr.bf16.gmra.mxu0 %v2955
      %v3086 = vpop.f32.mrf.mxu0
      %v3087 = vadd.f32 %v2897, %v3086
      %v3088 = vpop.f32.mrf.mxu0
      %v3089 = vpop.f32.mrf.mxu0
      %v3090 = vadd.f32 %v2897, %v3089
      %v3091 = vpop.f32.mrf.mxu0
      %3092 = vmatprep.mubr.bf16.mxu0 0
      %3093 = vmatmul.mubr.bf16.gmra.mxu0 %v2958
      %v3094 = vpop.f32.mrf.mxu0
      %v3095 = vadd.f32 %v2897, %v3094
      %v3096 = vpop.f32.mrf.mxu0
      %v3097 = vpop.f32.mrf.mxu0
      %v3098 = vadd.f32 %v2897, %v3097
      %v3099 = vpop.f32.mrf.mxu0
      %3100 = vmatprep.mubr.bf16.mxu0 0
      %3101 = vmatmul.mubr.bf16.gmra.mxu0 %v2961
      %v3102 = vpop.f32.mrf.mxu0
      %v3103 = vadd.f32 %v2897, %v3102
      %v3104 = vpop.f32.mrf.mxu0
      %v3105 = vpop.f32.mrf.mxu0
      %v3106 = vadd.f32 %v2897, %v3105
      %v3107 = vpop.f32.mrf.mxu0
      %3108 = vmatprep.mubr.bf16.mxu0 0
      %3109 = vmatmul.mubr.bf16.gmra.mxu0 %v2964
      %v3110 = vpop.f32.mrf.mxu0
      %v3111 = vadd.f32 %v2897, %v3110
      %v3112 = vpop.f32.mrf.mxu0
      %v3113 = vpop.f32.mrf.mxu0
      %v3114 = vadd.f32 %v2897, %v3113
      %v3115 = vpop.f32.mrf.mxu0
      %3116 = vmatprep.mubr.bf16.mxu0 0
      %3117 = vmatmul.mubr.bf16.gmra.mxu0 %v2967
      %v3118 = vpop.f32.mrf.mxu0
      %v3119 = vadd.f32 %v2897, %v3118
      %v3120 = vpop.f32.mrf.mxu0
      %v3121 = vpop.f32.mrf.mxu0
      %v3122 = vadd.f32 %v2897, %v3121
      %v3123 = vpop.f32.mrf.mxu0
      %3124 = vmatprep.mubr.bf16.mxu0 0
      %3125 = vmatmul.mubr.bf16.gmra.mxu0 %v2970
      %v3126 = vpop.f32.mrf.mxu0
      %v3127 = vadd.f32 %v2897, %v3126
      %v3128 = vpop.f32.mrf.mxu0
      %v3129 = vpop.f32.mrf.mxu0
      %v3130 = vadd.f32 %v2897, %v3129
      %v3131 = vpop.f32.mrf.mxu0
      %3132 = vdwg.mxu0
      %vm3133 = vcmp.gt.f32.partialorder %v3007, 0.0
      %vm3134 = vcmp.gt.f32.partialorder %v3010, 0.0
      %vm3135 = vcmp.gt.f32.partialorder %v3015, 0.0
      %vm3136 = vcmp.gt.f32.partialorder %v3018, 0.0
      %vm3137 = vcmp.gt.f32.partialorder %v3023, 0.0
      %vm3138 = vcmp.gt.f32.partialorder %v3026, 0.0
      %vm3139 = vcmp.gt.f32.partialorder %v3031, 0.0
      %vm3140 = vcmp.gt.f32.partialorder %v3034, 0.0
      %vm3141 = vcmp.gt.f32.partialorder %v3039, 0.0
      %vm3142 = vcmp.gt.f32.partialorder %v3042, 0.0
      %vm3143 = vcmp.gt.f32.partialorder %v3047, 0.0
      %vm3144 = vcmp.gt.f32.partialorder %v3050, 0.0
      %vm3145 = vcmp.gt.f32.partialorder %v3055, 0.0
      %vm3146 = vcmp.gt.f32.partialorder %v3058, 0.0
      %vm3147 = vcmp.gt.f32.partialorder %v3063, 0.0
      %vm3148 = vcmp.gt.f32.partialorder %v3066, 0.0
      %vm3149 = vcmp.gt.f32.partialorder %v3071, 0.0
      %vm3150 = vcmp.gt.f32.partialorder %v3074, 0.0
      %vm3151 = vcmp.gt.f32.partialorder %v3079, 0.0
      %vm3152 = vcmp.gt.f32.partialorder %v3082, 0.0
      %vm3153 = vcmp.gt.f32.partialorder %v3087, 0.0
      %vm3154 = vcmp.gt.f32.partialorder %v3090, 0.0
      %vm3155 = vcmp.gt.f32.partialorder %v3095, 0.0
      %vm3156 = vcmp.gt.f32.partialorder %v3098, 0.0
      %vm3157 = vcmp.gt.f32.partialorder %v3103, 0.0
      %vm3158 = vcmp.gt.f32.partialorder %v3106, 0.0
      %vm3159 = vcmp.gt.f32.partialorder %v3111, 0.0
      %vm3160 = vcmp.gt.f32.partialorder %v3114, 0.0
      %vm3161 = vcmp.gt.f32.partialorder %v3119, 0.0
      %vm3162 = vcmp.gt.f32.partialorder %v3122, 0.0
      %vm3163 = vcmp.gt.f32.partialorder %v3127, 0.0
      %vm3164 = vcmp.gt.f32.partialorder %v3130, 0.0
      %v3165 = vmul.f32 %v3007, 0.1
      %v3166 = vmul.f32 %v3010, 0.1
      %v3167 = vmul.f32 %v3015, 0.1
      %v3168 = vmul.f32 %v3018, 0.1
      %v3169 = vmul.f32 %v3023, 0.1
      %v3170 = vmul.f32 %v3026, 0.1
      %v3171 = vmul.f32 %v3031, 0.1
      %v3172 = vmul.f32 %v3034, 0.1
      %v3173 = vmul.f32 %v3039, 0.1
      %v3174 = vmul.f32 %v3042, 0.1
      %v3175 = vmul.f32 %v3047, 0.1
      %v3176 = vmul.f32 %v3050, 0.1
      %v3177 = vmul.f32 %v3055, 0.1
      %v3178 = vmul.f32 %v3058, 0.1
      %v3179 = vmul.f32 %v3063, 0.1
      %v3180 = vmul.f32 %v3066, 0.1
      %v3181 = vmul.f32 %v3071, 0.1
      %v3182 = vmul.f32 %v3074, 0.1
      %v3183 = vmul.f32 %v3079, 0.1
      %v3184 = vmul.f32 %v3082, 0.1
      %v3185 = vmul.f32 %v3087, 0.1
      %v3186 = vmul.f32 %v3090, 0.1
      %v3187 = vmul.f32 %v3095, 0.1
      %v3188 = vmul.f32 %v3098, 0.1
      %v3189 = vmul.f32 %v3103, 0.1
      %v3190 = vmul.f32 %v3106, 0.1
      %v3191 = vmul.f32 %v3111, 0.1
      %v3192 = vmul.f32 %v3114, 0.1
      %v3193 = vmul.f32 %v3119, 0.1
      %v3194 = vmul.f32 %v3122, 0.1
      %v3195 = vmul.f32 %v3127, 0.1
      %v3196 = vmul.f32 %v3130, 0.1
      %v3197 = vsel %vm3133, %v3007, %v3165
      %v3198 = vsel %vm3134, %v3010, %v3166
      %v3199 = vsel %vm3135, %v3015, %v3167
      %v3200 = vsel %vm3136, %v3018, %v3168
      %v3201 = vsel %vm3137, %v3023, %v3169
      %v3202 = vsel %vm3138, %v3026, %v3170
      %v3203 = vsel %vm3139, %v3031, %v3171
      %v3204 = vsel %vm3140, %v3034, %v3172
      %v3205 = vsel %vm3141, %v3039, %v3173
      %v3206 = vsel %vm3142, %v3042, %v3174
      %v3207 = vsel %vm3143, %v3047, %v3175
      %v3208 = vsel %vm3144, %v3050, %v3176
      %v3209 = vsel %vm3145, %v3055, %v3177
      %v3210 = vsel %vm3146, %v3058, %v3178
      %v3211 = vsel %vm3147, %v3063, %v3179
      %v3212 = vsel %vm3148, %v3066, %v3180
      %v3213 = vsel %vm3149, %v3071, %v3181
      %v3214 = vsel %vm3150, %v3074, %v3182
      %v3215 = vsel %vm3151, %v3079, %v3183
      %v3216 = vsel %vm3152, %v3082, %v3184
      %v3217 = vsel %vm3153, %v3087, %v3185
      %v3218 = vsel %vm3154, %v3090, %v3186
      %v3219 = vsel %vm3155, %v3095, %v3187
      %v3220 = vsel %vm3156, %v3098, %v3188
      %v3221 = vsel %vm3157, %v3103, %v3189
      %v3222 = vsel %vm3158, %v3106, %v3190
      %v3223 = vsel %vm3159, %v3111, %v3191
      %v3224 = vsel %vm3160, %v3114, %v3192
      %v3225 = vsel %vm3161, %v3119, %v3193
      %v3226 = vsel %vm3162, %v3122, %v3194
      %v3227 = vsel %vm3163, %v3127, %v3195
      %v3228 = vsel %vm3164, %v3130, %v3196
      %v3229 = vpack.c.bf16 %v3198, %v3197
      %v3230 = vpack.c.bf16 %v3200, %v3199
      %v3231 = vpack.c.bf16 %v3202, %v3201
      %v3232 = vpack.c.bf16 %v3204, %v3203
      %v3233 = vpack.c.bf16 %v3206, %v3205
      %v3234 = vpack.c.bf16 %v3208, %v3207
      %v3235 = vpack.c.bf16 %v3210, %v3209
      %v3236 = vpack.c.bf16 %v3212, %v3211
      %v3237 = vpack.c.bf16 %v3214, %v3213
      %v3238 = vpack.c.bf16 %v3216, %v3215
      %v3239 = vpack.c.bf16 %v3218, %v3217
      %v3240 = vpack.c.bf16 %v3220, %v3219
      %v3241 = vpack.c.bf16 %v3222, %v3221
      %v3242 = vpack.c.bf16 %v3224, %v3223
      %v3243 = vpack.c.bf16 %v3226, %v3225
      %v3244 = vpack.c.bf16 %v3228, %v3227
      %v3245 = vld [vmem:[%s8] sm:$0xf]
      %v3246 = vld [vmem:[%s8 + $0x4] sm:$0x3]
      %v3247 = vld [vmem:[%s9] sm:$0x1]
      %v3249 = vlaneseq
      %v3250 = vshrl.u32 %v3249, 7
      %v3251 = vsub.s32 0, %v3250
      %v3252 = vrot.slane %v3247, %v3251
      %v3256 = vunpack.c.l.b16 %v3245
      %v3257 = vunpack.c.l.b16 %v3246
      %v3258 = vpack.c.b16 %v3257, %v3256
      %vm3259 = vcmask 97280
      %v3261 = vsel %vm3259, %v3229, 0
      %v3264 = vsel %vm3259, %v3230, 0
      %v3267 = vsel %vm3259, %v3231, 0
      %v3270 = vsel %vm3259, %v3232, 0
      %v3273 = vsel %vm3259, %v3233, 0
      %v3276 = vsel %vm3259, %v3234, 0
      %v3279 = vsel %vm3259, %v3235, 0
      %v3282 = vsel %vm3259, %v3236, 0
      %v3285 = vsel %vm3259, %v3237, 0
      %v3288 = vsel %vm3259, %v3238, 0
      %v3291 = vsel %vm3259, %v3239, 0
      %v3294 = vsel %vm3259, %v3240, 0
      %v3297 = vsel %vm3259, %v3241, 0
      %v3300 = vsel %vm3259, %v3242, 0
      %v3303 = vsel %vm3259, %v3243, 0
      %v3306 = vsel %vm3259, %v3244, 0
      %vm3308 = vcmask 1045504
      %v3310 = vsel %vm3308, %v3258, 0
      %3312 = vmatprep.subr.bf16.mxu0 0
      %3313 = vmatpush1.bf16.msra.mxu0 0
      %3314 = vmatprep.subr.bf16.mxu0 0
      %3315 = vmatpush1.bf16.msra.mxu0 0
      %3316 = vmatprep.subr.bf16.mxu0 0
      %3317 = vmatpush1.bf16.msra.mxu0 0
      %3318 = vmatprep.subr.bf16.mxu0 0
      %3319 = vmatpush1.bf16.msra.mxu0 0
      %3320 = vmatprep.subr.bf16.mxu0 0
      %3321 = vmatpush1.bf16.msra.mxu0 0
      %3322 = vmatprep.subr.bf16.mxu0 0
      %3323 = vmatpush1.bf16.msra.mxu0 0
      %3324 = vmatprep.subr.bf16.mxu0 0
      %3325 = vmatpush1.bf16.msra.mxu0 0
      %3326 = vmatprep.subr.bf16.mxu0 0
      %3327 = vmatpush1.bf16.msra.mxu0 %v3310
      %3328 = vmatprep.subr.bf16.mxu0 0
      %3329 = vmatpush2.bf16.msra.mxu0 0
      %3330 = vmatprep.subr.bf16.mxu0 0
      %3331 = vmatpush2.bf16.msra.mxu0 0
      %3332 = vmatprep.subr.bf16.mxu0 0
      %3333 = vmatpush2.bf16.msra.mxu0 0
      %3334 = vmatprep.subr.bf16.mxu0 0
      %3335 = vmatpush2.bf16.msra.mxu0 0
      %3336 = vmatprep.subr.bf16.mxu0 0
      %3337 = vmatpush2.bf16.msra.mxu0 0
      %3338 = vmatprep.subr.bf16.mxu0 0
      %3339 = vmatpush2.bf16.msra.mxu0 0
      %3340 = vmatprep.subr.bf16.mxu0 0
      %3341 = vmatpush2.bf16.msra.mxu0 0
      %3342 = vmatprep.subr.bf16.mxu0 0
      %3343 = vmatpush2.bf16.msra.mxu0 0
      %3344 = vmatprep.mubr.bf16.mxu0 0
      %3345 = vmatmul.mubr.bf16.gmra.mxu0 %v3261
      %v3346 = vpop.f32.mrf.mxu0
      %v3347 = vadd.f32 %v3252, %v3346
      %v3348 = vpop.f32.mrf.mxu0
      %v3349 = vpop.f32.mrf.mxu0
      %v3350 = vadd.f32 %v3252, %v3349
      %v3351 = vpop.f32.mrf.mxu0
      %3352 = vmatprep.mubr.bf16.mxu0 0
      %3353 = vmatmul.mubr.bf16.gmra.mxu0 %v3264
      %v3354 = vpop.f32.mrf.mxu0
      %v3355 = vadd.f32 %v3252, %v3354
      %v3356 = vpop.f32.mrf.mxu0
      %v3357 = vpop.f32.mrf.mxu0
      %v3358 = vadd.f32 %v3252, %v3357
      %v3359 = vpop.f32.mrf.mxu0
      %3360 = vmatprep.mubr.bf16.mxu0 0
      %3361 = vmatmul.mubr.bf16.gmra.mxu0 %v3267
      %v3362 = vpop.f32.mrf.mxu0
      %v3363 = vadd.f32 %v3252, %v3362
      %v3364 = vpop.f32.mrf.mxu0
      %v3365 = vpop.f32.mrf.mxu0
      %v3366 = vadd.f32 %v3252, %v3365
      %v3367 = vpop.f32.mrf.mxu0
      %3368 = vmatprep.mubr.bf16.mxu0 0
      %3369 = vmatmul.mubr.bf16.gmra.mxu0 %v3270
      %v3370 = vpop.f32.mrf.mxu0
      %v3371 = vadd.f32 %v3252, %v3370
      %v3372 = vpop.f32.mrf.mxu0
      %v3373 = vpop.f32.mrf.mxu0
      %v3374 = vadd.f32 %v3252, %v3373
      %v3375 = vpop.f32.mrf.mxu0
      %3376 = vmatprep.mubr.bf16.mxu0 0
      %3377 = vmatmul.mubr.bf16.gmra.mxu0 %v3273
      %v3378 = vpop.f32.mrf.mxu0
      %v3379 = vadd.f32 %v3252, %v3378
      %v3380 = vpop.f32.mrf.mxu0
      %v3381 = vpop.f32.mrf.mxu0
      %v3382 = vadd.f32 %v3252, %v3381
      %v3383 = vpop.f32.mrf.mxu0
      %3384 = vmatprep.mubr.bf16.mxu0 0
      %3385 = vmatmul.mubr.bf16.gmra.mxu0 %v3276
      %v3386 = vpop.f32.mrf.mxu0
      %v3387 = vadd.f32 %v3252, %v3386
      %v3388 = vpop.f32.mrf.mxu0
      %v3389 = vpop.f32.mrf.mxu0
      %v3390 = vadd.f32 %v3252, %v3389
      %v3391 = vpop.f32.mrf.mxu0
      %3392 = vmatprep.mubr.bf16.mxu0 0
      %3393 = vmatmul.mubr.bf16.gmra.mxu0 %v3279
      %v3394 = vpop.f32.mrf.mxu0
      %v3395 = vadd.f32 %v3252, %v3394
      %v3396 = vpop.f32.mrf.mxu0
      %v3397 = vpop.f32.mrf.mxu0
      %v3398 = vadd.f32 %v3252, %v3397
      %v3399 = vpop.f32.mrf.mxu0
      %3400 = vmatprep.mubr.bf16.mxu0 0
      %3401 = vmatmul.mubr.bf16.gmra.mxu0 %v3282
      %v3402 = vpop.f32.mrf.mxu0
      %v3403 = vadd.f32 %v3252, %v3402
      %v3404 = vpop.f32.mrf.mxu0
      %v3405 = vpop.f32.mrf.mxu0
      %v3406 = vadd.f32 %v3252, %v3405
      %v3407 = vpop.f32.mrf.mxu0
      %3408 = vmatprep.mubr.bf16.mxu0 0
      %3409 = vmatmul.mubr.bf16.gmra.mxu0 %v3285
      %v3410 = vpop.f32.mrf.mxu0
      %v3411 = vadd.f32 %v3252, %v3410
      %v3412 = vpop.f32.mrf.mxu0
      %v3413 = vpop.f32.mrf.mxu0
      %v3414 = vadd.f32 %v3252, %v3413
      %v3415 = vpop.f32.mrf.mxu0
      %3416 = vmatprep.mubr.bf16.mxu0 0
      %3417 = vmatmul.mubr.bf16.gmra.mxu0 %v3288
      %v3418 = vpop.f32.mrf.mxu0
      %v3419 = vadd.f32 %v3252, %v3418
      %v3420 = vpop.f32.mrf.mxu0
      %v3421 = vpop.f32.mrf.mxu0
      %v3422 = vadd.f32 %v3252, %v3421
      %v3423 = vpop.f32.mrf.mxu0
      %3424 = vmatprep.mubr.bf16.mxu0 0
      %3425 = vmatmul.mubr.bf16.gmra.mxu0 %v3291
      %v3426 = vpop.f32.mrf.mxu0
      %v3427 = vadd.f32 %v3252, %v3426
      %v3428 = vpop.f32.mrf.mxu0
      %v3429 = vpop.f32.mrf.mxu0
      %v3430 = vadd.f32 %v3252, %v3429
      %v3431 = vpop.f32.mrf.mxu0
      %3432 = vmatprep.mubr.bf16.mxu0 0
      %3433 = vmatmul.mubr.bf16.gmra.mxu0 %v3294
      %v3434 = vpop.f32.mrf.mxu0
      %v3435 = vadd.f32 %v3252, %v3434
      %v3436 = vpop.f32.mrf.mxu0
      %v3437 = vpop.f32.mrf.mxu0
      %v3438 = vadd.f32 %v3252, %v3437
      %v3439 = vpop.f32.mrf.mxu0
      %3440 = vmatprep.mubr.bf16.mxu0 0
      %3441 = vmatmul.mubr.bf16.gmra.mxu0 %v3297
      %v3442 = vpop.f32.mrf.mxu0
      %v3443 = vadd.f32 %v3252, %v3442
      %v3444 = vpop.f32.mrf.mxu0
      %v3445 = vpop.f32.mrf.mxu0
      %v3446 = vadd.f32 %v3252, %v3445
      %v3447 = vpop.f32.mrf.mxu0
      %3448 = vmatprep.mubr.bf16.mxu0 0
      %3449 = vmatmul.mubr.bf16.gmra.mxu0 %v3300
      %v3450 = vpop.f32.mrf.mxu0
      %v3451 = vadd.f32 %v3252, %v3450
      %v3452 = vpop.f32.mrf.mxu0
      %v3453 = vpop.f32.mrf.mxu0
      %v3454 = vadd.f32 %v3252, %v3453
      %v3455 = vpop.f32.mrf.mxu0
      %3456 = vmatprep.mubr.bf16.mxu0 0
      %3457 = vmatmul.mubr.bf16.gmra.mxu0 %v3303
      %v3458 = vpop.f32.mrf.mxu0
      %v3459 = vadd.f32 %v3252, %v3458
      %v3460 = vpop.f32.mrf.mxu0
      %v3461 = vpop.f32.mrf.mxu0
      %v3462 = vadd.f32 %v3252, %v3461
      %v3463 = vpop.f32.mrf.mxu0
      %3464 = vmatprep.mubr.bf16.mxu0 0
      %3465 = vmatmul.mubr.bf16.gmra.mxu0 %v3306
      %v3466 = vpop.f32.mrf.mxu0
      %v3467 = vadd.f32 %v3252, %v3466
      %v3468 = vpop.f32.mrf.mxu0
      %v3469 = vpop.f32.mrf.mxu0
      %v3470 = vadd.f32 %v3252, %v3469
      %v3471 = vpop.f32.mrf.mxu0
      %3472 = vdwg.mxu0
      %v3473 = vld [vmem:[%s632] sm:$0xff]
      %v3474 = vld [vmem:[%s632 + $0x8] sm:$0xff]
      %v3475 = vld [vmem:[%s632 + $0x10] sm:$0xff]
      %v3476 = vld [vmem:[%s632 + $0x18] sm:$0xff]
      %v3477 = vld [vmem:[%s632 + $0x20] sm:$0xff]
      %v3478 = vld [vmem:[%s632 + $0x28] sm:$0xff]
      %v3479 = vld [vmem:[%s632 + $0x30] sm:$0xff]
      %v3480 = vld [vmem:[%s632 + $0x38] sm:$0xff]
      %v3481 = vld [vmem:[%s632 + $0x40] sm:$0xff]
      %v3482 = vld [vmem:[%s632 + $0x48] sm:$0xff]
      %v3483 = vld [vmem:[%s632 + $0x50] sm:$0xff]
      %v3484 = vld [vmem:[%s632 + $0x58] sm:$0xff]
      %v3485 = vld [vmem:[%s632 + $0x60] sm:$0xff]
      %v3486 = vld [vmem:[%s632 + $0x68] sm:$0xff]
      %v3487 = vld [vmem:[%s632 + $0x70] sm:$0xff]
      %v3488 = vld [vmem:[%s632 + $0x78] sm:$0xff]
      %v3489 = vld [vmem:[%s632 + $0x80] sm:$0xff]
      %v3490 = vld [vmem:[%s632 + $0x88] sm:$0xff]
      %v3491 = vld [vmem:[%s632 + $0x90] sm:$0xff]
      %v3492 = vld [vmem:[%s632 + $0x98] sm:$0xff]
      %v3493 = vld [vmem:[%s632 + $0xa0] sm:$0xff]
      %v3494 = vld [vmem:[%s632 + $0xa8] sm:$0xff]
      %v3495 = vld [vmem:[%s632 + $0xb0] sm:$0xff]
      %v3496 = vld [vmem:[%s632 + $0xb8] sm:$0xff]
      %v3497 = vld [vmem:[%s632 + $0xc0] sm:$0xff]
      %v3498 = vld [vmem:[%s632 + $0xc8] sm:$0xff]
      %v3499 = vld [vmem:[%s632 + $0xd0] sm:$0xff]
      %v3500 = vld [vmem:[%s632 + $0xd8] sm:$0xff]
      %v3501 = vld [vmem:[%s632 + $0xe0] sm:$0xff]
      %v3502 = vld [vmem:[%s632 + $0xe8] sm:$0xff]
      %v3503 = vld [vmem:[%s632 + $0xf0] sm:$0xff]
      %v3504 = vld [vmem:[%s632 + $0xf8] sm:$0xff]
      %v3505 = vmul.f32 %v3347, 0.5
      %v3506 = vmul.f32 %v3350, 0.5
      %v3507 = vmul.f32 %v3355, 0.5
      %v3508 = vmul.f32 %v3358, 0.5
      %v3509 = vmul.f32 %v3363, 0.5
      %v3510 = vmul.f32 %v3366, 0.5
      %v3511 = vmul.f32 %v3371, 0.5
      %v3512 = vmul.f32 %v3374, 0.5
      %v3513 = vmul.f32 %v3379, 0.5
      %v3514 = vmul.f32 %v3382, 0.5
      %v3515 = vmul.f32 %v3387, 0.5
      %v3516 = vmul.f32 %v3390, 0.5
      %v3517 = vmul.f32 %v3395, 0.5
      %v3518 = vmul.f32 %v3398, 0.5
      %v3519 = vmul.f32 %v3403, 0.5
      %v3520 = vmul.f32 %v3406, 0.5
      %v3521 = vmul.f32 %v3411, 0.5
      %v3522 = vmul.f32 %v3414, 0.5
      %v3523 = vmul.f32 %v3419, 0.5
      %v3524 = vmul.f32 %v3422, 0.5
      %v3525 = vmul.f32 %v3427, 0.5
      %v3526 = vmul.f32 %v3430, 0.5
      %v3527 = vmul.f32 %v3435, 0.5
      %v3528 = vmul.f32 %v3438, 0.5
      %v3529 = vmul.f32 %v3443, 0.5
      %v3530 = vmul.f32 %v3446, 0.5
      %v3531 = vmul.f32 %v3451, 0.5
      %v3532 = vmul.f32 %v3454, 0.5
      %v3533 = vmul.f32 %v3459, 0.5
      %v3534 = vmul.f32 %v3462, 0.5
      %v3535 = vmul.f32 %v3467, 0.5
      %v3536 = vmul.f32 %v3470, 0.5
      %v3537 = vmul.f32 %v3505, 1.442695
      %v3538 = vpow.pop %v3537
      %v3539 = vmul.f32 %v3506, 1.442695
      %v3540 = vpow.pop %v3539
      %v3541 = vmul.f32 %v3507, 1.442695
      %v3542 = vpow.pop %v3541
      %v3543 = vmul.f32 %v3508, 1.442695
      %v3544 = vpow.pop %v3543
      %v3545 = vmul.f32 %v3509, 1.442695
      %v3546 = vpow.pop %v3545
      %v3547 = vmul.f32 %v3510, 1.442695
      %v3548 = vpow.pop %v3547
      %v3549 = vmul.f32 %v3511, 1.442695
      %v3550 = vpow.pop %v3549
      %v3551 = vmul.f32 %v3512, 1.442695
      %v3552 = vpow.pop %v3551
      %v3553 = vmul.f32 %v3513, 1.442695
      %v3554 = vpow.pop %v3553
      %v3555 = vmul.f32 %v3514, 1.442695
      %v3556 = vpow.pop %v3555
      %v3557 = vmul.f32 %v3515, 1.442695
      %v3558 = vpow.pop %v3557
      %v3559 = vmul.f32 %v3516, 1.442695
      %v3560 = vpow.pop %v3559
      %v3561 = vmul.f32 %v3517, 1.442695
      %v3562 = vpow.pop %v3561
      %v3563 = vmul.f32 %v3518, 1.442695
      %v3564 = vpow.pop %v3563
      %v3565 = vmul.f32 %v3519, 1.442695
      %v3566 = vpow.pop %v3565
      %v3567 = vmul.f32 %v3520, 1.442695
      %v3568 = vpow.pop %v3567
      %v3569 = vmul.f32 %v3521, 1.442695
      %v3570 = vpow.pop %v3569
      %v3571 = vmul.f32 %v3522, 1.442695
      %v3572 = vpow.pop %v3571
      %v3573 = vmul.f32 %v3523, 1.442695
      %v3574 = vpow.pop %v3573
      %v3575 = vmul.f32 %v3524, 1.442695
      %v3576 = vpow.pop %v3575
      %v3577 = vmul.f32 %v3525, 1.442695
      %v3578 = vpow.pop %v3577
      %v3579 = vmul.f32 %v3526, 1.442695
      %v3580 = vpow.pop %v3579
      %v3581 = vmul.f32 %v3527, 1.442695
      %v3582 = vpow.pop %v3581
      %v3583 = vmul.f32 %v3528, 1.442695
      %v3584 = vpow.pop %v3583
      %v3585 = vmul.f32 %v3529, 1.442695
      %v3586 = vpow.pop %v3585
      %v3587 = vmul.f32 %v3530, 1.442695
      %v3588 = vpow.pop %v3587
      %v3589 = vmul.f32 %v3531, 1.442695
      %v3590 = vpow.pop %v3589
      %v3591 = vmul.f32 %v3532, 1.442695
      %v3592 = vpow.pop %v3591
      %v3593 = vmul.f32 %v3533, 1.442695
      %v3594 = vpow.pop %v3593
      %v3595 = vmul.f32 %v3534, 1.442695
      %v3596 = vpow.pop %v3595
      %v3597 = vmul.f32 %v3535, 1.442695
      %v3598 = vpow.pop %v3597
      %v3599 = vmul.f32 %v3536, 1.442695
      %v3600 = vpow.pop %v3599
      %3633 = vrot.lane.b32.xlu0 %v3538, 126
      %v3634 = vpop.permute.xlu0 %3633
      %3635 = vrot.lane.b32.xlu0 %v3540, 126
      %v3636 = vpop.permute.xlu0 %3635
      %3637 = vrot.lane.b32.xlu0 %v3542, 126
      %v3638 = vpop.permute.xlu0 %3637
      %3639 = vrot.lane.b32.xlu0 %v3544, 126
      %v3640 = vpop.permute.xlu0 %3639
      %3641 = vrot.lane.b32.xlu0 %v3546, 126
      %v3642 = vpop.permute.xlu0 %3641
      %3643 = vrot.lane.b32.xlu0 %v3548, 126
      %v3644 = vpop.permute.xlu0 %3643
      %3645 = vrot.lane.b32.xlu0 %v3550, 126
      %v3646 = vpop.permute.xlu0 %3645
      %3647 = vrot.lane.b32.xlu0 %v3552, 126
      %v3648 = vpop.permute.xlu0 %3647
      %3649 = vrot.lane.b32.xlu0 %v3554, 126
      %v3650 = vpop.permute.xlu0 %3649
      %3651 = vrot.lane.b32.xlu0 %v3556, 126
      %v3652 = vpop.permute.xlu0 %3651
      %3653 = vrot.lane.b32.xlu0 %v3558, 126
      %v3654 = vpop.permute.xlu0 %3653
      %3655 = vrot.lane.b32.xlu0 %v3560, 126
      %v3656 = vpop.permute.xlu0 %3655
      %3657 = vrot.lane.b32.xlu0 %v3562, 126
      %v3658 = vpop.permute.xlu0 %3657
      %3659 = vrot.lane.b32.xlu0 %v3564, 126
      %v3660 = vpop.permute.xlu0 %3659
      %3661 = vrot.lane.b32.xlu0 %v3566, 126
      %v3662 = vpop.permute.xlu0 %3661
      %3663 = vrot.lane.b32.xlu0 %v3568, 126
      %v3664 = vpop.permute.xlu0 %3663
      %3665 = vrot.lane.b32.xlu0 %v3570, 126
      %v3666 = vpop.permute.xlu0 %3665
      %3667 = vrot.lane.b32.xlu0 %v3572, 126
      %v3668 = vpop.permute.xlu0 %3667
      %3669 = vrot.lane.b32.xlu0 %v3574, 126
      %v3670 = vpop.permute.xlu0 %3669
      %3671 = vrot.lane.b32.xlu0 %v3576, 126
      %v3672 = vpop.permute.xlu0 %3671
      %3673 = vrot.lane.b32.xlu0 %v3578, 126
      %v3674 = vpop.permute.xlu0 %3673
      %3675 = vrot.lane.b32.xlu0 %v3580, 126
      %v3676 = vpop.permute.xlu0 %3675
      %3677 = vrot.lane.b32.xlu0 %v3582, 126
      %v3678 = vpop.permute.xlu0 %3677
      %3679 = vrot.lane.b32.xlu0 %v3584, 126
      %v3680 = vpop.permute.xlu0 %3679
      %3681 = vrot.lane.b32.xlu0 %v3586, 126
      %v3682 = vpop.permute.xlu0 %3681
      %3683 = vrot.lane.b32.xlu0 %v3588, 126
      %v3684 = vpop.permute.xlu0 %3683
      %3685 = vrot.lane.b32.xlu0 %v3590, 126
      %v3686 = vpop.permute.xlu0 %3685
      %3687 = vrot.lane.b32.xlu0 %v3592, 126
      %v3688 = vpop.permute.xlu0 %3687
      %3689 = vrot.lane.b32.xlu0 %v3594, 126
      %v3690 = vpop.permute.xlu0 %3689
      %3691 = vrot.lane.b32.xlu0 %v3596, 126
      %v3692 = vpop.permute.xlu0 %3691
      %3693 = vrot.lane.b32.xlu0 %v3598, 126
      %v3694 = vpop.permute.xlu0 %3693
      %3695 = vrot.lane.b32.xlu0 %v3600, 126
      %v3696 = vpop.permute.xlu0 %3695
      %v3729 = vmul.f32 %v3473, %v3634
      %v3730 = vmul.f32 %v3474, %v3636
      %v3731 = vmul.f32 %v3475, %v3638
      %v3732 = vmul.f32 %v3476, %v3640
      %v3733 = vmul.f32 %v3477, %v3642
      %v3734 = vmul.f32 %v3478, %v3644
      %v3735 = vmul.f32 %v3479, %v3646
      %v3736 = vmul.f32 %v3480, %v3648
      %v3737 = vmul.f32 %v3481, %v3650
      %v3738 = vmul.f32 %v3482, %v3652
      %v3739 = vmul.f32 %v3483, %v3654
      %v3740 = vmul.f32 %v3484, %v3656
      %v3741 = vmul.f32 %v3485, %v3658
      %v3742 = vmul.f32 %v3486, %v3660
      %v3743 = vmul.f32 %v3487, %v3662
      %v3744 = vmul.f32 %v3488, %v3664
      %v3745 = vmul.f32 %v3489, %v3666
      %v3746 = vmul.f32 %v3490, %v3668
      %v3747 = vmul.f32 %v3491, %v3670
      %v3748 = vmul.f32 %v3492, %v3672
      %v3749 = vmul.f32 %v3493, %v3674
      %v3750 = vmul.f32 %v3494, %v3676
      %v3751 = vmul.f32 %v3495, %v3678
      %v3752 = vmul.f32 %v3496, %v3680
      %v3753 = vmul.f32 %v3497, %v3682
      %v3754 = vmul.f32 %v3498, %v3684
      %v3755 = vmul.f32 %v3499, %v3686
      %v3756 = vmul.f32 %v3500, %v3688
      %v3757 = vmul.f32 %v3501, %v3690
      %v3758 = vmul.f32 %v3502, %v3692
      %v3759 = vmul.f32 %v3503, %v3694
      %v3760 = vmul.f32 %v3504, %v3696
      %v3761 = vadd.f32 %v3347, %v3729
      %v3762 = vadd.f32 %v3350, %v3730
      %v3763 = vadd.f32 %v3355, %v3731
      %v3764 = vadd.f32 %v3358, %v3732
      %v3765 = vadd.f32 %v3363, %v3733
      %v3766 = vadd.f32 %v3366, %v3734
      %v3767 = vadd.f32 %v3371, %v3735
      %v3768 = vadd.f32 %v3374, %v3736
      %v3769 = vadd.f32 %v3379, %v3737
      %v3770 = vadd.f32 %v3382, %v3738
      %v3771 = vadd.f32 %v3387, %v3739
      %v3772 = vadd.f32 %v3390, %v3740
      %v3773 = vadd.f32 %v3395, %v3741
      %v3774 = vadd.f32 %v3398, %v3742
      %v3775 = vadd.f32 %v3403, %v3743
      %v3776 = vadd.f32 %v3406, %v3744
      %v3777 = vadd.f32 %v3411, %v3745
      %v3778 = vadd.f32 %v3414, %v3746
      %v3779 = vadd.f32 %v3419, %v3747
      %v3780 = vadd.f32 %v3422, %v3748
      %v3781 = vadd.f32 %v3427, %v3749
      %v3782 = vadd.f32 %v3430, %v3750
      %v3783 = vadd.f32 %v3435, %v3751
      %v3784 = vadd.f32 %v3438, %v3752
      %v3785 = vadd.f32 %v3443, %v3753
      %v3786 = vadd.f32 %v3446, %v3754
      %v3787 = vadd.f32 %v3451, %v3755
      %v3788 = vadd.f32 %v3454, %v3756
      %v3789 = vadd.f32 %v3459, %v3757
      %v3790 = vadd.f32 %v3462, %v3758
      %v3791 = vadd.f32 %v3467, %v3759
      %v3792 = vadd.f32 %v3470, %v3760
      %v3793 = vld [vmem:[%s10] sm:$0x1]
      %v3794 = vunpack.c.l.bf16 %v3793
      %3796 = vset.pattern.permute.xlu0 0
      %3797 = vperm.xlu0 %3796, %v3761
      %v3798 = vpop.permute.xlu0 %3797
      %3801 = vset.pattern.permute.xlu0 0
      %3802 = vperm.xlu0 %3801, %v3762
      %v3803 = vpop.permute.xlu0 %3802
      %3806 = vset.pattern.permute.xlu0 0
      %3807 = vperm.xlu0 %3806, %v3763
      %v3808 = vpop.permute.xlu0 %3807
      %3811 = vset.pattern.permute.xlu0 0
      %3812 = vperm.xlu0 %3811, %v3764
      %v3813 = vpop.permute.xlu0 %3812
      %3816 = vset.pattern.permute.xlu0 0
      %3817 = vperm.xlu0 %3816, %v3765
      %v3818 = vpop.permute.xlu0 %3817
      %3821 = vset.pattern.permute.xlu0 0
      %3822 = vperm.xlu0 %3821, %v3766
      %v3823 = vpop.permute.xlu0 %3822
      %3826 = vset.pattern.permute.xlu0 0
      %3827 = vperm.xlu0 %3826, %v3767
      %v3828 = vpop.permute.xlu0 %3827
      %3831 = vset.pattern.permute.xlu0 0
      %3832 = vperm.xlu0 %3831, %v3768
      %v3833 = vpop.permute.xlu0 %3832
      %3836 = vset.pattern.permute.xlu0 0
      %3837 = vperm.xlu0 %3836, %v3769
      %v3838 = vpop.permute.xlu0 %3837
      %3841 = vset.pattern.permute.xlu0 0
      %3842 = vperm.xlu0 %3841, %v3770
      %v3843 = vpop.permute.xlu0 %3842
      %3846 = vset.pattern.permute.xlu0 0
      %3847 = vperm.xlu0 %3846, %v3771
      %v3848 = vpop.permute.xlu0 %3847
      %3851 = vset.pattern.permute.xlu0 0
      %3852 = vperm.xlu0 %3851, %v3772
      %v3853 = vpop.permute.xlu0 %3852
      %3856 = vset.pattern.permute.xlu0 0
      %3857 = vperm.xlu0 %3856, %v3773
      %v3858 = vpop.permute.xlu0 %3857
      %3861 = vset.pattern.permute.xlu0 0
      %3862 = vperm.xlu0 %3861, %v3774
      %v3863 = vpop.permute.xlu0 %3862
      %3866 = vset.pattern.permute.xlu0 0
      %3867 = vperm.xlu0 %3866, %v3775
      %v3868 = vpop.permute.xlu0 %3867
      %3871 = vset.pattern.permute.xlu0 0
      %3872 = vperm.xlu0 %3871, %v3776
      %v3873 = vpop.permute.xlu0 %3872
      %3876 = vset.pattern.permute.xlu0 0
      %3877 = vperm.xlu0 %3876, %v3777
      %v3878 = vpop.permute.xlu0 %3877
      %3881 = vset.pattern.permute.xlu0 0
      %3882 = vperm.xlu0 %3881, %v3778
      %v3883 = vpop.permute.xlu0 %3882
      %3886 = vset.pattern.permute.xlu0 0
      %3887 = vperm.xlu0 %3886, %v3779
      %v3888 = vpop.permute.xlu0 %3887
      %3891 = vset.pattern.permute.xlu0 0
      %3892 = vperm.xlu0 %3891, %v3780
      %v3893 = vpop.permute.xlu0 %3892
      %3896 = vset.pattern.permute.xlu0 0
      %3897 = vperm.xlu0 %3896, %v3781
      %v3898 = vpop.permute.xlu0 %3897
      %3901 = vset.pattern.permute.xlu0 0
      %3902 = vperm.xlu0 %3901, %v3782
      %v3903 = vpop.permute.xlu0 %3902
      %3906 = vset.pattern.permute.xlu0 0
      %3907 = vperm.xlu0 %3906, %v3783
      %v3908 = vpop.permute.xlu0 %3907
      %3911 = vset.pattern.permute.xlu0 0
      %3912 = vperm.xlu0 %3911, %v3784
      %v3913 = vpop.permute.xlu0 %3912
      %3916 = vset.pattern.permute.xlu0 0
      %3917 = vperm.xlu0 %3916, %v3785
      %v3918 = vpop.permute.xlu0 %3917
      %3921 = vset.pattern.permute.xlu0 0
      %3922 = vperm.xlu0 %3921, %v3786
      %v3923 = vpop.permute.xlu0 %3922
      %3926 = vset.pattern.permute.xlu0 0
      %3927 = vperm.xlu0 %3926, %v3787
      %v3928 = vpop.permute.xlu0 %3927
      %3931 = vset.pattern.permute.xlu0 0
      %3932 = vperm.xlu0 %3931, %v3788
      %v3933 = vpop.permute.xlu0 %3932
      %3936 = vset.pattern.permute.xlu0 0
      %3937 = vperm.xlu0 %3936, %v3789
      %v3938 = vpop.permute.xlu0 %3937
      %3941 = vset.pattern.permute.xlu0 0
      %3942 = vperm.xlu0 %3941, %v3790
      %v3943 = vpop.permute.xlu0 %3942
      %3946 = vset.pattern.permute.xlu0 0
      %3947 = vperm.xlu0 %3946, %v3791
      %v3948 = vpop.permute.xlu0 %3947
      %3951 = vset.pattern.permute.xlu0 0
      %3952 = vperm.xlu0 %3951, %v3792
      %v3953 = vpop.permute.xlu0 %3952
      %v3955 = vlaneseq
      %v3956 = vshrl.u32 %v3955, 7
      %v3957 = vsub.s32 0, %v3956
      %v3958 = vrot.slane %v3794, %v3957
      %v3959 = vmul.f32 %v3798, %v3958
      %v3960 = vmul.f32 %v3803, %v3958
      %v3961 = vmul.f32 %v3808, %v3958
      %v3962 = vmul.f32 %v3813, %v3958
      %v3963 = vmul.f32 %v3818, %v3958
      %v3964 = vmul.f32 %v3823, %v3958
      %v3965 = vmul.f32 %v3828, %v3958
      %v3966 = vmul.f32 %v3833, %v3958
      %v3967 = vmul.f32 %v3838, %v3958
      %v3968 = vmul.f32 %v3843, %v3958
      %v3969 = vmul.f32 %v3848, %v3958
      %v3970 = vmul.f32 %v3853, %v3958
      %v3971 = vmul.f32 %v3858, %v3958
      %v3972 = vmul.f32 %v3863, %v3958
      %v3973 = vmul.f32 %v3868, %v3958
      %v3974 = vmul.f32 %v3873, %v3958
      %v3975 = vmul.f32 %v3878, %v3958
      %v3976 = vmul.f32 %v3883, %v3958
      %v3977 = vmul.f32 %v3888, %v3958
      %v3978 = vmul.f32 %v3893, %v3958
      %v3979 = vmul.f32 %v3898, %v3958
      %v3980 = vmul.f32 %v3903, %v3958
      %v3981 = vmul.f32 %v3908, %v3958
      %v3982 = vmul.f32 %v3913, %v3958
      %v3983 = vmul.f32 %v3918, %v3958
      %v3984 = vmul.f32 %v3923, %v3958
      %v3985 = vmul.f32 %v3928, %v3958
      %v3986 = vmul.f32 %v3933, %v3958
      %v3987 = vmul.f32 %v3938, %v3958
      %v3988 = vmul.f32 %v3943, %v3958
      %v3989 = vmul.f32 %v3948, %v3958
      %v3990 = vmul.f32 %v3953, %v3958
      %3991 = vset.pattern.permute.xlu0 1
      %3992 = vperm.xlu0 %3991, %v3761
      %v3993 = vpop.permute.xlu0 %3992
      %3995 = vset.pattern.permute.xlu0 1
      %3996 = vperm.xlu0 %3995, %v3762
      %v3997 = vpop.permute.xlu0 %3996
      %3999 = vset.pattern.permute.xlu0 1
      %4000 = vperm.xlu0 %3999, %v3763
      %v4001 = vpop.permute.xlu0 %4000
      %4003 = vset.pattern.permute.xlu0 1
      %4004 = vperm.xlu0 %4003, %v3764
      %v4005 = vpop.permute.xlu0 %4004
      %4007 = vset.pattern.permute.xlu0 1
      %4008 = vperm.xlu0 %4007, %v3765
      %v4009 = vpop.permute.xlu0 %4008
      %4011 = vset.pattern.permute.xlu0 1
      %4012 = vperm.xlu0 %4011, %v3766
      %v4013 = vpop.permute.xlu0 %4012
      %4015 = vset.pattern.permute.xlu0 1
      %4016 = vperm.xlu0 %4015, %v3767
      %v4017 = vpop.permute.xlu0 %4016
      %4019 = vset.pattern.permute.xlu0 1
      %4020 = vperm.xlu0 %4019, %v3768
      %v4021 = vpop.permute.xlu0 %4020
      %4023 = vset.pattern.permute.xlu0 1
      %4024 = vperm.xlu0 %4023, %v3769
      %v4025 = vpop.permute.xlu0 %4024
      %4027 = vset.pattern.permute.xlu0 1
      %4028 = vperm.xlu0 %4027, %v3770
      %v4029 = vpop.permute.xlu0 %4028
      %4031 = vset.pattern.permute.xlu0 1
      %4032 = vperm.xlu0 %4031, %v3771
      %v4033 = vpop.permute.xlu0 %4032
      %4035 = vset.pattern.permute.xlu0 1
      %4036 = vperm.xlu0 %4035, %v3772
      %v4037 = vpop.permute.xlu0 %4036
      %4039 = vset.pattern.permute.xlu0 1
      %4040 = vperm.xlu0 %4039, %v3773
      %v4041 = vpop.permute.xlu0 %4040
      %4043 = vset.pattern.permute.xlu0 1
      %4044 = vperm.xlu0 %4043, %v3774
      %v4045 = vpop.permute.xlu0 %4044
      %4047 = vset.pattern.permute.xlu0 1
      %4048 = vperm.xlu0 %4047, %v3775
      %v4049 = vpop.permute.xlu0 %4048
      %4051 = vset.pattern.permute.xlu0 1
      %4052 = vperm.xlu0 %4051, %v3776
      %v4053 = vpop.permute.xlu0 %4052
      %4055 = vset.pattern.permute.xlu0 1
      %4056 = vperm.xlu0 %4055, %v3777
      %v4057 = vpop.permute.xlu0 %4056
      %4059 = vset.pattern.permute.xlu0 1
      %4060 = vperm.xlu0 %4059, %v3778
      %v4061 = vpop.permute.xlu0 %4060
      %4063 = vset.pattern.permute.xlu0 1
      %4064 = vperm.xlu0 %4063, %v3779
      %v4065 = vpop.permute.xlu0 %4064
      %4067 = vset.pattern.permute.xlu0 1
      %4068 = vperm.xlu0 %4067, %v3780
      %v4069 = vpop.permute.xlu0 %4068
      %4071 = vset.pattern.permute.xlu0 1
      %4072 = vperm.xlu0 %4071, %v3781
      %v4073 = vpop.permute.xlu0 %4072
      %4075 = vset.pattern.permute.xlu0 1
      %4076 = vperm.xlu0 %4075, %v3782
      %v4077 = vpop.permute.xlu0 %4076
      %4079 = vset.pattern.permute.xlu0 1
      %4080 = vperm.xlu0 %4079, %v3783
      %v4081 = vpop.permute.xlu0 %4080
      %4083 = vset.pattern.permute.xlu0 1
      %4084 = vperm.xlu0 %4083, %v3784
      %v4085 = vpop.permute.xlu0 %4084
      %4087 = vset.pattern.permute.xlu0 1
      %4088 = vperm.xlu0 %4087, %v3785
      %v4089 = vpop.permute.xlu0 %4088
      %4091 = vset.pattern.permute.xlu0 1
      %4092 = vperm.xlu0 %4091, %v3786
      %v4093 = vpop.permute.xlu0 %4092
      %4095 = vset.pattern.permute.xlu0 1
      %4096 = vperm.xlu0 %4095, %v3787
      %v4097 = vpop.permute.xlu0 %4096
      %4099 = vset.pattern.permute.xlu0 1
      %4100 = vperm.xlu0 %4099, %v3788
      %v4101 = vpop.permute.xlu0 %4100
      %4103 = vset.pattern.permute.xlu0 1
      %4104 = vperm.xlu0 %4103, %v3789
      %v4105 = vpop.permute.xlu0 %4104
      %4107 = vset.pattern.permute.xlu0 1
      %4108 = vperm.xlu0 %4107, %v3790
      %v4109 = vpop.permute.xlu0 %4108
      %4111 = vset.pattern.permute.xlu0 1
      %4112 = vperm.xlu0 %4111, %v3791
      %v4113 = vpop.permute.xlu0 %4112
      %4115 = vset.pattern.permute.xlu0 1
      %4116 = vperm.xlu0 %4115, %v3792
      %v4117 = vpop.permute.xlu0 %4116
      %v4119 = vlaneseq
      %v4120 = vshrl.u32 %v4119, 7
      %v4121 = vsub.s32 1, %v4120
      %v4122 = vrot.slane %v3794, %v4121
      %v4123 = vmul.f32 %v3993, %v4122
      %v4124 = vmul.f32 %v3997, %v4122
      %v4125 = vmul.f32 %v4001, %v4122
      %v4126 = vmul.f32 %v4005, %v4122
      %v4127 = vmul.f32 %v4009, %v4122
      %v4128 = vmul.f32 %v4013, %v4122
      %v4129 = vmul.f32 %v4017, %v4122
      %v4130 = vmul.f32 %v4021, %v4122
      %v4131 = vmul.f32 %v4025, %v4122
      %v4132 = vmul.f32 %v4029, %v4122
      %v4133 = vmul.f32 %v4033, %v4122
      %v4134 = vmul.f32 %v4037, %v4122
      %v4135 = vmul.f32 %v4041, %v4122
      %v4136 = vmul.f32 %v4045, %v4122
      %v4137 = vmul.f32 %v4049, %v4122
      %v4138 = vmul.f32 %v4053, %v4122
      %v4139 = vmul.f32 %v4057, %v4122
      %v4140 = vmul.f32 %v4061, %v4122
      %v4141 = vmul.f32 %v4065, %v4122
      %v4142 = vmul.f32 %v4069, %v4122
      %v4143 = vmul.f32 %v4073, %v4122
      %v4144 = vmul.f32 %v4077, %v4122
      %v4145 = vmul.f32 %v4081, %v4122
      %v4146 = vmul.f32 %v4085, %v4122
      %v4147 = vmul.f32 %v4089, %v4122
      %v4148 = vmul.f32 %v4093, %v4122
      %v4149 = vmul.f32 %v4097, %v4122
      %v4150 = vmul.f32 %v4101, %v4122
      %v4151 = vmul.f32 %v4105, %v4122
      %v4152 = vmul.f32 %v4109, %v4122
      %v4153 = vmul.f32 %v4113, %v4122
      %v4154 = vmul.f32 %v4117, %v4122
      %v4155 = vadd.f32 %v3959, %v4123
      %v4156 = vadd.f32 %v3960, %v4124
      %v4157 = vadd.f32 %v3961, %v4125
      %v4158 = vadd.f32 %v3962, %v4126
      %v4159 = vadd.f32 %v3963, %v4127
      %v4160 = vadd.f32 %v3964, %v4128
      %v4161 = vadd.f32 %v3965, %v4129
      %v4162 = vadd.f32 %v3966, %v4130
      %v4163 = vadd.f32 %v3967, %v4131
      %v4164 = vadd.f32 %v3968, %v4132
      %v4165 = vadd.f32 %v3969, %v4133
      %v4166 = vadd.f32 %v3970, %v4134
      %v4167 = vadd.f32 %v3971, %v4135
      %v4168 = vadd.f32 %v3972, %v4136
      %v4169 = vadd.f32 %v3973, %v4137
      %v4170 = vadd.f32 %v3974, %v4138
      %v4171 = vadd.f32 %v3975, %v4139
      %v4172 = vadd.f32 %v3976, %v4140
      %v4173 = vadd.f32 %v3977, %v4141
      %v4174 = vadd.f32 %v3978, %v4142
      %v4175 = vadd.f32 %v3979, %v4143
      %v4176 = vadd.f32 %v3980, %v4144
      %v4177 = vadd.f32 %v3981, %v4145
      %v4178 = vadd.f32 %v3982, %v4146
      %v4179 = vadd.f32 %v3983, %v4147
      %v4180 = vadd.f32 %v3984, %v4148
      %v4181 = vadd.f32 %v3985, %v4149
      %v4182 = vadd.f32 %v3986, %v4150
      %v4183 = vadd.f32 %v3987, %v4151
      %v4184 = vadd.f32 %v3988, %v4152
      %v4185 = vadd.f32 %v3989, %v4153
      %v4186 = vadd.f32 %v3990, %v4154
      %v4187 = vld [vmem:[%s11] sm:$0x1]
      %v4189 = vlaneseq
      %v4190 = vshrl.u32 %v4189, 7
      %v4191 = vsub.s32 0, %v4190
      %v4192 = vrot.slane %v4187, %v4191
      %v4194 = vadd.f32 %v4155, %v4192
      %v4195 = vadd.f32 %v4156, %v4192
      %v4196 = vadd.f32 %v4157, %v4192
      %v4197 = vadd.f32 %v4158, %v4192
      %v4198 = vadd.f32 %v4159, %v4192
      %v4199 = vadd.f32 %v4160, %v4192
      %v4200 = vadd.f32 %v4161, %v4192
      %v4201 = vadd.f32 %v4162, %v4192
      %v4202 = vadd.f32 %v4163, %v4192
      %v4203 = vadd.f32 %v4164, %v4192
      %v4204 = vadd.f32 %v4165, %v4192
      %v4205 = vadd.f32 %v4166, %v4192
      %v4206 = vadd.f32 %v4167, %v4192
      %v4207 = vadd.f32 %v4168, %v4192
      %v4208 = vadd.f32 %v4169, %v4192
      %v4209 = vadd.f32 %v4170, %v4192
      %v4210 = vadd.f32 %v4171, %v4192
      %v4211 = vadd.f32 %v4172, %v4192
      %v4212 = vadd.f32 %v4173, %v4192
      %v4213 = vadd.f32 %v4174, %v4192
      %v4214 = vadd.f32 %v4175, %v4192
      %v4215 = vadd.f32 %v4176, %v4192
      %v4216 = vadd.f32 %v4177, %v4192
      %v4217 = vadd.f32 %v4178, %v4192
      %v4218 = vadd.f32 %v4179, %v4192
      %v4219 = vadd.f32 %v4180, %v4192
      %v4220 = vadd.f32 %v4181, %v4192
      %v4221 = vadd.f32 %v4182, %v4192
      %v4222 = vadd.f32 %v4183, %v4192
      %v4223 = vadd.f32 %v4184, %v4192
      %v4224 = vadd.f32 %v4185, %v4192
      %v4225 = vadd.f32 %v4186, %v4192
      %vm4226 = vcmp.gt.f32.partialorder %v4194, 0.0
      %vm4227 = vcmp.gt.f32.partialorder %v4195, 0.0
      %vm4228 = vcmp.gt.f32.partialorder %v4196, 0.0
      %vm4229 = vcmp.gt.f32.partialorder %v4197, 0.0
      %vm4230 = vcmp.gt.f32.partialorder %v4198, 0.0
      %vm4231 = vcmp.gt.f32.partialorder %v4199, 0.0
      %vm4232 = vcmp.gt.f32.partialorder %v4200, 0.0
      %vm4233 = vcmp.gt.f32.partialorder %v4201, 0.0
      %vm4234 = vcmp.gt.f32.partialorder %v4202, 0.0
      %vm4235 = vcmp.gt.f32.partialorder %v4203, 0.0
      %vm4236 = vcmp.gt.f32.partialorder %v4204, 0.0
      %vm4237 = vcmp.gt.f32.partialorder %v4205, 0.0
      %vm4238 = vcmp.gt.f32.partialorder %v4206, 0.0
      %vm4239 = vcmp.gt.f32.partialorder %v4207, 0.0
      %vm4240 = vcmp.gt.f32.partialorder %v4208, 0.0
      %vm4241 = vcmp.gt.f32.partialorder %v4209, 0.0
      %vm4242 = vcmp.gt.f32.partialorder %v4210, 0.0
      %vm4243 = vcmp.gt.f32.partialorder %v4211, 0.0
      %vm4244 = vcmp.gt.f32.partialorder %v4212, 0.0
      %vm4245 = vcmp.gt.f32.partialorder %v4213, 0.0
      %vm4246 = vcmp.gt.f32.partialorder %v4214, 0.0
      %vm4247 = vcmp.gt.f32.partialorder %v4215, 0.0
      %vm4248 = vcmp.gt.f32.partialorder %v4216, 0.0
      %vm4249 = vcmp.gt.f32.partialorder %v4217, 0.0
      %vm4250 = vcmp.gt.f32.partialorder %v4218, 0.0
      %vm4251 = vcmp.gt.f32.partialorder %v4219, 0.0
      %vm4252 = vcmp.gt.f32.partialorder %v4220, 0.0
      %vm4253 = vcmp.gt.f32.partialorder %v4221, 0.0
      %vm4254 = vcmp.gt.f32.partialorder %v4222, 0.0
      %vm4255 = vcmp.gt.f32.partialorder %v4223, 0.0
      %vm4256 = vcmp.gt.f32.partialorder %v4224, 0.0
      %vm4257 = vcmp.gt.f32.partialorder %v4225, 0.0
      %v4258 = vmul.f32 %v4194, 0.1
      %v4259 = vmul.f32 %v4195, 0.1
      %v4260 = vmul.f32 %v4196, 0.1
      %v4261 = vmul.f32 %v4197, 0.1
      %v4262 = vmul.f32 %v4198, 0.1
      %v4263 = vmul.f32 %v4199, 0.1
      %v4264 = vmul.f32 %v4200, 0.1
      %v4265 = vmul.f32 %v4201, 0.1
      %v4266 = vmul.f32 %v4202, 0.1
      %v4267 = vmul.f32 %v4203, 0.1
      %v4268 = vmul.f32 %v4204, 0.1
      %v4269 = vmul.f32 %v4205, 0.1
      %v4270 = vmul.f32 %v4206, 0.1
      %v4271 = vmul.f32 %v4207, 0.1
      %v4272 = vmul.f32 %v4208, 0.1
      %v4273 = vmul.f32 %v4209, 0.1
      %v4274 = vmul.f32 %v4210, 0.1
      %v4275 = vmul.f32 %v4211, 0.1
      %v4276 = vmul.f32 %v4212, 0.1
      %v4277 = vmul.f32 %v4213, 0.1
      %v4278 = vmul.f32 %v4214, 0.1
      %v4279 = vmul.f32 %v4215, 0.1
      %v4280 = vmul.f32 %v4216, 0.1
      %v4281 = vmul.f32 %v4217, 0.1
      %v4282 = vmul.f32 %v4218, 0.1
      %v4283 = vmul.f32 %v4219, 0.1
      %v4284 = vmul.f32 %v4220, 0.1
      %v4285 = vmul.f32 %v4221, 0.1
      %v4286 = vmul.f32 %v4222, 0.1
      %v4287 = vmul.f32 %v4223, 0.1
      %v4288 = vmul.f32 %v4224, 0.1
      %v4289 = vmul.f32 %v4225, 0.1
      %v4290 = vsel %vm4226, %v4194, %v4258
      %v4291 = vsel %vm4227, %v4195, %v4259
      %v4292 = vsel %vm4228, %v4196, %v4260
      %v4293 = vsel %vm4229, %v4197, %v4261
      %v4294 = vsel %vm4230, %v4198, %v4262
      %v4295 = vsel %vm4231, %v4199, %v4263
      %v4296 = vsel %vm4232, %v4200, %v4264
      %v4297 = vsel %vm4233, %v4201, %v4265
      %v4298 = vsel %vm4234, %v4202, %v4266
      %v4299 = vsel %vm4235, %v4203, %v4267
      %v4300 = vsel %vm4236, %v4204, %v4268
      %v4301 = vsel %vm4237, %v4205, %v4269
      %v4302 = vsel %vm4238, %v4206, %v4270
      %v4303 = vsel %vm4239, %v4207, %v4271
      %v4304 = vsel %vm4240, %v4208, %v4272
      %v4305 = vsel %vm4241, %v4209, %v4273
      %v4306 = vsel %vm4242, %v4210, %v4274
      %v4307 = vsel %vm4243, %v4211, %v4275
      %v4308 = vsel %vm4244, %v4212, %v4276
      %v4309 = vsel %vm4245, %v4213, %v4277
      %v4310 = vsel %vm4246, %v4214, %v4278
      %v4311 = vsel %vm4247, %v4215, %v4279
      %v4312 = vsel %vm4248, %v4216, %v4280
      %v4313 = vsel %vm4249, %v4217, %v4281
      %v4314 = vsel %vm4250, %v4218, %v4282
      %v4315 = vsel %vm4251, %v4219, %v4283
      %v4316 = vsel %vm4252, %v4220, %v4284
      %v4317 = vsel %vm4253, %v4221, %v4285
      %v4318 = vsel %vm4254, %v4222, %v4286
      %v4319 = vsel %vm4255, %v4223, %v4287
      %v4320 = vsel %vm4256, %v4224, %v4288
      %v4321 = vsel %vm4257, %v4225, %v4289
      %v4322 = vpack.c.bf16 %v4291, %v4290
      %v4323 = vpack.c.bf16 %v4293, %v4292
      %v4324 = vpack.c.bf16 %v4295, %v4294
      %v4325 = vpack.c.bf16 %v4297, %v4296
      %v4326 = vpack.c.bf16 %v4299, %v4298
      %v4327 = vpack.c.bf16 %v4301, %v4300
      %v4328 = vpack.c.bf16 %v4303, %v4302
      %v4329 = vpack.c.bf16 %v4305, %v4304
      %v4330 = vpack.c.bf16 %v4307, %v4306
      %v4331 = vpack.c.bf16 %v4309, %v4308
      %v4332 = vpack.c.bf16 %v4311, %v4310
      %v4333 = vpack.c.bf16 %v4313, %v4312
      %v4334 = vpack.c.bf16 %v4315, %v4314
      %v4335 = vpack.c.bf16 %v4317, %v4316
      %v4336 = vpack.c.bf16 %v4319, %v4318
      %v4337 = vpack.c.bf16 %v4321, %v4320
      %v4338 = vld [vmem:[%s12] sm:$0xf]
      %v4339 = vld [vmem:[%s12 + $0x4] sm:$0x3]
      %v4340 = vld [vmem:[%s13] sm:$0x1]
      %v4342 = vlaneseq
      %v4343 = vshrl.u32 %v4342, 7
      %v4344 = vsub.s32 0, %v4343
      %v4345 = vrot.slane %v4340, %v4344
      %v4349 = vunpack.c.l.b16 %v4338
      %v4350 = vunpack.c.l.b16 %v4339
      %v4351 = vpack.c.b16 %v4350, %v4349
      %v4353 = vsel %vm3259, %v4322, 0
      %v4356 = vsel %vm3259, %v4323, 0
      %v4359 = vsel %vm3259, %v4324, 0
      %v4362 = vsel %vm3259, %v4325, 0
      %v4365 = vsel %vm3259, %v4326, 0
      %v4368 = vsel %vm3259, %v4327, 0
      %v4371 = vsel %vm3259, %v4328, 0
      %v4374 = vsel %vm3259, %v4329, 0
      %v4377 = vsel %vm3259, %v4330, 0
      %v4380 = vsel %vm3259, %v4331, 0
      %v4383 = vsel %vm3259, %v4332, 0
      %v4386 = vsel %vm3259, %v4333, 0
      %v4389 = vsel %vm3259, %v4334, 0
      %v4392 = vsel %vm3259, %v4335, 0
      %v4395 = vsel %vm3259, %v4336, 0
      %v4398 = vsel %vm3259, %v4337, 0
      %v4401 = vsel %vm3308, %v4351, 0
      %4403 = vmatprep.subr.bf16.mxu0 0
      %4404 = vmatpush1.bf16.msra.mxu0 0
      %4405 = vmatprep.subr.bf16.mxu0 0
      %4406 = vmatpush1.bf16.msra.mxu0 0
      %4407 = vmatprep.subr.bf16.mxu0 0
      %4408 = vmatpush1.bf16.msra.mxu0 0
      %4409 = vmatprep.subr.bf16.mxu0 0
      %4410 = vmatpush1.bf16.msra.mxu0 0
      %4411 = vmatprep.subr.bf16.mxu0 0
      %4412 = vmatpush1.bf16.msra.mxu0 0
      %4413 = vmatprep.subr.bf16.mxu0 0
      %4414 = vmatpush1.bf16.msra.mxu0 0
      %4415 = vmatprep.subr.bf16.mxu0 0
      %4416 = vmatpush1.bf16.msra.mxu0 0
      %4417 = vmatprep.subr.bf16.mxu0 0
      %4418 = vmatpush1.bf16.msra.mxu0 %v4401
      %4419 = vmatprep.subr.bf16.mxu0 0
      %4420 = vmatpush2.bf16.msra.mxu0 0
      %4421 = vmatprep.subr.bf16.mxu0 0
      %4422 = vmatpush2.bf16.msra.mxu0 0
      %4423 = vmatprep.subr.bf16.mxu0 0
      %4424 = vmatpush2.bf16.msra.mxu0 0
      %4425 = vmatprep.subr.bf16.mxu0 0
      %4426 = vmatpush2.bf16.msra.mxu0 0
      %4427 = vmatprep.subr.bf16.mxu0 0
      %4428 = vmatpush2.bf16.msra.mxu0 0
      %4429 = vmatprep.subr.bf16.mxu0 0
      %4430 = vmatpush2.bf16.msra.mxu0 0
      %4431 = vmatprep.subr.bf16.mxu0 0
      %4432 = vmatpush2.bf16.msra.mxu0 0
      %4433 = vmatprep.subr.bf16.mxu0 0
      %4434 = vmatpush2.bf16.msra.mxu0 0
      %4435 = vmatprep.mubr.bf16.mxu0 0
      %4436 = vmatmul.mubr.bf16.gmra.mxu0 %v4353
      %v4437 = vpop.f32.mrf.mxu0
      %v4438 = vadd.f32 %v4345, %v4437
      %v4439 = vpop.f32.mrf.mxu0
      %v4440 = vpop.f32.mrf.mxu0
      %v4441 = vadd.f32 %v4345, %v4440
      %v4442 = vpop.f32.mrf.mxu0
      %4443 = vmatprep.mubr.bf16.mxu0 0
      %4444 = vmatmul.mubr.bf16.gmra.mxu0 %v4356
      %v4445 = vpop.f32.mrf.mxu0
      %v4446 = vadd.f32 %v4345, %v4445
      %v4447 = vpop.f32.mrf.mxu0
      %v4448 = vpop.f32.mrf.mxu0
      %v4449 = vadd.f32 %v4345, %v4448
      %v4450 = vpop.f32.mrf.mxu0
      %4451 = vmatprep.mubr.bf16.mxu0 0
      %4452 = vmatmul.mubr.bf16.gmra.mxu0 %v4359
      %v4453 = vpop.f32.mrf.mxu0
      %v4454 = vadd.f32 %v4345, %v4453
      %v4455 = vpop.f32.mrf.mxu0
      %v4456 = vpop.f32.mrf.mxu0
      %v4457 = vadd.f32 %v4345, %v4456
      %v4458 = vpop.f32.mrf.mxu0
      %4459 = vmatprep.mubr.bf16.mxu0 0
      %4460 = vmatmul.mubr.bf16.gmra.mxu0 %v4362
      %v4461 = vpop.f32.mrf.mxu0
      %v4462 = vadd.f32 %v4345, %v4461
      %v4463 = vpop.f32.mrf.mxu0
      %v4464 = vpop.f32.mrf.mxu0
      %v4465 = vadd.f32 %v4345, %v4464
      %v4466 = vpop.f32.mrf.mxu0
      %4467 = vmatprep.mubr.bf16.mxu0 0
      %4468 = vmatmul.mubr.bf16.gmra.mxu0 %v4365
      %v4469 = vpop.f32.mrf.mxu0
      %v4470 = vadd.f32 %v4345, %v4469
      %v4471 = vpop.f32.mrf.mxu0
      %v4472 = vpop.f32.mrf.mxu0
      %v4473 = vadd.f32 %v4345, %v4472
      %v4474 = vpop.f32.mrf.mxu0
      %4475 = vmatprep.mubr.bf16.mxu0 0
      %4476 = vmatmul.mubr.bf16.gmra.mxu0 %v4368
      %v4477 = vpop.f32.mrf.mxu0
      %v4478 = vadd.f32 %v4345, %v4477
      %v4479 = vpop.f32.mrf.mxu0
      %v4480 = vpop.f32.mrf.mxu0
      %v4481 = vadd.f32 %v4345, %v4480
      %v4482 = vpop.f32.mrf.mxu0
      %4483 = vmatprep.mubr.bf16.mxu0 0
      %4484 = vmatmul.mubr.bf16.gmra.mxu0 %v4371
      %v4485 = vpop.f32.mrf.mxu0
      %v4486 = vadd.f32 %v4345, %v4485
      %v4487 = vpop.f32.mrf.mxu0
      %v4488 = vpop.f32.mrf.mxu0
      %v4489 = vadd.f32 %v4345, %v4488
      %v4490 = vpop.f32.mrf.mxu0
      %4491 = vmatprep.mubr.bf16.mxu0 0
      %4492 = vmatmul.mubr.bf16.gmra.mxu0 %v4374
      %v4493 = vpop.f32.mrf.mxu0
      %v4494 = vadd.f32 %v4345, %v4493
      %v4495 = vpop.f32.mrf.mxu0
      %v4496 = vpop.f32.mrf.mxu0
      %v4497 = vadd.f32 %v4345, %v4496
      %v4498 = vpop.f32.mrf.mxu0
      %4499 = vmatprep.mubr.bf16.mxu0 0
      %4500 = vmatmul.mubr.bf16.gmra.mxu0 %v4377
      %v4501 = vpop.f32.mrf.mxu0
      %v4502 = vadd.f32 %v4345, %v4501
      %v4503 = vpop.f32.mrf.mxu0
      %v4504 = vpop.f32.mrf.mxu0
      %v4505 = vadd.f32 %v4345, %v4504
      %v4506 = vpop.f32.mrf.mxu0
      %4507 = vmatprep.mubr.bf16.mxu0 0
      %4508 = vmatmul.mubr.bf16.gmra.mxu0 %v4380
      %v4509 = vpop.f32.mrf.mxu0
      %v4510 = vadd.f32 %v4345, %v4509
      %v4511 = vpop.f32.mrf.mxu0
      %v4512 = vpop.f32.mrf.mxu0
      %v4513 = vadd.f32 %v4345, %v4512
      %v4514 = vpop.f32.mrf.mxu0
      %4515 = vmatprep.mubr.bf16.mxu0 0
      %4516 = vmatmul.mubr.bf16.gmra.mxu0 %v4383
      %v4517 = vpop.f32.mrf.mxu0
      %v4518 = vadd.f32 %v4345, %v4517
      %v4519 = vpop.f32.mrf.mxu0
      %v4520 = vpop.f32.mrf.mxu0
      %v4521 = vadd.f32 %v4345, %v4520
      %v4522 = vpop.f32.mrf.mxu0
      %4523 = vmatprep.mubr.bf16.mxu0 0
      %4524 = vmatmul.mubr.bf16.gmra.mxu0 %v4386
      %v4525 = vpop.f32.mrf.mxu0
      %v4526 = vadd.f32 %v4345, %v4525
      %v4527 = vpop.f32.mrf.mxu0
      %v4528 = vpop.f32.mrf.mxu0
      %v4529 = vadd.f32 %v4345, %v4528
      %v4530 = vpop.f32.mrf.mxu0
      %4531 = vmatprep.mubr.bf16.mxu0 0
      %4532 = vmatmul.mubr.bf16.gmra.mxu0 %v4389
      %v4533 = vpop.f32.mrf.mxu0
      %v4534 = vadd.f32 %v4345, %v4533
      %v4535 = vpop.f32.mrf.mxu0
      %v4536 = vpop.f32.mrf.mxu0
      %v4537 = vadd.f32 %v4345, %v4536
      %v4538 = vpop.f32.mrf.mxu0
      %4539 = vmatprep.mubr.bf16.mxu0 0
      %4540 = vmatmul.mubr.bf16.gmra.mxu0 %v4392
      %v4541 = vpop.f32.mrf.mxu0
      %v4542 = vadd.f32 %v4345, %v4541
      %v4543 = vpop.f32.mrf.mxu0
      %v4544 = vpop.f32.mrf.mxu0
      %v4545 = vadd.f32 %v4345, %v4544
      %v4546 = vpop.f32.mrf.mxu0
      %4547 = vmatprep.mubr.bf16.mxu0 0
      %4548 = vmatmul.mubr.bf16.gmra.mxu0 %v4395
      %v4549 = vpop.f32.mrf.mxu0
      %v4550 = vadd.f32 %v4345, %v4549
      %v4551 = vpop.f32.mrf.mxu0
      %v4552 = vpop.f32.mrf.mxu0
      %v4553 = vadd.f32 %v4345, %v4552
      %v4554 = vpop.f32.mrf.mxu0
      %4555 = vmatprep.mubr.bf16.mxu0 0
      %4556 = vmatmul.mubr.bf16.gmra.mxu0 %v4398
      %v4557 = vpop.f32.mrf.mxu0
      %v4558 = vadd.f32 %v4345, %v4557
      %v4559 = vpop.f32.mrf.mxu0
      %v4560 = vpop.f32.mrf.mxu0
      %v4561 = vadd.f32 %v4345, %v4560
      %v4562 = vpop.f32.mrf.mxu0
      %4563 = vdwg.mxu0
      %vm4564 = vcmp.gt.f32.partialorder %v4438, 0.0
      %vm4565 = vcmp.gt.f32.partialorder %v4441, 0.0
      %vm4566 = vcmp.gt.f32.partialorder %v4446, 0.0
      %vm4567 = vcmp.gt.f32.partialorder %v4449, 0.0
      %vm4568 = vcmp.gt.f32.partialorder %v4454, 0.0
      %vm4569 = vcmp.gt.f32.partialorder %v4457, 0.0
      %vm4570 = vcmp.gt.f32.partialorder %v4462, 0.0
      %vm4571 = vcmp.gt.f32.partialorder %v4465, 0.0
      %vm4572 = vcmp.gt.f32.partialorder %v4470, 0.0
      %vm4573 = vcmp.gt.f32.partialorder %v4473, 0.0
      %vm4574 = vcmp.gt.f32.partialorder %v4478, 0.0
      %vm4575 = vcmp.gt.f32.partialorder %v4481, 0.0
      %vm4576 = vcmp.gt.f32.partialorder %v4486, 0.0
      %vm4577 = vcmp.gt.f32.partialorder %v4489, 0.0
      %vm4578 = vcmp.gt.f32.partialorder %v4494, 0.0
      %vm4579 = vcmp.gt.f32.partialorder %v4497, 0.0
      %vm4580 = vcmp.gt.f32.partialorder %v4502, 0.0
      %vm4581 = vcmp.gt.f32.partialorder %v4505, 0.0
      %vm4582 = vcmp.gt.f32.partialorder %v4510, 0.0
      %vm4583 = vcmp.gt.f32.partialorder %v4513, 0.0
      %vm4584 = vcmp.gt.f32.partialorder %v4518, 0.0
      %vm4585 = vcmp.gt.f32.partialorder %v4521, 0.0
      %vm4586 = vcmp.gt.f32.partialorder %v4526, 0.0
      %vm4587 = vcmp.gt.f32.partialorder %v4529, 0.0
      %vm4588 = vcmp.gt.f32.partialorder %v4534, 0.0
      %vm4589 = vcmp.gt.f32.partialorder %v4537, 0.0
      %vm4590 = vcmp.gt.f32.partialorder %v4542, 0.0
      %vm4591 = vcmp.gt.f32.partialorder %v4545, 0.0
      %vm4592 = vcmp.gt.f32.partialorder %v4550, 0.0
      %vm4593 = vcmp.gt.f32.partialorder %v4553, 0.0
      %vm4594 = vcmp.gt.f32.partialorder %v4558, 0.0
      %vm4595 = vcmp.gt.f32.partialorder %v4561, 0.0
      %v4596 = vmul.f32 %v4438, 0.1
      %v4597 = vmul.f32 %v4441, 0.1
      %v4598 = vmul.f32 %v4446, 0.1
      %v4599 = vmul.f32 %v4449, 0.1
      %v4600 = vmul.f32 %v4454, 0.1
      %v4601 = vmul.f32 %v4457, 0.1
      %v4602 = vmul.f32 %v4462, 0.1
      %v4603 = vmul.f32 %v4465, 0.1
      %v4604 = vmul.f32 %v4470, 0.1
      %v4605 = vmul.f32 %v4473, 0.1
      %v4606 = vmul.f32 %v4478, 0.1
      %v4607 = vmul.f32 %v4481, 0.1
      %v4608 = vmul.f32 %v4486, 0.1
      %v4609 = vmul.f32 %v4489, 0.1
      %v4610 = vmul.f32 %v4494, 0.1
      %v4611 = vmul.f32 %v4497, 0.1
      %v4612 = vmul.f32 %v4502, 0.1
      %v4613 = vmul.f32 %v4505, 0.1
      %v4614 = vmul.f32 %v4510, 0.1
      %v4615 = vmul.f32 %v4513, 0.1
      %v4616 = vmul.f32 %v4518, 0.1
      %v4617 = vmul.f32 %v4521, 0.1
      %v4618 = vmul.f32 %v4526, 0.1
      %v4619 = vmul.f32 %v4529, 0.1
      %v4620 = vmul.f32 %v4534, 0.1
      %v4621 = vmul.f32 %v4537, 0.1
      %v4622 = vmul.f32 %v4542, 0.1
      %v4623 = vmul.f32 %v4545, 0.1
      %v4624 = vmul.f32 %v4550, 0.1
      %v4625 = vmul.f32 %v4553, 0.1
      %v4626 = vmul.f32 %v4558, 0.1
      %v4627 = vmul.f32 %v4561, 0.1
      %v4628 = vsel %vm4564, %v4438, %v4596
      %v4629 = vsel %vm4565, %v4441, %v4597
      %v4630 = vsel %vm4566, %v4446, %v4598
      %v4631 = vsel %vm4567, %v4449, %v4599
      %v4632 = vsel %vm4568, %v4454, %v4600
      %v4633 = vsel %vm4569, %v4457, %v4601
      %v4634 = vsel %vm4570, %v4462, %v4602
      %v4635 = vsel %vm4571, %v4465, %v4603
      %v4636 = vsel %vm4572, %v4470, %v4604
      %v4637 = vsel %vm4573, %v4473, %v4605
      %v4638 = vsel %vm4574, %v4478, %v4606
      %v4639 = vsel %vm4575, %v4481, %v4607
      %v4640 = vsel %vm4576, %v4486, %v4608
      %v4641 = vsel %vm4577, %v4489, %v4609
      %v4642 = vsel %vm4578, %v4494, %v4610
      %v4643 = vsel %vm4579, %v4497, %v4611
      %v4644 = vsel %vm4580, %v4502, %v4612
      %v4645 = vsel %vm4581, %v4505, %v4613
      %v4646 = vsel %vm4582, %v4510, %v4614
      %v4647 = vsel %vm4583, %v4513, %v4615
      %v4648 = vsel %vm4584, %v4518, %v4616
      %v4649 = vsel %vm4585, %v4521, %v4617
      %v4650 = vsel %vm4586, %v4526, %v4618
      %v4651 = vsel %vm4587, %v4529, %v4619
      %v4652 = vsel %vm4588, %v4534, %v4620
      %v4653 = vsel %vm4589, %v4537, %v4621
      %v4654 = vsel %vm4590, %v4542, %v4622
      %v4655 = vsel %vm4591, %v4545, %v4623
      %v4656 = vsel %vm4592, %v4550, %v4624
      %v4657 = vsel %vm4593, %v4553, %v4625
      %v4658 = vsel %vm4594, %v4558, %v4626
      %v4659 = vsel %vm4595, %v4561, %v4627
      %v4660 = vpack.c.bf16 %v4629, %v4628
      %v4661 = vpack.c.bf16 %v4631, %v4630
      %v4662 = vpack.c.bf16 %v4633, %v4632
      %v4663 = vpack.c.bf16 %v4635, %v4634
      %v4664 = vpack.c.bf16 %v4637, %v4636
      %v4665 = vpack.c.bf16 %v4639, %v4638
      %v4666 = vpack.c.bf16 %v4641, %v4640
      %v4667 = vpack.c.bf16 %v4643, %v4642
      %v4668 = vpack.c.bf16 %v4645, %v4644
      %v4669 = vpack.c.bf16 %v4647, %v4646
      %v4670 = vpack.c.bf16 %v4649, %v4648
      %v4671 = vpack.c.bf16 %v4651, %v4650
      %v4672 = vpack.c.bf16 %v4653, %v4652
      %v4673 = vpack.c.bf16 %v4655, %v4654
      %v4674 = vpack.c.bf16 %v4657, %v4656
      %v4675 = vpack.c.bf16 %v4659, %v4658
      %v4676 = vld [vmem:[%s14] sm:$0xf]
      %v4677 = vld [vmem:[%s14 + $0x4] sm:$0xf]
      %v4678 = vld [vmem:[%s14 + $0x8] sm:$0xf]
      %v4679 = vld [vmem:[%s14 + $0xc] sm:$0xf]
      %v4680 = vld [vmem:[%s14 + $0x10] sm:$0xf]
      %v4681 = vld [vmem:[%s14 + $0x14] sm:$0xf]
      %v4682 = vld [vmem:[%s14 + $0x18] sm:$0xf]
      %v4683 = vld [vmem:[%s14 + $0x1c] sm:$0xf]
      %v4684 = vld [vmem:[%s15] sm:$0x1]
      %v4686 = vlaneseq
      %v4687 = vshrl.u32 %v4686, 7
      %v4688 = vsub.s32 0, %v4687
      %v4689 = vrot.slane %v4684, %v4688
      %v4699 = vunpack.c.l.b16 %v4676
      %v4700 = vunpack.c.l.b16 %v4677
      %v4701 = vunpack.c.l.b16 %v4678
      %v4702 = vunpack.c.l.b16 %v4679
      %v4703 = vunpack.c.l.b16 %v4680
      %v4704 = vunpack.c.l.b16 %v4681
      %v4705 = vunpack.c.l.b16 %v4682
      %v4706 = vunpack.c.l.b16 %v4683
      %v4707 = vpack.c.b16 %v4700, %v4699
      %v4708 = vpack.c.b16 %v4702, %v4701
      %v4709 = vpack.c.b16 %v4704, %v4703
      %v4710 = vpack.c.b16 %v4706, %v4705
      %v4716 = vsel %vm2923, %v4660, 0
      %v4719 = vsel %vm2923, %v4661, 0
      %v4722 = vsel %vm2923, %v4662, 0
      %v4725 = vsel %vm2923, %v4663, 0
      %v4728 = vsel %vm2923, %v4664, 0
      %v4731 = vsel %vm2923, %v4665, 0
      %v4734 = vsel %vm2923, %v4666, 0
      %v4737 = vsel %vm2923, %v4667, 0
      %v4740 = vsel %vm2923, %v4668, 0
      %v4743 = vsel %vm2923, %v4669, 0
      %v4746 = vsel %vm2923, %v4670, 0
      %v4749 = vsel %vm2923, %v4671, 0
      %v4752 = vsel %vm2923, %v4672, 0
      %v4755 = vsel %vm2923, %v4673, 0
      %v4758 = vsel %vm2923, %v4674, 0
      %v4761 = vsel %vm2923, %v4675, 0
      %4763 = vmatprep.subr.bf16.mxu0 0
      %4764 = vmatpush1.bf16.msra.mxu0 0
      %4765 = vmatprep.subr.bf16.mxu0 0
      %4766 = vmatpush1.bf16.msra.mxu0 0
      %4767 = vmatprep.subr.bf16.mxu0 0
      %4768 = vmatpush1.bf16.msra.mxu0 0
      %4769 = vmatprep.subr.bf16.mxu0 0
      %4770 = vmatpush1.bf16.msra.mxu0 0
      %4771 = vmatprep.subr.bf16.mxu0 0
      %4772 = vmatpush1.bf16.msra.mxu0 %v4710
      %4773 = vmatprep.subr.bf16.mxu0 0
      %4774 = vmatpush1.bf16.msra.mxu0 %v4709
      %4775 = vmatprep.subr.bf16.mxu0 0
      %4776 = vmatpush1.bf16.msra.mxu0 %v4708
      %4777 = vmatprep.subr.bf16.mxu0 0
      %4778 = vmatpush1.bf16.msra.mxu0 %v4707
      %4779 = vmatprep.subr.bf16.mxu0 0
      %4780 = vmatpush2.bf16.msra.mxu0 0
      %4781 = vmatprep.subr.bf16.mxu0 0
      %4782 = vmatpush2.bf16.msra.mxu0 0
      %4783 = vmatprep.subr.bf16.mxu0 0
      %4784 = vmatpush2.bf16.msra.mxu0 0
      %4785 = vmatprep.subr.bf16.mxu0 0
      %4786 = vmatpush2.bf16.msra.mxu0 0
      %4787 = vmatprep.subr.bf16.mxu0 0
      %4788 = vmatpush2.bf16.msra.mxu0 0
      %4789 = vmatprep.subr.bf16.mxu0 0
      %4790 = vmatpush2.bf16.msra.mxu0 0
      %4791 = vmatprep.subr.bf16.mxu0 0
      %4792 = vmatpush2.bf16.msra.mxu0 0
      %4793 = vmatprep.subr.bf16.mxu0 0
      %4794 = vmatpush2.bf16.msra.mxu0 0
      %4795 = vmatprep.mubr.bf16.mxu0 0
      %4796 = vmatmul.mubr.bf16.gmra.mxu0 %v4716
      %v4797 = vpop.f32.mrf.mxu0
      %v4798 = vadd.f32 %v4689, %v4797
      %v4799 = vpop.f32.mrf.mxu0
      %v4800 = vpop.f32.mrf.mxu0
      %v4801 = vadd.f32 %v4689, %v4800
      %v4802 = vpop.f32.mrf.mxu0
      %4803 = vmatprep.mubr.bf16.mxu0 0
      %4804 = vmatmul.mubr.bf16.gmra.mxu0 %v4719
      %v4805 = vpop.f32.mrf.mxu0
      %v4806 = vadd.f32 %v4689, %v4805
      %v4807 = vpop.f32.mrf.mxu0
      %v4808 = vpop.f32.mrf.mxu0
      %v4809 = vadd.f32 %v4689, %v4808
      %v4810 = vpop.f32.mrf.mxu0
      %4811 = vmatprep.mubr.bf16.mxu0 0
      %4812 = vmatmul.mubr.bf16.gmra.mxu0 %v4722
      %v4813 = vpop.f32.mrf.mxu0
      %v4814 = vadd.f32 %v4689, %v4813
      %v4815 = vpop.f32.mrf.mxu0
      %v4816 = vpop.f32.mrf.mxu0
      %v4817 = vadd.f32 %v4689, %v4816
      %v4818 = vpop.f32.mrf.mxu0
      %4819 = vmatprep.mubr.bf16.mxu0 0
      %4820 = vmatmul.mubr.bf16.gmra.mxu0 %v4725
      %v4821 = vpop.f32.mrf.mxu0
      %v4822 = vadd.f32 %v4689, %v4821
      %v4823 = vpop.f32.mrf.mxu0
      %v4824 = vpop.f32.mrf.mxu0
      %v4825 = vadd.f32 %v4689, %v4824
      %v4826 = vpop.f32.mrf.mxu0
      %4827 = vmatprep.mubr.bf16.mxu0 0
      %4828 = vmatmul.mubr.bf16.gmra.mxu0 %v4728
      %v4829 = vpop.f32.mrf.mxu0
      %v4830 = vadd.f32 %v4689, %v4829
      %v4831 = vpop.f32.mrf.mxu0
      %v4832 = vpop.f32.mrf.mxu0
      %v4833 = vadd.f32 %v4689, %v4832
      %v4834 = vpop.f32.mrf.mxu0
      %4835 = vmatprep.mubr.bf16.mxu0 0
      %4836 = vmatmul.mubr.bf16.gmra.mxu0 %v4731
      %v4837 = vpop.f32.mrf.mxu0
      %v4838 = vadd.f32 %v4689, %v4837
      %v4839 = vpop.f32.mrf.mxu0
      %v4840 = vpop.f32.mrf.mxu0
      %v4841 = vadd.f32 %v4689, %v4840
      %v4842 = vpop.f32.mrf.mxu0
      %4843 = vmatprep.mubr.bf16.mxu0 0
      %4844 = vmatmul.mubr.bf16.gmra.mxu0 %v4734
      %v4845 = vpop.f32.mrf.mxu0
      %v4846 = vadd.f32 %v4689, %v4845
      %v4847 = vpop.f32.mrf.mxu0
      %v4848 = vpop.f32.mrf.mxu0
      %v4849 = vadd.f32 %v4689, %v4848
      %v4850 = vpop.f32.mrf.mxu0
      %4851 = vmatprep.mubr.bf16.mxu0 0
      %4852 = vmatmul.mubr.bf16.gmra.mxu0 %v4737
      %v4853 = vpop.f32.mrf.mxu0
      %v4854 = vadd.f32 %v4689, %v4853
      %v4855 = vpop.f32.mrf.mxu0
      %v4856 = vpop.f32.mrf.mxu0
      %v4857 = vadd.f32 %v4689, %v4856
      %v4858 = vpop.f32.mrf.mxu0
      %4859 = vmatprep.mubr.bf16.mxu0 0
      %4860 = vmatmul.mubr.bf16.gmra.mxu0 %v4740
      %v4861 = vpop.f32.mrf.mxu0
      %v4862 = vadd.f32 %v4689, %v4861
      %v4863 = vpop.f32.mrf.mxu0
      %v4864 = vpop.f32.mrf.mxu0
      %v4865 = vadd.f32 %v4689, %v4864
      %v4866 = vpop.f32.mrf.mxu0
      %4867 = vmatprep.mubr.bf16.mxu0 0
      %4868 = vmatmul.mubr.bf16.gmra.mxu0 %v4743
      %v4869 = vpop.f32.mrf.mxu0
      %v4870 = vadd.f32 %v4689, %v4869
      %v4871 = vpop.f32.mrf.mxu0
      %v4872 = vpop.f32.mrf.mxu0
      %v4873 = vadd.f32 %v4689, %v4872
      %v4874 = vpop.f32.mrf.mxu0
      %4875 = vmatprep.mubr.bf16.mxu0 0
      %4876 = vmatmul.mubr.bf16.gmra.mxu0 %v4746
      %v4877 = vpop.f32.mrf.mxu0
      %v4878 = vadd.f32 %v4689, %v4877
      %v4879 = vpop.f32.mrf.mxu0
      %v4880 = vpop.f32.mrf.mxu0
      %v4881 = vadd.f32 %v4689, %v4880
      %v4882 = vpop.f32.mrf.mxu0
      %4883 = vmatprep.mubr.bf16.mxu0 0
      %4884 = vmatmul.mubr.bf16.gmra.mxu0 %v4749
      %v4885 = vpop.f32.mrf.mxu0
      %v4886 = vadd.f32 %v4689, %v4885
      %v4887 = vpop.f32.mrf.mxu0
      %v4888 = vpop.f32.mrf.mxu0
      %v4889 = vadd.f32 %v4689, %v4888
      %v4890 = vpop.f32.mrf.mxu0
      %4891 = vmatprep.mubr.bf16.mxu0 0
      %4892 = vmatmul.mubr.bf16.gmra.mxu0 %v4752
      %v4893 = vpop.f32.mrf.mxu0
      %v4894 = vadd.f32 %v4689, %v4893
      %v4895 = vpop.f32.mrf.mxu0
      %v4896 = vpop.f32.mrf.mxu0
      %v4897 = vadd.f32 %v4689, %v4896
      %v4898 = vpop.f32.mrf.mxu0
      %4899 = vmatprep.mubr.bf16.mxu0 0
      %4900 = vmatmul.mubr.bf16.gmra.mxu0 %v4755
      %v4901 = vpop.f32.mrf.mxu0
      %v4902 = vadd.f32 %v4689, %v4901
      %v4903 = vpop.f32.mrf.mxu0
      %v4904 = vpop.f32.mrf.mxu0
      %v4905 = vadd.f32 %v4689, %v4904
      %v4906 = vpop.f32.mrf.mxu0
      %4907 = vmatprep.mubr.bf16.mxu0 0
      %4908 = vmatmul.mubr.bf16.gmra.mxu0 %v4758
      %v4909 = vpop.f32.mrf.mxu0
      %v4910 = vadd.f32 %v4689, %v4909
      %v4911 = vpop.f32.mrf.mxu0
      %v4912 = vpop.f32.mrf.mxu0
      %v4913 = vadd.f32 %v4689, %v4912
      %v4914 = vpop.f32.mrf.mxu0
      %4915 = vmatprep.mubr.bf16.mxu0 0
      %4916 = vmatmul.mubr.bf16.gmra.mxu0 %v4761
      %v4917 = vpop.f32.mrf.mxu0
      %v4918 = vadd.f32 %v4689, %v4917
      %v4919 = vpop.f32.mrf.mxu0
      %v4920 = vpop.f32.mrf.mxu0
      %v4921 = vadd.f32 %v4689, %v4920
      %v4922 = vpop.f32.mrf.mxu0
      %4923 = vdwg.mxu0
      %vm4924 = vcmp.gt.f32.partialorder %v4798, 0.0
      %vm4925 = vcmp.gt.f32.partialorder %v4801, 0.0
      %vm4926 = vcmp.gt.f32.partialorder %v4806, 0.0
      %vm4927 = vcmp.gt.f32.partialorder %v4809, 0.0
      %vm4928 = vcmp.gt.f32.partialorder %v4814, 0.0
      %vm4929 = vcmp.gt.f32.partialorder %v4817, 0.0
      %vm4930 = vcmp.gt.f32.partialorder %v4822, 0.0
      %vm4931 = vcmp.gt.f32.partialorder %v4825, 0.0
      %vm4932 = vcmp.gt.f32.partialorder %v4830, 0.0
      %vm4933 = vcmp.gt.f32.partialorder %v4833, 0.0
      %vm4934 = vcmp.gt.f32.partialorder %v4838, 0.0
      %vm4935 = vcmp.gt.f32.partialorder %v4841, 0.0
      %vm4936 = vcmp.gt.f32.partialorder %v4846, 0.0
      %vm4937 = vcmp.gt.f32.partialorder %v4849, 0.0
      %vm4938 = vcmp.gt.f32.partialorder %v4854, 0.0
      %vm4939 = vcmp.gt.f32.partialorder %v4857, 0.0
      %vm4940 = vcmp.gt.f32.partialorder %v4862, 0.0
      %vm4941 = vcmp.gt.f32.partialorder %v4865, 0.0
      %vm4942 = vcmp.gt.f32.partialorder %v4870, 0.0
      %vm4943 = vcmp.gt.f32.partialorder %v4873, 0.0
      %vm4944 = vcmp.gt.f32.partialorder %v4878, 0.0
      %vm4945 = vcmp.gt.f32.partialorder %v4881, 0.0
      %vm4946 = vcmp.gt.f32.partialorder %v4886, 0.0
      %vm4947 = vcmp.gt.f32.partialorder %v4889, 0.0
      %vm4948 = vcmp.gt.f32.partialorder %v4894, 0.0
      %vm4949 = vcmp.gt.f32.partialorder %v4897, 0.0
      %vm4950 = vcmp.gt.f32.partialorder %v4902, 0.0
      %vm4951 = vcmp.gt.f32.partialorder %v4905, 0.0
      %vm4952 = vcmp.gt.f32.partialorder %v4910, 0.0
      %vm4953 = vcmp.gt.f32.partialorder %v4913, 0.0
      %vm4954 = vcmp.gt.f32.partialorder %v4918, 0.0
      %vm4955 = vcmp.gt.f32.partialorder %v4921, 0.0
      %v4956 = vmul.f32 %v4798, 0.1
      %v4957 = vmul.f32 %v4801, 0.1
      %v4958 = vmul.f32 %v4806, 0.1
      %v4959 = vmul.f32 %v4809, 0.1
      %v4960 = vmul.f32 %v4814, 0.1
      %v4961 = vmul.f32 %v4817, 0.1
      %v4962 = vmul.f32 %v4822, 0.1
      %v4963 = vmul.f32 %v4825, 0.1
      %v4964 = vmul.f32 %v4830, 0.1
      %v4965 = vmul.f32 %v4833, 0.1
      %v4966 = vmul.f32 %v4838, 0.1
      %v4967 = vmul.f32 %v4841, 0.1
      %v4968 = vmul.f32 %v4846, 0.1
      %v4969 = vmul.f32 %v4849, 0.1
      %v4970 = vmul.f32 %v4854, 0.1
      %v4971 = vmul.f32 %v4857, 0.1
      %v4972 = vmul.f32 %v4862, 0.1
      %v4973 = vmul.f32 %v4865, 0.1
      %v4974 = vmul.f32 %v4870, 0.1
      %v4975 = vmul.f32 %v4873, 0.1
      %v4976 = vmul.f32 %v4878, 0.1
      %v4977 = vmul.f32 %v4881, 0.1
      %v4978 = vmul.f32 %v4886, 0.1
      %v4979 = vmul.f32 %v4889, 0.1
      %v4980 = vmul.f32 %v4894, 0.1
      %v4981 = vmul.f32 %v4897, 0.1
      %v4982 = vmul.f32 %v4902, 0.1
      %v4983 = vmul.f32 %v4905, 0.1
      %v4984 = vmul.f32 %v4910, 0.1
      %v4985 = vmul.f32 %v4913, 0.1
      %v4986 = vmul.f32 %v4918, 0.1
      %v4987 = vmul.f32 %v4921, 0.1
      %v4988 = vsel %vm4924, %v4798, %v4956
      %v4989 = vsel %vm4925, %v4801, %v4957
      %v4990 = vsel %vm4926, %v4806, %v4958
      %v4991 = vsel %vm4927, %v4809, %v4959
      %v4992 = vsel %vm4928, %v4814, %v4960
      %v4993 = vsel %vm4929, %v4817, %v4961
      %v4994 = vsel %vm4930, %v4822, %v4962
      %v4995 = vsel %vm4931, %v4825, %v4963
      %v4996 = vsel %vm4932, %v4830, %v4964
      %v4997 = vsel %vm4933, %v4833, %v4965
      %v4998 = vsel %vm4934, %v4838, %v4966
      %v4999 = vsel %vm4935, %v4841, %v4967
      %v5000 = vsel %vm4936, %v4846, %v4968
      %v5001 = vsel %vm4937, %v4849, %v4969
      %v5002 = vsel %vm4938, %v4854, %v4970
      %v5003 = vsel %vm4939, %v4857, %v4971
      %v5004 = vsel %vm4940, %v4862, %v4972
      %v5005 = vsel %vm4941, %v4865, %v4973
      %v5006 = vsel %vm4942, %v4870, %v4974
      %v5007 = vsel %vm4943, %v4873, %v4975
      %v5008 = vsel %vm4944, %v4878, %v4976
      %v5009 = vsel %vm4945, %v4881, %v4977
      %v5010 = vsel %vm4946, %v4886, %v4978
      %v5011 = vsel %vm4947, %v4889, %v4979
      %v5012 = vsel %vm4948, %v4894, %v4980
      %v5013 = vsel %vm4949, %v4897, %v4981
      %v5014 = vsel %vm4950, %v4902, %v4982
      %v5015 = vsel %vm4951, %v4905, %v4983
      %v5016 = vsel %vm4952, %v4910, %v4984
      %v5017 = vsel %vm4953, %v4913, %v4985
      %v5018 = vsel %vm4954, %v4918, %v4986
      %v5019 = vsel %vm4955, %v4921, %v4987
      %v5020 = vpack.c.bf16 %v4989, %v4988
      %v5021 = vpack.c.bf16 %v4991, %v4990
      %v5022 = vpack.c.bf16 %v4993, %v4992
      %v5023 = vpack.c.bf16 %v4995, %v4994
      %v5024 = vpack.c.bf16 %v4997, %v4996
      %v5025 = vpack.c.bf16 %v4999, %v4998
      %v5026 = vpack.c.bf16 %v5001, %v5000
      %v5027 = vpack.c.bf16 %v5003, %v5002
      %v5028 = vpack.c.bf16 %v5005, %v5004
      %v5029 = vpack.c.bf16 %v5007, %v5006
      %v5030 = vpack.c.bf16 %v5009, %v5008
      %v5031 = vpack.c.bf16 %v5011, %v5010
      %v5032 = vpack.c.bf16 %v5013, %v5012
      %v5033 = vpack.c.bf16 %v5015, %v5014
      %v5034 = vpack.c.bf16 %v5017, %v5016
      %v5035 = vpack.c.bf16 %v5019, %v5018
      %v5036 = vld [vmem:[%s16] sm:$0xff]
      %v5037 = vld [vmem:[%s16 + $0x8] sm:$0xff]
      %v5038 = vld [vmem:[%s16 + $0x10] sm:$0xff]
      %v5039 = vld [vmem:[%s16 + $0x18] sm:$0xf]
      %v5040 = vld [vmem:[%s16 + $0x1c] sm:$0xff]
      %v5041 = vld [vmem:[%s16 + $0x24] sm:$0xff]
      %v5042 = vld [vmem:[%s16 + $0x2c] sm:$0xff]
      %v5043 = vld [vmem:[%s16 + $0x34] sm:$0xf]
      %v5044 = vld [vmem:[%s16 + $0x38] sm:$0xff]
      %v5045 = vld [vmem:[%s16 + $0x40] sm:$0xff]
      %v5046 = vld [vmem:[%s16 + $0x48] sm:$0xff]
      %v5047 = vld [vmem:[%s16 + $0x50] sm:$0xf]
      %v5048 = vld [vmem:[%s16 + $0x54] sm:$0xff]
      %v5049 = vld [vmem:[%s16 + $0x5c] sm:$0xff]
      %v5050 = vld [vmem:[%s16 + $0x64] sm:$0xff]
      %v5051 = vld [vmem:[%s16 + $0x6c] sm:$0xf]
      %v5052 = vld [vmem:[%s16 + $0x70] sm:$0xff]
      %v5053 = vld [vmem:[%s16 + $0x78] sm:$0xff]
      %v5054 = vld [vmem:[%s16 + $0x80] sm:$0xff]
      %v5055 = vld [vmem:[%s16 + $0x88] sm:$0xf]
      %v5056 = vld [vmem:[%s16 + $0x8c] sm:$0xff]
      %v5057 = vld [vmem:[%s16 + $0x94] sm:$0xff]
      %v5058 = vld [vmem:[%s16 + $0x9c] sm:$0xff]
      %v5059 = vld [vmem:[%s16 + $0xa4] sm:$0xf]
      %v5060 = vld [vmem:[%s16 + $0xa8] sm:$0xff]
      %v5061 = vld [vmem:[%s16 + $0xb0] sm:$0xff]
      %v5062 = vld [vmem:[%s16 + $0xb8] sm:$0xff]
      %v5063 = vld [vmem:[%s16 + $0xc0] sm:$0xf]
      %v5064 = vld [vmem:[%s16 + $0xc4] sm:$0xff]
      %v5065 = vld [vmem:[%s16 + $0xcc] sm:$0xff]
      %v5066 = vld [vmem:[%s16 + $0xd4] sm:$0xff]
      %v5067 = vld [vmem:[%s16 + $0xdc] sm:$0xf]
      %v5068 = vld [vmem:[%s16 + $0xe0] sm:$0xff]
      %v5069 = vld [vmem:[%s16 + $0xe8] sm:$0xff]
      %v5070 = vld [vmem:[%s16 + $0xf0] sm:$0xff]
      %v5071 = vld [vmem:[%s16 + $0xf8] sm:$0xf]
      %v5072 = vld [vmem:[%s16 + $0xfc] sm:$0xff]
      %v5073 = vld [vmem:[%s16 + $0x104] sm:$0xff]
      %v5074 = vld [vmem:[%s16 + $0x10c] sm:$0xff]
      %v5075 = vld [vmem:[%s16 + $0x114] sm:$0xf]
      %v5076 = vld [vmem:[%s16 + $0x118] sm:$0xff]
      %v5077 = vld [vmem:[%s16 + $0x120] sm:$0xff]
      %v5078 = vld [vmem:[%s16 + $0x128] sm:$0xff]
      %v5079 = vld [vmem:[%s16 + $0x130] sm:$0xf]
      %v5080 = vld [vmem:[%s16 + $0x134] sm:$0xff]
      %v5081 = vld [vmem:[%s16 + $0x13c] sm:$0xff]
      %v5082 = vld [vmem:[%s16 + $0x144] sm:$0xff]
      %v5083 = vld [vmem:[%s16 + $0x14c] sm:$0xf]
      %v5084 = vld [vmem:[%s16 + $0x150] sm:$0xff]
      %v5085 = vld [vmem:[%s16 + $0x158] sm:$0xff]
      %v5086 = vld [vmem:[%s16 + $0x160] sm:$0xff]
      %v5087 = vld [vmem:[%s16 + $0x168] sm:$0xf]
      %v5088 = vld [vmem:[%s16 + $0x16c] sm:$0xff]
      %v5089 = vld [vmem:[%s16 + $0x174] sm:$0xff]
      %v5090 = vld [vmem:[%s16 + $0x17c] sm:$0xff]
      %v5091 = vld [vmem:[%s16 + $0x184] sm:$0xf]
      %v5092 = vld [vmem:[%s16 + $0x188] sm:$0xff]
      %v5093 = vld [vmem:[%s16 + $0x190] sm:$0xff]
      %v5094 = vld [vmem:[%s16 + $0x198] sm:$0xff]
      %v5095 = vld [vmem:[%s16 + $0x1a0] sm:$0xf]
      %v5096 = vld [vmem:[%s16 + $0x1a4] sm:$0xff]
      %v5097 = vld [vmem:[%s16 + $0x1ac] sm:$0xff]
      %v5098 = vld [vmem:[%s16 + $0x1b4] sm:$0xff]
      %v5099 = vld [vmem:[%s16 + $0x1bc] sm:$0xf]
      %v5100 = vld [vmem:[%s17] sm:$0x7f]
      %v5102 = vlaneseq
      %v5103 = vshrl.u32 %v5102, 7
      %v5104 = vsub.s32 0, %v5103
      %v5105 = vrot.slane %v5100, %v5104
      %v5106 = vlaneseq
      %v5107 = vshrl.u32 %v5106, 7
      %v5108 = vsub.s32 1, %v5107
      %v5109 = vrot.slane %v5100, %v5108
      %v5110 = vlaneseq
      %v5111 = vshrl.u32 %v5110, 7
      %v5112 = vsub.s32 2, %v5111
      %v5113 = vrot.slane %v5100, %v5112
      %v5114 = vlaneseq
      %v5115 = vshrl.u32 %v5114, 7
      %v5116 = vsub.s32 3, %v5115
      %v5117 = vrot.slane %v5100, %v5116
      %v5118 = vlaneseq
      %v5119 = vshrl.u32 %v5118, 7
      %v5120 = vsub.s32 4, %v5119
      %v5121 = vrot.slane %v5100, %v5120
      %v5122 = vlaneseq
      %v5123 = vshrl.u32 %v5122, 7
      %v5124 = vsub.s32 5, %v5123
      %v5125 = vrot.slane %v5100, %v5124
      %v5126 = vlaneseq
      %v5127 = vshrl.u32 %v5126, 7
      %v5128 = vsub.s32 6, %v5127
      %v5129 = vrot.slane %v5100, %v5128
      %v5201 = vunpack.c.l.b16 %v5036
      %v5202 = vunpack.c.h.b16 %v5036
      %v5203 = vunpack.c.l.b16 %v5037
      %v5204 = vunpack.c.h.b16 %v5037
      %v5205 = vunpack.c.l.b16 %v5038
      %v5206 = vunpack.c.h.b16 %v5038
      %v5207 = vunpack.c.l.b16 %v5039
      %v5208 = vunpack.c.l.b16 %v5040
      %v5209 = vunpack.c.h.b16 %v5040
      %v5210 = vunpack.c.l.b16 %v5041
      %v5211 = vunpack.c.h.b16 %v5041
      %v5212 = vunpack.c.l.b16 %v5042
      %v5213 = vunpack.c.h.b16 %v5042
      %v5214 = vunpack.c.l.b16 %v5043
      %v5215 = vunpack.c.l.b16 %v5044
      %v5216 = vunpack.c.h.b16 %v5044
      %v5217 = vunpack.c.l.b16 %v5045
      %v5218 = vunpack.c.h.b16 %v5045
      %v5219 = vunpack.c.l.b16 %v5046
      %v5220 = vunpack.c.h.b16 %v5046
      %v5221 = vunpack.c.l.b16 %v5047
      %v5222 = vunpack.c.l.b16 %v5048
      %v5223 = vunpack.c.h.b16 %v5048
      %v5224 = vunpack.c.l.b16 %v5049
      %v5225 = vunpack.c.h.b16 %v5049
      %v5226 = vunpack.c.l.b16 %v5050
      %v5227 = vunpack.c.h.b16 %v5050
      %v5228 = vunpack.c.l.b16 %v5051
      %v5229 = vunpack.c.l.b16 %v5052
      %v5230 = vunpack.c.h.b16 %v5052
      %v5231 = vunpack.c.l.b16 %v5053
      %v5232 = vunpack.c.h.b16 %v5053
      %v5233 = vunpack.c.l.b16 %v5054
      %v5234 = vunpack.c.h.b16 %v5054
      %v5235 = vunpack.c.l.b16 %v5055
      %v5236 = vunpack.c.l.b16 %v5056
      %v5237 = vunpack.c.h.b16 %v5056
      %v5238 = vunpack.c.l.b16 %v5057
      %v5239 = vunpack.c.h.b16 %v5057
      %v5240 = vunpack.c.l.b16 %v5058
      %v5241 = vunpack.c.h.b16 %v5058
      %v5242 = vunpack.c.l.b16 %v5059
      %v5243 = vunpack.c.l.b16 %v5060
      %v5244 = vunpack.c.h.b16 %v5060
      %v5245 = vunpack.c.l.b16 %v5061
      %v5246 = vunpack.c.h.b16 %v5061
      %v5247 = vunpack.c.l.b16 %v5062
      %v5248 = vunpack.c.h.b16 %v5062
      %v5249 = vunpack.c.l.b16 %v5063
      %v5250 = vunpack.c.l.b16 %v5064
      %v5251 = vunpack.c.h.b16 %v5064
      %v5252 = vunpack.c.l.b16 %v5065
      %v5253 = vunpack.c.h.b16 %v5065
      %v5254 = vunpack.c.l.b16 %v5066
      %v5255 = vunpack.c.h.b16 %v5066
      %v5256 = vunpack.c.l.b16 %v5067
      %v5257 = vunpack.c.l.b16 %v5068
      %v5258 = vunpack.c.h.b16 %v5068
      %v5259 = vunpack.c.l.b16 %v5069
      %v5260 = vunpack.c.h.b16 %v5069
      %v5261 = vunpack.c.l.b16 %v5070
      %v5262 = vunpack.c.h.b16 %v5070
      %v5263 = vunpack.c.l.b16 %v5071
      %v5264 = vunpack.c.l.b16 %v5072
      %v5265 = vunpack.c.h.b16 %v5072
      %v5266 = vunpack.c.l.b16 %v5073
      %v5267 = vunpack.c.h.b16 %v5073
      %v5268 = vunpack.c.l.b16 %v5074
      %v5269 = vunpack.c.h.b16 %v5074
      %v5270 = vunpack.c.l.b16 %v5075
      %v5271 = vunpack.c.l.b16 %v5076
      %v5272 = vunpack.c.h.b16 %v5076
      %v5273 = vunpack.c.l.b16 %v5077
      %v5274 = vunpack.c.h.b16 %v5077
      %v5275 = vunpack.c.l.b16 %v5078
      %v5276 = vunpack.c.h.b16 %v5078
      %v5277 = vunpack.c.l.b16 %v5079
      %v5278 = vunpack.c.l.b16 %v5080
      %v5279 = vunpack.c.h.b16 %v5080
      %v5280 = vunpack.c.l.b16 %v5081
      %v5281 = vunpack.c.h.b16 %v5081
      %v5282 = vunpack.c.l.b16 %v5082
      %v5283 = vunpack.c.h.b16 %v5082
      %v5284 = vunpack.c.l.b16 %v5083
      %v5285 = vunpack.c.l.b16 %v5084
      %v5286 = vunpack.c.h.b16 %v5084
      %v5287 = vunpack.c.l.b16 %v5085
      %v5288 = vunpack.c.h.b16 %v5085
      %v5289 = vunpack.c.l.b16 %v5086
      %v5290 = vunpack.c.h.b16 %v5086
      %v5291 = vunpack.c.l.b16 %v5087
      %v5292 = vunpack.c.l.b16 %v5088
      %v5293 = vunpack.c.h.b16 %v5088
      %v5294 = vunpack.c.l.b16 %v5089
      %v5295 = vunpack.c.h.b16 %v5089
      %v5296 = vunpack.c.l.b16 %v5090
      %v5297 = vunpack.c.h.b16 %v5090
      %v5298 = vunpack.c.l.b16 %v5091
      %v5299 = vunpack.c.l.b16 %v5092
      %v5300 = vunpack.c.h.b16 %v5092
      %v5301 = vunpack.c.l.b16 %v5093
      %v5302 = vunpack.c.h.b16 %v5093
      %v5303 = vunpack.c.l.b16 %v5094
      %v5304 = vunpack.c.h.b16 %v5094
      %v5305 = vunpack.c.l.b16 %v5095
      %v5306 = vunpack.c.l.b16 %v5096
      %v5307 = vunpack.c.h.b16 %v5096
      %v5308 = vunpack.c.l.b16 %v5097
      %v5309 = vunpack.c.h.b16 %v5097
      %v5310 = vunpack.c.l.b16 %v5098
      %v5311 = vunpack.c.h.b16 %v5098
      %v5312 = vunpack.c.l.b16 %v5099
      %v5313 = vpack.c.b16 %v5208, %v5201
      %v5314 = vpack.c.b16 %v5209, %v5202
      %v5315 = vpack.c.b16 %v5210, %v5203
      %v5316 = vpack.c.b16 %v5211, %v5204
      %v5317 = vpack.c.b16 %v5212, %v5205
      %v5318 = vpack.c.b16 %v5213, %v5206
      %v5319 = vpack.c.b16 %v5214, %v5207
      %v5320 = vpack.c.b16 %v5222, %v5215
      %v5321 = vpack.c.b16 %v5223, %v5216
      %v5322 = vpack.c.b16 %v5224, %v5217
      %v5323 = vpack.c.b16 %v5225, %v5218
      %v5324 = vpack.c.b16 %v5226, %v5219
      %v5325 = vpack.c.b16 %v5227, %v5220
      %v5326 = vpack.c.b16 %v5228, %v5221
      %v5327 = vpack.c.b16 %v5236, %v5229
      %v5328 = vpack.c.b16 %v5237, %v5230
      %v5329 = vpack.c.b16 %v5238, %v5231
      %v5330 = vpack.c.b16 %v5239, %v5232
      %v5331 = vpack.c.b16 %v5240, %v5233
      %v5332 = vpack.c.b16 %v5241, %v5234
      %v5333 = vpack.c.b16 %v5242, %v5235
      %v5334 = vpack.c.b16 %v5250, %v5243
      %v5335 = vpack.c.b16 %v5251, %v5244
      %v5336 = vpack.c.b16 %v5252, %v5245
      %v5337 = vpack.c.b16 %v5253, %v5246
      %v5338 = vpack.c.b16 %v5254, %v5247
      %v5339 = vpack.c.b16 %v5255, %v5248
      %v5340 = vpack.c.b16 %v5256, %v5249
      %v5341 = vpack.c.b16 %v5264, %v5257
      %v5342 = vpack.c.b16 %v5265, %v5258
      %v5343 = vpack.c.b16 %v5266, %v5259
      %v5344 = vpack.c.b16 %v5267, %v5260
      %v5345 = vpack.c.b16 %v5268, %v5261
      %v5346 = vpack.c.b16 %v5269, %v5262
      %v5347 = vpack.c.b16 %v5270, %v5263
      %v5348 = vpack.c.b16 %v5278, %v5271
      %v5349 = vpack.c.b16 %v5279, %v5272
      %v5350 = vpack.c.b16 %v5280, %v5273
      %v5351 = vpack.c.b16 %v5281, %v5274
      %v5352 = vpack.c.b16 %v5282, %v5275
      %v5353 = vpack.c.b16 %v5283, %v5276
      %v5354 = vpack.c.b16 %v5284, %v5277
      %v5355 = vpack.c.b16 %v5292, %v5285
      %v5356 = vpack.c.b16 %v5293, %v5286
      %v5357 = vpack.c.b16 %v5294, %v5287
      %v5358 = vpack.c.b16 %v5295, %v5288
      %v5359 = vpack.c.b16 %v5296, %v5289
      %v5360 = vpack.c.b16 %v5297, %v5290
      %v5361 = vpack.c.b16 %v5298, %v5291
      %v5362 = vpack.c.b16 %v5306, %v5299
      %v5363 = vpack.c.b16 %v5307, %v5300
      %v5364 = vpack.c.b16 %v5308, %v5301
      %v5365 = vpack.c.b16 %v5309, %v5302
      %v5366 = vpack.c.b16 %v5310, %v5303
      %v5367 = vpack.c.b16 %v5311, %v5304
      %v5368 = vpack.c.b16 %v5312, %v5305
      %5425 = vmatprep.subr.bf16.mxu0 %v5363
      %5426 = vmatpush1.bf16.msra.mxu0 %v5362
      %5427 = vmatprep.subr.bf16.mxu0 %v5356
      %5428 = vmatpush1.bf16.msra.mxu0 %v5355
      %5429 = vmatprep.subr.bf16.mxu0 %v5349
      %5430 = vmatpush1.bf16.msra.mxu0 %v5348
      %5431 = vmatprep.subr.bf16.mxu0 %v5342
      %5432 = vmatpush1.bf16.msra.mxu0 %v5341
      %5433 = vmatprep.subr.bf16.mxu0 %v5335
      %5434 = vmatpush1.bf16.msra.mxu0 %v5334
      %5435 = vmatprep.subr.bf16.mxu0 %v5328
      %5436 = vmatpush1.bf16.msra.mxu0 %v5327
      %5437 = vmatprep.subr.bf16.mxu0 %v5321
      %5438 = vmatpush1.bf16.msra.mxu0 %v5320
      %5439 = vmatprep.subr.bf16.mxu0 %v5314
      %5440 = vmatpush1.bf16.msra.mxu0 %v5313
      %5441 = vmatprep.subr.bf16.mxu0 0
      %5442 = vmatpush2.bf16.msra.mxu0 0
      %5443 = vmatprep.subr.bf16.mxu0 0
      %5444 = vmatpush2.bf16.msra.mxu0 0
      %5445 = vmatprep.subr.bf16.mxu0 0
      %5446 = vmatpush2.bf16.msra.mxu0 0
      %5447 = vmatprep.subr.bf16.mxu0 0
      %5448 = vmatpush2.bf16.msra.mxu0 0
      %5449 = vmatprep.subr.bf16.mxu0 0
      %5450 = vmatpush2.bf16.msra.mxu0 0
      %5451 = vmatprep.subr.bf16.mxu0 0
      %5452 = vmatpush2.bf16.msra.mxu0 0
      %5453 = vmatprep.subr.bf16.mxu0 0
      %5454 = vmatpush2.bf16.msra.mxu0 0
      %5455 = vmatprep.subr.bf16.mxu0 0
      %5456 = vmatpush2.bf16.msra.mxu0 0
      %5457 = vmatprep.mubr.bf16.mxu0 0
      %5458 = vmatmul.mubr.bf16.gmra.mxu0 %v5020
      %v5459 = vpop.f32.mrf.mxu0
      %v5460 = vadd.f32 %v5105, %v5459
      %v5461 = vpop.f32.mrf.mxu0
      %v5462 = vadd.f32 %v5109, %v5461
      %v5463 = vpop.f32.mrf.mxu0
      %v5464 = vadd.f32 %v5105, %v5463
      %v5465 = vpop.f32.mrf.mxu0
      %v5466 = vadd.f32 %v5109, %v5465
      %5467 = vmatprep.mubr.bf16.mxu0 0
      %5468 = vmatmul.mubr.bf16.gmra.mxu0 %v5021
      %v5469 = vpop.f32.mrf.mxu0
      %v5470 = vadd.f32 %v5105, %v5469
      %v5471 = vpop.f32.mrf.mxu0
      %v5472 = vadd.f32 %v5109, %v5471
      %v5473 = vpop.f32.mrf.mxu0
      %v5474 = vadd.f32 %v5105, %v5473
      %v5475 = vpop.f32.mrf.mxu0
      %v5476 = vadd.f32 %v5109, %v5475
      %5477 = vmatprep.mubr.bf16.mxu0 0
      %5478 = vmatmul.mubr.bf16.gmra.mxu0 %v5022
      %v5479 = vpop.f32.mrf.mxu0
      %v5480 = vadd.f32 %v5105, %v5479
      %v5481 = vpop.f32.mrf.mxu0
      %v5482 = vadd.f32 %v5109, %v5481
      %v5483 = vpop.f32.mrf.mxu0
      %v5484 = vadd.f32 %v5105, %v5483
      %v5485 = vpop.f32.mrf.mxu0
      %v5486 = vadd.f32 %v5109, %v5485
      %5487 = vmatprep.mubr.bf16.mxu0 0
      %5488 = vmatmul.mubr.bf16.gmra.mxu0 %v5023
      %v5489 = vpop.f32.mrf.mxu0
      %v5490 = vadd.f32 %v5105, %v5489
      %v5491 = vpop.f32.mrf.mxu0
      %v5492 = vadd.f32 %v5109, %v5491
      %v5493 = vpop.f32.mrf.mxu0
      %v5494 = vadd.f32 %v5105, %v5493
      %v5495 = vpop.f32.mrf.mxu0
      %v5496 = vadd.f32 %v5109, %v5495
      %5497 = vmatprep.mubr.bf16.mxu0 0
      %5498 = vmatmul.mubr.bf16.gmra.mxu0 %v5024
      %v5499 = vpop.f32.mrf.mxu0
      %v5500 = vadd.f32 %v5105, %v5499
      %v5501 = vpop.f32.mrf.mxu0
      %v5502 = vadd.f32 %v5109, %v5501
      %v5503 = vpop.f32.mrf.mxu0
      %v5504 = vadd.f32 %v5105, %v5503
      %v5505 = vpop.f32.mrf.mxu0
      %v5506 = vadd.f32 %v5109, %v5505
      %5507 = vmatprep.mubr.bf16.mxu0 0
      %5508 = vmatmul.mubr.bf16.gmra.mxu0 %v5025
      %v5509 = vpop.f32.mrf.mxu0
      %v5510 = vadd.f32 %v5105, %v5509
      %v5511 = vpop.f32.mrf.mxu0
      %v5512 = vadd.f32 %v5109, %v5511
      %v5513 = vpop.f32.mrf.mxu0
      %v5514 = vadd.f32 %v5105, %v5513
      %v5515 = vpop.f32.mrf.mxu0
      %v5516 = vadd.f32 %v5109, %v5515
      %5517 = vmatprep.mubr.bf16.mxu0 0
      %5518 = vmatmul.mubr.bf16.gmra.mxu0 %v5026
      %v5519 = vpop.f32.mrf.mxu0
      %v5520 = vadd.f32 %v5105, %v5519
      %v5521 = vpop.f32.mrf.mxu0
      %v5522 = vadd.f32 %v5109, %v5521
      %v5523 = vpop.f32.mrf.mxu0
      %v5524 = vadd.f32 %v5105, %v5523
      %v5525 = vpop.f32.mrf.mxu0
      %v5526 = vadd.f32 %v5109, %v5525
      %5527 = vmatprep.mubr.bf16.mxu0 0
      %5528 = vmatmul.mubr.bf16.gmra.mxu0 %v5027
      %v5529 = vpop.f32.mrf.mxu0
      %v5530 = vadd.f32 %v5105, %v5529
      %v5531 = vpop.f32.mrf.mxu0
      %v5532 = vadd.f32 %v5109, %v5531
      %v5533 = vpop.f32.mrf.mxu0
      %v5534 = vadd.f32 %v5105, %v5533
      %v5535 = vpop.f32.mrf.mxu0
      %v5536 = vadd.f32 %v5109, %v5535
      %5537 = vmatprep.mubr.bf16.mxu0 0
      %5538 = vmatmul.mubr.bf16.gmra.mxu0 %v5028
      %v5539 = vpop.f32.mrf.mxu0
      %v5540 = vadd.f32 %v5105, %v5539
      %v5541 = vpop.f32.mrf.mxu0
      %v5542 = vadd.f32 %v5109, %v5541
      %v5543 = vpop.f32.mrf.mxu0
      %v5544 = vadd.f32 %v5105, %v5543
      %v5545 = vpop.f32.mrf.mxu0
      %v5546 = vadd.f32 %v5109, %v5545
      %5547 = vmatprep.mubr.bf16.mxu0 0
      %5548 = vmatmul.mubr.bf16.gmra.mxu0 %v5029
      %v5549 = vpop.f32.mrf.mxu0
      %v5550 = vadd.f32 %v5105, %v5549
      %v5551 = vpop.f32.mrf.mxu0
      %v5552 = vadd.f32 %v5109, %v5551
      %v5553 = vpop.f32.mrf.mxu0
      %v5554 = vadd.f32 %v5105, %v5553
      %v5555 = vpop.f32.mrf.mxu0
      %v5556 = vadd.f32 %v5109, %v5555
      %5557 = vmatprep.mubr.bf16.mxu0 0
      %5558 = vmatmul.mubr.bf16.gmra.mxu0 %v5030
      %v5559 = vpop.f32.mrf.mxu0
      %v5560 = vadd.f32 %v5105, %v5559
      %v5561 = vpop.f32.mrf.mxu0
      %v5562 = vadd.f32 %v5109, %v5561
      %v5563 = vpop.f32.mrf.mxu0
      %v5564 = vadd.f32 %v5105, %v5563
      %v5565 = vpop.f32.mrf.mxu0
      %v5566 = vadd.f32 %v5109, %v5565
      %5567 = vmatprep.mubr.bf16.mxu0 0
      %5568 = vmatmul.mubr.bf16.gmra.mxu0 %v5031
      %v5569 = vpop.f32.mrf.mxu0
      %v5570 = vadd.f32 %v5105, %v5569
      %v5571 = vpop.f32.mrf.mxu0
      %v5572 = vadd.f32 %v5109, %v5571
      %v5573 = vpop.f32.mrf.mxu0
      %v5574 = vadd.f32 %v5105, %v5573
      %v5575 = vpop.f32.mrf.mxu0
      %v5576 = vadd.f32 %v5109, %v5575
      %5577 = vmatprep.mubr.bf16.mxu0 0
      %5578 = vmatmul.mubr.bf16.gmra.mxu0 %v5032
      %v5579 = vpop.f32.mrf.mxu0
      %v5580 = vadd.f32 %v5105, %v5579
      %v5581 = vpop.f32.mrf.mxu0
      %v5582 = vadd.f32 %v5109, %v5581
      %v5583 = vpop.f32.mrf.mxu0
      %v5584 = vadd.f32 %v5105, %v5583
      %v5585 = vpop.f32.mrf.mxu0
      %v5586 = vadd.f32 %v5109, %v5585
      %5587 = vmatprep.mubr.bf16.mxu0 0
      %5588 = vmatmul.mubr.bf16.gmra.mxu0 %v5033
      %v5589 = vpop.f32.mrf.mxu0
      %v5590 = vadd.f32 %v5105, %v5589
      %v5591 = vpop.f32.mrf.mxu0
      %v5592 = vadd.f32 %v5109, %v5591
      %v5593 = vpop.f32.mrf.mxu0
      %v5594 = vadd.f32 %v5105, %v5593
      %v5595 = vpop.f32.mrf.mxu0
      %v5596 = vadd.f32 %v5109, %v5595
      %5597 = vmatprep.mubr.bf16.mxu0 0
      %5598 = vmatmul.mubr.bf16.gmra.mxu0 %v5034
      %v5599 = vpop.f32.mrf.mxu0
      %v5600 = vadd.f32 %v5105, %v5599
      %v5601 = vpop.f32.mrf.mxu0
      %v5602 = vadd.f32 %v5109, %v5601
      %v5603 = vpop.f32.mrf.mxu0
      %v5604 = vadd.f32 %v5105, %v5603
      %v5605 = vpop.f32.mrf.mxu0
      %v5606 = vadd.f32 %v5109, %v5605
      %5607 = vmatprep.mubr.bf16.mxu0 0
      %5608 = vmatmul.mubr.bf16.gmra.mxu0 %v5035
      %v5609 = vpop.f32.mrf.mxu0
      %v5610 = vadd.f32 %v5105, %v5609
      %v5611 = vpop.f32.mrf.mxu0
      %v5612 = vadd.f32 %v5109, %v5611
      %v5613 = vpop.f32.mrf.mxu0
      %v5614 = vadd.f32 %v5105, %v5613
      %v5615 = vpop.f32.mrf.mxu0
      %v5616 = vadd.f32 %v5109, %v5615
      %5617 = vdwg.mxu0
      %5618 = vmatprep.subr.bf16.mxu0 %v5365
      %5619 = vmatpush1.bf16.msra.mxu0 %v5364
      %5620 = vmatprep.subr.bf16.mxu0 %v5358
      %5621 = vmatpush1.bf16.msra.mxu0 %v5357
      %5622 = vmatprep.subr.bf16.mxu0 %v5351
      %5623 = vmatpush1.bf16.msra.mxu0 %v5350
      %5624 = vmatprep.subr.bf16.mxu0 %v5344
      %5625 = vmatpush1.bf16.msra.mxu0 %v5343
      %5626 = vmatprep.subr.bf16.mxu0 %v5337
      %5627 = vmatpush1.bf16.msra.mxu0 %v5336
      %5628 = vmatprep.subr.bf16.mxu0 %v5330
      %5629 = vmatpush1.bf16.msra.mxu0 %v5329
      %5630 = vmatprep.subr.bf16.mxu0 %v5323
      %5631 = vmatpush1.bf16.msra.mxu0 %v5322
      %5632 = vmatprep.subr.bf16.mxu0 %v5316
      %5633 = vmatpush1.bf16.msra.mxu0 %v5315
      %5634 = vmatprep.subr.bf16.mxu0 0
      %5635 = vmatpush2.bf16.msra.mxu0 0
      %5636 = vmatprep.subr.bf16.mxu0 0
      %5637 = vmatpush2.bf16.msra.mxu0 0
      %5638 = vmatprep.subr.bf16.mxu0 0
      %5639 = vmatpush2.bf16.msra.mxu0 0
      %5640 = vmatprep.subr.bf16.mxu0 0
      %5641 = vmatpush2.bf16.msra.mxu0 0
      %5642 = vmatprep.subr.bf16.mxu0 0
      %5643 = vmatpush2.bf16.msra.mxu0 0
      %5644 = vmatprep.subr.bf16.mxu0 0
      %5645 = vmatpush2.bf16.msra.mxu0 0
      %5646 = vmatprep.subr.bf16.mxu0 0
      %5647 = vmatpush2.bf16.msra.mxu0 0
      %5648 = vmatprep.subr.bf16.mxu0 0
      %5649 = vmatpush2.bf16.msra.mxu0 0
      %5650 = vmatprep.mubr.bf16.mxu0 0
      %5651 = vmatmul.mubr.bf16.gmra.mxu0 %v5020
      %v5652 = vpop.f32.mrf.mxu0
      %v5653 = vadd.f32 %v5113, %v5652
      %v5654 = vpop.f32.mrf.mxu0
      %v5655 = vadd.f32 %v5117, %v5654
      %v5656 = vpop.f32.mrf.mxu0
      %v5657 = vadd.f32 %v5113, %v5656
      %v5658 = vpop.f32.mrf.mxu0
      %v5659 = vadd.f32 %v5117, %v5658
      %5660 = vmatprep.mubr.bf16.mxu0 0
      %5661 = vmatmul.mubr.bf16.gmra.mxu0 %v5021
      %v5662 = vpop.f32.mrf.mxu0
      %v5663 = vadd.f32 %v5113, %v5662
      %v5664 = vpop.f32.mrf.mxu0
      %v5665 = vadd.f32 %v5117, %v5664
      %v5666 = vpop.f32.mrf.mxu0
      %v5667 = vadd.f32 %v5113, %v5666
      %v5668 = vpop.f32.mrf.mxu0
      %v5669 = vadd.f32 %v5117, %v5668
      %5670 = vmatprep.mubr.bf16.mxu0 0
      %5671 = vmatmul.mubr.bf16.gmra.mxu0 %v5022
      %v5672 = vpop.f32.mrf.mxu0
      %v5673 = vadd.f32 %v5113, %v5672
      %v5674 = vpop.f32.mrf.mxu0
      %v5675 = vadd.f32 %v5117, %v5674
      %v5676 = vpop.f32.mrf.mxu0
      %v5677 = vadd.f32 %v5113, %v5676
      %v5678 = vpop.f32.mrf.mxu0
      %v5679 = vadd.f32 %v5117, %v5678
      %5680 = vmatprep.mubr.bf16.mxu0 0
      %5681 = vmatmul.mubr.bf16.gmra.mxu0 %v5023
      %v5682 = vpop.f32.mrf.mxu0
      %v5683 = vadd.f32 %v5113, %v5682
      %v5684 = vpop.f32.mrf.mxu0
      %v5685 = vadd.f32 %v5117, %v5684
      %v5686 = vpop.f32.mrf.mxu0
      %v5687 = vadd.f32 %v5113, %v5686
      %v5688 = vpop.f32.mrf.mxu0
      %v5689 = vadd.f32 %v5117, %v5688
      %5690 = vmatprep.mubr.bf16.mxu0 0
      %5691 = vmatmul.mubr.bf16.gmra.mxu0 %v5024
      %v5692 = vpop.f32.mrf.mxu0
      %v5693 = vadd.f32 %v5113, %v5692
      %v5694 = vpop.f32.mrf.mxu0
      %v5695 = vadd.f32 %v5117, %v5694
      %v5696 = vpop.f32.mrf.mxu0
      %v5697 = vadd.f32 %v5113, %v5696
      %v5698 = vpop.f32.mrf.mxu0
      %v5699 = vadd.f32 %v5117, %v5698
      %5700 = vmatprep.mubr.bf16.mxu0 0
      %5701 = vmatmul.mubr.bf16.gmra.mxu0 %v5025
      %v5702 = vpop.f32.mrf.mxu0
      %v5703 = vadd.f32 %v5113, %v5702
      %v5704 = vpop.f32.mrf.mxu0
      %v5705 = vadd.f32 %v5117, %v5704
      %v5706 = vpop.f32.mrf.mxu0
      %v5707 = vadd.f32 %v5113, %v5706
      %v5708 = vpop.f32.mrf.mxu0
      %v5709 = vadd.f32 %v5117, %v5708
      %5710 = vmatprep.mubr.bf16.mxu0 0
      %5711 = vmatmul.mubr.bf16.gmra.mxu0 %v5026
      %v5712 = vpop.f32.mrf.mxu0
      %v5713 = vadd.f32 %v5113, %v5712
      %v5714 = vpop.f32.mrf.mxu0
      %v5715 = vadd.f32 %v5117, %v5714
      %v5716 = vpop.f32.mrf.mxu0
      %v5717 = vadd.f32 %v5113, %v5716
      %v5718 = vpop.f32.mrf.mxu0
      %v5719 = vadd.f32 %v5117, %v5718
      %5720 = vmatprep.mubr.bf16.mxu0 0
      %5721 = vmatmul.mubr.bf16.gmra.mxu0 %v5027
      %v5722 = vpop.f32.mrf.mxu0
      %v5723 = vadd.f32 %v5113, %v5722
      %v5724 = vpop.f32.mrf.mxu0
      %v5725 = vadd.f32 %v5117, %v5724
      %v5726 = vpop.f32.mrf.mxu0
      %v5727 = vadd.f32 %v5113, %v5726
      %v5728 = vpop.f32.mrf.mxu0
      %v5729 = vadd.f32 %v5117, %v5728
      %5730 = vmatprep.mubr.bf16.mxu0 0
      %5731 = vmatmul.mubr.bf16.gmra.mxu0 %v5028
      %v5732 = vpop.f32.mrf.mxu0
      %v5733 = vadd.f32 %v5113, %v5732
      %v5734 = vpop.f32.mrf.mxu0
      %v5735 = vadd.f32 %v5117, %v5734
      %v5736 = vpop.f32.mrf.mxu0
      %v5737 = vadd.f32 %v5113, %v5736
      %v5738 = vpop.f32.mrf.mxu0
      %v5739 = vadd.f32 %v5117, %v5738
      %5740 = vmatprep.mubr.bf16.mxu0 0
      %5741 = vmatmul.mubr.bf16.gmra.mxu0 %v5029
      %v5742 = vpop.f32.mrf.mxu0
      %v5743 = vadd.f32 %v5113, %v5742
      %v5744 = vpop.f32.mrf.mxu0
      %v5745 = vadd.f32 %v5117, %v5744
      %v5746 = vpop.f32.mrf.mxu0
      %v5747 = vadd.f32 %v5113, %v5746
      %v5748 = vpop.f32.mrf.mxu0
      %v5749 = vadd.f32 %v5117, %v5748
      %5750 = vmatprep.mubr.bf16.mxu0 0
      %5751 = vmatmul.mubr.bf16.gmra.mxu0 %v5030
      %v5752 = vpop.f32.mrf.mxu0
      %v5753 = vadd.f32 %v5113, %v5752
      %v5754 = vpop.f32.mrf.mxu0
      %v5755 = vadd.f32 %v5117, %v5754
      %v5756 = vpop.f32.mrf.mxu0
      %v5757 = vadd.f32 %v5113, %v5756
      %v5758 = vpop.f32.mrf.mxu0
      %v5759 = vadd.f32 %v5117, %v5758
      %5760 = vmatprep.mubr.bf16.mxu0 0
      %5761 = vmatmul.mubr.bf16.gmra.mxu0 %v5031
      %v5762 = vpop.f32.mrf.mxu0
      %v5763 = vadd.f32 %v5113, %v5762
      %v5764 = vpop.f32.mrf.mxu0
      %v5765 = vadd.f32 %v5117, %v5764
      %v5766 = vpop.f32.mrf.mxu0
      %v5767 = vadd.f32 %v5113, %v5766
      %v5768 = vpop.f32.mrf.mxu0
      %v5769 = vadd.f32 %v5117, %v5768
      %5770 = vmatprep.mubr.bf16.mxu0 0
      %5771 = vmatmul.mubr.bf16.gmra.mxu0 %v5032
      %v5772 = vpop.f32.mrf.mxu0
      %v5773 = vadd.f32 %v5113, %v5772
      %v5774 = vpop.f32.mrf.mxu0
      %v5775 = vadd.f32 %v5117, %v5774
      %v5776 = vpop.f32.mrf.mxu0
      %v5777 = vadd.f32 %v5113, %v5776
      %v5778 = vpop.f32.mrf.mxu0
      %v5779 = vadd.f32 %v5117, %v5778
      %5780 = vmatprep.mubr.bf16.mxu0 0
      %5781 = vmatmul.mubr.bf16.gmra.mxu0 %v5033
      %v5782 = vpop.f32.mrf.mxu0
      %v5783 = vadd.f32 %v5113, %v5782
      %v5784 = vpop.f32.mrf.mxu0
      %v5785 = vadd.f32 %v5117, %v5784
      %v5786 = vpop.f32.mrf.mxu0
      %v5787 = vadd.f32 %v5113, %v5786
      %v5788 = vpop.f32.mrf.mxu0
      %v5789 = vadd.f32 %v5117, %v5788
      %5790 = vmatprep.mubr.bf16.mxu0 0
      %5791 = vmatmul.mubr.bf16.gmra.mxu0 %v5034
      %v5792 = vpop.f32.mrf.mxu0
      %v5793 = vadd.f32 %v5113, %v5792
      %v5794 = vpop.f32.mrf.mxu0
      %v5795 = vadd.f32 %v5117, %v5794
      %v5796 = vpop.f32.mrf.mxu0
      %v5797 = vadd.f32 %v5113, %v5796
      %v5798 = vpop.f32.mrf.mxu0
      %v5799 = vadd.f32 %v5117, %v5798
      %5800 = vmatprep.mubr.bf16.mxu0 0
      %5801 = vmatmul.mubr.bf16.gmra.mxu0 %v5035
      %v5802 = vpop.f32.mrf.mxu0
      %v5803 = vadd.f32 %v5113, %v5802
      %v5804 = vpop.f32.mrf.mxu0
      %v5805 = vadd.f32 %v5117, %v5804
      %v5806 = vpop.f32.mrf.mxu0
      %v5807 = vadd.f32 %v5113, %v5806
      %v5808 = vpop.f32.mrf.mxu0
      %v5809 = vadd.f32 %v5117, %v5808
      %5810 = vdwg.mxu0
      %5811 = vmatprep.subr.bf16.mxu0 %v5367
      %5812 = vmatpush1.bf16.msra.mxu0 %v5366
      %5813 = vmatprep.subr.bf16.mxu0 %v5360
      %5814 = vmatpush1.bf16.msra.mxu0 %v5359
      %5815 = vmatprep.subr.bf16.mxu0 %v5353
      %5816 = vmatpush1.bf16.msra.mxu0 %v5352
      %5817 = vmatprep.subr.bf16.mxu0 %v5346
      %5818 = vmatpush1.bf16.msra.mxu0 %v5345
      %5819 = vmatprep.subr.bf16.mxu0 %v5339
      %5820 = vmatpush1.bf16.msra.mxu0 %v5338
      %5821 = vmatprep.subr.bf16.mxu0 %v5332
      %5822 = vmatpush1.bf16.msra.mxu0 %v5331
      %5823 = vmatprep.subr.bf16.mxu0 %v5325
      %5824 = vmatpush1.bf16.msra.mxu0 %v5324
      %5825 = vmatprep.subr.bf16.mxu0 %v5318
      %5826 = vmatpush1.bf16.msra.mxu0 %v5317
      %5827 = vmatprep.subr.bf16.mxu0 0
      %5828 = vmatpush2.bf16.msra.mxu0 0
      %5829 = vmatprep.subr.bf16.mxu0 0
      %5830 = vmatpush2.bf16.msra.mxu0 0
      %5831 = vmatprep.subr.bf16.mxu0 0
      %5832 = vmatpush2.bf16.msra.mxu0 0
      %5833 = vmatprep.subr.bf16.mxu0 0
      %5834 = vmatpush2.bf16.msra.mxu0 0
      %5835 = vmatprep.subr.bf16.mxu0 0
      %5836 = vmatpush2.bf16.msra.mxu0 0
      %5837 = vmatprep.subr.bf16.mxu0 0
      %5838 = vmatpush2.bf16.msra.mxu0 0
      %5839 = vmatprep.subr.bf16.mxu0 0
      %5840 = vmatpush2.bf16.msra.mxu0 0
      %5841 = vmatprep.subr.bf16.mxu0 0
      %5842 = vmatpush2.bf16.msra.mxu0 0
      %5843 = vmatprep.mubr.bf16.mxu0 0
      %5844 = vmatmul.mubr.bf16.gmra.mxu0 %v5020
      %v5845 = vpop.f32.mrf.mxu0
      %v5846 = vadd.f32 %v5121, %v5845
      %v5847 = vpop.f32.mrf.mxu0
      %v5848 = vadd.f32 %v5125, %v5847
      %v5849 = vpop.f32.mrf.mxu0
      %v5850 = vadd.f32 %v5121, %v5849
      %v5851 = vpop.f32.mrf.mxu0
      %v5852 = vadd.f32 %v5125, %v5851
      %5853 = vmatprep.mubr.bf16.mxu0 0
      %5854 = vmatmul.mubr.bf16.gmra.mxu0 %v5021
      %v5855 = vpop.f32.mrf.mxu0
      %v5856 = vadd.f32 %v5121, %v5855
      %v5857 = vpop.f32.mrf.mxu0
      %v5858 = vadd.f32 %v5125, %v5857
      %v5859 = vpop.f32.mrf.mxu0
      %v5860 = vadd.f32 %v5121, %v5859
      %v5861 = vpop.f32.mrf.mxu0
      %v5862 = vadd.f32 %v5125, %v5861
      %5863 = vmatprep.mubr.bf16.mxu0 0
      %5864 = vmatmul.mubr.bf16.gmra.mxu0 %v5022
      %v5865 = vpop.f32.mrf.mxu0
      %v5866 = vadd.f32 %v5121, %v5865
      %v5867 = vpop.f32.mrf.mxu0
      %v5868 = vadd.f32 %v5125, %v5867
      %v5869 = vpop.f32.mrf.mxu0
      %v5870 = vadd.f32 %v5121, %v5869
      %v5871 = vpop.f32.mrf.mxu0
      %v5872 = vadd.f32 %v5125, %v5871
      %5873 = vmatprep.mubr.bf16.mxu0 0
      %5874 = vmatmul.mubr.bf16.gmra.mxu0 %v5023
      %v5875 = vpop.f32.mrf.mxu0
      %v5876 = vadd.f32 %v5121, %v5875
      %v5877 = vpop.f32.mrf.mxu0
      %v5878 = vadd.f32 %v5125, %v5877
      %v5879 = vpop.f32.mrf.mxu0
      %v5880 = vadd.f32 %v5121, %v5879
      %v5881 = vpop.f32.mrf.mxu0
      %v5882 = vadd.f32 %v5125, %v5881
      %5883 = vmatprep.mubr.bf16.mxu0 0
      %5884 = vmatmul.mubr.bf16.gmra.mxu0 %v5024
      %v5885 = vpop.f32.mrf.mxu0
      %v5886 = vadd.f32 %v5121, %v5885
      %v5887 = vpop.f32.mrf.mxu0
      %v5888 = vadd.f32 %v5125, %v5887
      %v5889 = vpop.f32.mrf.mxu0
      %v5890 = vadd.f32 %v5121, %v5889
      %v5891 = vpop.f32.mrf.mxu0
      %v5892 = vadd.f32 %v5125, %v5891
      %5893 = vmatprep.mubr.bf16.mxu0 0
      %5894 = vmatmul.mubr.bf16.gmra.mxu0 %v5025
      %v5895 = vpop.f32.mrf.mxu0
      %v5896 = vadd.f32 %v5121, %v5895
      %v5897 = vpop.f32.mrf.mxu0
      %v5898 = vadd.f32 %v5125, %v5897
      %v5899 = vpop.f32.mrf.mxu0
      %v5900 = vadd.f32 %v5121, %v5899
      %v5901 = vpop.f32.mrf.mxu0
      %v5902 = vadd.f32 %v5125, %v5901
      %5903 = vmatprep.mubr.bf16.mxu0 0
      %5904 = vmatmul.mubr.bf16.gmra.mxu0 %v5026
      %v5905 = vpop.f32.mrf.mxu0
      %v5906 = vadd.f32 %v5121, %v5905
      %v5907 = vpop.f32.mrf.mxu0
      %v5908 = vadd.f32 %v5125, %v5907
      %v5909 = vpop.f32.mrf.mxu0
      %v5910 = vadd.f32 %v5121, %v5909
      %v5911 = vpop.f32.mrf.mxu0
      %v5912 = vadd.f32 %v5125, %v5911
      %5913 = vmatprep.mubr.bf16.mxu0 0
      %5914 = vmatmul.mubr.bf16.gmra.mxu0 %v5027
      %v5915 = vpop.f32.mrf.mxu0
      %v5916 = vadd.f32 %v5121, %v5915
      %v5917 = vpop.f32.mrf.mxu0
      %v5918 = vadd.f32 %v5125, %v5917
      %v5919 = vpop.f32.mrf.mxu0
      %v5920 = vadd.f32 %v5121, %v5919
      %v5921 = vpop.f32.mrf.mxu0
      %v5922 = vadd.f32 %v5125, %v5921
      %5923 = vmatprep.mubr.bf16.mxu0 0
      %5924 = vmatmul.mubr.bf16.gmra.mxu0 %v5028
      %v5925 = vpop.f32.mrf.mxu0
      %v5926 = vadd.f32 %v5121, %v5925
      %v5927 = vpop.f32.mrf.mxu0
      %v5928 = vadd.f32 %v5125, %v5927
      %v5929 = vpop.f32.mrf.mxu0
      %v5930 = vadd.f32 %v5121, %v5929
      %v5931 = vpop.f32.mrf.mxu0
      %v5932 = vadd.f32 %v5125, %v5931
      %5933 = vmatprep.mubr.bf16.mxu0 0
      %5934 = vmatmul.mubr.bf16.gmra.mxu0 %v5029
      %v5935 = vpop.f32.mrf.mxu0
      %v5936 = vadd.f32 %v5121, %v5935
      %v5937 = vpop.f32.mrf.mxu0
      %v5938 = vadd.f32 %v5125, %v5937
      %v5939 = vpop.f32.mrf.mxu0
      %v5940 = vadd.f32 %v5121, %v5939
      %v5941 = vpop.f32.mrf.mxu0
      %v5942 = vadd.f32 %v5125, %v5941
      %5943 = vmatprep.mubr.bf16.mxu0 0
      %5944 = vmatmul.mubr.bf16.gmra.mxu0 %v5030
      %v5945 = vpop.f32.mrf.mxu0
      %v5946 = vadd.f32 %v5121, %v5945
      %v5947 = vpop.f32.mrf.mxu0
      %v5948 = vadd.f32 %v5125, %v5947
      %v5949 = vpop.f32.mrf.mxu0
      %v5950 = vadd.f32 %v5121, %v5949
      %v5951 = vpop.f32.mrf.mxu0
      %v5952 = vadd.f32 %v5125, %v5951
      %5953 = vmatprep.mubr.bf16.mxu0 0
      %5954 = vmatmul.mubr.bf16.gmra.mxu0 %v5031
      %v5955 = vpop.f32.mrf.mxu0
      %v5956 = vadd.f32 %v5121, %v5955
      %v5957 = vpop.f32.mrf.mxu0
      %v5958 = vadd.f32 %v5125, %v5957
      %v5959 = vpop.f32.mrf.mxu0
      %v5960 = vadd.f32 %v5121, %v5959
      %v5961 = vpop.f32.mrf.mxu0
      %v5962 = vadd.f32 %v5125, %v5961
      %5963 = vmatprep.mubr.bf16.mxu0 0
      %5964 = vmatmul.mubr.bf16.gmra.mxu0 %v5032
      %v5965 = vpop.f32.mrf.mxu0
      %v5966 = vadd.f32 %v5121, %v5965
      %v5967 = vpop.f32.mrf.mxu0
      %v5968 = vadd.f32 %v5125, %v5967
      %v5969 = vpop.f32.mrf.mxu0
      %v5970 = vadd.f32 %v5121, %v5969
      %v5971 = vpop.f32.mrf.mxu0
      %v5972 = vadd.f32 %v5125, %v5971
      %5973 = vmatprep.mubr.bf16.mxu0 0
      %5974 = vmatmul.mubr.bf16.gmra.mxu0 %v5033
      %v5975 = vpop.f32.mrf.mxu0
      %v5976 = vadd.f32 %v5121, %v5975
      %v5977 = vpop.f32.mrf.mxu0
      %v5978 = vadd.f32 %v5125, %v5977
      %v5979 = vpop.f32.mrf.mxu0
      %v5980 = vadd.f32 %v5121, %v5979
      %v5981 = vpop.f32.mrf.mxu0
      %v5982 = vadd.f32 %v5125, %v5981
      %5983 = vmatprep.mubr.bf16.mxu0 0
      %5984 = vmatmul.mubr.bf16.gmra.mxu0 %v5034
      %v5985 = vpop.f32.mrf.mxu0
      %v5986 = vadd.f32 %v5121, %v5985
      %v5987 = vpop.f32.mrf.mxu0
      %v5988 = vadd.f32 %v5125, %v5987
      %v5989 = vpop.f32.mrf.mxu0
      %v5990 = vadd.f32 %v5121, %v5989
      %v5991 = vpop.f32.mrf.mxu0
      %v5992 = vadd.f32 %v5125, %v5991
      %5993 = vmatprep.mubr.bf16.mxu0 0
      %5994 = vmatmul.mubr.bf16.gmra.mxu0 %v5035
      %v5995 = vpop.f32.mrf.mxu0
      %v5996 = vadd.f32 %v5121, %v5995
      %v5997 = vpop.f32.mrf.mxu0
      %v5998 = vadd.f32 %v5125, %v5997
      %v5999 = vpop.f32.mrf.mxu0
      %v6000 = vadd.f32 %v5121, %v5999
      %v6001 = vpop.f32.mrf.mxu0
      %v6002 = vadd.f32 %v5125, %v6001
      %6003 = vdwg.mxu0
      %6004 = vmatprep.subr.bf16.mxu0 0
      %6005 = vmatpush1.bf16.msra.mxu0 %v5368
      %6006 = vmatprep.subr.bf16.mxu0 0
      %6007 = vmatpush1.bf16.msra.mxu0 %v5361
      %6008 = vmatprep.subr.bf16.mxu0 0
      %6009 = vmatpush1.bf16.msra.mxu0 %v5354
      %6010 = vmatprep.subr.bf16.mxu0 0
      %6011 = vmatpush1.bf16.msra.mxu0 %v5347
      %6012 = vmatprep.subr.bf16.mxu0 0
      %6013 = vmatpush1.bf16.msra.mxu0 %v5340
      %6014 = vmatprep.subr.bf16.mxu0 0
      %6015 = vmatpush1.bf16.msra.mxu0 %v5333
      %6016 = vmatprep.subr.bf16.mxu0 0
      %6017 = vmatpush1.bf16.msra.mxu0 %v5326
      %6018 = vmatprep.subr.bf16.mxu0 0
      %6019 = vmatpush1.bf16.msra.mxu0 %v5319
      %6020 = vmatprep.subr.bf16.mxu0 0
      %6021 = vmatpush2.bf16.msra.mxu0 0
      %6022 = vmatprep.subr.bf16.mxu0 0
      %6023 = vmatpush2.bf16.msra.mxu0 0
      %6024 = vmatprep.subr.bf16.mxu0 0
      %6025 = vmatpush2.bf16.msra.mxu0 0
      %6026 = vmatprep.subr.bf16.mxu0 0
      %6027 = vmatpush2.bf16.msra.mxu0 0
      %6028 = vmatprep.subr.bf16.mxu0 0
      %6029 = vmatpush2.bf16.msra.mxu0 0
      %6030 = vmatprep.subr.bf16.mxu0 0
      %6031 = vmatpush2.bf16.msra.mxu0 0
      %6032 = vmatprep.subr.bf16.mxu0 0
      %6033 = vmatpush2.bf16.msra.mxu0 0
      %6034 = vmatprep.subr.bf16.mxu0 0
      %6035 = vmatpush2.bf16.msra.mxu0 0
      %6036 = vmatprep.mubr.bf16.mxu0 0
      %6037 = vmatmul.mubr.bf16.gmra.mxu0 %v5020
      %v6038 = vpop.f32.mrf.mxu0
      %v6039 = vadd.f32 %v5129, %v6038
      %v6040 = vpop.f32.mrf.mxu0
      %v6041 = vpop.f32.mrf.mxu0
      %v6042 = vadd.f32 %v5129, %v6041
      %v6043 = vpop.f32.mrf.mxu0
      %6044 = vmatprep.mubr.bf16.mxu0 0
      %6045 = vmatmul.mubr.bf16.gmra.mxu0 %v5021
      %v6046 = vpop.f32.mrf.mxu0
      %v6047 = vadd.f32 %v5129, %v6046
      %v6048 = vpop.f32.mrf.mxu0
      %v6049 = vpop.f32.mrf.mxu0
      %v6050 = vadd.f32 %v5129, %v6049
      %v6051 = vpop.f32.mrf.mxu0
      %6052 = vmatprep.mubr.bf16.mxu0 0
      %6053 = vmatmul.mubr.bf16.gmra.mxu0 %v5022
      %v6054 = vpop.f32.mrf.mxu0
      %v6055 = vadd.f32 %v5129, %v6054
      %v6056 = vpop.f32.mrf.mxu0
      %v6057 = vpop.f32.mrf.mxu0
      %v6058 = vadd.f32 %v5129, %v6057
      %v6059 = vpop.f32.mrf.mxu0
      %6060 = vmatprep.mubr.bf16.mxu0 0
      %6061 = vmatmul.mubr.bf16.gmra.mxu0 %v5023
      %v6062 = vpop.f32.mrf.mxu0
      %v6063 = vadd.f32 %v5129, %v6062
      %v6064 = vpop.f32.mrf.mxu0
      %v6065 = vpop.f32.mrf.mxu0
      %v6066 = vadd.f32 %v5129, %v6065
      %v6067 = vpop.f32.mrf.mxu0
      %6068 = vmatprep.mubr.bf16.mxu0 0
      %6069 = vmatmul.mubr.bf16.gmra.mxu0 %v5024
      %v6070 = vpop.f32.mrf.mxu0
      %v6071 = vadd.f32 %v5129, %v6070
      %v6072 = vpop.f32.mrf.mxu0
      %v6073 = vpop.f32.mrf.mxu0
      %v6074 = vadd.f32 %v5129, %v6073
      %v6075 = vpop.f32.mrf.mxu0
      %6076 = vmatprep.mubr.bf16.mxu0 0
      %6077 = vmatmul.mubr.bf16.gmra.mxu0 %v5025
      %v6078 = vpop.f32.mrf.mxu0
      %v6079 = vadd.f32 %v5129, %v6078
      %v6080 = vpop.f32.mrf.mxu0
      %v6081 = vpop.f32.mrf.mxu0
      %v6082 = vadd.f32 %v5129, %v6081
      %v6083 = vpop.f32.mrf.mxu0
      %6084 = vmatprep.mubr.bf16.mxu0 0
      %6085 = vmatmul.mubr.bf16.gmra.mxu0 %v5026
      %v6086 = vpop.f32.mrf.mxu0
      %v6087 = vadd.f32 %v5129, %v6086
      %v6088 = vpop.f32.mrf.mxu0
      %v6089 = vpop.f32.mrf.mxu0
      %v6090 = vadd.f32 %v5129, %v6089
      %v6091 = vpop.f32.mrf.mxu0
      %6092 = vmatprep.mubr.bf16.mxu0 0
      %6093 = vmatmul.mubr.bf16.gmra.mxu0 %v5027
      %v6094 = vpop.f32.mrf.mxu0
      %v6095 = vadd.f32 %v5129, %v6094
      %v6096 = vpop.f32.mrf.mxu0
      %v6097 = vpop.f32.mrf.mxu0
      %v6098 = vadd.f32 %v5129, %v6097
      %v6099 = vpop.f32.mrf.mxu0
      %6100 = vmatprep.mubr.bf16.mxu0 0
      %6101 = vmatmul.mubr.bf16.gmra.mxu0 %v5028
      %v6102 = vpop.f32.mrf.mxu0
      %v6103 = vadd.f32 %v5129, %v6102
      %v6104 = vpop.f32.mrf.mxu0
      %v6105 = vpop.f32.mrf.mxu0
      %v6106 = vadd.f32 %v5129, %v6105
      %v6107 = vpop.f32.mrf.mxu0
      %6108 = vmatprep.mubr.bf16.mxu0 0
      %6109 = vmatmul.mubr.bf16.gmra.mxu0 %v5029
      %v6110 = vpop.f32.mrf.mxu0
      %v6111 = vadd.f32 %v5129, %v6110
      %v6112 = vpop.f32.mrf.mxu0
      %v6113 = vpop.f32.mrf.mxu0
      %v6114 = vadd.f32 %v5129, %v6113
      %v6115 = vpop.f32.mrf.mxu0
      %6116 = vmatprep.mubr.bf16.mxu0 0
      %6117 = vmatmul.mubr.bf16.gmra.mxu0 %v5030
      %v6118 = vpop.f32.mrf.mxu0
      %v6119 = vadd.f32 %v5129, %v6118
      %v6120 = vpop.f32.mrf.mxu0
      %v6121 = vpop.f32.mrf.mxu0
      %v6122 = vadd.f32 %v5129, %v6121
      %v6123 = vpop.f32.mrf.mxu0
      %6124 = vmatprep.mubr.bf16.mxu0 0
      %6125 = vmatmul.mubr.bf16.gmra.mxu0 %v5031
      %v6126 = vpop.f32.mrf.mxu0
      %v6127 = vadd.f32 %v5129, %v6126
      %v6128 = vpop.f32.mrf.mxu0
      %v6129 = vpop.f32.mrf.mxu0
      %v6130 = vadd.f32 %v5129, %v6129
      %v6131 = vpop.f32.mrf.mxu0
      %6132 = vmatprep.mubr.bf16.mxu0 0
      %6133 = vmatmul.mubr.bf16.gmra.mxu0 %v5032
      %v6134 = vpop.f32.mrf.mxu0
      %v6135 = vadd.f32 %v5129, %v6134
      %v6136 = vpop.f32.mrf.mxu0
      %v6137 = vpop.f32.mrf.mxu0
      %v6138 = vadd.f32 %v5129, %v6137
      %v6139 = vpop.f32.mrf.mxu0
      %6140 = vmatprep.mubr.bf16.mxu0 0
      %6141 = vmatmul.mubr.bf16.gmra.mxu0 %v5033
      %v6142 = vpop.f32.mrf.mxu0
      %v6143 = vadd.f32 %v5129, %v6142
      %v6144 = vpop.f32.mrf.mxu0
      %v6145 = vpop.f32.mrf.mxu0
      %v6146 = vadd.f32 %v5129, %v6145
      %v6147 = vpop.f32.mrf.mxu0
      %6148 = vmatprep.mubr.bf16.mxu0 0
      %6149 = vmatmul.mubr.bf16.gmra.mxu0 %v5034
      %v6150 = vpop.f32.mrf.mxu0
      %v6151 = vadd.f32 %v5129, %v6150
      %v6152 = vpop.f32.mrf.mxu0
      %v6153 = vpop.f32.mrf.mxu0
      %v6154 = vadd.f32 %v5129, %v6153
      %v6155 = vpop.f32.mrf.mxu0
      %6156 = vmatprep.mubr.bf16.mxu0 0
      %6157 = vmatmul.mubr.bf16.gmra.mxu0 %v5035
      %v6158 = vpop.f32.mrf.mxu0
      %v6159 = vadd.f32 %v5129, %v6158
      %v6160 = vpop.f32.mrf.mxu0
      %v6161 = vpop.f32.mrf.mxu0
      %v6162 = vadd.f32 %v5129, %v6161
      %v6163 = vpop.f32.mrf.mxu0
      %6164 = vdwg.mxu0
      %v6165 = vxor.u32 %v5460, 2147483648
      %v6166 = vxor.u32 %v5462, 2147483648
      %v6167 = vxor.u32 %v5653, 2147483648
      %v6168 = vxor.u32 %v5655, 2147483648
      %v6169 = vxor.u32 %v5846, 2147483648
      %v6170 = vxor.u32 %v5848, 2147483648
      %v6171 = vxor.u32 %v6039, 2147483648
      %v6172 = vxor.u32 %v5464, 2147483648
      %v6173 = vxor.u32 %v5466, 2147483648
      %v6174 = vxor.u32 %v5657, 2147483648
      %v6175 = vxor.u32 %v5659, 2147483648
      %v6176 = vxor.u32 %v5850, 2147483648
      %v6177 = vxor.u32 %v5852, 2147483648
      %v6178 = vxor.u32 %v6042, 2147483648
      %v6179 = vxor.u32 %v5470, 2147483648
      %v6180 = vxor.u32 %v5472, 2147483648
      %v6181 = vxor.u32 %v5663, 2147483648
      %v6182 = vxor.u32 %v5665, 2147483648
      %v6183 = vxor.u32 %v5856, 2147483648
      %v6184 = vxor.u32 %v5858, 2147483648
      %v6185 = vxor.u32 %v6047, 2147483648
      %v6186 = vxor.u32 %v5474, 2147483648
      %v6187 = vxor.u32 %v5476, 2147483648
      %v6188 = vxor.u32 %v5667, 2147483648
      %v6189 = vxor.u32 %v5669, 2147483648
      %v6190 = vxor.u32 %v5860, 2147483648
      %v6191 = vxor.u32 %v5862, 2147483648
      %v6192 = vxor.u32 %v6050, 2147483648
      %v6193 = vxor.u32 %v5480, 2147483648
      %v6194 = vxor.u32 %v5482, 2147483648
      %v6195 = vxor.u32 %v5673, 2147483648
      %v6196 = vxor.u32 %v5675, 2147483648
      %v6197 = vxor.u32 %v5866, 2147483648
      %v6198 = vxor.u32 %v5868, 2147483648
      %v6199 = vxor.u32 %v6055, 2147483648
      %v6200 = vxor.u32 %v5484, 2147483648
      %v6201 = vxor.u32 %v5486, 2147483648
      %v6202 = vxor.u32 %v5677, 2147483648
      %v6203 = vxor.u32 %v5679, 2147483648
      %v6204 = vxor.u32 %v5870, 2147483648
      %v6205 = vxor.u32 %v5872, 2147483648
      %v6206 = vxor.u32 %v6058, 2147483648
      %v6207 = vxor.u32 %v5490, 2147483648
      %v6208 = vxor.u32 %v5492, 2147483648
      %v6209 = vxor.u32 %v5683, 2147483648
      %v6210 = vxor.u32 %v5685, 2147483648
      %v6211 = vxor.u32 %v5876, 2147483648
      %v6212 = vxor.u32 %v5878, 2147483648
      %v6213 = vxor.u32 %v6063, 2147483648
      %v6214 = vxor.u32 %v5494, 2147483648
      %v6215 = vxor.u32 %v5496, 2147483648
      %v6216 = vxor.u32 %v5687, 2147483648
      %v6217 = vxor.u32 %v5689, 2147483648
      %v6218 = vxor.u32 %v5880, 2147483648
      %v6219 = vxor.u32 %v5882, 2147483648
      %v6220 = vxor.u32 %v6066, 2147483648
      %v6221 = vxor.u32 %v5500, 2147483648
      %v6222 = vxor.u32 %v5502, 2147483648
      %v6223 = vxor.u32 %v5693, 2147483648
      %v6224 = vxor.u32 %v5695, 2147483648
      %v6225 = vxor.u32 %v5886, 2147483648
      %v6226 = vxor.u32 %v5888, 2147483648
      %v6227 = vxor.u32 %v6071, 2147483648
      %v6228 = vxor.u32 %v5504, 2147483648
      %v6229 = vxor.u32 %v5506, 2147483648
      %v6230 = vxor.u32 %v5697, 2147483648
      %v6231 = vxor.u32 %v5699, 2147483648
      %v6232 = vxor.u32 %v5890, 2147483648
      %v6233 = vxor.u32 %v5892, 2147483648
      %v6234 = vxor.u32 %v6074, 2147483648
      %v6235 = vxor.u32 %v5510, 2147483648
      %v6236 = vxor.u32 %v5512, 2147483648
      %v6237 = vxor.u32 %v5703, 2147483648
      %v6238 = vxor.u32 %v5705, 2147483648
      %v6239 = vxor.u32 %v5896, 2147483648
      %v6240 = vxor.u32 %v5898, 2147483648
      %v6241 = vxor.u32 %v6079, 2147483648
      %v6242 = vxor.u32 %v5514, 2147483648
      %v6243 = vxor.u32 %v5516, 2147483648
      %v6244 = vxor.u32 %v5707, 2147483648
      %v6245 = vxor.u32 %v5709, 2147483648
      %v6246 = vxor.u32 %v5900, 2147483648
      %v6247 = vxor.u32 %v5902, 2147483648
      %v6248 = vxor.u32 %v6082, 2147483648
      %v6249 = vxor.u32 %v5520, 2147483648
      %v6250 = vxor.u32 %v5522, 2147483648
      %v6251 = vxor.u32 %v5713, 2147483648
      %v6252 = vxor.u32 %v5715, 2147483648
      %v6253 = vxor.u32 %v5906, 2147483648
      %v6254 = vxor.u32 %v5908, 2147483648
      %v6255 = vxor.u32 %v6087, 2147483648
      %v6256 = vxor.u32 %v5524, 2147483648
      %v6257 = vxor.u32 %v5526, 2147483648
      %v6258 = vxor.u32 %v5717, 2147483648
      %v6259 = vxor.u32 %v5719, 2147483648
      %v6260 = vxor.u32 %v5910, 2147483648
      %v6261 = vxor.u32 %v5912, 2147483648
      %v6262 = vxor.u32 %v6090, 2147483648
      %v6263 = vxor.u32 %v5530, 2147483648
      %v6264 = vxor.u32 %v5532, 2147483648
      %v6265 = vxor.u32 %v5723, 2147483648
      %v6266 = vxor.u32 %v5725, 2147483648
      %v6267 = vxor.u32 %v5916, 2147483648
      %v6268 = vxor.u32 %v5918, 2147483648
      %v6269 = vxor.u32 %v6095, 2147483648
      %v6270 = vxor.u32 %v5534, 2147483648
      %v6271 = vxor.u32 %v5536, 2147483648
      %v6272 = vxor.u32 %v5727, 2147483648
      %v6273 = vxor.u32 %v5729, 2147483648
      %v6274 = vxor.u32 %v5920, 2147483648
      %v6275 = vxor.u32 %v5922, 2147483648
      %v6276 = vxor.u32 %v6098, 2147483648
      %v6277 = vxor.u32 %v5540, 2147483648
      %v6278 = vxor.u32 %v5542, 2147483648
      %v6279 = vxor.u32 %v5733, 2147483648
      %v6280 = vxor.u32 %v5735, 2147483648
      %v6281 = vxor.u32 %v5926, 2147483648
      %v6282 = vxor.u32 %v5928, 2147483648
      %v6283 = vxor.u32 %v6103, 2147483648
      %v6284 = vxor.u32 %v5544, 2147483648
      %v6285 = vxor.u32 %v5546, 2147483648
      %v6286 = vxor.u32 %v5737, 2147483648
      %v6287 = vxor.u32 %v5739, 2147483648
      %v6288 = vxor.u32 %v5930, 2147483648
      %v6289 = vxor.u32 %v5932, 2147483648
      %v6290 = vxor.u32 %v6106, 2147483648
      %v6291 = vxor.u32 %v5550, 2147483648
      %v6292 = vxor.u32 %v5552, 2147483648
      %v6293 = vxor.u32 %v5743, 2147483648
      %v6294 = vxor.u32 %v5745, 2147483648
      %v6295 = vxor.u32 %v5936, 2147483648
      %v6296 = vxor.u32 %v5938, 2147483648
      %v6297 = vxor.u32 %v6111, 2147483648
      %v6298 = vxor.u32 %v5554, 2147483648
      %v6299 = vxor.u32 %v5556, 2147483648
      %v6300 = vxor.u32 %v5747, 2147483648
      %v6301 = vxor.u32 %v5749, 2147483648
      %v6302 = vxor.u32 %v5940, 2147483648
      %v6303 = vxor.u32 %v5942, 2147483648
      %v6304 = vxor.u32 %v6114, 2147483648
      %v6305 = vxor.u32 %v5560, 2147483648
      %v6306 = vxor.u32 %v5562, 2147483648
      %v6307 = vxor.u32 %v5753, 2147483648
      %v6308 = vxor.u32 %v5755, 2147483648
      %v6309 = vxor.u32 %v5946, 2147483648
      %v6310 = vxor.u32 %v5948, 2147483648
      %v6311 = vxor.u32 %v6119, 2147483648
      %v6312 = vxor.u32 %v5564, 2147483648
      %v6313 = vxor.u32 %v5566, 2147483648
      %v6314 = vxor.u32 %v5757, 2147483648
      %v6315 = vxor.u32 %v5759, 2147483648
      %v6316 = vxor.u32 %v5950, 2147483648
      %v6317 = vxor.u32 %v5952, 2147483648
      %v6318 = vxor.u32 %v6122, 2147483648
      %v6319 = vxor.u32 %v5570, 2147483648
      %v6320 = vxor.u32 %v5572, 2147483648
      %v6321 = vxor.u32 %v5763, 2147483648
      %v6322 = vxor.u32 %v5765, 2147483648
      %v6323 = vxor.u32 %v5956, 2147483648
      %v6324 = vxor.u32 %v5958, 2147483648
      %v6325 = vxor.u32 %v6127, 2147483648
      %v6326 = vxor.u32 %v5574, 2147483648
      %v6327 = vxor.u32 %v5576, 2147483648
      %v6328 = vxor.u32 %v5767, 2147483648
      %v6329 = vxor.u32 %v5769, 2147483648
      %v6330 = vxor.u32 %v5960, 2147483648
      %v6331 = vxor.u32 %v5962, 2147483648
      %v6332 = vxor.u32 %v6130, 2147483648
      %v6333 = vxor.u32 %v5580, 2147483648
      %v6334 = vxor.u32 %v5582, 2147483648
      %v6335 = vxor.u32 %v5773, 2147483648
      %v6336 = vxor.u32 %v5775, 2147483648
      %v6337 = vxor.u32 %v5966, 2147483648
      %v6338 = vxor.u32 %v5968, 2147483648
      %v6339 = vxor.u32 %v6135, 2147483648
      %v6340 = vxor.u32 %v5584, 2147483648
      %v6341 = vxor.u32 %v5586, 2147483648
      %v6342 = vxor.u32 %v5777, 2147483648
      %v6343 = vxor.u32 %v5779, 2147483648
      %v6344 = vxor.u32 %v5970, 2147483648
      %v6345 = vxor.u32 %v5972, 2147483648
      %v6346 = vxor.u32 %v6138, 2147483648
      %v6347 = vxor.u32 %v5590, 2147483648
      %v6348 = vxor.u32 %v5592, 2147483648
      %v6349 = vxor.u32 %v5783, 2147483648
      %v6350 = vxor.u32 %v5785, 2147483648
      %v6351 = vxor.u32 %v5976, 2147483648
      %v6352 = vxor.u32 %v5978, 2147483648
      %v6353 = vxor.u32 %v6143, 2147483648
      %v6354 = vxor.u32 %v5594, 2147483648
      %v6355 = vxor.u32 %v5596, 2147483648
      %v6356 = vxor.u32 %v5787, 2147483648
      %v6357 = vxor.u32 %v5789, 2147483648
      %v6358 = vxor.u32 %v5980, 2147483648
      %v6359 = vxor.u32 %v5982, 2147483648
      %v6360 = vxor.u32 %v6146, 2147483648
      %v6361 = vxor.u32 %v5600, 2147483648
      %v6362 = vxor.u32 %v5602, 2147483648
      %v6363 = vxor.u32 %v5793, 2147483648
      %v6364 = vxor.u32 %v5795, 2147483648
      %v6365 = vxor.u32 %v5986, 2147483648
      %v6366 = vxor.u32 %v5988, 2147483648
      %v6367 = vxor.u32 %v6151, 2147483648
      %v6368 = vxor.u32 %v5604, 2147483648
      %v6369 = vxor.u32 %v5606, 2147483648
      %v6370 = vxor.u32 %v5797, 2147483648
      %v6371 = vxor.u32 %v5799, 2147483648
      %v6372 = vxor.u32 %v5990, 2147483648
      %v6373 = vxor.u32 %v5992, 2147483648
      %v6374 = vxor.u32 %v6154, 2147483648
      %v6375 = vxor.u32 %v5610, 2147483648
      %v6376 = vxor.u32 %v5612, 2147483648
      %v6377 = vxor.u32 %v5803, 2147483648
      %v6378 = vxor.u32 %v5805, 2147483648
      %v6379 = vxor.u32 %v5996, 2147483648
      %v6380 = vxor.u32 %v5998, 2147483648
      %v6381 = vxor.u32 %v6159, 2147483648
      %v6382 = vxor.u32 %v5614, 2147483648
      %v6383 = vxor.u32 %v5616, 2147483648
      %v6384 = vxor.u32 %v5807, 2147483648
      %v6385 = vxor.u32 %v5809, 2147483648
      %v6386 = vxor.u32 %v6000, 2147483648
      %v6387 = vxor.u32 %v6002, 2147483648
      %v6388 = vxor.u32 %v6162, 2147483648
      %v6389 = vmul.f32 %v6165, 1.442695
      %v6390 = vpow.pop %v6389
      %v6391 = vmul.f32 %v6166, 1.442695
      %v6392 = vpow.pop %v6391
      %v6393 = vmul.f32 %v6167, 1.442695
      %v6394 = vpow.pop %v6393
      %v6395 = vmul.f32 %v6168, 1.442695
      %v6396 = vpow.pop %v6395
      %v6397 = vmul.f32 %v6169, 1.442695
      %v6398 = vpow.pop %v6397
      %v6399 = vmul.f32 %v6170, 1.442695
      %v6400 = vpow.pop %v6399
      %v6401 = vmul.f32 %v6171, 1.442695
      %v6402 = vpow.pop %v6401
      %v6403 = vmul.f32 %v6172, 1.442695
      %v6404 = vpow.pop %v6403
      %v6405 = vmul.f32 %v6173, 1.442695
      %v6406 = vpow.pop %v6405
      %v6407 = vmul.f32 %v6174, 1.442695
      %v6408 = vpow.pop %v6407
      %v6409 = vmul.f32 %v6175, 1.442695
      %v6410 = vpow.pop %v6409
      %v6411 = vmul.f32 %v6176, 1.442695
      %v6412 = vpow.pop %v6411
      %v6413 = vmul.f32 %v6177, 1.442695
      %v6414 = vpow.pop %v6413
      %v6415 = vmul.f32 %v6178, 1.442695
      %v6416 = vpow.pop %v6415
      %v6417 = vmul.f32 %v6179, 1.442695
      %v6418 = vpow.pop %v6417
      %v6419 = vmul.f32 %v6180, 1.442695
      %v6420 = vpow.pop %v6419
      %v6421 = vmul.f32 %v6181, 1.442695
      %v6422 = vpow.pop %v6421
      %v6423 = vmul.f32 %v6182, 1.442695
      %v6424 = vpow.pop %v6423
      %v6425 = vmul.f32 %v6183, 1.442695
      %v6426 = vpow.pop %v6425
      %v6427 = vmul.f32 %v6184, 1.442695
      %v6428 = vpow.pop %v6427
      %v6429 = vmul.f32 %v6185, 1.442695
      %v6430 = vpow.pop %v6429
      %v6431 = vmul.f32 %v6186, 1.442695
      %v6432 = vpow.pop %v6431
      %v6433 = vmul.f32 %v6187, 1.442695
      %v6434 = vpow.pop %v6433
      %v6435 = vmul.f32 %v6188, 1.442695
      %v6436 = vpow.pop %v6435
      %v6437 = vmul.f32 %v6189, 1.442695
      %v6438 = vpow.pop %v6437
      %v6439 = vmul.f32 %v6190, 1.442695
      %v6440 = vpow.pop %v6439
      %v6441 = vmul.f32 %v6191, 1.442695
      %v6442 = vpow.pop %v6441
      %v6443 = vmul.f32 %v6192, 1.442695
      %v6444 = vpow.pop %v6443
      %v6445 = vmul.f32 %v6193, 1.442695
      %v6446 = vpow.pop %v6445
      %v6447 = vmul.f32 %v6194, 1.442695
      %v6448 = vpow.pop %v6447
      %v6449 = vmul.f32 %v6195, 1.442695
      %v6450 = vpow.pop %v6449
      %v6451 = vmul.f32 %v6196, 1.442695
      %v6452 = vpow.pop %v6451
      %v6453 = vmul.f32 %v6197, 1.442695
      %v6454 = vpow.pop %v6453
      %v6455 = vmul.f32 %v6198, 1.442695
      %v6456 = vpow.pop %v6455
      %v6457 = vmul.f32 %v6199, 1.442695
      %v6458 = vpow.pop %v6457
      %v6459 = vmul.f32 %v6200, 1.442695
      %v6460 = vpow.pop %v6459
      %v6461 = vmul.f32 %v6201, 1.442695
      %v6462 = vpow.pop %v6461
      %v6463 = vmul.f32 %v6202, 1.442695
      %v6464 = vpow.pop %v6463
      %v6465 = vmul.f32 %v6203, 1.442695
      %v6466 = vpow.pop %v6465
      %v6467 = vmul.f32 %v6204, 1.442695
      %v6468 = vpow.pop %v6467
      %v6469 = vmul.f32 %v6205, 1.442695
      %v6470 = vpow.pop %v6469
      %v6471 = vmul.f32 %v6206, 1.442695
      %v6472 = vpow.pop %v6471
      %v6473 = vmul.f32 %v6207, 1.442695
      %v6474 = vpow.pop %v6473
      %v6475 = vmul.f32 %v6208, 1.442695
      %v6476 = vpow.pop %v6475
      %v6477 = vmul.f32 %v6209, 1.442695
      %v6478 = vpow.pop %v6477
      %v6479 = vmul.f32 %v6210, 1.442695
      %v6480 = vpow.pop %v6479
      %v6481 = vmul.f32 %v6211, 1.442695
      %v6482 = vpow.pop %v6481
      %v6483 = vmul.f32 %v6212, 1.442695
      %v6484 = vpow.pop %v6483
      %v6485 = vmul.f32 %v6213, 1.442695
      %v6486 = vpow.pop %v6485
      %v6487 = vmul.f32 %v6214, 1.442695
      %v6488 = vpow.pop %v6487
      %v6489 = vmul.f32 %v6215, 1.442695
      %v6490 = vpow.pop %v6489
      %v6491 = vmul.f32 %v6216, 1.442695
      %v6492 = vpow.pop %v6491
      %v6493 = vmul.f32 %v6217, 1.442695
      %v6494 = vpow.pop %v6493
      %v6495 = vmul.f32 %v6218, 1.442695
      %v6496 = vpow.pop %v6495
      %v6497 = vmul.f32 %v6219, 1.442695
      %v6498 = vpow.pop %v6497
      %v6499 = vmul.f32 %v6220, 1.442695
      %v6500 = vpow.pop %v6499
      %v6501 = vmul.f32 %v6221, 1.442695
      %v6502 = vpow.pop %v6501
      %v6503 = vmul.f32 %v6222, 1.442695
      %v6504 = vpow.pop %v6503
      %v6505 = vmul.f32 %v6223, 1.442695
      %v6506 = vpow.pop %v6505
      %v6507 = vmul.f32 %v6224, 1.442695
      %v6508 = vpow.pop %v6507
      %v6509 = vmul.f32 %v6225, 1.442695
      %v6510 = vpow.pop %v6509
      %v6511 = vmul.f32 %v6226, 1.442695
      %v6512 = vpow.pop %v6511
      %v6513 = vmul.f32 %v6227, 1.442695
      %v6514 = vpow.pop %v6513
      %v6515 = vmul.f32 %v6228, 1.442695
      %v6516 = vpow.pop %v6515
      %v6517 = vmul.f32 %v6229, 1.442695
      %v6518 = vpow.pop %v6517
      %v6519 = vmul.f32 %v6230, 1.442695
      %v6520 = vpow.pop %v6519
      %v6521 = vmul.f32 %v6231, 1.442695
      %v6522 = vpow.pop %v6521
      %v6523 = vmul.f32 %v6232, 1.442695
      %v6524 = vpow.pop %v6523
      %v6525 = vmul.f32 %v6233, 1.442695
      %v6526 = vpow.pop %v6525
      %v6527 = vmul.f32 %v6234, 1.442695
      %v6528 = vpow.pop %v6527
      %v6529 = vmul.f32 %v6235, 1.442695
      %v6530 = vpow.pop %v6529
      %v6531 = vmul.f32 %v6236, 1.442695
      %v6532 = vpow.pop %v6531
      %v6533 = vmul.f32 %v6237, 1.442695
      %v6534 = vpow.pop %v6533
      %v6535 = vmul.f32 %v6238, 1.442695
      %v6536 = vpow.pop %v6535
      %v6537 = vmul.f32 %v6239, 1.442695
      %v6538 = vpow.pop %v6537
      %v6539 = vmul.f32 %v6240, 1.442695
      %v6540 = vpow.pop %v6539
      %v6541 = vmul.f32 %v6241, 1.442695
      %v6542 = vpow.pop %v6541
      %v6543 = vmul.f32 %v6242, 1.442695
      %v6544 = vpow.pop %v6543
      %v6545 = vmul.f32 %v6243, 1.442695
      %v6546 = vpow.pop %v6545
      %v6547 = vmul.f32 %v6244, 1.442695
      %v6548 = vpow.pop %v6547
      %v6549 = vmul.f32 %v6245, 1.442695
      %v6550 = vpow.pop %v6549
      %v6551 = vmul.f32 %v6246, 1.442695
      %v6552 = vpow.pop %v6551
      %v6553 = vmul.f32 %v6247, 1.442695
      %v6554 = vpow.pop %v6553
      %v6555 = vmul.f32 %v6248, 1.442695
      %v6556 = vpow.pop %v6555
      %v6557 = vmul.f32 %v6249, 1.442695
      %v6558 = vpow.pop %v6557
      %v6559 = vmul.f32 %v6250, 1.442695
      %v6560 = vpow.pop %v6559
      %v6561 = vmul.f32 %v6251, 1.442695
      %v6562 = vpow.pop %v6561
      %v6563 = vmul.f32 %v6252, 1.442695
      %v6564 = vpow.pop %v6563
      %v6565 = vmul.f32 %v6253, 1.442695
      %v6566 = vpow.pop %v6565
      %v6567 = vmul.f32 %v6254, 1.442695
      %v6568 = vpow.pop %v6567
      %v6569 = vmul.f32 %v6255, 1.442695
      %v6570 = vpow.pop %v6569
      %v6571 = vmul.f32 %v6256, 1.442695
      %v6572 = vpow.pop %v6571
      %v6573 = vmul.f32 %v6257, 1.442695
      %v6574 = vpow.pop %v6573
      %v6575 = vmul.f32 %v6258, 1.442695
      %v6576 = vpow.pop %v6575
      %v6577 = vmul.f32 %v6259, 1.442695
      %v6578 = vpow.pop %v6577
      %v6579 = vmul.f32 %v6260, 1.442695
      %v6580 = vpow.pop %v6579
      %v6581 = vmul.f32 %v6261, 1.442695
      %v6582 = vpow.pop %v6581
      %v6583 = vmul.f32 %v6262, 1.442695
      %v6584 = vpow.pop %v6583
      %v6585 = vmul.f32 %v6263, 1.442695
      %v6586 = vpow.pop %v6585
      %v6587 = vmul.f32 %v6264, 1.442695
      %v6588 = vpow.pop %v6587
      %v6589 = vmul.f32 %v6265, 1.442695
      %v6590 = vpow.pop %v6589
      %v6591 = vmul.f32 %v6266, 1.442695
      %v6592 = vpow.pop %v6591
      %v6593 = vmul.f32 %v6267, 1.442695
      %v6594 = vpow.pop %v6593
      %v6595 = vmul.f32 %v6268, 1.442695
      %v6596 = vpow.pop %v6595
      %v6597 = vmul.f32 %v6269, 1.442695
      %v6598 = vpow.pop %v6597
      %v6599 = vmul.f32 %v6270, 1.442695
      %v6600 = vpow.pop %v6599
      %v6601 = vmul.f32 %v6271, 1.442695
      %v6602 = vpow.pop %v6601
      %v6603 = vmul.f32 %v6272, 1.442695
      %v6604 = vpow.pop %v6603
      %v6605 = vmul.f32 %v6273, 1.442695
      %v6606 = vpow.pop %v6605
      %v6607 = vmul.f32 %v6274, 1.442695
      %v6608 = vpow.pop %v6607
      %v6609 = vmul.f32 %v6275, 1.442695
      %v6610 = vpow.pop %v6609
      %v6611 = vmul.f32 %v6276, 1.442695
      %v6612 = vpow.pop %v6611
      %v6613 = vmul.f32 %v6277, 1.442695
      %v6614 = vpow.pop %v6613
      %v6615 = vmul.f32 %v6278, 1.442695
      %v6616 = vpow.pop %v6615
      %v6617 = vmul.f32 %v6279, 1.442695
      %v6618 = vpow.pop %v6617
      %v6619 = vmul.f32 %v6280, 1.442695
      %v6620 = vpow.pop %v6619
      %v6621 = vmul.f32 %v6281, 1.442695
      %v6622 = vpow.pop %v6621
      %v6623 = vmul.f32 %v6282, 1.442695
      %v6624 = vpow.pop %v6623
      %v6625 = vmul.f32 %v6283, 1.442695
      %v6626 = vpow.pop %v6625
      %v6627 = vmul.f32 %v6284, 1.442695
      %v6628 = vpow.pop %v6627
      %v6629 = vmul.f32 %v6285, 1.442695
      %v6630 = vpow.pop %v6629
      %v6631 = vmul.f32 %v6286, 1.442695
      %v6632 = vpow.pop %v6631
      %v6633 = vmul.f32 %v6287, 1.442695
      %v6634 = vpow.pop %v6633
      %v6635 = vmul.f32 %v6288, 1.442695
      %v6636 = vpow.pop %v6635
      %v6637 = vmul.f32 %v6289, 1.442695
      %v6638 = vpow.pop %v6637
      %v6639 = vmul.f32 %v6290, 1.442695
      %v6640 = vpow.pop %v6639
      %v6641 = vmul.f32 %v6291, 1.442695
      %v6642 = vpow.pop %v6641
      %v6643 = vmul.f32 %v6292, 1.442695
      %v6644 = vpow.pop %v6643
      %v6645 = vmul.f32 %v6293, 1.442695
      %v6646 = vpow.pop %v6645
      %v6647 = vmul.f32 %v6294, 1.442695
      %v6648 = vpow.pop %v6647
      %v6649 = vmul.f32 %v6295, 1.442695
      %v6650 = vpow.pop %v6649
      %v6651 = vmul.f32 %v6296, 1.442695
      %v6652 = vpow.pop %v6651
      %v6653 = vmul.f32 %v6297, 1.442695
      %v6654 = vpow.pop %v6653
      %v6655 = vmul.f32 %v6298, 1.442695
      %v6656 = vpow.pop %v6655
      %v6657 = vmul.f32 %v6299, 1.442695
      %v6658 = vpow.pop %v6657
      %v6659 = vmul.f32 %v6300, 1.442695
      %v6660 = vpow.pop %v6659
      %v6661 = vmul.f32 %v6301, 1.442695
      %v6662 = vpow.pop %v6661
      %v6663 = vmul.f32 %v6302, 1.442695
      %v6664 = vpow.pop %v6663
      %v6665 = vmul.f32 %v6303, 1.442695
      %v6666 = vpow.pop %v6665
      %v6667 = vmul.f32 %v6304, 1.442695
      %v6668 = vpow.pop %v6667
      %v6669 = vmul.f32 %v6305, 1.442695
      %v6670 = vpow.pop %v6669
      %v6671 = vmul.f32 %v6306, 1.442695
      %v6672 = vpow.pop %v6671
      %v6673 = vmul.f32 %v6307, 1.442695
      %v6674 = vpow.pop %v6673
      %v6675 = vmul.f32 %v6308, 1.442695
      %v6676 = vpow.pop %v6675
      %v6677 = vmul.f32 %v6309, 1.442695
      %v6678 = vpow.pop %v6677
      %v6679 = vmul.f32 %v6310, 1.442695
      %v6680 = vpow.pop %v6679
      %v6681 = vmul.f32 %v6311, 1.442695
      %v6682 = vpow.pop %v6681
      %v6683 = vmul.f32 %v6312, 1.442695
      %v6684 = vpow.pop %v6683
      %v6685 = vmul.f32 %v6313, 1.442695
      %v6686 = vpow.pop %v6685
      %v6687 = vmul.f32 %v6314, 1.442695
      %v6688 = vpow.pop %v6687
      %v6689 = vmul.f32 %v6315, 1.442695
      %v6690 = vpow.pop %v6689
      %v6691 = vmul.f32 %v6316, 1.442695
      %v6692 = vpow.pop %v6691
      %v6693 = vmul.f32 %v6317, 1.442695
      %v6694 = vpow.pop %v6693
      %v6695 = vmul.f32 %v6318, 1.442695
      %v6696 = vpow.pop %v6695
      %v6697 = vmul.f32 %v6319, 1.442695
      %v6698 = vpow.pop %v6697
      %v6699 = vmul.f32 %v6320, 1.442695
      %v6700 = vpow.pop %v6699
      %v6701 = vmul.f32 %v6321, 1.442695
      %v6702 = vpow.pop %v6701
      %v6703 = vmul.f32 %v6322, 1.442695
      %v6704 = vpow.pop %v6703
      %v6705 = vmul.f32 %v6323, 1.442695
      %v6706 = vpow.pop %v6705
      %v6707 = vmul.f32 %v6324, 1.442695
      %v6708 = vpow.pop %v6707
      %v6709 = vmul.f32 %v6325, 1.442695
      %v6710 = vpow.pop %v6709
      %v6711 = vmul.f32 %v6326, 1.442695
      %v6712 = vpow.pop %v6711
      %v6713 = vmul.f32 %v6327, 1.442695
      %v6714 = vpow.pop %v6713
      %v6715 = vmul.f32 %v6328, 1.442695
      %v6716 = vpow.pop %v6715
      %v6717 = vmul.f32 %v6329, 1.442695
      %v6718 = vpow.pop %v6717
      %v6719 = vmul.f32 %v6330, 1.442695
      %v6720 = vpow.pop %v6719
      %v6721 = vmul.f32 %v6331, 1.442695
      %v6722 = vpow.pop %v6721
      %v6723 = vmul.f32 %v6332, 1.442695
      %v6724 = vpow.pop %v6723
      %v6725 = vmul.f32 %v6333, 1.442695
      %v6726 = vpow.pop %v6725
      %v6727 = vmul.f32 %v6334, 1.442695
      %v6728 = vpow.pop %v6727
      %v6729 = vmul.f32 %v6335, 1.442695
      %v6730 = vpow.pop %v6729
      %v6731 = vmul.f32 %v6336, 1.442695
      %v6732 = vpow.pop %v6731
      %v6733 = vmul.f32 %v6337, 1.442695
      %v6734 = vpow.pop %v6733
      %v6735 = vmul.f32 %v6338, 1.442695
      %v6736 = vpow.pop %v6735
      %v6737 = vmul.f32 %v6339, 1.442695
      %v6738 = vpow.pop %v6737
      %v6739 = vmul.f32 %v6340, 1.442695
      %v6740 = vpow.pop %v6739
      %v6741 = vmul.f32 %v6341, 1.442695
      %v6742 = vpow.pop %v6741
      %v6743 = vmul.f32 %v6342, 1.442695
      %v6744 = vpow.pop %v6743
      %v6745 = vmul.f32 %v6343, 1.442695
      %v6746 = vpow.pop %v6745
      %v6747 = vmul.f32 %v6344, 1.442695
      %v6748 = vpow.pop %v6747
      %v6749 = vmul.f32 %v6345, 1.442695
      %v6750 = vpow.pop %v6749
      %v6751 = vmul.f32 %v6346, 1.442695
      %v6752 = vpow.pop %v6751
      %v6753 = vmul.f32 %v6347, 1.442695
      %v6754 = vpow.pop %v6753
      %v6755 = vmul.f32 %v6348, 1.442695
      %v6756 = vpow.pop %v6755
      %v6757 = vmul.f32 %v6349, 1.442695
      %v6758 = vpow.pop %v6757
      %v6759 = vmul.f32 %v6350, 1.442695
      %v6760 = vpow.pop %v6759
      %v6761 = vmul.f32 %v6351, 1.442695
      %v6762 = vpow.pop %v6761
      %v6763 = vmul.f32 %v6352, 1.442695
      %v6764 = vpow.pop %v6763
      %v6765 = vmul.f32 %v6353, 1.442695
      %v6766 = vpow.pop %v6765
      %v6767 = vmul.f32 %v6354, 1.442695
      %v6768 = vpow.pop %v6767
      %v6769 = vmul.f32 %v6355, 1.442695
      %v6770 = vpow.pop %v6769
      %v6771 = vmul.f32 %v6356, 1.442695
      %v6772 = vpow.pop %v6771
      %v6773 = vmul.f32 %v6357, 1.442695
      %v6774 = vpow.pop %v6773
      %v6775 = vmul.f32 %v6358, 1.442695
      %v6776 = vpow.pop %v6775
      %v6777 = vmul.f32 %v6359, 1.442695
      %v6778 = vpow.pop %v6777
      %v6779 = vmul.f32 %v6360, 1.442695
      %v6780 = vpow.pop %v6779
      %v6781 = vmul.f32 %v6361, 1.442695
      %v6782 = vpow.pop %v6781
      %v6783 = vmul.f32 %v6362, 1.442695
      %v6784 = vpow.pop %v6783
      %v6785 = vmul.f32 %v6363, 1.442695
      %v6786 = vpow.pop %v6785
      %v6787 = vmul.f32 %v6364, 1.442695
      %v6788 = vpow.pop %v6787
      %v6789 = vmul.f32 %v6365, 1.442695
      %v6790 = vpow.pop %v6789
      %v6791 = vmul.f32 %v6366, 1.442695
      %v6792 = vpow.pop %v6791
      %v6793 = vmul.f32 %v6367, 1.442695
      %v6794 = vpow.pop %v6793
      %v6795 = vmul.f32 %v6368, 1.442695
      %v6796 = vpow.pop %v6795
      %v6797 = vmul.f32 %v6369, 1.442695
      %v6798 = vpow.pop %v6797
      %v6799 = vmul.f32 %v6370, 1.442695
      %v6800 = vpow.pop %v6799
      %v6801 = vmul.f32 %v6371, 1.442695
      %v6802 = vpow.pop %v6801
      %v6803 = vmul.f32 %v6372, 1.442695
      %v6804 = vpow.pop %v6803
      %v6805 = vmul.f32 %v6373, 1.442695
      %v6806 = vpow.pop %v6805
      %v6807 = vmul.f32 %v6374, 1.442695
      %v6808 = vpow.pop %v6807
      %v6809 = vmul.f32 %v6375, 1.442695
      %v6810 = vpow.pop %v6809
      %v6811 = vmul.f32 %v6376, 1.442695
      %v6812 = vpow.pop %v6811
      %v6813 = vmul.f32 %v6377, 1.442695
      %v6814 = vpow.pop %v6813
      %v6815 = vmul.f32 %v6378, 1.442695
      %v6816 = vpow.pop %v6815
      %v6817 = vmul.f32 %v6379, 1.442695
      %v6818 = vpow.pop %v6817
      %v6819 = vmul.f32 %v6380, 1.442695
      %v6820 = vpow.pop %v6819
      %v6821 = vmul.f32 %v6381, 1.442695
      %v6822 = vpow.pop %v6821
      %v6823 = vmul.f32 %v6382, 1.442695
      %v6824 = vpow.pop %v6823
      %v6825 = vmul.f32 %v6383, 1.442695
      %v6826 = vpow.pop %v6825
      %v6827 = vmul.f32 %v6384, 1.442695
      %v6828 = vpow.pop %v6827
      %v6829 = vmul.f32 %v6385, 1.442695
      %v6830 = vpow.pop %v6829
      %v6831 = vmul.f32 %v6386, 1.442695
      %v6832 = vpow.pop %v6831
      %v6833 = vmul.f32 %v6387, 1.442695
      %v6834 = vpow.pop %v6833
      %v6835 = vmul.f32 %v6388, 1.442695
      %v6836 = vpow.pop %v6835
      %v6837 = vadd.f32 %v6390, 1.0
      %v6838 = vadd.f32 %v6392, 1.0
      %v6839 = vadd.f32 %v6394, 1.0
      %v6840 = vadd.f32 %v6396, 1.0
      %v6841 = vadd.f32 %v6398, 1.0
      %v6842 = vadd.f32 %v6400, 1.0
      %v6843 = vadd.f32 %v6402, 1.0
      %v6844 = vadd.f32 %v6404, 1.0
      %v6845 = vadd.f32 %v6406, 1.0
      %v6846 = vadd.f32 %v6408, 1.0
      %v6847 = vadd.f32 %v6410, 1.0
      %v6848 = vadd.f32 %v6412, 1.0
      %v6849 = vadd.f32 %v6414, 1.0
      %v6850 = vadd.f32 %v6416, 1.0
      %v6851 = vadd.f32 %v6418, 1.0
      %v6852 = vadd.f32 %v6420, 1.0
      %v6853 = vadd.f32 %v6422, 1.0
      %v6854 = vadd.f32 %v6424, 1.0
      %v6855 = vadd.f32 %v6426, 1.0
      %v6856 = vadd.f32 %v6428, 1.0
      %v6857 = vadd.f32 %v6430, 1.0
      %v6858 = vadd.f32 %v6432, 1.0
      %v6859 = vadd.f32 %v6434, 1.0
      %v6860 = vadd.f32 %v6436, 1.0
      %v6861 = vadd.f32 %v6438, 1.0
      %v6862 = vadd.f32 %v6440, 1.0
      %v6863 = vadd.f32 %v6442, 1.0
      %v6864 = vadd.f32 %v6444, 1.0
      %v6865 = vadd.f32 %v6446, 1.0
      %v6866 = vadd.f32 %v6448, 1.0
      %v6867 = vadd.f32 %v6450, 1.0
      %v6868 = vadd.f32 %v6452, 1.0
      %v6869 = vadd.f32 %v6454, 1.0
      %v6870 = vadd.f32 %v6456, 1.0
      %v6871 = vadd.f32 %v6458, 1.0
      %v6872 = vadd.f32 %v6460, 1.0
      %v6873 = vadd.f32 %v6462, 1.0
      %v6874 = vadd.f32 %v6464, 1.0
      %v6875 = vadd.f32 %v6466, 1.0
      %v6876 = vadd.f32 %v6468, 1.0
      %v6877 = vadd.f32 %v6470, 1.0
      %v6878 = vadd.f32 %v6472, 1.0
      %v6879 = vadd.f32 %v6474, 1.0
      %v6880 = vadd.f32 %v6476, 1.0
      %v6881 = vadd.f32 %v6478, 1.0
      %v6882 = vadd.f32 %v6480, 1.0
      %v6883 = vadd.f32 %v6482, 1.0
      %v6884 = vadd.f32 %v6484, 1.0
      %v6885 = vadd.f32 %v6486, 1.0
      %v6886 = vadd.f32 %v6488, 1.0
      %v6887 = vadd.f32 %v6490, 1.0
      %v6888 = vadd.f32 %v6492, 1.0
      %v6889 = vadd.f32 %v6494, 1.0
      %v6890 = vadd.f32 %v6496, 1.0
      %v6891 = vadd.f32 %v6498, 1.0
      %v6892 = vadd.f32 %v6500, 1.0
      %v6893 = vadd.f32 %v6502, 1.0
      %v6894 = vadd.f32 %v6504, 1.0
      %v6895 = vadd.f32 %v6506, 1.0
      %v6896 = vadd.f32 %v6508, 1.0
      %v6897 = vadd.f32 %v6510, 1.0
      %v6898 = vadd.f32 %v6512, 1.0
      %v6899 = vadd.f32 %v6514, 1.0
      %v6900 = vadd.f32 %v6516, 1.0
      %v6901 = vadd.f32 %v6518, 1.0
      %v6902 = vadd.f32 %v6520, 1.0
      %v6903 = vadd.f32 %v6522, 1.0
      %v6904 = vadd.f32 %v6524, 1.0
      %v6905 = vadd.f32 %v6526, 1.0
      %v6906 = vadd.f32 %v6528, 1.0
      %v6907 = vadd.f32 %v6530, 1.0
      %v6908 = vadd.f32 %v6532, 1.0
      %v6909 = vadd.f32 %v6534, 1.0
      %v6910 = vadd.f32 %v6536, 1.0
      %v6911 = vadd.f32 %v6538, 1.0
      %v6912 = vadd.f32 %v6540, 1.0
      %v6913 = vadd.f32 %v6542, 1.0
      %v6914 = vadd.f32 %v6544, 1.0
      %v6915 = vadd.f32 %v6546, 1.0
      %v6916 = vadd.f32 %v6548, 1.0
      %v6917 = vadd.f32 %v6550, 1.0
      %v6918 = vadd.f32 %v6552, 1.0
      %v6919 = vadd.f32 %v6554, 1.0
      %v6920 = vadd.f32 %v6556, 1.0
      %v6921 = vadd.f32 %v6558, 1.0
      %v6922 = vadd.f32 %v6560, 1.0
      %v6923 = vadd.f32 %v6562, 1.0
      %v6924 = vadd.f32 %v6564, 1.0
      %v6925 = vadd.f32 %v6566, 1.0
      %v6926 = vadd.f32 %v6568, 1.0
      %v6927 = vadd.f32 %v6570, 1.0
      %v6928 = vadd.f32 %v6572, 1.0
      %v6929 = vadd.f32 %v6574, 1.0
      %v6930 = vadd.f32 %v6576, 1.0
      %v6931 = vadd.f32 %v6578, 1.0
      %v6932 = vadd.f32 %v6580, 1.0
      %v6933 = vadd.f32 %v6582, 1.0
      %v6934 = vadd.f32 %v6584, 1.0
      %v6935 = vadd.f32 %v6586, 1.0
      %v6936 = vadd.f32 %v6588, 1.0
      %v6937 = vadd.f32 %v6590, 1.0
      %v6938 = vadd.f32 %v6592, 1.0
      %v6939 = vadd.f32 %v6594, 1.0
      %v6940 = vadd.f32 %v6596, 1.0
      %v6941 = vadd.f32 %v6598, 1.0
      %v6942 = vadd.f32 %v6600, 1.0
      %v6943 = vadd.f32 %v6602, 1.0
      %v6944 = vadd.f32 %v6604, 1.0
      %v6945 = vadd.f32 %v6606, 1.0
      %v6946 = vadd.f32 %v6608, 1.0
      %v6947 = vadd.f32 %v6610, 1.0
      %v6948 = vadd.f32 %v6612, 1.0
      %v6949 = vadd.f32 %v6614, 1.0
      %v6950 = vadd.f32 %v6616, 1.0
      %v6951 = vadd.f32 %v6618, 1.0
      %v6952 = vadd.f32 %v6620, 1.0
      %v6953 = vadd.f32 %v6622, 1.0
      %v6954 = vadd.f32 %v6624, 1.0
      %v6955 = vadd.f32 %v6626, 1.0
      %v6956 = vadd.f32 %v6628, 1.0
      %v6957 = vadd.f32 %v6630, 1.0
      %v6958 = vadd.f32 %v6632, 1.0
      %v6959 = vadd.f32 %v6634, 1.0
      %v6960 = vadd.f32 %v6636, 1.0
      %v6961 = vadd.f32 %v6638, 1.0
      %v6962 = vadd.f32 %v6640, 1.0
      %v6963 = vadd.f32 %v6642, 1.0
      %v6964 = vadd.f32 %v6644, 1.0
      %v6965 = vadd.f32 %v6646, 1.0
      %v6966 = vadd.f32 %v6648, 1.0
      %v6967 = vadd.f32 %v6650, 1.0
      %v6968 = vadd.f32 %v6652, 1.0
      %v6969 = vadd.f32 %v6654, 1.0
      %v6970 = vadd.f32 %v6656, 1.0
      %v6971 = vadd.f32 %v6658, 1.0
      %v6972 = vadd.f32 %v6660, 1.0
      %v6973 = vadd.f32 %v6662, 1.0
      %v6974 = vadd.f32 %v6664, 1.0
      %v6975 = vadd.f32 %v6666, 1.0
      %v6976 = vadd.f32 %v6668, 1.0
      %v6977 = vadd.f32 %v6670, 1.0
      %v6978 = vadd.f32 %v6672, 1.0
      %v6979 = vadd.f32 %v6674, 1.0
      %v6980 = vadd.f32 %v6676, 1.0
      %v6981 = vadd.f32 %v6678, 1.0
      %v6982 = vadd.f32 %v6680, 1.0
      %v6983 = vadd.f32 %v6682, 1.0
      %v6984 = vadd.f32 %v6684, 1.0
      %v6985 = vadd.f32 %v6686, 1.0
      %v6986 = vadd.f32 %v6688, 1.0
      %v6987 = vadd.f32 %v6690, 1.0
      %v6988 = vadd.f32 %v6692, 1.0
      %v6989 = vadd.f32 %v6694, 1.0
      %v6990 = vadd.f32 %v6696, 1.0
      %v6991 = vadd.f32 %v6698, 1.0
      %v6992 = vadd.f32 %v6700, 1.0
      %v6993 = vadd.f32 %v6702, 1.0
      %v6994 = vadd.f32 %v6704, 1.0
      %v6995 = vadd.f32 %v6706, 1.0
      %v6996 = vadd.f32 %v6708, 1.0
      %v6997 = vadd.f32 %v6710, 1.0
      %v6998 = vadd.f32 %v6712, 1.0
      %v6999 = vadd.f32 %v6714, 1.0
      %v7000 = vadd.f32 %v6716, 1.0
      %v7001 = vadd.f32 %v6718, 1.0
      %v7002 = vadd.f32 %v6720, 1.0
      %v7003 = vadd.f32 %v6722, 1.0
      %v7004 = vadd.f32 %v6724, 1.0
      %v7005 = vadd.f32 %v6726, 1.0
      %v7006 = vadd.f32 %v6728, 1.0
      %v7007 = vadd.f32 %v6730, 1.0
      %v7008 = vadd.f32 %v6732, 1.0
      %v7009 = vadd.f32 %v6734, 1.0
      %v7010 = vadd.f32 %v6736, 1.0
      %v7011 = vadd.f32 %v6738, 1.0
      %v7012 = vadd.f32 %v6740, 1.0
      %v7013 = vadd.f32 %v6742, 1.0
      %v7014 = vadd.f32 %v6744, 1.0
      %v7015 = vadd.f32 %v6746, 1.0
      %v7016 = vadd.f32 %v6748, 1.0
      %v7017 = vadd.f32 %v6750, 1.0
      %v7018 = vadd.f32 %v6752, 1.0
      %v7019 = vadd.f32 %v6754, 1.0
      %v7020 = vadd.f32 %v6756, 1.0
      %v7021 = vadd.f32 %v6758, 1.0
      %v7022 = vadd.f32 %v6760, 1.0
      %v7023 = vadd.f32 %v6762, 1.0
      %v7024 = vadd.f32 %v6764, 1.0
      %v7025 = vadd.f32 %v6766, 1.0
      %v7026 = vadd.f32 %v6768, 1.0
      %v7027 = vadd.f32 %v6770, 1.0
      %v7028 = vadd.f32 %v6772, 1.0
      %v7029 = vadd.f32 %v6774, 1.0
      %v7030 = vadd.f32 %v6776, 1.0
      %v7031 = vadd.f32 %v6778, 1.0
      %v7032 = vadd.f32 %v6780, 1.0
      %v7033 = vadd.f32 %v6782, 1.0
      %v7034 = vadd.f32 %v6784, 1.0
      %v7035 = vadd.f32 %v6786, 1.0
      %v7036 = vadd.f32 %v6788, 1.0
      %v7037 = vadd.f32 %v6790, 1.0
      %v7038 = vadd.f32 %v6792, 1.0
      %v7039 = vadd.f32 %v6794, 1.0
      %v7040 = vadd.f32 %v6796, 1.0
      %v7041 = vadd.f32 %v6798, 1.0
      %v7042 = vadd.f32 %v6800, 1.0
      %v7043 = vadd.f32 %v6802, 1.0
      %v7044 = vadd.f32 %v6804, 1.0
      %v7045 = vadd.f32 %v6806, 1.0
      %v7046 = vadd.f32 %v6808, 1.0
      %v7047 = vadd.f32 %v6810, 1.0
      %v7048 = vadd.f32 %v6812, 1.0
      %v7049 = vadd.f32 %v6814, 1.0
      %v7050 = vadd.f32 %v6816, 1.0
      %v7051 = vadd.f32 %v6818, 1.0
      %v7052 = vadd.f32 %v6820, 1.0
      %v7053 = vadd.f32 %v6822, 1.0
      %v7054 = vadd.f32 %v6824, 1.0
      %v7055 = vadd.f32 %v6826, 1.0
      %v7056 = vadd.f32 %v6828, 1.0
      %v7057 = vadd.f32 %v6830, 1.0
      %v7058 = vadd.f32 %v6832, 1.0
      %v7059 = vadd.f32 %v6834, 1.0
      %v7060 = vadd.f32 %v6836, 1.0
      %v7061 = vrcp.pop %v6837
      %v7062 = vmul.f32 1.0, %v7061
      %v7063 = vrcp.pop %v6838
      %v7064 = vmul.f32 1.0, %v7063
      %v7065 = vrcp.pop %v6839
      %v7066 = vmul.f32 1.0, %v7065
      %v7067 = vrcp.pop %v6840
      %v7068 = vmul.f32 1.0, %v7067
      %v7069 = vrcp.pop %v6841
      %v7070 = vmul.f32 1.0, %v7069
      %v7071 = vrcp.pop %v6842
      %v7072 = vmul.f32 1.0, %v7071
      %v7073 = vrcp.pop %v6843
      %v7074 = vmul.f32 1.0, %v7073
      %v7075 = vrcp.pop %v6844
      %v7076 = vmul.f32 1.0, %v7075
      %v7077 = vrcp.pop %v6845
      %v7078 = vmul.f32 1.0, %v7077
      %v7079 = vrcp.pop %v6846
      %v7080 = vmul.f32 1.0, %v7079
      %v7081 = vrcp.pop %v6847
      %v7082 = vmul.f32 1.0, %v7081
      %v7083 = vrcp.pop %v6848
      %v7084 = vmul.f32 1.0, %v7083
      %v7085 = vrcp.pop %v6849
      %v7086 = vmul.f32 1.0, %v7085
      %v7087 = vrcp.pop %v6850
      %v7088 = vmul.f32 1.0, %v7087
      %v7089 = vrcp.pop %v6851
      %v7090 = vmul.f32 1.0, %v7089
      %v7091 = vrcp.pop %v6852
      %v7092 = vmul.f32 1.0, %v7091
      %v7093 = vrcp.pop %v6853
      %v7094 = vmul.f32 1.0, %v7093
      %v7095 = vrcp.pop %v6854
      %v7096 = vmul.f32 1.0, %v7095
      %v7097 = vrcp.pop %v6855
      %v7098 = vmul.f32 1.0, %v7097
      %v7099 = vrcp.pop %v6856
      %v7100 = vmul.f32 1.0, %v7099
      %v7101 = vrcp.pop %v6857
      %v7102 = vmul.f32 1.0, %v7101
      %v7103 = vrcp.pop %v6858
      %v7104 = vmul.f32 1.0, %v7103
      %v7105 = vrcp.pop %v6859
      %v7106 = vmul.f32 1.0, %v7105
      %v7107 = vrcp.pop %v6860
      %v7108 = vmul.f32 1.0, %v7107
      %v7109 = vrcp.pop %v6861
      %v7110 = vmul.f32 1.0, %v7109
      %v7111 = vrcp.pop %v6862
      %v7112 = vmul.f32 1.0, %v7111
      %v7113 = vrcp.pop %v6863
      %v7114 = vmul.f32 1.0, %v7113
      %v7115 = vrcp.pop %v6864
      %v7116 = vmul.f32 1.0, %v7115
      %v7117 = vrcp.pop %v6865
      %v7118 = vmul.f32 1.0, %v7117
      %v7119 = vrcp.pop %v6866
      %v7120 = vmul.f32 1.0, %v7119
      %v7121 = vrcp.pop %v6867
      %v7122 = vmul.f32 1.0, %v7121
      %v7123 = vrcp.pop %v6868
      %v7124 = vmul.f32 1.0, %v7123
      %v7125 = vrcp.pop %v6869
      %v7126 = vmul.f32 1.0, %v7125
      %v7127 = vrcp.pop %v6870
      %v7128 = vmul.f32 1.0, %v7127
      %v7129 = vrcp.pop %v6871
      %v7130 = vmul.f32 1.0, %v7129
      %v7131 = vrcp.pop %v6872
      %v7132 = vmul.f32 1.0, %v7131
      %v7133 = vrcp.pop %v6873
      %v7134 = vmul.f32 1.0, %v7133
      %v7135 = vrcp.pop %v6874
      %v7136 = vmul.f32 1.0, %v7135
      %v7137 = vrcp.pop %v6875
      %v7138 = vmul.f32 1.0, %v7137
      %v7139 = vrcp.pop %v6876
      %v7140 = vmul.f32 1.0, %v7139
      %v7141 = vrcp.pop %v6877
      %v7142 = vmul.f32 1.0, %v7141
      %v7143 = vrcp.pop %v6878
      %v7144 = vmul.f32 1.0, %v7143
      %v7145 = vrcp.pop %v6879
      %v7146 = vmul.f32 1.0, %v7145
      %v7147 = vrcp.pop %v6880
      %v7148 = vmul.f32 1.0, %v7147
      %v7149 = vrcp.pop %v6881
      %v7150 = vmul.f32 1.0, %v7149
      %v7151 = vrcp.pop %v6882
      %v7152 = vmul.f32 1.0, %v7151
      %v7153 = vrcp.pop %v6883
      %v7154 = vmul.f32 1.0, %v7153
      %v7155 = vrcp.pop %v6884
      %v7156 = vmul.f32 1.0, %v7155
      %v7157 = vrcp.pop %v6885
      %v7158 = vmul.f32 1.0, %v7157
      %v7159 = vrcp.pop %v6886
      %v7160 = vmul.f32 1.0, %v7159
      %v7161 = vrcp.pop %v6887
      %v7162 = vmul.f32 1.0, %v7161
      %v7163 = vrcp.pop %v6888
      %v7164 = vmul.f32 1.0, %v7163
      %v7165 = vrcp.pop %v6889
      %v7166 = vmul.f32 1.0, %v7165
      %v7167 = vrcp.pop %v6890
      %v7168 = vmul.f32 1.0, %v7167
      %v7169 = vrcp.pop %v6891
      %v7170 = vmul.f32 1.0, %v7169
      %v7171 = vrcp.pop %v6892
      %v7172 = vmul.f32 1.0, %v7171
      %v7173 = vrcp.pop %v6893
      %v7174 = vmul.f32 1.0, %v7173
      %v7175 = vrcp.pop %v6894
      %v7176 = vmul.f32 1.0, %v7175
      %v7177 = vrcp.pop %v6895
      %v7178 = vmul.f32 1.0, %v7177
      %v7179 = vrcp.pop %v6896
      %v7180 = vmul.f32 1.0, %v7179
      %v7181 = vrcp.pop %v6897
      %v7182 = vmul.f32 1.0, %v7181
      %v7183 = vrcp.pop %v6898
      %v7184 = vmul.f32 1.0, %v7183
      %v7185 = vrcp.pop %v6899
      %v7186 = vmul.f32 1.0, %v7185
      %v7187 = vrcp.pop %v6900
      %v7188 = vmul.f32 1.0, %v7187
      %v7189 = vrcp.pop %v6901
      %v7190 = vmul.f32 1.0, %v7189
      %v7191 = vrcp.pop %v6902
      %v7192 = vmul.f32 1.0, %v7191
      %v7193 = vrcp.pop %v6903
      %v7194 = vmul.f32 1.0, %v7193
      %v7195 = vrcp.pop %v6904
      %v7196 = vmul.f32 1.0, %v7195
      %v7197 = vrcp.pop %v6905
      %v7198 = vmul.f32 1.0, %v7197
      %v7199 = vrcp.pop %v6906
      %v7200 = vmul.f32 1.0, %v7199
      %v7201 = vrcp.pop %v6907
      %v7202 = vmul.f32 1.0, %v7201
      %v7203 = vrcp.pop %v6908
      %v7204 = vmul.f32 1.0, %v7203
      %v7205 = vrcp.pop %v6909
      %v7206 = vmul.f32 1.0, %v7205
      %v7207 = vrcp.pop %v6910
      %v7208 = vmul.f32 1.0, %v7207
      %v7209 = vrcp.pop %v6911
      %v7210 = vmul.f32 1.0, %v7209
      %v7211 = vrcp.pop %v6912
      %v7212 = vmul.f32 1.0, %v7211
      %v7213 = vrcp.pop %v6913
      %v7214 = vmul.f32 1.0, %v7213
      %v7215 = vrcp.pop %v6914
      %v7216 = vmul.f32 1.0, %v7215
      %v7217 = vrcp.pop %v6915
      %v7218 = vmul.f32 1.0, %v7217
      %v7219 = vrcp.pop %v6916
      %v7220 = vmul.f32 1.0, %v7219
      %v7221 = vrcp.pop %v6917
      %v7222 = vmul.f32 1.0, %v7221
      %v7223 = vrcp.pop %v6918
      %v7224 = vmul.f32 1.0, %v7223
      %v7225 = vrcp.pop %v6919
      %v7226 = vmul.f32 1.0, %v7225
      %v7227 = vrcp.pop %v6920
      %v7228 = vmul.f32 1.0, %v7227
      %v7229 = vrcp.pop %v6921
      %v7230 = vmul.f32 1.0, %v7229
      %v7231 = vrcp.pop %v6922
      %v7232 = vmul.f32 1.0, %v7231
      %v7233 = vrcp.pop %v6923
      %v7234 = vmul.f32 1.0, %v7233
      %v7235 = vrcp.pop %v6924
      %v7236 = vmul.f32 1.0, %v7235
      %v7237 = vrcp.pop %v6925
      %v7238 = vmul.f32 1.0, %v7237
      %v7239 = vrcp.pop %v6926
      %v7240 = vmul.f32 1.0, %v7239
      %v7241 = vrcp.pop %v6927
      %v7242 = vmul.f32 1.0, %v7241
      %v7243 = vrcp.pop %v6928
      %v7244 = vmul.f32 1.0, %v7243
      %v7245 = vrcp.pop %v6929
      %v7246 = vmul.f32 1.0, %v7245
      %v7247 = vrcp.pop %v6930
      %v7248 = vmul.f32 1.0, %v7247
      %v7249 = vrcp.pop %v6931
      %v7250 = vmul.f32 1.0, %v7249
      %v7251 = vrcp.pop %v6932
      %v7252 = vmul.f32 1.0, %v7251
      %v7253 = vrcp.pop %v6933
      %v7254 = vmul.f32 1.0, %v7253
      %v7255 = vrcp.pop %v6934
      %v7256 = vmul.f32 1.0, %v7255
      %v7257 = vrcp.pop %v6935
      %v7258 = vmul.f32 1.0, %v7257
      %v7259 = vrcp.pop %v6936
      %v7260 = vmul.f32 1.0, %v7259
      %v7261 = vrcp.pop %v6937
      %v7262 = vmul.f32 1.0, %v7261
      %v7263 = vrcp.pop %v6938
      %v7264 = vmul.f32 1.0, %v7263
      %v7265 = vrcp.pop %v6939
      %v7266 = vmul.f32 1.0, %v7265
      %v7267 = vrcp.pop %v6940
      %v7268 = vmul.f32 1.0, %v7267
      %v7269 = vrcp.pop %v6941
      %v7270 = vmul.f32 1.0, %v7269
      %v7271 = vrcp.pop %v6942
      %v7272 = vmul.f32 1.0, %v7271
      %v7273 = vrcp.pop %v6943
      %v7274 = vmul.f32 1.0, %v7273
      %v7275 = vrcp.pop %v6944
      %v7276 = vmul.f32 1.0, %v7275
      %v7277 = vrcp.pop %v6945
      %v7278 = vmul.f32 1.0, %v7277
      %v7279 = vrcp.pop %v6946
      %v7280 = vmul.f32 1.0, %v7279
      %v7281 = vrcp.pop %v6947
      %v7282 = vmul.f32 1.0, %v7281
      %v7283 = vrcp.pop %v6948
      %v7284 = vmul.f32 1.0, %v7283
      %v7285 = vrcp.pop %v6949
      %v7286 = vmul.f32 1.0, %v7285
      %v7287 = vrcp.pop %v6950
      %v7288 = vmul.f32 1.0, %v7287
      %v7289 = vrcp.pop %v6951
      %v7290 = vmul.f32 1.0, %v7289
      %v7291 = vrcp.pop %v6952
      %v7292 = vmul.f32 1.0, %v7291
      %v7293 = vrcp.pop %v6953
      %v7294 = vmul.f32 1.0, %v7293
      %v7295 = vrcp.pop %v6954
      %v7296 = vmul.f32 1.0, %v7295
      %v7297 = vrcp.pop %v6955
      %v7298 = vmul.f32 1.0, %v7297
      %v7299 = vrcp.pop %v6956
      %v7300 = vmul.f32 1.0, %v7299
      %v7301 = vrcp.pop %v6957
      %v7302 = vmul.f32 1.0, %v7301
      %v7303 = vrcp.pop %v6958
      %v7304 = vmul.f32 1.0, %v7303
      %v7305 = vrcp.pop %v6959
      %v7306 = vmul.f32 1.0, %v7305
      %v7307 = vrcp.pop %v6960
      %v7308 = vmul.f32 1.0, %v7307
      %v7309 = vrcp.pop %v6961
      %v7310 = vmul.f32 1.0, %v7309
      %v7311 = vrcp.pop %v6962
      %v7312 = vmul.f32 1.0, %v7311
      %v7313 = vrcp.pop %v6963
      %v7314 = vmul.f32 1.0, %v7313
      %v7315 = vrcp.pop %v6964
      %v7316 = vmul.f32 1.0, %v7315
      %v7317 = vrcp.pop %v6965
      %v7318 = vmul.f32 1.0, %v7317
      %v7319 = vrcp.pop %v6966
      %v7320 = vmul.f32 1.0, %v7319
      %v7321 = vrcp.pop %v6967
      %v7322 = vmul.f32 1.0, %v7321
      %v7323 = vrcp.pop %v6968
      %v7324 = vmul.f32 1.0, %v7323
      %v7325 = vrcp.pop %v6969
      %v7326 = vmul.f32 1.0, %v7325
      %v7327 = vrcp.pop %v6970
      %v7328 = vmul.f32 1.0, %v7327
      %v7329 = vrcp.pop %v6971
      %v7330 = vmul.f32 1.0, %v7329
      %v7331 = vrcp.pop %v6972
      %v7332 = vmul.f32 1.0, %v7331
      %v7333 = vrcp.pop %v6973
      %v7334 = vmul.f32 1.0, %v7333
      %v7335 = vrcp.pop %v6974
      %v7336 = vmul.f32 1.0, %v7335
      %v7337 = vrcp.pop %v6975
      %v7338 = vmul.f32 1.0, %v7337
      %v7339 = vrcp.pop %v6976
      %v7340 = vmul.f32 1.0, %v7339
      %v7341 = vrcp.pop %v6977
      %v7342 = vmul.f32 1.0, %v7341
      %v7343 = vrcp.pop %v6978
      %v7344 = vmul.f32 1.0, %v7343
      %v7345 = vrcp.pop %v6979
      %v7346 = vmul.f32 1.0, %v7345
      %v7347 = vrcp.pop %v6980
      %v7348 = vmul.f32 1.0, %v7347
      %v7349 = vrcp.pop %v6981
      %v7350 = vmul.f32 1.0, %v7349
      %v7351 = vrcp.pop %v6982
      %v7352 = vmul.f32 1.0, %v7351
      %v7353 = vrcp.pop %v6983
      %v7354 = vmul.f32 1.0, %v7353
      %v7355 = vrcp.pop %v6984
      %v7356 = vmul.f32 1.0, %v7355
      %v7357 = vrcp.pop %v6985
      %v7358 = vmul.f32 1.0, %v7357
      %v7359 = vrcp.pop %v6986
      %v7360 = vmul.f32 1.0, %v7359
      %v7361 = vrcp.pop %v6987
      %v7362 = vmul.f32 1.0, %v7361
      %v7363 = vrcp.pop %v6988
      %v7364 = vmul.f32 1.0, %v7363
      %v7365 = vrcp.pop %v6989
      %v7366 = vmul.f32 1.0, %v7365
      %v7367 = vrcp.pop %v6990
      %v7368 = vmul.f32 1.0, %v7367
      %v7369 = vrcp.pop %v6991
      %v7370 = vmul.f32 1.0, %v7369
      %v7371 = vrcp.pop %v6992
      %v7372 = vmul.f32 1.0, %v7371
      %v7373 = vrcp.pop %v6993
      %v7374 = vmul.f32 1.0, %v7373
      %v7375 = vrcp.pop %v6994
      %v7376 = vmul.f32 1.0, %v7375
      %v7377 = vrcp.pop %v6995
      %v7378 = vmul.f32 1.0, %v7377
      %v7379 = vrcp.pop %v6996
      %v7380 = vmul.f32 1.0, %v7379
      %v7381 = vrcp.pop %v6997
      %v7382 = vmul.f32 1.0, %v7381
      %v7383 = vrcp.pop %v6998
      %v7384 = vmul.f32 1.0, %v7383
      %v7385 = vrcp.pop %v6999
      %v7386 = vmul.f32 1.0, %v7385
      %v7387 = vrcp.pop %v7000
      %v7388 = vmul.f32 1.0, %v7387
      %v7389 = vrcp.pop %v7001
      %v7390 = vmul.f32 1.0, %v7389
      %v7391 = vrcp.pop %v7002
      %v7392 = vmul.f32 1.0, %v7391
      %v7393 = vrcp.pop %v7003
      %v7394 = vmul.f32 1.0, %v7393
      %v7395 = vrcp.pop %v7004
      %v7396 = vmul.f32 1.0, %v7395
      %v7397 = vrcp.pop %v7005
      %v7398 = vmul.f32 1.0, %v7397
      %v7399 = vrcp.pop %v7006
      %v7400 = vmul.f32 1.0, %v7399
      %v7401 = vrcp.pop %v7007
      %v7402 = vmul.f32 1.0, %v7401
      %v7403 = vrcp.pop %v7008
      %v7404 = vmul.f32 1.0, %v7403
      %v7405 = vrcp.pop %v7009
      %v7406 = vmul.f32 1.0, %v7405
      %v7407 = vrcp.pop %v7010
      %v7408 = vmul.f32 1.0, %v7407
      %v7409 = vrcp.pop %v7011
      %v7410 = vmul.f32 1.0, %v7409
      %v7411 = vrcp.pop %v7012
      %v7412 = vmul.f32 1.0, %v7411
      %v7413 = vrcp.pop %v7013
      %v7414 = vmul.f32 1.0, %v7413
      %v7415 = vrcp.pop %v7014
      %v7416 = vmul.f32 1.0, %v7415
      %v7417 = vrcp.pop %v7015
      %v7418 = vmul.f32 1.0, %v7417
      %v7419 = vrcp.pop %v7016
      %v7420 = vmul.f32 1.0, %v7419
      %v7421 = vrcp.pop %v7017
      %v7422 = vmul.f32 1.0, %v7421
      %v7423 = vrcp.pop %v7018
      %v7424 = vmul.f32 1.0, %v7423
      %v7425 = vrcp.pop %v7019
      %v7426 = vmul.f32 1.0, %v7425
      %v7427 = vrcp.pop %v7020
      %v7428 = vmul.f32 1.0, %v7427
      %v7429 = vrcp.pop %v7021
      %v7430 = vmul.f32 1.0, %v7429
      %v7431 = vrcp.pop %v7022
      %v7432 = vmul.f32 1.0, %v7431
      %v7433 = vrcp.pop %v7023
      %v7434 = vmul.f32 1.0, %v7433
      %v7435 = vrcp.pop %v7024
      %v7436 = vmul.f32 1.0, %v7435
      %v7437 = vrcp.pop %v7025
      %v7438 = vmul.f32 1.0, %v7437
      %v7439 = vrcp.pop %v7026
      %v7440 = vmul.f32 1.0, %v7439
      %v7441 = vrcp.pop %v7027
      %v7442 = vmul.f32 1.0, %v7441
      %v7443 = vrcp.pop %v7028
      %v7444 = vmul.f32 1.0, %v7443
      %v7445 = vrcp.pop %v7029
      %v7446 = vmul.f32 1.0, %v7445
      %v7447 = vrcp.pop %v7030
      %v7448 = vmul.f32 1.0, %v7447
      %v7449 = vrcp.pop %v7031
      %v7450 = vmul.f32 1.0, %v7449
      %v7451 = vrcp.pop %v7032
      %v7452 = vmul.f32 1.0, %v7451
      %v7453 = vrcp.pop %v7033
      %v7454 = vmul.f32 1.0, %v7453
      %v7455 = vrcp.pop %v7034
      %v7456 = vmul.f32 1.0, %v7455
      %v7457 = vrcp.pop %v7035
      %v7458 = vmul.f32 1.0, %v7457
      %v7459 = vrcp.pop %v7036
      %v7460 = vmul.f32 1.0, %v7459
      %v7461 = vrcp.pop %v7037
      %v7462 = vmul.f32 1.0, %v7461
      %v7463 = vrcp.pop %v7038
      %v7464 = vmul.f32 1.0, %v7463
      %v7465 = vrcp.pop %v7039
      %v7466 = vmul.f32 1.0, %v7465
      %v7467 = vrcp.pop %v7040
      %v7468 = vmul.f32 1.0, %v7467
      %v7469 = vrcp.pop %v7041
      %v7470 = vmul.f32 1.0, %v7469
      %v7471 = vrcp.pop %v7042
      %v7472 = vmul.f32 1.0, %v7471
      %v7473 = vrcp.pop %v7043
      %v7474 = vmul.f32 1.0, %v7473
      %v7475 = vrcp.pop %v7044
      %v7476 = vmul.f32 1.0, %v7475
      %v7477 = vrcp.pop %v7045
      %v7478 = vmul.f32 1.0, %v7477
      %v7479 = vrcp.pop %v7046
      %v7480 = vmul.f32 1.0, %v7479
      %v7481 = vrcp.pop %v7047
      %v7482 = vmul.f32 1.0, %v7481
      %v7483 = vrcp.pop %v7048
      %v7484 = vmul.f32 1.0, %v7483
      %v7485 = vrcp.pop %v7049
      %v7486 = vmul.f32 1.0, %v7485
      %v7487 = vrcp.pop %v7050
      %v7488 = vmul.f32 1.0, %v7487
      %v7489 = vrcp.pop %v7051
      %v7490 = vmul.f32 1.0, %v7489
      %v7491 = vrcp.pop %v7052
      %v7492 = vmul.f32 1.0, %v7491
      %v7493 = vrcp.pop %v7053
      %v7494 = vmul.f32 1.0, %v7493
      %v7495 = vrcp.pop %v7054
      %v7496 = vmul.f32 1.0, %v7495
      %v7497 = vrcp.pop %v7055
      %v7498 = vmul.f32 1.0, %v7497
      %v7499 = vrcp.pop %v7056
      %v7500 = vmul.f32 1.0, %v7499
      %v7501 = vrcp.pop %v7057
      %v7502 = vmul.f32 1.0, %v7501
      %v7503 = vrcp.pop %v7058
      %v7504 = vmul.f32 1.0, %v7503
      %v7505 = vrcp.pop %v7059
      %v7506 = vmul.f32 1.0, %v7505
      %v7507 = vrcp.pop %v7060
      %v7508 = vmul.f32 1.0, %v7507
      %7541 = vrot.lane.b32.xlu0 %v3347, 2
      %v7542 = vpop.permute.xlu0 %7541
      %7543 = vrot.lane.b32.xlu0 %v3350, 2
      %v7544 = vpop.permute.xlu0 %7543
      %7545 = vrot.lane.b32.xlu0 %v3355, 2
      %v7546 = vpop.permute.xlu0 %7545
      %7547 = vrot.lane.b32.xlu0 %v3358, 2
      %v7548 = vpop.permute.xlu0 %7547
      %7549 = vrot.lane.b32.xlu0 %v3363, 2
      %v7550 = vpop.permute.xlu0 %7549
      %7551 = vrot.lane.b32.xlu0 %v3366, 2
      %v7552 = vpop.permute.xlu0 %7551
      %7553 = vrot.lane.b32.xlu0 %v3371, 2
      %v7554 = vpop.permute.xlu0 %7553
      %7555 = vrot.lane.b32.xlu0 %v3374, 2
      %v7556 = vpop.permute.xlu0 %7555
      %7557 = vrot.lane.b32.xlu0 %v3379, 2
      %v7558 = vpop.permute.xlu0 %7557
      %7559 = vrot.lane.b32.xlu0 %v3382, 2
      %v7560 = vpop.permute.xlu0 %7559
      %7561 = vrot.lane.b32.xlu0 %v3387, 2
      %v7562 = vpop.permute.xlu0 %7561
      %7563 = vrot.lane.b32.xlu0 %v3390, 2
      %v7564 = vpop.permute.xlu0 %7563
      %7565 = vrot.lane.b32.xlu0 %v3395, 2
      %v7566 = vpop.permute.xlu0 %7565
      %7567 = vrot.lane.b32.xlu0 %v3398, 2
      %v7568 = vpop.permute.xlu0 %7567
      %7569 = vrot.lane.b32.xlu0 %v3403, 2
      %v7570 = vpop.permute.xlu0 %7569
      %7571 = vrot.lane.b32.xlu0 %v3406, 2
      %v7572 = vpop.permute.xlu0 %7571
      %7573 = vrot.lane.b32.xlu0 %v3411, 2
      %v7574 = vpop.permute.xlu0 %7573
      %7575 = vrot.lane.b32.xlu0 %v3414, 2
      %v7576 = vpop.permute.xlu0 %7575
      %7577 = vrot.lane.b32.xlu0 %v3419, 2
      %v7578 = vpop.permute.xlu0 %7577
      %7579 = vrot.lane.b32.xlu0 %v3422, 2
      %v7580 = vpop.permute.xlu0 %7579
      %7581 = vrot.lane.b32.xlu0 %v3427, 2
      %v7582 = vpop.permute.xlu0 %7581
      %7583 = vrot.lane.b32.xlu0 %v3430, 2
      %v7584 = vpop.permute.xlu0 %7583
      %7585 = vrot.lane.b32.xlu0 %v3435, 2
      %v7586 = vpop.permute.xlu0 %7585
      %7587 = vrot.lane.b32.xlu0 %v3438, 2
      %v7588 = vpop.permute.xlu0 %7587
      %7589 = vrot.lane.b32.xlu0 %v3443, 2
      %v7590 = vpop.permute.xlu0 %7589
      %7591 = vrot.lane.b32.xlu0 %v3446, 2
      %v7592 = vpop.permute.xlu0 %7591
      %7593 = vrot.lane.b32.xlu0 %v3451, 2
      %v7594 = vpop.permute.xlu0 %7593
      %7595 = vrot.lane.b32.xlu0 %v3454, 2
      %v7596 = vpop.permute.xlu0 %7595
      %7597 = vrot.lane.b32.xlu0 %v3459, 2
      %v7598 = vpop.permute.xlu0 %7597
      %7599 = vrot.lane.b32.xlu0 %v3462, 2
      %v7600 = vpop.permute.xlu0 %7599
      %7601 = vrot.lane.b32.xlu0 %v3467, 2
      %v7602 = vpop.permute.xlu0 %7601
      %7603 = vrot.lane.b32.xlu0 %v3470, 2
      %v7604 = vpop.permute.xlu0 %7603
      %vm7637 = vcmask 15360
      %v7638 = vsel %vm7637, %v3761, %v7542
      %v7639 = vsel %vm7637, %v3762, %v7544
      %v7640 = vsel %vm7637, %v3763, %v7546
      %v7641 = vsel %vm7637, %v3764, %v7548
      %v7642 = vsel %vm7637, %v3765, %v7550
      %v7643 = vsel %vm7637, %v3766, %v7552
      %v7644 = vsel %vm7637, %v3767, %v7554
      %v7645 = vsel %vm7637, %v3768, %v7556
      %v7646 = vsel %vm7637, %v3769, %v7558
      %v7647 = vsel %vm7637, %v3770, %v7560
      %v7648 = vsel %vm7637, %v3771, %v7562
      %v7649 = vsel %vm7637, %v3772, %v7564
      %v7650 = vsel %vm7637, %v3773, %v7566
      %v7651 = vsel %vm7637, %v3774, %v7568
      %v7652 = vsel %vm7637, %v3775, %v7570
      %v7653 = vsel %vm7637, %v3776, %v7572
      %v7654 = vsel %vm7637, %v3777, %v7574
      %v7655 = vsel %vm7637, %v3778, %v7576
      %v7656 = vsel %vm7637, %v3779, %v7578
      %v7657 = vsel %vm7637, %v3780, %v7580
      %v7658 = vsel %vm7637, %v3781, %v7582
      %v7659 = vsel %vm7637, %v3782, %v7584
      %v7660 = vsel %vm7637, %v3783, %v7586
      %v7661 = vsel %vm7637, %v3784, %v7588
      %v7662 = vsel %vm7637, %v3785, %v7590
      %v7663 = vsel %vm7637, %v3786, %v7592
      %v7664 = vsel %vm7637, %v3787, %v7594
      %v7665 = vsel %vm7637, %v3788, %v7596
      %v7666 = vsel %vm7637, %v3789, %v7598
      %v7667 = vsel %vm7637, %v3790, %v7600
      %v7668 = vsel %vm7637, %v3791, %v7602
      %v7669 = vsel %vm7637, %v3792, %v7604
      %vm7670 = vcmask 31744
      %v7671 = vsel %vm7670, %v7638, %v7542
      %v7672 = vsel %vm7670, %v7639, %v7544
      %v7673 = vsel %vm7670, %v7640, %v7546
      %v7674 = vsel %vm7670, %v7641, %v7548
      %v7675 = vsel %vm7670, %v7642, %v7550
      %v7676 = vsel %vm7670, %v7643, %v7552
      %v7677 = vsel %vm7670, %v7644, %v7554
      %v7678 = vsel %vm7670, %v7645, %v7556
      %v7679 = vsel %vm7670, %v7646, %v7558
      %v7680 = vsel %vm7670, %v7647, %v7560
      %v7681 = vsel %vm7670, %v7648, %v7562
      %v7682 = vsel %vm7670, %v7649, %v7564
      %v7683 = vsel %vm7670, %v7650, %v7566
      %v7684 = vsel %vm7670, %v7651, %v7568
      %v7685 = vsel %vm7670, %v7652, %v7570
      %v7686 = vsel %vm7670, %v7653, %v7572
      %v7687 = vsel %vm7670, %v7654, %v7574
      %v7688 = vsel %vm7670, %v7655, %v7576
      %v7689 = vsel %vm7670, %v7656, %v7578
      %v7690 = vsel %vm7670, %v7657, %v7580
      %v7691 = vsel %vm7670, %v7658, %v7582
      %v7692 = vsel %vm7670, %v7659, %v7584
      %v7693 = vsel %vm7670, %v7660, %v7586
      %v7694 = vsel %vm7670, %v7661, %v7588
      %v7695 = vsel %vm7670, %v7662, %v7590
      %v7696 = vsel %vm7670, %v7663, %v7592
      %v7697 = vsel %vm7670, %v7664, %v7594
      %v7698 = vsel %vm7670, %v7665, %v7596
      %v7699 = vsel %vm7670, %v7666, %v7598
      %v7700 = vsel %vm7670, %v7667, %v7600
      %v7701 = vsel %vm7670, %v7668, %v7602
      %v7702 = vsel %vm7670, %v7669, %v7604
      %vm7703 = vcmask 48128
      %v7704 = vsel %vm7703, %v7671, 0.0
      %v7705 = vsel %vm7703, %v7672, 0.0
      %v7706 = vsel %vm7703, %v7673, 0.0
      %v7707 = vsel %vm7703, %v7674, 0.0
      %v7708 = vsel %vm7703, %v7675, 0.0
      %v7709 = vsel %vm7703, %v7676, 0.0
      %v7710 = vsel %vm7703, %v7677, 0.0
      %v7711 = vsel %vm7703, %v7678, 0.0
      %v7712 = vsel %vm7703, %v7679, 0.0
      %v7713 = vsel %vm7703, %v7680, 0.0
      %v7714 = vsel %vm7703, %v7681, 0.0
      %v7715 = vsel %vm7703, %v7682, 0.0
      %v7716 = vsel %vm7703, %v7683, 0.0
      %v7717 = vsel %vm7703, %v7684, 0.0
      %v7718 = vsel %vm7703, %v7685, 0.0
      %v7719 = vsel %vm7703, %v7686, 0.0
      %v7720 = vsel %vm7703, %v7687, 0.0
      %v7721 = vsel %vm7703, %v7688, 0.0
      %v7722 = vsel %vm7703, %v7689, 0.0
      %v7723 = vsel %vm7703, %v7690, 0.0
      %v7724 = vsel %vm7703, %v7691, 0.0
      %v7725 = vsel %vm7703, %v7692, 0.0
      %v7726 = vsel %vm7703, %v7693, 0.0
      %v7727 = vsel %vm7703, %v7694, 0.0
      %v7728 = vsel %vm7703, %v7695, 0.0
      %v7729 = vsel %vm7703, %v7696, 0.0
      %v7730 = vsel %vm7703, %v7697, 0.0
      %v7731 = vsel %vm7703, %v7698, 0.0
      %v7732 = vsel %vm7703, %v7699, 0.0
      %v7733 = vsel %vm7703, %v7700, 0.0
      %v7734 = vsel %vm7703, %v7701, 0.0
      %v7735 = vsel %vm7703, %v7702, 0.0
      %vm7736 = vcmask 64512
      %7737 = vst.msk [vmem:[%s638] sm:$0xff] %vm7736, %v7704
      %7738 = vst.msk [vmem:[%s638 + $0x8] sm:$0xff] %vm7736, %v7705
      %7739 = vst.msk [vmem:[%s638 + $0x10] sm:$0xff] %vm7736, %v7706
      %7740 = vst.msk [vmem:[%s638 + $0x18] sm:$0xff] %vm7736, %v7707
      %7741 = vst.msk [vmem:[%s638 + $0x20] sm:$0xff] %vm7736, %v7708
      %7742 = vst.msk [vmem:[%s638 + $0x28] sm:$0xff] %vm7736, %v7709
      %7743 = vst.msk [vmem:[%s638 + $0x30] sm:$0xff] %vm7736, %v7710
      %7744 = vst.msk [vmem:[%s638 + $0x38] sm:$0xff] %vm7736, %v7711
      %7745 = vst.msk [vmem:[%s638 + $0x40] sm:$0xff] %vm7736, %v7712
      %7746 = vst.msk [vmem:[%s638 + $0x48] sm:$0xff] %vm7736, %v7713
      %7747 = vst.msk [vmem:[%s638 + $0x50] sm:$0xff] %vm7736, %v7714
      %7748 = vst.msk [vmem:[%s638 + $0x58] sm:$0xff] %vm7736, %v7715
      %7749 = vst.msk [vmem:[%s638 + $0x60] sm:$0xff] %vm7736, %v7716
      %7750 = vst.msk [vmem:[%s638 + $0x68] sm:$0xff] %vm7736, %v7717
      %7751 = vst.msk [vmem:[%s638 + $0x70] sm:$0xff] %vm7736, %v7718
      %7752 = vst.msk [vmem:[%s638 + $0x78] sm:$0xff] %vm7736, %v7719
      %7753 = vst.msk [vmem:[%s638 + $0x80] sm:$0xff] %vm7736, %v7720
      %7754 = vst.msk [vmem:[%s638 + $0x88] sm:$0xff] %vm7736, %v7721
      %7755 = vst.msk [vmem:[%s638 + $0x90] sm:$0xff] %vm7736, %v7722
      %7756 = vst.msk [vmem:[%s638 + $0x98] sm:$0xff] %vm7736, %v7723
      %7757 = vst.msk [vmem:[%s638 + $0xa0] sm:$0xff] %vm7736, %v7724
      %7758 = vst.msk [vmem:[%s638 + $0xa8] sm:$0xff] %vm7736, %v7725
      %7759 = vst.msk [vmem:[%s638 + $0xb0] sm:$0xff] %vm7736, %v7726
      %7760 = vst.msk [vmem:[%s638 + $0xb8] sm:$0xff] %vm7736, %v7727
      %7761 = vst.msk [vmem:[%s638 + $0xc0] sm:$0xff] %vm7736, %v7728
      %7762 = vst.msk [vmem:[%s638 + $0xc8] sm:$0xff] %vm7736, %v7729
      %7763 = vst.msk [vmem:[%s638 + $0xd0] sm:$0xff] %vm7736, %v7730
      %7764 = vst.msk [vmem:[%s638 + $0xd8] sm:$0xff] %vm7736, %v7731
      %7765 = vst.msk [vmem:[%s638 + $0xe0] sm:$0xff] %vm7736, %v7732
      %7766 = vst.msk [vmem:[%s638 + $0xe8] sm:$0xff] %vm7736, %v7733
      %7767 = vst.msk [vmem:[%s638 + $0xf0] sm:$0xff] %vm7736, %v7734
      %7768 = vst.msk [vmem:[%s638 + $0xf8] sm:$0xff] %vm7736, %v7735
      %7769 = vst [vmem:[%s645] sm:$0xff] %v7062
      %7770 = vst [vmem:[%s645 + $0x8] sm:$0xff] %v7064
      %7771 = vst [vmem:[%s645 + $0x10] sm:$0xff] %v7066
      %7772 = vst [vmem:[%s645 + $0x18] sm:$0xff] %v7068
      %7773 = vst [vmem:[%s645 + $0x20] sm:$0xff] %v7070
      %7774 = vst [vmem:[%s645 + $0x28] sm:$0xff] %v7072
      %7775 = vst.msk [vmem:[%s645 + $0x30] sm:$0xff] %vm1735, %v7074
      %7776 = vst [vmem:[%s645 + $0x38] sm:$0xff] %v7076
      %7777 = vst [vmem:[%s645 + $0x40] sm:$0xff] %v7078
      %7778 = vst [vmem:[%s645 + $0x48] sm:$0xff] %v7080
      %7779 = vst [vmem:[%s645 + $0x50] sm:$0xff] %v7082
      %7780 = vst [vmem:[%s645 + $0x58] sm:$0xff] %v7084
      %7781 = vst [vmem:[%s645 + $0x60] sm:$0xff] %v7086
      %7782 = vst.msk [vmem:[%s645 + $0x68] sm:$0xff] %vm1735, %v7088
      %7783 = vst [vmem:[%s645 + $0x70] sm:$0xff] %v7090
      %7784 = vst [vmem:[%s645 + $0x78] sm:$0xff] %v7092
      %7785 = vst [vmem:[%s645 + $0x80] sm:$0xff] %v7094
      %7786 = vst [vmem:[%s645 + $0x88] sm:$0xff] %v7096
      %7787 = vst [vmem:[%s645 + $0x90] sm:$0xff] %v7098
      %7788 = vst [vmem:[%s645 + $0x98] sm:$0xff] %v7100
      %7789 = vst.msk [vmem:[%s645 + $0xa0] sm:$0xff] %vm1735, %v7102
      %7790 = vst [vmem:[%s645 + $0xa8] sm:$0xff] %v7104
      %7791 = vst [vmem:[%s645 + $0xb0] sm:$0xff] %v7106
      %7792 = vst [vmem:[%s645 + $0xb8] sm:$0xff] %v7108
      %7793 = vst [vmem:[%s645 + $0xc0] sm:$0xff] %v7110
      %7794 = vst [vmem:[%s645 + $0xc8] sm:$0xff] %v7112
      %7795 = vst [vmem:[%s645 + $0xd0] sm:$0xff] %v7114
      %7796 = vst.msk [vmem:[%s645 + $0xd8] sm:$0xff] %vm1735, %v7116
      %7797 = vst [vmem:[%s645 + $0xe0] sm:$0xff] %v7118
      %7798 = vst [vmem:[%s645 + $0xe8] sm:$0xff] %v7120
      %7799 = vst [vmem:[%s645 + $0xf0] sm:$0xff] %v7122
      %7800 = vst [vmem:[%s645 + $0xf8] sm:$0xff] %v7124
      %7801 = vst [vmem:[%s645 + $0x100] sm:$0xff] %v7126
      %7802 = vst [vmem:[%s645 + $0x108] sm:$0xff] %v7128
      %7803 = vst.msk [vmem:[%s645 + $0x110] sm:$0xff] %vm1735, %v7130
      %7804 = vst [vmem:[%s645 + $0x118] sm:$0xff] %v7132
      %7805 = vst [vmem:[%s645 + $0x120] sm:$0xff] %v7134
      %7806 = vst [vmem:[%s645 + $0x128] sm:$0xff] %v7136
      %7807 = vst [vmem:[%s645 + $0x130] sm:$0xff] %v7138
      %7808 = vst [vmem:[%s645 + $0x138] sm:$0xff] %v7140
      %7809 = vst [vmem:[%s645 + $0x140] sm:$0xff] %v7142
      %7810 = vst.msk [vmem:[%s645 + $0x148] sm:$0xff] %vm1735, %v7144
      %7811 = vst [vmem:[%s645 + $0x150] sm:$0xff] %v7146
      %7812 = vst [vmem:[%s645 + $0x158] sm:$0xff] %v7148
      %7813 = vst [vmem:[%s645 + $0x160] sm:$0xff] %v7150
      %7814 = vst [vmem:[%s645 + $0x168] sm:$0xff] %v7152
      %7815 = vst [vmem:[%s645 + $0x170] sm:$0xff] %v7154
      %7816 = vst [vmem:[%s645 + $0x178] sm:$0xff] %v7156
      %7817 = vst.msk [vmem:[%s645 + $0x180] sm:$0xff] %vm1735, %v7158
      %7818 = vst [vmem:[%s645 + $0x188] sm:$0xff] %v7160
      %7819 = vst [vmem:[%s645 + $0x190] sm:$0xff] %v7162
      %7820 = vst [vmem:[%s645 + $0x198] sm:$0xff] %v7164
      %7821 = vst [vmem:[%s645 + $0x1a0] sm:$0xff] %v7166
      %7822 = vst [vmem:[%s645 + $0x1a8] sm:$0xff] %v7168
      %7823 = vst [vmem:[%s645 + $0x1b0] sm:$0xff] %v7170
      %7824 = vst.msk [vmem:[%s645 + $0x1b8] sm:$0xff] %vm1735, %v7172
      %7825 = vst [vmem:[%s645 + $0x1c0] sm:$0xff] %v7174
      %7826 = vst [vmem:[%s645 + $0x1c8] sm:$0xff] %v7176
      %7827 = vst [vmem:[%s645 + $0x1d0] sm:$0xff] %v7178
      %7828 = vst [vmem:[%s645 + $0x1d8] sm:$0xff] %v7180
      %7829 = vst [vmem:[%s645 + $0x1e0] sm:$0xff] %v7182
      %7830 = vst [vmem:[%s645 + $0x1e8] sm:$0xff] %v7184
      %7831 = vst.msk [vmem:[%s645 + $0x1f0] sm:$0xff] %vm1735, %v7186
      %7832 = vst [vmem:[%s645 + $0x1f8] sm:$0xff] %v7188
      %7833 = vst [vmem:[%s645 + $0x200] sm:$0xff] %v7190
      %7834 = vst [vmem:[%s645 + $0x208] sm:$0xff] %v7192
      %7835 = vst [vmem:[%s645 + $0x210] sm:$0xff] %v7194
      %7836 = vst [vmem:[%s645 + $0x218] sm:$0xff] %v7196
      %7837 = vst [vmem:[%s645 + $0x220] sm:$0xff] %v7198
      %7838 = vst.msk [vmem:[%s645 + $0x228] sm:$0xff] %vm1735, %v7200
      %7839 = vst [vmem:[%s645 + $0x230] sm:$0xff] %v7202
      %7840 = vst [vmem:[%s645 + $0x238] sm:$0xff] %v7204
      %7841 = vst [vmem:[%s645 + $0x240] sm:$0xff] %v7206
      %7842 = vst [vmem:[%s645 + $0x248] sm:$0xff] %v7208
      %7843 = vst [vmem:[%s645 + $0x250] sm:$0xff] %v7210
      %7844 = vst [vmem:[%s645 + $0x258] sm:$0xff] %v7212
      %7845 = vst.msk [vmem:[%s645 + $0x260] sm:$0xff] %vm1735, %v7214
      %7846 = vst [vmem:[%s645 + $0x268] sm:$0xff] %v7216
      %7847 = vst [vmem:[%s645 + $0x270] sm:$0xff] %v7218
      %7848 = vst [vmem:[%s645 + $0x278] sm:$0xff] %v7220
      %7849 = vst [vmem:[%s645 + $0x280] sm:$0xff] %v7222
      %7850 = vst [vmem:[%s645 + $0x288] sm:$0xff] %v7224
      %7851 = vst [vmem:[%s645 + $0x290] sm:$0xff] %v7226
      %7852 = vst.msk [vmem:[%s645 + $0x298] sm:$0xff] %vm1735, %v7228
      %7853 = vst [vmem:[%s645 + $0x2a0] sm:$0xff] %v7230
      %7854 = vst [vmem:[%s645 + $0x2a8] sm:$0xff] %v7232
      %7855 = vst [vmem:[%s645 + $0x2b0] sm:$0xff] %v7234
      %7856 = vst [vmem:[%s645 + $0x2b8] sm:$0xff] %v7236
      %7857 = vst [vmem:[%s645 + $0x2c0] sm:$0xff] %v7238
      %7858 = vst [vmem:[%s645 + $0x2c8] sm:$0xff] %v7240
      %7859 = vst.msk [vmem:[%s645 + $0x2d0] sm:$0xff] %vm1735, %v7242
      %7860 = vst [vmem:[%s645 + $0x2d8] sm:$0xff] %v7244
      %7861 = vst [vmem:[%s645 + $0x2e0] sm:$0xff] %v7246
      %7862 = vst [vmem:[%s645 + $0x2e8] sm:$0xff] %v7248
      %7863 = vst [vmem:[%s645 + $0x2f0] sm:$0xff] %v7250
      %7864 = vst [vmem:[%s645 + $0x2f8] sm:$0xff] %v7252
      %7865 = vst [vmem:[%s645 + $0x300] sm:$0xff] %v7254
      %7866 = vst.msk [vmem:[%s645 + $0x308] sm:$0xff] %vm1735, %v7256
      %7867 = vst [vmem:[%s645 + $0x310] sm:$0xff] %v7258
      %7868 = vst [vmem:[%s645 + $0x318] sm:$0xff] %v7260
      %7869 = vst [vmem:[%s645 + $0x320] sm:$0xff] %v7262
      %7870 = vst [vmem:[%s645 + $0x328] sm:$0xff] %v7264
      %7871 = vst [vmem:[%s645 + $0x330] sm:$0xff] %v7266
      %7872 = vst [vmem:[%s645 + $0x338] sm:$0xff] %v7268
      %7873 = vst.msk [vmem:[%s645 + $0x340] sm:$0xff] %vm1735, %v7270
      %7874 = vst [vmem:[%s645 + $0x348] sm:$0xff] %v7272
      %7875 = vst [vmem:[%s645 + $0x350] sm:$0xff] %v7274
      %7876 = vst [vmem:[%s645 + $0x358] sm:$0xff] %v7276
      %7877 = vst [vmem:[%s645 + $0x360] sm:$0xff] %v7278
      %7878 = vst [vmem:[%s645 + $0x368] sm:$0xff] %v7280
      %7879 = vst [vmem:[%s645 + $0x370] sm:$0xff] %v7282
      %7880 = vst.msk [vmem:[%s645 + $0x378] sm:$0xff] %vm1735, %v7284
      %7881 = vst [vmem:[%s645 + $0x380] sm:$0xff] %v7286
      %7882 = vst [vmem:[%s645 + $0x388] sm:$0xff] %v7288
      %7883 = vst [vmem:[%s645 + $0x390] sm:$0xff] %v7290
      %7884 = vst [vmem:[%s645 + $0x398] sm:$0xff] %v7292
      %7885 = vst [vmem:[%s645 + $0x3a0] sm:$0xff] %v7294
      %7886 = vst [vmem:[%s645 + $0x3a8] sm:$0xff] %v7296
      %7887 = vst.msk [vmem:[%s645 + $0x3b0] sm:$0xff] %vm1735, %v7298
      %7888 = vst [vmem:[%s645 + $0x3b8] sm:$0xff] %v7300
      %7889 = vst [vmem:[%s645 + $0x3c0] sm:$0xff] %v7302
      %7890 = vst [vmem:[%s645 + $0x3c8] sm:$0xff] %v7304
      %7891 = vst [vmem:[%s645 + $0x3d0] sm:$0xff] %v7306
      %7892 = vst [vmem:[%s645 + $0x3d8] sm:$0xff] %v7308
      %7893 = vst [vmem:[%s645 + $0x3e0] sm:$0xff] %v7310
      %7894 = vst.msk [vmem:[%s645 + $0x3e8] sm:$0xff] %vm1735, %v7312
      %7895 = vst [vmem:[%s645 + $0x3f0] sm:$0xff] %v7314
      %7896 = vst [vmem:[%s645 + $0x3f8] sm:$0xff] %v7316
      %7897 = vst [vmem:[%s645 + $0x400] sm:$0xff] %v7318
      %7898 = vst [vmem:[%s645 + $0x408] sm:$0xff] %v7320
      %7899 = vst [vmem:[%s645 + $0x410] sm:$0xff] %v7322
      %7900 = vst [vmem:[%s645 + $0x418] sm:$0xff] %v7324
      %7901 = vst.msk [vmem:[%s645 + $0x420] sm:$0xff] %vm1735, %v7326
      %7902 = vst [vmem:[%s645 + $0x428] sm:$0xff] %v7328
      %7903 = vst [vmem:[%s645 + $0x430] sm:$0xff] %v7330
      %7904 = vst [vmem:[%s645 + $0x438] sm:$0xff] %v7332
      %7905 = vst [vmem:[%s645 + $0x440] sm:$0xff] %v7334
      %7906 = vst [vmem:[%s645 + $0x448] sm:$0xff] %v7336
      %7907 = vst [vmem:[%s645 + $0x450] sm:$0xff] %v7338
      %7908 = vst.msk [vmem:[%s645 + $0x458] sm:$0xff] %vm1735, %v7340
      %7909 = vst [vmem:[%s645 + $0x460] sm:$0xff] %v7342
      %7910 = vst [vmem:[%s645 + $0x468] sm:$0xff] %v7344
      %7911 = vst [vmem:[%s645 + $0x470] sm:$0xff] %v7346
      %7912 = vst [vmem:[%s645 + $0x478] sm:$0xff] %v7348
      %7913 = vst [vmem:[%s645 + $0x480] sm:$0xff] %v7350
      %7914 = vst [vmem:[%s645 + $0x488] sm:$0xff] %v7352
      %7915 = vst.msk [vmem:[%s645 + $0x490] sm:$0xff] %vm1735, %v7354
      %7916 = vst [vmem:[%s645 + $0x498] sm:$0xff] %v7356
      %7917 = vst [vmem:[%s645 + $0x4a0] sm:$0xff] %v7358
      %7918 = vst [vmem:[%s645 + $0x4a8] sm:$0xff] %v7360
      %7919 = vst [vmem:[%s645 + $0x4b0] sm:$0xff] %v7362
      %7920 = vst [vmem:[%s645 + $0x4b8] sm:$0xff] %v7364
      %7921 = vst [vmem:[%s645 + $0x4c0] sm:$0xff] %v7366
      %7922 = vst.msk [vmem:[%s645 + $0x4c8] sm:$0xff] %vm1735, %v7368
      %7923 = vst [vmem:[%s645 + $0x4d0] sm:$0xff] %v7370
      %7924 = vst [vmem:[%s645 + $0x4d8] sm:$0xff] %v7372
      %7925 = vst [vmem:[%s645 + $0x4e0] sm:$0xff] %v7374
      %7926 = vst [vmem:[%s645 + $0x4e8] sm:$0xff] %v7376
      %7927 = vst [vmem:[%s645 + $0x4f0] sm:$0xff] %v7378
      %7928 = vst [vmem:[%s645 + $0x4f8] sm:$0xff] %v7380
      %7929 = vst.msk [vmem:[%s645 + $0x500] sm:$0xff] %vm1735, %v7382
      %7930 = vst [vmem:[%s645 + $0x508] sm:$0xff] %v7384
      %7931 = vst [vmem:[%s645 + $0x510] sm:$0xff] %v7386
      %7932 = vst [vmem:[%s645 + $0x518] sm:$0xff] %v7388
      %7933 = vst [vmem:[%s645 + $0x520] sm:$0xff] %v7390
      %7934 = vst [vmem:[%s645 + $0x528] sm:$0xff] %v7392
      %7935 = vst [vmem:[%s645 + $0x530] sm:$0xff] %v7394
      %7936 = vst.msk [vmem:[%s645 + $0x538] sm:$0xff] %vm1735, %v7396
      %7937 = vst [vmem:[%s645 + $0x540] sm:$0xff] %v7398
      %7938 = vst [vmem:[%s645 + $0x548] sm:$0xff] %v7400
      %7939 = vst [vmem:[%s645 + $0x550] sm:$0xff] %v7402
      %7940 = vst [vmem:[%s645 + $0x558] sm:$0xff] %v7404
      %7941 = vst [vmem:[%s645 + $0x560] sm:$0xff] %v7406
      %7942 = vst [vmem:[%s645 + $0x568] sm:$0xff] %v7408
      %7943 = vst.msk [vmem:[%s645 + $0x570] sm:$0xff] %vm1735, %v7410
      %7944 = vst [vmem:[%s645 + $0x578] sm:$0xff] %v7412
      %7945 = vst [vmem:[%s645 + $0x580] sm:$0xff] %v7414
      %7946 = vst [vmem:[%s645 + $0x588] sm:$0xff] %v7416
      %7947 = vst [vmem:[%s645 + $0x590] sm:$0xff] %v7418
      %7948 = vst [vmem:[%s645 + $0x598] sm:$0xff] %v7420
      %7949 = vst [vmem:[%s645 + $0x5a0] sm:$0xff] %v7422
      %7950 = vst.msk [vmem:[%s645 + $0x5a8] sm:$0xff] %vm1735, %v7424
      %7951 = vst [vmem:[%s645 + $0x5b0] sm:$0xff] %v7426
      %7952 = vst [vmem:[%s645 + $0x5b8] sm:$0xff] %v7428
      %7953 = vst [vmem:[%s645 + $0x5c0] sm:$0xff] %v7430
      %7954 = vst [vmem:[%s645 + $0x5c8] sm:$0xff] %v7432
      %7955 = vst [vmem:[%s645 + $0x5d0] sm:$0xff] %v7434
      %7956 = vst [vmem:[%s645 + $0x5d8] sm:$0xff] %v7436
      %7957 = vst.msk [vmem:[%s645 + $0x5e0] sm:$0xff] %vm1735, %v7438
      %7958 = vst [vmem:[%s645 + $0x5e8] sm:$0xff] %v7440
      %7959 = vst [vmem:[%s645 + $0x5f0] sm:$0xff] %v7442
      %7960 = vst [vmem:[%s645 + $0x5f8] sm:$0xff] %v7444
      %7961 = vst [vmem:[%s645 + $0x600] sm:$0xff] %v7446
      %7962 = vst [vmem:[%s645 + $0x608] sm:$0xff] %v7448
      %7963 = vst [vmem:[%s645 + $0x610] sm:$0xff] %v7450
      %7964 = vst.msk [vmem:[%s645 + $0x618] sm:$0xff] %vm1735, %v7452
      %7965 = vst [vmem:[%s645 + $0x620] sm:$0xff] %v7454
      %7966 = vst [vmem:[%s645 + $0x628] sm:$0xff] %v7456
      %7967 = vst [vmem:[%s645 + $0x630] sm:$0xff] %v7458
      %7968 = vst [vmem:[%s645 + $0x638] sm:$0xff] %v7460
      %7969 = vst [vmem:[%s645 + $0x640] sm:$0xff] %v7462
      %7970 = vst [vmem:[%s645 + $0x648] sm:$0xff] %v7464
      %7971 = vst.msk [vmem:[%s645 + $0x650] sm:$0xff] %vm1735, %v7466
      %7972 = vst [vmem:[%s645 + $0x658] sm:$0xff] %v7468
      %7973 = vst [vmem:[%s645 + $0x660] sm:$0xff] %v7470
      %7974 = vst [vmem:[%s645 + $0x668] sm:$0xff] %v7472
      %7975 = vst [vmem:[%s645 + $0x670] sm:$0xff] %v7474
      %7976 = vst [vmem:[%s645 + $0x678] sm:$0xff] %v7476
      %7977 = vst [vmem:[%s645 + $0x680] sm:$0xff] %v7478
      %7978 = vst.msk [vmem:[%s645 + $0x688] sm:$0xff] %vm1735, %v7480
      %7979 = vst [vmem:[%s645 + $0x690] sm:$0xff] %v7482
      %7980 = vst [vmem:[%s645 + $0x698] sm:$0xff] %v7484
      %7981 = vst [vmem:[%s645 + $0x6a0] sm:$0xff] %v7486
      %7982 = vst [vmem:[%s645 + $0x6a8] sm:$0xff] %v7488
      %7983 = vst [vmem:[%s645 + $0x6b0] sm:$0xff] %v7490
      %7984 = vst [vmem:[%s645 + $0x6b8] sm:$0xff] %v7492
      %7985 = vst.msk [vmem:[%s645 + $0x6c0] sm:$0xff] %vm1735, %v7494
      %7986 = vst [vmem:[%s645 + $0x6c8] sm:$0xff] %v7496
      %7987 = vst [vmem:[%s645 + $0x6d0] sm:$0xff] %v7498
      %7988 = vst [vmem:[%s645 + $0x6d8] sm:$0xff] %v7500
      %7989 = vst [vmem:[%s645 + $0x6e0] sm:$0xff] %v7502
      %7990 = vst [vmem:[%s645 + $0x6e8] sm:$0xff] %v7504
      %7991 = vst [vmem:[%s645 + $0x6f0] sm:$0xff] %v7506
      %7992 = vst.msk [vmem:[%s645 + $0x6f8] sm:$0xff] %vm1735, %v7508
      %s7993 = smul.u32 32, %s31
      %p7994 = scmp.lt.s32.totalorder %s7993, 63
      %s7995 = scalar_select %p7994, %s7993, 63
      %s7996 = smul.addr %s7995, 8
      %s7997 = scalar_lea.vmem %s18, %s7996
      %s7998 = smul.u32 32, %s31
      %p7999 = scmp.lt.s32.totalorder %s7998, 63
      %s8000 = scalar_select %p7999, %s7998, 63
      %s8001 = smul.addr %s8000, 7
      %s8002 = smul.addr %s8001, 8
      %s8003 = scalar_lea.vmem %s19, %s8002
      // Predicated region
      $region93: #{tpu_custom_call.1} parent=91 // pred_check
        %p8004 = pneg %p437
      $region94: #{tpu_custom_call.1} parent=91 // pred_check_branch
        %8006 = sbr.rel (%p8004) target = $region96
      $region95: #{tpu_custom_call.1} parent=91 // pred_region
        %s8007 = smul.u32 32, %s31
      $region96: #{tpu_custom_call.1} parent=91 // pred_fallthru
        _
      // Predicated region
      $region97: #{tpu_custom_call.1} parent=91 // pred_check
        %p8008 = pneg %p463
      $region98: #{tpu_custom_call.1} parent=91 // pred_check_branch
        %8010 = sbr.rel (%p8008) target = $region100
      $region99: #{tpu_custom_call.1} parent=91 // pred_region
        %s8011 = smul.u32 32, %s31
      $region100: #{tpu_custom_call.1} parent=91 // pred_fallthru
        _
    $region92: #{tpu_custom_call.1} parent=5 // pred_fallthru
      _
    %p8012 = scmp.le.s32.totalorder 2, %s26
    // Predicated region
    $region101: #{tpu_custom_call.1} parent=5 // pred_check
      %p8013 = pneg %p8012
    $region102: #{tpu_custom_call.1} parent=5 // pred_check_branch
      %8015 = sbr.rel (%p8013) target = $region104
    $region103: #{tpu_custom_call.1} parent=5 // pred_region
      %s8016 = ssub.s32 %s26, 2
      // Predicated region
      $region105: #{tpu_custom_call.1} parent=103 // pred_check
        %p8017 = pneg %p443
      $region106: #{tpu_custom_call.1} parent=103 // pred_check_branch
        %8019 = sbr.rel (%p8017) target = $region108
      $region107: #{tpu_custom_call.1} parent=103 // pred_region
        %s8020 = smul.u32 32, %s32
        %p8021 = scmp.lt.s32.totalorder %s8020, 63
        %s8022 = scalar_select %p8021, %s8020, 63
        %s8023 = smul.addr %s8022, 8
        %s8024 = scalar_lea.vmem %s18, %s8023
      $region108: #{tpu_custom_call.1} parent=103 // pred_fallthru
        _
      // Predicated region
      $region109: #{tpu_custom_call.1} parent=103 // pred_check
        %p8025 = pneg %p469
      $region110: #{tpu_custom_call.1} parent=103 // pred_check_branch
        %8027 = sbr.rel (%p8025) target = $region112
      $region111: #{tpu_custom_call.1} parent=103 // pred_region
        %s8028 = smul.u32 32, %s32
        %p8029 = scmp.lt.s32.totalorder %s8028, 63
        %s8030 = scalar_select %p8029, %s8028, 63
        %s8031 = smul.addr %s8030, 7
        %s8032 = smul.addr %s8031, 8
        %s8033 = scalar_lea.vmem %s19, %s8032
      $region112: #{tpu_custom_call.1} parent=103 // pred_fallthru
        _
    $region104: #{tpu_custom_call.1} parent=5 // pred_fallthru
      _
  $region6: #{tpu_custom_call.1} parent=0 // loop_footer
    %s30 = sadd.s32 1, %s26
  $region7: #{tpu_custom_call.1} parent=0 // loop_footer_branch
    %25 = sbr.rel target = $region3
  $region8: #{tpu_custom_call.1} parent=0 // loop_exit
    _

</llo_original>
